<compile_context>
chip_gen: v5e
topology: v5e:2x2
jax: 0.10.0
libtpu: 0.0.40
codegen_flags: <defaults>
</compile_context>

<pallas_src>
import functools

import jax
import jax.numpy as jnp
from jax import lax
from jax.experimental import pallas as pl
from jax.experimental.pallas import tpu as pltpu


# ----------------------------------------------------------------------------
# Fused kernel: linear_in -> seq_in x (RK4 GAT ODE -> gate -> LN) -> output MLP
# Processes a batch-chunk of size Bc per grid step.
# ----------------------------------------------------------------------------
def _encoder_kernel(x_ref, bias_ref, w_in_ref, b_in_ref, wg_aug_ref,
                    w_W_ref, w_U_ref, b_gate_ref, w_o1_ref, b_o1_ref,
                    w_o2_ref, b_o2_ref, o_ref, *, Bc, S, N, H, nsteps, dt):
    Din = x_ref.shape[-1]

    # ---- weights / constants read & hoisted ONCE (outside every loop) -------
    attn_bias = bias_ref[...][None, :, :]                     # (1, N, N) additive
    wg_aug = wg_aug_ref[...]                                  # (H, H+2) bf16
    w_W = w_W_ref[...]                                        # (H, H)
    w_U = w_U_ref[...]                                        # (H, H)
    b_gate = jnp.broadcast_to(b_gate_ref[...], (Bc * N, H))   # hoisted broadcast

    # ---- linear_in as ONE (S*Bc*N, Din) @ (Din, H) matmul --------------------
    x = x_ref[...].astype(jnp.float32)                        # (S, Bc, N, Din)
    h_in = (jnp.dot(x.reshape(S * Bc * N, Din), w_in_ref[...],
                    preferred_element_type=jnp.float32) + b_in_ref[...])
    h_in = h_in.reshape(S, Bc, N, H)

    def gat(h):  # h: (Bc, N, H) -> dh/dt (single-head GAT dynamics)
        # One bf16 MXU push yields wh AND both attention score vectors
        # (a_src / a_dst folded into the projection's last two columns).
        wh_aug = jnp.dot(h.reshape(Bc * N, H).astype(jnp.bfloat16), wg_aug,
                         preferred_element_type=jnp.float32)
        wh_aug = wh_aug.reshape(Bc, N, H + 2)
        wh = wh_aug[..., :H]                                  # (Bc, N, H)  f32
        s_src = wh_aug[..., H:H + 1]                          # (Bc, N, 1)
        s_dst = wh_aug[..., H + 1]                            # (Bc, N)
        e = s_src + s_dst[:, None, :]                         # (Bc, N, N)
        e = jnp.maximum(e, 0.2 * e)                           # LeakyReLU(0.2)
        e = e + attn_bias                                     # additive mask
        m = jnp.max(e, axis=-1, keepdims=True)
        p = jnp.exp(e - m)
        alpha = p / jnp.sum(p, axis=-1, keepdims=True)        # exact softmax
        out = jnp.einsum("bij,bjh->bih", alpha.astype(jnp.bfloat16),
                         wh.astype(jnp.bfloat16),
                         preferred_element_type=jnp.float32)
        return jnp.tanh(out)

    def rk4_step(_, h):  # classic RK4; state accumulation stays in f32
        k1 = gat(h)
        k2 = gat(h + (0.5 * dt) * k1)
        k3 = gat(h + (0.5 * dt) * k2)
        k4 = gat(h + dt * k3)
        return h + (dt / 6.0) * (k1 + 2.0 * k2 + 2.0 * k3 + k4)

    def layernorm(h2):  # last-dim LN, elementwise_affine=False, eps=1e-5
        mean = jnp.mean(h2, axis=-1, keepdims=True)
        var = jnp.mean((h2 - mean) ** 2, axis=-1, keepdims=True)  # biased (PyTorch)
        return (h2 - mean) * lax.rsqrt(var + 1e-5)

    ret = h_in[0]                                             # (Bc, N, H)
    for idx in range(S):  # seq_in is tiny; gate presence is static per idx
        # nsteps is small & static: unroll so adjacent RK4 stages interleave.
        ret = lax.fori_loop(0, nsteps, rk4_step, ret, unroll=True)
        if idx != 0:
            g = (jnp.dot(ret.reshape(Bc * N, H), w_W,
                         preferred_element_type=jnp.float32)
                 + jnp.dot(h_in[idx].reshape(Bc * N, H), w_U,
                           preferred_element_type=jnp.float32)
                 + b_gate)
            ret = jnp.tanh(g).reshape(Bc, N, H)
        ret = layernorm(ret.reshape(Bc * N, H)).reshape(Bc, N, H)

    # ---- output layer: Linear -> Tanh -> Linear (still inside the kernel) ----
    flat = ret.reshape(Bc * N, H)
    y = jnp.tanh(jnp.dot(flat, w_o1_ref[...],
                         preferred_element_type=jnp.float32) + b_o1_ref[...])
    y = jnp.dot(y, w_o2_ref[...], preferred_element_type=jnp.float32) + b_o2_ref[...]
    o_ref[...] = y.reshape(Bc, N, H).astype(o_ref.dtype)


def _multi_tensorcore_chip():
    """Best-effort detection of multi-TensorCore chips (v7x)."""
    try:
        kind = jax.devices()[0].device_kind.lower()
    except Exception:
        return False
    return ("v7" in kind) or ("7x" in kind)


def encoder_forward(inputs, adj, params, args):
    B, S, N, Din = inputs.shape
    H = args["hidden_dim"]
    assert B == args["batch_size"] and S == args["seq_in"] and N == args["num_node"]
    nsteps = int(args["encoder_interval"])
    dt = float(args["encoder_scale"]) / nsteps   # T = linspace(0,1,K+1)*scale

    # ---- static layout plumbing, done once OUTSIDE the kernel ---------------
    x_t = jnp.transpose(inputs, (1, 0, 2, 3))                 # (S, B, N, Din)
    attn_bias = jnp.where(adj > 0.0, 0.0, -1e9).astype(jnp.float32)  # (N, N)
    w_in_t = jnp.transpose(params["w_in"])                    # (Din, H)
    wg_t = jnp.transpose(params["w_gat"])                     # (H, H)
    # Fold a_src / a_dst into the projection: columns [0:H]=Wg, H=Wg·a_srcᵀ,
    # H+1=Wg·a_dstᵀ.  bf16 weights for the MXU (f32 accumulation in-kernel).
    wg_aug = jnp.concatenate(
        [wg_t,
         wg_t @ jnp.transpose(params["a_src"]),
         wg_t @ jnp.transpose(params["a_dst"])], axis=1).astype(jnp.bfloat16)
    w_W_t = jnp.transpose(params["w_W"])                      # (H, H)
    w_U_t = jnp.transpose(params["w_U"])                      # (H, H)
    b_gate = params["b_W"] + params["b_U"]                    # (1, H)
    w_o1_t = jnp.transpose(params["w_o1"])                    # (H, H)
    w_o2_t = jnp.transpose(params["w_o2"])                    # (H, H)

    # Batch elements are independent: shard them across TensorCores on v7x.
    # On 1-TC chips a single-step grid == the gridless single invocation.
    Bc = 1 if (_multi_tensorcore_chip() and B > 1) else B
    grid = (B // Bc,)

    def const_spec(a):
        return pl.BlockSpec(a.shape, lambda b, _nd=a.ndim: (0,) * _nd)

    in_specs = [
        pl.BlockSpec((S, Bc, N, Din), lambda b: (0, b, 0, 0)),   # x (batch-chunked)
        const_spec(attn_bias), const_spec(w_in_t), const_spec(params["b_in"]),
        const_spec(wg_aug), const_spec(w_W_t), const_spec(w_U_t),
        const_spec(b_gate), const_spec(w_o1_t), const_spec(params["b_o1"]),
        const_spec(w_o2_t), const_spec(params["b_o2"]),
    ]
    out_spec = pl.BlockSpec((Bc, N, H), lambda b: (b, 0, 0))

    kernel = functools.partial(_encoder_kernel, Bc=Bc, S=S, N=N, H=H,
                               nsteps=nsteps, dt=dt)
    # Whole problem (state + weights) is well under 1 MiB -> fits the scoped
    # VMEM default on every generation (incl. v7x).  For production B*N, add a
    # row grid and re-derive tiles against v7x's 64 MiB VMEM (vmem_limit_bytes).
    out = pl.pallas_call(
        kernel,
        out_shape=jax.ShapeDtypeStruct((B, N, H), jnp.float32),
        grid=grid,
        in_specs=in_specs,
        out_specs=out_spec,
        compiler_params=pltpu.CompilerParams(
            dimension_semantics=("parallel",)),
    )(x_t, attn_bias, w_in_t, params["b_in"], wg_aug, w_W_t, w_U_t, b_gate,
      w_o1_t, params["b_o1"], w_o2_t, params["b_o2"])

    # matches PyTorch: view(B,N,H).unsqueeze(0).transpose(0,1) -> (B,1,N,H)
    return out[:, None, :, :]


# ----------------------------------------------------------------------------
# Deterministic parameter / input construction and smoke test.
# ----------------------------------------------------------------------------
def make_params(key, in_dim, hidden):
    ks = jax.random.split(key, 12)
    s = 0.1
    return {
        "w_in": s * jax.random.normal(ks[0], (hidden, in_dim), jnp.float32),
        "b_in": s * jax.random.normal(ks[1], (1, hidden), jnp.float32),
        "w_gat": s * jax.random.normal(ks[2], (hidden, hidden), jnp.float32),
        "a_src": s * jax.random.normal(ks[3], (1, hidden), jnp.float32),
        "a_dst": s * jax.random.normal(ks[4], (1, hidden), jnp.float32),
        "w_W": s * jax.random.normal(ks[5], (hidden, hidden), jnp.float32),
        "b_W": s * jax.random.normal(ks[6], (1, hidden), jnp.float32),
        "w_U": s * jax.random.normal(ks[7], (hidden, hidden), jnp.float32),
        "b_U": s * jax.random.normal(ks[8], (1, hidden), jnp.float32),
        "w_o1": s * jax.random.normal(ks[9], (hidden, hidden), jnp.float32),
        "b_o1": s * jax.random.normal(ks[10], (1, hidden), jnp.float32),
        "w_o2": s * jax.random.normal(ks[11], (hidden, hidden), jnp.float32),
        "b_o2": jnp.zeros((1, hidden), jnp.float32),
    }


if __name__ == "__main__":
    args = dict(
        batch_size=2, seq_in=3, num_node=8, in_dim=4, hidden_dim=32,
        encoder_interval=4, encoder_scale=1.0,
    )
    key = jax.random.PRNGKey(0)
    k_in, k_adj, k_par = jax.random.split(key, 3)

    inputs = jax.random.normal(
        k_in, (args["batch_size"], args["seq_in"], args["num_node"],
               args["in_dim"]), jnp.float32)

    # random symmetric adjacency with guaranteed self-loops
    a = (jax.random.uniform(k_adj, (args["num_node"], args["num_node"])) > 0.5)
    adj = jnp.asarray(a | a.T, jnp.float32)
    adj = jnp.maximum(adj, jnp.eye(args["num_node"], dtype=jnp.float32))

    params = make_params(k_par, args["in_dim"], args["hidden_dim"])

    out = encoder_forward(inputs, adj, params, args)
    out = jax.block_until_ready(out)
    assert out.shape == (args["batch_size"], 1, args["num_node"],
                         args["hidden_dim"])
    assert bool(jnp.all(jnp.isfinite(out)))
    print("KERNEL_OK")
</pallas_src>

<mosaic_0001>
module attributes {stable_mosaic.version = 11 : i64} {
  func.func @_encoder_kernel(%arg0: i32, %arg1: memref<3x2x8x4xf32, #tpu.memory_space<vmem>>, %arg2: memref<8x8xf32, #tpu.memory_space<vmem>>, %arg3: memref<4x32xf32, #tpu.memory_space<vmem>>, %arg4: memref<1x32xf32, #tpu.memory_space<vmem>>, %arg5: memref<32x34xbf16, #tpu.memory_space<vmem>>, %arg6: memref<32x32xf32, #tpu.memory_space<vmem>>, %arg7: memref<32x32xf32, #tpu.memory_space<vmem>>, %arg8: memref<1x32xf32, #tpu.memory_space<vmem>>, %arg9: memref<32x32xf32, #tpu.memory_space<vmem>>, %arg10: memref<1x32xf32, #tpu.memory_space<vmem>>, %arg11: memref<32x32xf32, #tpu.memory_space<vmem>>, %arg12: memref<1x32xf32, #tpu.memory_space<vmem>>, %arg13: memref<2x8x32xf32, #tpu.memory_space<vmem>>) attributes {dimension_semantics = [#tpu.dimension_semantics<parallel>], iteration_bounds = array<i64: 1>, scalar_prefetch = 0 : i64, scratch_operands = 0 : i64, tpu.core_type = #tpu.core_type<tc>, window_params = [{transform_indices = @transform_0, window_bounds = array<i64: 3, 2, 8, 4>}, {pipeline_mode = #tpu.pipeline_mode<synchronous>, transform_indices = @transform_1, window_bounds = array<i64: 8, 8>}, {pipeline_mode = #tpu.pipeline_mode<synchronous>, transform_indices = @transform_2, window_bounds = array<i64: 4, 32>}, {pipeline_mode = #tpu.pipeline_mode<synchronous>, transform_indices = @transform_3, window_bounds = array<i64: 1, 32>}, {pipeline_mode = #tpu.pipeline_mode<synchronous>, transform_indices = @transform_4, window_bounds = array<i64: 32, 34>}, {pipeline_mode = #tpu.pipeline_mode<synchronous>, transform_indices = @transform_5, window_bounds = array<i64: 32, 32>}, {pipeline_mode = #tpu.pipeline_mode<synchronous>, transform_indices = @transform_6, window_bounds = array<i64: 32, 32>}, {pipeline_mode = #tpu.pipeline_mode<synchronous>, transform_indices = @transform_7, window_bounds = array<i64: 1, 32>}, {pipeline_mode = #tpu.pipeline_mode<synchronous>, transform_indices = @transform_8, window_bounds = array<i64: 32, 32>}, {pipeline_mode = #tpu.pipeline_mode<synchronous>, transform_indices = @transform_9, window_bounds = array<i64: 1, 32>}, {pipeline_mode = #tpu.pipeline_mode<synchronous>, transform_indices = @transform_10, window_bounds = array<i64: 32, 32>}, {pipeline_mode = #tpu.pipeline_mode<synchronous>, transform_indices = @transform_11, window_bounds = array<i64: 1, 32>}, {transform_indices = @transform_12, window_bounds = array<i64: 2, 8, 32>}]} {
    %c0 = arith.constant 0 : index
    %c0_0 = arith.constant 0 : index
    %0 = vector.load %arg2[%c0, %c0_0] : memref<8x8xf32, #tpu.memory_space<vmem>>, vector<8x8xf32>
    %1 = vector.shape_cast %0 : vector<8x8xf32> to vector<1x8x8xf32>
    %c0_1 = arith.constant 0 : index
    %c0_2 = arith.constant 0 : index
    %2 = vector.load %arg5[%c0_1, %c0_2] : memref<32x34xbf16, #tpu.memory_space<vmem>>, vector<32x34xbf16>
    %c0_3 = arith.constant 0 : index
    %c0_4 = arith.constant 0 : index
    %3 = vector.load %arg6[%c0_3, %c0_4] : memref<32x32xf32, #tpu.memory_space<vmem>>, vector<32x32xf32>
    %c0_5 = arith.constant 0 : index
    %c0_6 = arith.constant 0 : index
    %4 = vector.load %arg7[%c0_5, %c0_6] : memref<32x32xf32, #tpu.memory_space<vmem>>, vector<32x32xf32>
    %c0_7 = arith.constant 0 : index
    %c0_8 = arith.constant 0 : index
    %5 = vector.load %arg8[%c0_7, %c0_8] : memref<1x32xf32, #tpu.memory_space<vmem>>, vector<1x32xf32>
    %6 = vector.shape_cast %5 : vector<1x32xf32> to vector<1x32xf32>
    %7 = vector.broadcast %6 : vector<1x32xf32> to vector<16x32xf32>
    %c0_9 = arith.constant 0 : index
    %c0_10 = arith.constant 0 : index
    %c0_11 = arith.constant 0 : index
    %c0_12 = arith.constant 0 : index
    %8 = vector.load %arg1[%c0_9, %c0_10, %c0_11, %c0_12] : memref<3x2x8x4xf32, #tpu.memory_space<vmem>>, vector<3x2x8x4xf32>
    %9 = vector.shape_cast %8 : vector<3x2x8x4xf32> to vector<48x4xf32>
    %c0_13 = arith.constant 0 : index
    %c0_14 = arith.constant 0 : index
    %10 = vector.load %arg3[%c0_13, %c0_14] : memref<4x32xf32, #tpu.memory_space<vmem>>, vector<4x32xf32>
    %cst = arith.constant dense<0.000000e+00> : vector<48x32xf32>
    %11 = tpu.matmul %9, %10, %cst {dimension_numbers = #tpu.dot_dimension_numbers<[1], [0], [0], [1], [0, 0, 1, 1], [], []>} : vector<48x4xf32>, vector<4x32xf32>, vector<48x32xf32> -> vector<48x32xf32>
    %c0_15 = arith.constant 0 : index
    %c0_16 = arith.constant 0 : index
    %12 = vector.load %arg4[%c0_15, %c0_16] : memref<1x32xf32, #tpu.memory_space<vmem>>, vector<1x32xf32>
    %13 = vector.broadcast %12 : vector<1x32xf32> to vector<48x32xf32>
    %14 = arith.addf %11, %13 : vector<48x32xf32>
    %15 = vector.shape_cast %14 : vector<48x32xf32> to vector<3x2x8x32xf32>
    %16 = vector.extract_strided_slice %15 {offsets = [0, 0, 0, 0], sizes = [1, 2, 8, 32], strides = [1, 1, 1, 1]} : vector<3x2x8x32xf32> to vector<1x2x8x32xf32>
    %17 = vector.shape_cast %16 : vector<1x2x8x32xf32> to vector<2x8x32xf32>
    %c0_i32 = arith.constant 0 : i32
    %18 = vector.shape_cast %17 : vector<2x8x32xf32> to vector<16x32xf32>
    %19 = arith.truncf %18 : vector<16x32xf32> to vector<16x32xbf16>
    %cst_17 = arith.constant dense<0.000000e+00> : vector<16x34xf32>
    %20 = tpu.matmul %19, %2, %cst_17 {dimension_numbers = #tpu.dot_dimension_numbers<[1], [0], [0], [1], [0, 0, 1, 1], [], []>} : vector<16x32xbf16>, vector<32x34xbf16>, vector<16x34xf32> -> vector<16x34xf32>
    %21 = vector.shape_cast %20 : vector<16x34xf32> to vector<2x8x34xf32>
    %22 = vector.extract_strided_slice %21 {offsets = [0, 0, 0], sizes = [2, 8, 32], strides = [1, 1, 1]} : vector<2x8x34xf32> to vector<2x8x32xf32>
    %23 = vector.extract_strided_slice %21 {offsets = [0, 0, 32], sizes = [2, 8, 1], strides = [1, 1, 1]} : vector<2x8x34xf32> to vector<2x8x1xf32>
    %24 = vector.extract_strided_slice %21 {offsets = [0, 0, 33], sizes = [2, 8, 1], strides = [1, 1, 1]} : vector<2x8x34xf32> to vector<2x8x1xf32>
    %25 = vector.shape_cast %24 : vector<2x8x1xf32> to vector<2x8xf32>
    %26 = vector.shape_cast %25 : vector<2x8xf32> to vector<2x1x8xf32>
    %27 = vector.broadcast %23 : vector<2x8x1xf32> to vector<2x8x8xf32>
    %28 = vector.broadcast %26 : vector<2x1x8xf32> to vector<2x8x8xf32>
    %29 = arith.addf %27, %28 : vector<2x8x8xf32>
    %cst_18 = arith.constant 2.000000e-01 : f32
    %30 = vector.broadcast %cst_18 : f32 to vector<2x8x8xf32>
    %31 = arith.mulf %30, %29 : vector<2x8x8xf32>
    %32 = arith.maximumf %29, %31 : vector<2x8x8xf32>
    %33 = vector.broadcast %1 : vector<1x8x8xf32> to vector<2x8x8xf32>
    %34 = arith.addf %32, %33 : vector<2x8x8xf32>
    %cst_19 = arith.constant dense<0xFF800000> : vector<2x8xf32>
    %35 = vector.multi_reduction <maximumf>, %34, %cst_19 [2] : vector<2x8x8xf32> to vector<2x8xf32>
    %36 = vector.shape_cast %35 : vector<2x8xf32> to vector<2x8x1xf32>
    %37 = vector.broadcast %36 : vector<2x8x1xf32> to vector<2x8x8xf32>
    %38 = arith.subf %34, %37 : vector<2x8x8xf32>
    %39 = math.exp %38 : vector<2x8x8xf32>
    %cst_20 = arith.constant dense<0.000000e+00> : vector<2x8xf32>
    %40 = vector.multi_reduction <add>, %39, %cst_20 [2] : vector<2x8x8xf32> to vector<2x8xf32>
    %41 = vector.shape_cast %40 : vector<2x8xf32> to vector<2x8x1xf32>
    %42 = vector.broadcast %41 : vector<2x8x1xf32> to vector<2x8x8xf32>
    %43 = arith.divf %39, %42 : vector<2x8x8xf32>
    %44 = arith.truncf %43 : vector<2x8x8xf32> to vector<2x8x8xbf16>
    %45 = arith.truncf %22 : vector<2x8x32xf32> to vector<2x8x32xbf16>
    "tpu.trace_start"() <{level = 10 : i32, message = "bij,bjh->bih"}> : () -> ()
    %cst_21 = arith.constant dense<0.000000e+00> : vector<2x8x32xf32>
    %46 = tpu.matmul %44, %45, %cst_21 {dimension_numbers = #tpu.dot_dimension_numbers<[2], [1], [1], [2], [0, 0, 0, 1, 1, 2], [0], [0]>} : vector<2x8x8xbf16>, vector<2x8x32xbf16>, vector<2x8x32xf32> -> vector<2x8x32xf32>
    "tpu.trace_stop"() : () -> ()
    %47 = math.tanh %46 : vector<2x8x32xf32>
    %cst_22 = arith.constant 1.250000e-01 : f32
    %48 = vector.broadcast %cst_22 : f32 to vector<2x8x32xf32>
    %49 = arith.mulf %48, %47 : vector<2x8x32xf32>
    %50 = arith.addf %17, %49 : vector<2x8x32xf32>
    %51 = vector.shape_cast %50 : vector<2x8x32xf32> to vector<16x32xf32>
    %52 = arith.truncf %51 : vector<16x32xf32> to vector<16x32xbf16>
    %cst_23 = arith.constant dense<0.000000e+00> : vector<16x34xf32>
    %53 = tpu.matmul %52, %2, %cst_23 {dimension_numbers = #tpu.dot_dimension_numbers<[1], [0], [0], [1], [0, 0, 1, 1], [], []>} : vector<16x32xbf16>, vector<32x34xbf16>, vector<16x34xf32> -> vector<16x34xf32>
    %54 = vector.shape_cast %53 : vector<16x34xf32> to vector<2x8x34xf32>
    %55 = vector.extract_strided_slice %54 {offsets = [0, 0, 0], sizes = [2, 8, 32], strides = [1, 1, 1]} : vector<2x8x34xf32> to vector<2x8x32xf32>
    %56 = vector.extract_strided_slice %54 {offsets = [0, 0, 32], sizes = [2, 8, 1], strides = [1, 1, 1]} : vector<2x8x34xf32> to vector<2x8x1xf32>
    %57 = vector.extract_strided_slice %54 {offsets = [0, 0, 33], sizes = [2, 8, 1], strides = [1, 1, 1]} : vector<2x8x34xf32> to vector<2x8x1xf32>
    %58 = vector.shape_cast %57 : vector<2x8x1xf32> to vector<2x8xf32>
    %59 = vector.shape_cast %58 : vector<2x8xf32> to vector<2x1x8xf32>
    %60 = vector.broadcast %56 : vector<2x8x1xf32> to vector<2x8x8xf32>
    %61 = vector.broadcast %59 : vector<2x1x8xf32> to vector<2x8x8xf32>
    %62 = arith.addf %60, %61 : vector<2x8x8xf32>
    %cst_24 = arith.constant 2.000000e-01 : f32
    %63 = vector.broadcast %cst_24 : f32 to vector<2x8x8xf32>
    %64 = arith.mulf %63, %62 : vector<2x8x8xf32>
    %65 = arith.maximumf %62, %64 : vector<2x8x8xf32>
    %66 = vector.broadcast %1 : vector<1x8x8xf32> to vector<2x8x8xf32>
    %67 = arith.addf %65, %66 : vector<2x8x8xf32>
    %cst_25 = arith.constant dense<0xFF800000> : vector<2x8xf32>
    %68 = vector.multi_reduction <maximumf>, %67, %cst_25 [2] : vector<2x8x8xf32> to vector<2x8xf32>
    %69 = vector.shape_cast %68 : vector<2x8xf32> to vector<2x8x1xf32>
    %70 = vector.broadcast %69 : vector<2x8x1xf32> to vector<2x8x8xf32>
    %71 = arith.subf %67, %70 : vector<2x8x8xf32>
    %72 = math.exp %71 : vector<2x8x8xf32>
    %cst_26 = arith.constant dense<0.000000e+00> : vector<2x8xf32>
    %73 = vector.multi_reduction <add>, %72, %cst_26 [2] : vector<2x8x8xf32> to vector<2x8xf32>
    %74 = vector.shape_cast %73 : vector<2x8xf32> to vector<2x8x1xf32>
    %75 = vector.broadcast %74 : vector<2x8x1xf32> to vector<2x8x8xf32>
    %76 = arith.divf %72, %75 : vector<2x8x8xf32>
    %77 = arith.truncf %76 : vector<2x8x8xf32> to vector<2x8x8xbf16>
    %78 = arith.truncf %55 : vector<2x8x32xf32> to vector<2x8x32xbf16>
    "tpu.trace_start"() <{level = 10 : i32, message = "bij,bjh->bih"}> : () -> ()
    %cst_27 = arith.constant dense<0.000000e+00> : vector<2x8x32xf32>
    %79 = tpu.matmul %77, %78, %cst_27 {dimension_numbers = #tpu.dot_dimension_numbers<[2], [1], [1], [2], [0, 0, 0, 1, 1, 2], [0], [0]>} : vector<2x8x8xbf16>, vector<2x8x32xbf16>, vector<2x8x32xf32> -> vector<2x8x32xf32>
    "tpu.trace_stop"() : () -> ()
    %80 = math.tanh %79 : vector<2x8x32xf32>
    %cst_28 = arith.constant 1.250000e-01 : f32
    %81 = vector.broadcast %cst_28 : f32 to vector<2x8x32xf32>
    %82 = arith.mulf %81, %80 : vector<2x8x32xf32>
    %83 = arith.addf %17, %82 : vector<2x8x32xf32>
    %84 = vector.shape_cast %83 : vector<2x8x32xf32> to vector<16x32xf32>
    %85 = arith.truncf %84 : vector<16x32xf32> to vector<16x32xbf16>
    %cst_29 = arith.constant dense<0.000000e+00> : vector<16x34xf32>
    %86 = tpu.matmul %85, %2, %cst_29 {dimension_numbers = #tpu.dot_dimension_numbers<[1], [0], [0], [1], [0, 0, 1, 1], [], []>} : vector<16x32xbf16>, vector<32x34xbf16>, vector<16x34xf32> -> vector<16x34xf32>
    %87 = vector.shape_cast %86 : vector<16x34xf32> to vector<2x8x34xf32>
    %88 = vector.extract_strided_slice %87 {offsets = [0, 0, 0], sizes = [2, 8, 32], strides = [1, 1, 1]} : vector<2x8x34xf32> to vector<2x8x32xf32>
    %89 = vector.extract_strided_slice %87 {offsets = [0, 0, 32], sizes = [2, 8, 1], strides = [1, 1, 1]} : vector<2x8x34xf32> to vector<2x8x1xf32>
    %90 = vector.extract_strided_slice %87 {offsets = [0, 0, 33], sizes = [2, 8, 1], strides = [1, 1, 1]} : vector<2x8x34xf32> to vector<2x8x1xf32>
    %91 = vector.shape_cast %90 : vector<2x8x1xf32> to vector<2x8xf32>
    %92 = vector.shape_cast %91 : vector<2x8xf32> to vector<2x1x8xf32>
    %93 = vector.broadcast %89 : vector<2x8x1xf32> to vector<2x8x8xf32>
    %94 = vector.broadcast %92 : vector<2x1x8xf32> to vector<2x8x8xf32>
    %95 = arith.addf %93, %94 : vector<2x8x8xf32>
    %cst_30 = arith.constant 2.000000e-01 : f32
    %96 = vector.broadcast %cst_30 : f32 to vector<2x8x8xf32>
    %97 = arith.mulf %96, %95 : vector<2x8x8xf32>
    %98 = arith.maximumf %95, %97 : vector<2x8x8xf32>
    %99 = vector.broadcast %1 : vector<1x8x8xf32> to vector<2x8x8xf32>
    %100 = arith.addf %98, %99 : vector<2x8x8xf32>
    %cst_31 = arith.constant dense<0xFF800000> : vector<2x8xf32>
    %101 = vector.multi_reduction <maximumf>, %100, %cst_31 [2] : vector<2x8x8xf32> to vector<2x8xf32>
    %102 = vector.shape_cast %101 : vector<2x8xf32> to vector<2x8x1xf32>
    %103 = vector.broadcast %102 : vector<2x8x1xf32> to vector<2x8x8xf32>
    %104 = arith.subf %100, %103 : vector<2x8x8xf32>
    %105 = math.exp %104 : vector<2x8x8xf32>
    %cst_32 = arith.constant dense<0.000000e+00> : vector<2x8xf32>
    %106 = vector.multi_reduction <add>, %105, %cst_32 [2] : vector<2x8x8xf32> to vector<2x8xf32>
    %107 = vector.shape_cast %106 : vector<2x8xf32> to vector<2x8x1xf32>
    %108 = vector.broadcast %107 : vector<2x8x1xf32> to vector<2x8x8xf32>
    %109 = arith.divf %105, %108 : vector<2x8x8xf32>
    %110 = arith.truncf %109 : vector<2x8x8xf32> to vector<2x8x8xbf16>
    %111 = arith.truncf %88 : vector<2x8x32xf32> to vector<2x8x32xbf16>
    "tpu.trace_start"() <{level = 10 : i32, message = "bij,bjh->bih"}> : () -> ()
    %cst_33 = arith.constant dense<0.000000e+00> : vector<2x8x32xf32>
    %112 = tpu.matmul %110, %111, %cst_33 {dimension_numbers = #tpu.dot_dimension_numbers<[2], [1], [1], [2], [0, 0, 0, 1, 1, 2], [0], [0]>} : vector<2x8x8xbf16>, vector<2x8x32xbf16>, vector<2x8x32xf32> -> vector<2x8x32xf32>
    "tpu.trace_stop"() : () -> ()
    %113 = math.tanh %112 : vector<2x8x32xf32>
    %cst_34 = arith.constant 2.500000e-01 : f32
    %114 = vector.broadcast %cst_34 : f32 to vector<2x8x32xf32>
    %115 = arith.mulf %114, %113 : vector<2x8x32xf32>
    %116 = arith.addf %17, %115 : vector<2x8x32xf32>
    %117 = vector.shape_cast %116 : vector<2x8x32xf32> to vector<16x32xf32>
    %118 = arith.truncf %117 : vector<16x32xf32> to vector<16x32xbf16>
    %cst_35 = arith.constant dense<0.000000e+00> : vector<16x34xf32>
    %119 = tpu.matmul %118, %2, %cst_35 {dimension_numbers = #tpu.dot_dimension_numbers<[1], [0], [0], [1], [0, 0, 1, 1], [], []>} : vector<16x32xbf16>, vector<32x34xbf16>, vector<16x34xf32> -> vector<16x34xf32>
    %120 = vector.shape_cast %119 : vector<16x34xf32> to vector<2x8x34xf32>
    %121 = vector.extract_strided_slice %120 {offsets = [0, 0, 0], sizes = [2, 8, 32], strides = [1, 1, 1]} : vector<2x8x34xf32> to vector<2x8x32xf32>
    %122 = vector.extract_strided_slice %120 {offsets = [0, 0, 32], sizes = [2, 8, 1], strides = [1, 1, 1]} : vector<2x8x34xf32> to vector<2x8x1xf32>
    %123 = vector.extract_strided_slice %120 {offsets = [0, 0, 33], sizes = [2, 8, 1], strides = [1, 1, 1]} : vector<2x8x34xf32> to vector<2x8x1xf32>
    %124 = vector.shape_cast %123 : vector<2x8x1xf32> to vector<2x8xf32>
    %125 = vector.shape_cast %124 : vector<2x8xf32> to vector<2x1x8xf32>
    %126 = vector.broadcast %122 : vector<2x8x1xf32> to vector<2x8x8xf32>
    %127 = vector.broadcast %125 : vector<2x1x8xf32> to vector<2x8x8xf32>
    %128 = arith.addf %126, %127 : vector<2x8x8xf32>
    %cst_36 = arith.constant 2.000000e-01 : f32
    %129 = vector.broadcast %cst_36 : f32 to vector<2x8x8xf32>
    %130 = arith.mulf %129, %128 : vector<2x8x8xf32>
    %131 = arith.maximumf %128, %130 : vector<2x8x8xf32>
    %132 = vector.broadcast %1 : vector<1x8x8xf32> to vector<2x8x8xf32>
    %133 = arith.addf %131, %132 : vector<2x8x8xf32>
    %cst_37 = arith.constant dense<0xFF800000> : vector<2x8xf32>
    %134 = vector.multi_reduction <maximumf>, %133, %cst_37 [2] : vector<2x8x8xf32> to vector<2x8xf32>
    %135 = vector.shape_cast %134 : vector<2x8xf32> to vector<2x8x1xf32>
    %136 = vector.broadcast %135 : vector<2x8x1xf32> to vector<2x8x8xf32>
    %137 = arith.subf %133, %136 : vector<2x8x8xf32>
    %138 = math.exp %137 : vector<2x8x8xf32>
    %cst_38 = arith.constant dense<0.000000e+00> : vector<2x8xf32>
    %139 = vector.multi_reduction <add>, %138, %cst_38 [2] : vector<2x8x8xf32> to vector<2x8xf32>
    %140 = vector.shape_cast %139 : vector<2x8xf32> to vector<2x8x1xf32>
    %141 = vector.broadcast %140 : vector<2x8x1xf32> to vector<2x8x8xf32>
    %142 = arith.divf %138, %141 : vector<2x8x8xf32>
    %143 = arith.truncf %142 : vector<2x8x8xf32> to vector<2x8x8xbf16>
    %144 = arith.truncf %121 : vector<2x8x32xf32> to vector<2x8x32xbf16>
    "tpu.trace_start"() <{level = 10 : i32, message = "bij,bjh->bih"}> : () -> ()
    %cst_39 = arith.constant dense<0.000000e+00> : vector<2x8x32xf32>
    %145 = tpu.matmul %143, %144, %cst_39 {dimension_numbers = #tpu.dot_dimension_numbers<[2], [1], [1], [2], [0, 0, 0, 1, 1, 2], [0], [0]>} : vector<2x8x8xbf16>, vector<2x8x32xbf16>, vector<2x8x32xf32> -> vector<2x8x32xf32>
    "tpu.trace_stop"() : () -> ()
    %146 = math.tanh %145 : vector<2x8x32xf32>
    %cst_40 = arith.constant 2.000000e+00 : f32
    %147 = vector.broadcast %cst_40 : f32 to vector<2x8x32xf32>
    %148 = arith.mulf %147, %80 : vector<2x8x32xf32>
    %149 = arith.addf %47, %148 : vector<2x8x32xf32>
    %cst_41 = arith.constant 2.000000e+00 : f32
    %150 = vector.broadcast %cst_41 : f32 to vector<2x8x32xf32>
    %151 = arith.mulf %150, %113 : vector<2x8x32xf32>
    %152 = arith.addf %149, %151 : vector<2x8x32xf32>
    %153 = arith.addf %152, %146 : vector<2x8x32xf32>
    %cst_42 = arith.constant 0.0416666679 : f32
    %154 = vector.broadcast %cst_42 : f32 to vector<2x8x32xf32>
    %155 = arith.mulf %154, %153 : vector<2x8x32xf32>
    %156 = arith.addf %17, %155 : vector<2x8x32xf32>
    %c1_i32 = arith.constant 1 : i32
    %157 = vector.shape_cast %156 : vector<2x8x32xf32> to vector<16x32xf32>
    %158 = arith.truncf %157 : vector<16x32xf32> to vector<16x32xbf16>
    %cst_43 = arith.constant dense<0.000000e+00> : vector<16x34xf32>
    %159 = tpu.matmul %158, %2, %cst_43 {dimension_numbers = #tpu.dot_dimension_numbers<[1], [0], [0], [1], [0, 0, 1, 1], [], []>} : vector<16x32xbf16>, vector<32x34xbf16>, vector<16x34xf32> -> vector<16x34xf32>
    %160 = vector.shape_cast %159 : vector<16x34xf32> to vector<2x8x34xf32>
    %161 = vector.extract_strided_slice %160 {offsets = [0, 0, 0], sizes = [2, 8, 32], strides = [1, 1, 1]} : vector<2x8x34xf32> to vector<2x8x32xf32>
    %162 = vector.extract_strided_slice %160 {offsets = [0, 0, 32], sizes = [2, 8, 1], strides = [1, 1, 1]} : vector<2x8x34xf32> to vector<2x8x1xf32>
    %163 = vector.extract_strided_slice %160 {offsets = [0, 0, 33], sizes = [2, 8, 1], strides = [1, 1, 1]} : vector<2x8x34xf32> to vector<2x8x1xf32>
    %164 = vector.shape_cast %163 : vector<2x8x1xf32> to vector<2x8xf32>
    %165 = vector.shape_cast %164 : vector<2x8xf32> to vector<2x1x8xf32>
    %166 = vector.broadcast %162 : vector<2x8x1xf32> to vector<2x8x8xf32>
    %167 = vector.broadcast %165 : vector<2x1x8xf32> to vector<2x8x8xf32>
    %168 = arith.addf %166, %167 : vector<2x8x8xf32>
    %cst_44 = arith.constant 2.000000e-01 : f32
    %169 = vector.broadcast %cst_44 : f32 to vector<2x8x8xf32>
    %170 = arith.mulf %169, %168 : vector<2x8x8xf32>
    %171 = arith.maximumf %168, %170 : vector<2x8x8xf32>
    %172 = vector.broadcast %1 : vector<1x8x8xf32> to vector<2x8x8xf32>
    %173 = arith.addf %171, %172 : vector<2x8x8xf32>
    %cst_45 = arith.constant dense<0xFF800000> : vector<2x8xf32>
    %174 = vector.multi_reduction <maximumf>, %173, %cst_45 [2] : vector<2x8x8xf32> to vector<2x8xf32>
    %175 = vector.shape_cast %174 : vector<2x8xf32> to vector<2x8x1xf32>
    %176 = vector.broadcast %175 : vector<2x8x1xf32> to vector<2x8x8xf32>
    %177 = arith.subf %173, %176 : vector<2x8x8xf32>
    %178 = math.exp %177 : vector<2x8x8xf32>
    %cst_46 = arith.constant dense<0.000000e+00> : vector<2x8xf32>
    %179 = vector.multi_reduction <add>, %178, %cst_46 [2] : vector<2x8x8xf32> to vector<2x8xf32>
    %180 = vector.shape_cast %179 : vector<2x8xf32> to vector<2x8x1xf32>
    %181 = vector.broadcast %180 : vector<2x8x1xf32> to vector<2x8x8xf32>
    %182 = arith.divf %178, %181 : vector<2x8x8xf32>
    %183 = arith.truncf %182 : vector<2x8x8xf32> to vector<2x8x8xbf16>
    %184 = arith.truncf %161 : vector<2x8x32xf32> to vector<2x8x32xbf16>
    "tpu.trace_start"() <{level = 10 : i32, message = "bij,bjh->bih"}> : () -> ()
    %cst_47 = arith.constant dense<0.000000e+00> : vector<2x8x32xf32>
    %185 = tpu.matmul %183, %184, %cst_47 {dimension_numbers = #tpu.dot_dimension_numbers<[2], [1], [1], [2], [0, 0, 0, 1, 1, 2], [0], [0]>} : vector<2x8x8xbf16>, vector<2x8x32xbf16>, vector<2x8x32xf32> -> vector<2x8x32xf32>
    "tpu.trace_stop"() : () -> ()
    %186 = math.tanh %185 : vector<2x8x32xf32>
    %cst_48 = arith.constant 1.250000e-01 : f32
    %187 = vector.broadcast %cst_48 : f32 to vector<2x8x32xf32>
    %188 = arith.mulf %187, %186 : vector<2x8x32xf32>
    %189 = arith.addf %156, %188 : vector<2x8x32xf32>
    %190 = vector.shape_cast %189 : vector<2x8x32xf32> to vector<16x32xf32>
    %191 = arith.truncf %190 : vector<16x32xf32> to vector<16x32xbf16>
    %cst_49 = arith.constant dense<0.000000e+00> : vector<16x34xf32>
    %192 = tpu.matmul %191, %2, %cst_49 {dimension_numbers = #tpu.dot_dimension_numbers<[1], [0], [0], [1], [0, 0, 1, 1], [], []>} : vector<16x32xbf16>, vector<32x34xbf16>, vector<16x34xf32> -> vector<16x34xf32>
    %193 = vector.shape_cast %192 : vector<16x34xf32> to vector<2x8x34xf32>
    %194 = vector.extract_strided_slice %193 {offsets = [0, 0, 0], sizes = [2, 8, 32], strides = [1, 1, 1]} : vector<2x8x34xf32> to vector<2x8x32xf32>
    %195 = vector.extract_strided_slice %193 {offsets = [0, 0, 32], sizes = [2, 8, 1], strides = [1, 1, 1]} : vector<2x8x34xf32> to vector<2x8x1xf32>
    %196 = vector.extract_strided_slice %193 {offsets = [0, 0, 33], sizes = [2, 8, 1], strides = [1, 1, 1]} : vector<2x8x34xf32> to vector<2x8x1xf32>
    %197 = vector.shape_cast %196 : vector<2x8x1xf32> to vector<2x8xf32>
    %198 = vector.shape_cast %197 : vector<2x8xf32> to vector<2x1x8xf32>
    %199 = vector.broadcast %195 : vector<2x8x1xf32> to vector<2x8x8xf32>
    %200 = vector.broadcast %198 : vector<2x1x8xf32> to vector<2x8x8xf32>
    %201 = arith.addf %199, %200 : vector<2x8x8xf32>
    %cst_50 = arith.constant 2.000000e-01 : f32
    %202 = vector.broadcast %cst_50 : f32 to vector<2x8x8xf32>
    %203 = arith.mulf %202, %201 : vector<2x8x8xf32>
    %204 = arith.maximumf %201, %203 : vector<2x8x8xf32>
    %205 = vector.broadcast %1 : vector<1x8x8xf32> to vector<2x8x8xf32>
    %206 = arith.addf %204, %205 : vector<2x8x8xf32>
    %cst_51 = arith.constant dense<0xFF800000> : vector<2x8xf32>
    %207 = vector.multi_reduction <maximumf>, %206, %cst_51 [2] : vector<2x8x8xf32> to vector<2x8xf32>
    %208 = vector.shape_cast %207 : vector<2x8xf32> to vector<2x8x1xf32>
    %209 = vector.broadcast %208 : vector<2x8x1xf32> to vector<2x8x8xf32>
    %210 = arith.subf %206, %209 : vector<2x8x8xf32>
    %211 = math.exp %210 : vector<2x8x8xf32>
    %cst_52 = arith.constant dense<0.000000e+00> : vector<2x8xf32>
    %212 = vector.multi_reduction <add>, %211, %cst_52 [2] : vector<2x8x8xf32> to vector<2x8xf32>
    %213 = vector.shape_cast %212 : vector<2x8xf32> to vector<2x8x1xf32>
    %214 = vector.broadcast %213 : vector<2x8x1xf32> to vector<2x8x8xf32>
    %215 = arith.divf %211, %214 : vector<2x8x8xf32>
    %216 = arith.truncf %215 : vector<2x8x8xf32> to vector<2x8x8xbf16>
    %217 = arith.truncf %194 : vector<2x8x32xf32> to vector<2x8x32xbf16>
    "tpu.trace_start"() <{level = 10 : i32, message = "bij,bjh->bih"}> : () -> ()
    %cst_53 = arith.constant dense<0.000000e+00> : vector<2x8x32xf32>
    %218 = tpu.matmul %216, %217, %cst_53 {dimension_numbers = #tpu.dot_dimension_numbers<[2], [1], [1], [2], [0, 0, 0, 1, 1, 2], [0], [0]>} : vector<2x8x8xbf16>, vector<2x8x32xbf16>, vector<2x8x32xf32> -> vector<2x8x32xf32>
    "tpu.trace_stop"() : () -> ()
    %219 = math.tanh %218 : vector<2x8x32xf32>
    %cst_54 = arith.constant 1.250000e-01 : f32
    %220 = vector.broadcast %cst_54 : f32 to vector<2x8x32xf32>
    %221 = arith.mulf %220, %219 : vector<2x8x32xf32>
    %222 = arith.addf %156, %221 : vector<2x8x32xf32>
    %223 = vector.shape_cast %222 : vector<2x8x32xf32> to vector<16x32xf32>
    %224 = arith.truncf %223 : vector<16x32xf32> to vector<16x32xbf16>
    %cst_55 = arith.constant dense<0.000000e+00> : vector<16x34xf32>
    %225 = tpu.matmul %224, %2, %cst_55 {dimension_numbers = #tpu.dot_dimension_numbers<[1], [0], [0], [1], [0, 0, 1, 1], [], []>} : vector<16x32xbf16>, vector<32x34xbf16>, vector<16x34xf32> -> vector<16x34xf32>
    %226 = vector.shape_cast %225 : vector<16x34xf32> to vector<2x8x34xf32>
    %227 = vector.extract_strided_slice %226 {offsets = [0, 0, 0], sizes = [2, 8, 32], strides = [1, 1, 1]} : vector<2x8x34xf32> to vector<2x8x32xf32>
    %228 = vector.extract_strided_slice %226 {offsets = [0, 0, 32], sizes = [2, 8, 1], strides = [1, 1, 1]} : vector<2x8x34xf32> to vector<2x8x1xf32>
    %229 = vector.extract_strided_slice %226 {offsets = [0, 0, 33], sizes = [2, 8, 1], strides = [1, 1, 1]} : vector<2x8x34xf32> to vector<2x8x1xf32>
    %230 = vector.shape_cast %229 : vector<2x8x1xf32> to vector<2x8xf32>
    %231 = vector.shape_cast %230 : vector<2x8xf32> to vector<2x1x8xf32>
    %232 = vector.broadcast %228 : vector<2x8x1xf32> to vector<2x8x8xf32>
    %233 = vector.broadcast %231 : vector<2x1x8xf32> to vector<2x8x8xf32>
    %234 = arith.addf %232, %233 : vector<2x8x8xf32>
    %cst_56 = arith.constant 2.000000e-01 : f32
    %235 = vector.broadcast %cst_56 : f32 to vector<2x8x8xf32>
    %236 = arith.mulf %235, %234 : vector<2x8x8xf32>
    %237 = arith.maximumf %234, %236 : vector<2x8x8xf32>
    %238 = vector.broadcast %1 : vector<1x8x8xf32> to vector<2x8x8xf32>
    %239 = arith.addf %237, %238 : vector<2x8x8xf32>
    %cst_57 = arith.constant dense<0xFF800000> : vector<2x8xf32>
    %240 = vector.multi_reduction <maximumf>, %239, %cst_57 [2] : vector<2x8x8xf32> to vector<2x8xf32>
    %241 = vector.shape_cast %240 : vector<2x8xf32> to vector<2x8x1xf32>
    %242 = vector.broadcast %241 : vector<2x8x1xf32> to vector<2x8x8xf32>
    %243 = arith.subf %239, %242 : vector<2x8x8xf32>
    %244 = math.exp %243 : vector<2x8x8xf32>
    %cst_58 = arith.constant dense<0.000000e+00> : vector<2x8xf32>
    %245 = vector.multi_reduction <add>, %244, %cst_58 [2] : vector<2x8x8xf32> to vector<2x8xf32>
    %246 = vector.shape_cast %245 : vector<2x8xf32> to vector<2x8x1xf32>
    %247 = vector.broadcast %246 : vector<2x8x1xf32> to vector<2x8x8xf32>
    %248 = arith.divf %244, %247 : vector<2x8x8xf32>
    %249 = arith.truncf %248 : vector<2x8x8xf32> to vector<2x8x8xbf16>
    %250 = arith.truncf %227 : vector<2x8x32xf32> to vector<2x8x32xbf16>
    "tpu.trace_start"() <{level = 10 : i32, message = "bij,bjh->bih"}> : () -> ()
    %cst_59 = arith.constant dense<0.000000e+00> : vector<2x8x32xf32>
    %251 = tpu.matmul %249, %250, %cst_59 {dimension_numbers = #tpu.dot_dimension_numbers<[2], [1], [1], [2], [0, 0, 0, 1, 1, 2], [0], [0]>} : vector<2x8x8xbf16>, vector<2x8x32xbf16>, vector<2x8x32xf32> -> vector<2x8x32xf32>
    "tpu.trace_stop"() : () -> ()
    %252 = math.tanh %251 : vector<2x8x32xf32>
    %cst_60 = arith.constant 2.500000e-01 : f32
    %253 = vector.broadcast %cst_60 : f32 to vector<2x8x32xf32>
    %254 = arith.mulf %253, %252 : vector<2x8x32xf32>
    %255 = arith.addf %156, %254 : vector<2x8x32xf32>
    %256 = vector.shape_cast %255 : vector<2x8x32xf32> to vector<16x32xf32>
    %257 = arith.truncf %256 : vector<16x32xf32> to vector<16x32xbf16>
    %cst_61 = arith.constant dense<0.000000e+00> : vector<16x34xf32>
    %258 = tpu.matmul %257, %2, %cst_61 {dimension_numbers = #tpu.dot_dimension_numbers<[1], [0], [0], [1], [0, 0, 1, 1], [], []>} : vector<16x32xbf16>, vector<32x34xbf16>, vector<16x34xf32> -> vector<16x34xf32>
    %259 = vector.shape_cast %258 : vector<16x34xf32> to vector<2x8x34xf32>
    %260 = vector.extract_strided_slice %259 {offsets = [0, 0, 0], sizes = [2, 8, 32], strides = [1, 1, 1]} : vector<2x8x34xf32> to vector<2x8x32xf32>
    %261 = vector.extract_strided_slice %259 {offsets = [0, 0, 32], sizes = [2, 8, 1], strides = [1, 1, 1]} : vector<2x8x34xf32> to vector<2x8x1xf32>
    %262 = vector.extract_strided_slice %259 {offsets = [0, 0, 33], sizes = [2, 8, 1], strides = [1, 1, 1]} : vector<2x8x34xf32> to vector<2x8x1xf32>
    %263 = vector.shape_cast %262 : vector<2x8x1xf32> to vector<2x8xf32>
    %264 = vector.shape_cast %263 : vector<2x8xf32> to vector<2x1x8xf32>
    %265 = vector.broadcast %261 : vector<2x8x1xf32> to vector<2x8x8xf32>
    %266 = vector.broadcast %264 : vector<2x1x8xf32> to vector<2x8x8xf32>
    %267 = arith.addf %265, %266 : vector<2x8x8xf32>
    %cst_62 = arith.constant 2.000000e-01 : f32
    %268 = vector.broadcast %cst_62 : f32 to vector<2x8x8xf32>
    %269 = arith.mulf %268, %267 : vector<2x8x8xf32>
    %270 = arith.maximumf %267, %269 : vector<2x8x8xf32>
    %271 = vector.broadcast %1 : vector<1x8x8xf32> to vector<2x8x8xf32>
    %272 = arith.addf %270, %271 : vector<2x8x8xf32>
    %cst_63 = arith.constant dense<0xFF800000> : vector<2x8xf32>
    %273 = vector.multi_reduction <maximumf>, %272, %cst_63 [2] : vector<2x8x8xf32> to vector<2x8xf32>
    %274 = vector.shape_cast %273 : vector<2x8xf32> to vector<2x8x1xf32>
    %275 = vector.broadcast %274 : vector<2x8x1xf32> to vector<2x8x8xf32>
    %276 = arith.subf %272, %275 : vector<2x8x8xf32>
    %277 = math.exp %276 : vector<2x8x8xf32>
    %cst_64 = arith.constant dense<0.000000e+00> : vector<2x8xf32>
    %278 = vector.multi_reduction <add>, %277, %cst_64 [2] : vector<2x8x8xf32> to vector<2x8xf32>
    %279 = vector.shape_cast %278 : vector<2x8xf32> to vector<2x8x1xf32>
    %280 = vector.broadcast %279 : vector<2x8x1xf32> to vector<2x8x8xf32>
    %281 = arith.divf %277, %280 : vector<2x8x8xf32>
    %282 = arith.truncf %281 : vector<2x8x8xf32> to vector<2x8x8xbf16>
    %283 = arith.truncf %260 : vector<2x8x32xf32> to vector<2x8x32xbf16>
    "tpu.trace_start"() <{level = 10 : i32, message = "bij,bjh->bih"}> : () -> ()
    %cst_65 = arith.constant dense<0.000000e+00> : vector<2x8x32xf32>
    %284 = tpu.matmul %282, %283, %cst_65 {dimension_numbers = #tpu.dot_dimension_numbers<[2], [1], [1], [2], [0, 0, 0, 1, 1, 2], [0], [0]>} : vector<2x8x8xbf16>, vector<2x8x32xbf16>, vector<2x8x32xf32> -> vector<2x8x32xf32>
    "tpu.trace_stop"() : () -> ()
    %285 = math.tanh %284 : vector<2x8x32xf32>
    %cst_66 = arith.constant 2.000000e+00 : f32
    %286 = vector.broadcast %cst_66 : f32 to vector<2x8x32xf32>
    %287 = arith.mulf %286, %219 : vector<2x8x32xf32>
    %288 = arith.addf %186, %287 : vector<2x8x32xf32>
    %cst_67 = arith.constant 2.000000e+00 : f32
    %289 = vector.broadcast %cst_67 : f32 to vector<2x8x32xf32>
    %290 = arith.mulf %289, %252 : vector<2x8x32xf32>
    %291 = arith.addf %288, %290 : vector<2x8x32xf32>
    %292 = arith.addf %291, %285 : vector<2x8x32xf32>
    %cst_68 = arith.constant 0.0416666679 : f32
    %293 = vector.broadcast %cst_68 : f32 to vector<2x8x32xf32>
    %294 = arith.mulf %293, %292 : vector<2x8x32xf32>
    %295 = arith.addf %156, %294 : vector<2x8x32xf32>
    %c2_i32 = arith.constant 2 : i32
    %296 = vector.shape_cast %295 : vector<2x8x32xf32> to vector<16x32xf32>
    %297 = arith.truncf %296 : vector<16x32xf32> to vector<16x32xbf16>
    %cst_69 = arith.constant dense<0.000000e+00> : vector<16x34xf32>
    %298 = tpu.matmul %297, %2, %cst_69 {dimension_numbers = #tpu.dot_dimension_numbers<[1], [0], [0], [1], [0, 0, 1, 1], [], []>} : vector<16x32xbf16>, vector<32x34xbf16>, vector<16x34xf32> -> vector<16x34xf32>
    %299 = vector.shape_cast %298 : vector<16x34xf32> to vector<2x8x34xf32>
    %300 = vector.extract_strided_slice %299 {offsets = [0, 0, 0], sizes = [2, 8, 32], strides = [1, 1, 1]} : vector<2x8x34xf32> to vector<2x8x32xf32>
    %301 = vector.extract_strided_slice %299 {offsets = [0, 0, 32], sizes = [2, 8, 1], strides = [1, 1, 1]} : vector<2x8x34xf32> to vector<2x8x1xf32>
    %302 = vector.extract_strided_slice %299 {offsets = [0, 0, 33], sizes = [2, 8, 1], strides = [1, 1, 1]} : vector<2x8x34xf32> to vector<2x8x1xf32>
    %303 = vector.shape_cast %302 : vector<2x8x1xf32> to vector<2x8xf32>
    %304 = vector.shape_cast %303 : vector<2x8xf32> to vector<2x1x8xf32>
    %305 = vector.broadcast %301 : vector<2x8x1xf32> to vector<2x8x8xf32>
    %306 = vector.broadcast %304 : vector<2x1x8xf32> to vector<2x8x8xf32>
    %307 = arith.addf %305, %306 : vector<2x8x8xf32>
    %cst_70 = arith.constant 2.000000e-01 : f32
    %308 = vector.broadcast %cst_70 : f32 to vector<2x8x8xf32>
    %309 = arith.mulf %308, %307 : vector<2x8x8xf32>
    %310 = arith.maximumf %307, %309 : vector<2x8x8xf32>
    %311 = vector.broadcast %1 : vector<1x8x8xf32> to vector<2x8x8xf32>
    %312 = arith.addf %310, %311 : vector<2x8x8xf32>
    %cst_71 = arith.constant dense<0xFF800000> : vector<2x8xf32>
    %313 = vector.multi_reduction <maximumf>, %312, %cst_71 [2] : vector<2x8x8xf32> to vector<2x8xf32>
    %314 = vector.shape_cast %313 : vector<2x8xf32> to vector<2x8x1xf32>
    %315 = vector.broadcast %314 : vector<2x8x1xf32> to vector<2x8x8xf32>
    %316 = arith.subf %312, %315 : vector<2x8x8xf32>
    %317 = math.exp %316 : vector<2x8x8xf32>
    %cst_72 = arith.constant dense<0.000000e+00> : vector<2x8xf32>
    %318 = vector.multi_reduction <add>, %317, %cst_72 [2] : vector<2x8x8xf32> to vector<2x8xf32>
    %319 = vector.shape_cast %318 : vector<2x8xf32> to vector<2x8x1xf32>
    %320 = vector.broadcast %319 : vector<2x8x1xf32> to vector<2x8x8xf32>
    %321 = arith.divf %317, %320 : vector<2x8x8xf32>
    %322 = arith.truncf %321 : vector<2x8x8xf32> to vector<2x8x8xbf16>
    %323 = arith.truncf %300 : vector<2x8x32xf32> to vector<2x8x32xbf16>
    "tpu.trace_start"() <{level = 10 : i32, message = "bij,bjh->bih"}> : () -> ()
    %cst_73 = arith.constant dense<0.000000e+00> : vector<2x8x32xf32>
    %324 = tpu.matmul %322, %323, %cst_73 {dimension_numbers = #tpu.dot_dimension_numbers<[2], [1], [1], [2], [0, 0, 0, 1, 1, 2], [0], [0]>} : vector<2x8x8xbf16>, vector<2x8x32xbf16>, vector<2x8x32xf32> -> vector<2x8x32xf32>
    "tpu.trace_stop"() : () -> ()
    %325 = math.tanh %324 : vector<2x8x32xf32>
    %cst_74 = arith.constant 1.250000e-01 : f32
    %326 = vector.broadcast %cst_74 : f32 to vector<2x8x32xf32>
    %327 = arith.mulf %326, %325 : vector<2x8x32xf32>
    %328 = arith.addf %295, %327 : vector<2x8x32xf32>
    %329 = vector.shape_cast %328 : vector<2x8x32xf32> to vector<16x32xf32>
    %330 = arith.truncf %329 : vector<16x32xf32> to vector<16x32xbf16>
    %cst_75 = arith.constant dense<0.000000e+00> : vector<16x34xf32>
    %331 = tpu.matmul %330, %2, %cst_75 {dimension_numbers = #tpu.dot_dimension_numbers<[1], [0], [0], [1], [0, 0, 1, 1], [], []>} : vector<16x32xbf16>, vector<32x34xbf16>, vector<16x34xf32> -> vector<16x34xf32>
    %332 = vector.shape_cast %331 : vector<16x34xf32> to vector<2x8x34xf32>
    %333 = vector.extract_strided_slice %332 {offsets = [0, 0, 0], sizes = [2, 8, 32], strides = [1, 1, 1]} : vector<2x8x34xf32> to vector<2x8x32xf32>
    %334 = vector.extract_strided_slice %332 {offsets = [0, 0, 32], sizes = [2, 8, 1], strides = [1, 1, 1]} : vector<2x8x34xf32> to vector<2x8x1xf32>
    %335 = vector.extract_strided_slice %332 {offsets = [0, 0, 33], sizes = [2, 8, 1], strides = [1, 1, 1]} : vector<2x8x34xf32> to vector<2x8x1xf32>
    %336 = vector.shape_cast %335 : vector<2x8x1xf32> to vector<2x8xf32>
    %337 = vector.shape_cast %336 : vector<2x8xf32> to vector<2x1x8xf32>
    %338 = vector.broadcast %334 : vector<2x8x1xf32> to vector<2x8x8xf32>
    %339 = vector.broadcast %337 : vector<2x1x8xf32> to vector<2x8x8xf32>
    %340 = arith.addf %338, %339 : vector<2x8x8xf32>
    %cst_76 = arith.constant 2.000000e-01 : f32
    %341 = vector.broadcast %cst_76 : f32 to vector<2x8x8xf32>
    %342 = arith.mulf %341, %340 : vector<2x8x8xf32>
    %343 = arith.maximumf %340, %342 : vector<2x8x8xf32>
    %344 = vector.broadcast %1 : vector<1x8x8xf32> to vector<2x8x8xf32>
    %345 = arith.addf %343, %344 : vector<2x8x8xf32>
    %cst_77 = arith.constant dense<0xFF800000> : vector<2x8xf32>
    %346 = vector.multi_reduction <maximumf>, %345, %cst_77 [2] : vector<2x8x8xf32> to vector<2x8xf32>
    %347 = vector.shape_cast %346 : vector<2x8xf32> to vector<2x8x1xf32>
    %348 = vector.broadcast %347 : vector<2x8x1xf32> to vector<2x8x8xf32>
    %349 = arith.subf %345, %348 : vector<2x8x8xf32>
    %350 = math.exp %349 : vector<2x8x8xf32>
    %cst_78 = arith.constant dense<0.000000e+00> : vector<2x8xf32>
    %351 = vector.multi_reduction <add>, %350, %cst_78 [2] : vector<2x8x8xf32> to vector<2x8xf32>
    %352 = vector.shape_cast %351 : vector<2x8xf32> to vector<2x8x1xf32>
    %353 = vector.broadcast %352 : vector<2x8x1xf32> to vector<2x8x8xf32>
    %354 = arith.divf %350, %353 : vector<2x8x8xf32>
    %355 = arith.truncf %354 : vector<2x8x8xf32> to vector<2x8x8xbf16>
    %356 = arith.truncf %333 : vector<2x8x32xf32> to vector<2x8x32xbf16>
    "tpu.trace_start"() <{level = 10 : i32, message = "bij,bjh->bih"}> : () -> ()
    %cst_79 = arith.constant dense<0.000000e+00> : vector<2x8x32xf32>
    %357 = tpu.matmul %355, %356, %cst_79 {dimension_numbers = #tpu.dot_dimension_numbers<[2], [1], [1], [2], [0, 0, 0, 1, 1, 2], [0], [0]>} : vector<2x8x8xbf16>, vector<2x8x32xbf16>, vector<2x8x32xf32> -> vector<2x8x32xf32>
    "tpu.trace_stop"() : () -> ()
    %358 = math.tanh %357 : vector<2x8x32xf32>
    %cst_80 = arith.constant 1.250000e-01 : f32
    %359 = vector.broadcast %cst_80 : f32 to vector<2x8x32xf32>
    %360 = arith.mulf %359, %358 : vector<2x8x32xf32>
    %361 = arith.addf %295, %360 : vector<2x8x32xf32>
    %362 = vector.shape_cast %361 : vector<2x8x32xf32> to vector<16x32xf32>
    %363 = arith.truncf %362 : vector<16x32xf32> to vector<16x32xbf16>
    %cst_81 = arith.constant dense<0.000000e+00> : vector<16x34xf32>
    %364 = tpu.matmul %363, %2, %cst_81 {dimension_numbers = #tpu.dot_dimension_numbers<[1], [0], [0], [1], [0, 0, 1, 1], [], []>} : vector<16x32xbf16>, vector<32x34xbf16>, vector<16x34xf32> -> vector<16x34xf32>
    %365 = vector.shape_cast %364 : vector<16x34xf32> to vector<2x8x34xf32>
    %366 = vector.extract_strided_slice %365 {offsets = [0, 0, 0], sizes = [2, 8, 32], strides = [1, 1, 1]} : vector<2x8x34xf32> to vector<2x8x32xf32>
    %367 = vector.extract_strided_slice %365 {offsets = [0, 0, 32], sizes = [2, 8, 1], strides = [1, 1, 1]} : vector<2x8x34xf32> to vector<2x8x1xf32>
    %368 = vector.extract_strided_slice %365 {offsets = [0, 0, 33], sizes = [2, 8, 1], strides = [1, 1, 1]} : vector<2x8x34xf32> to vector<2x8x1xf32>
    %369 = vector.shape_cast %368 : vector<2x8x1xf32> to vector<2x8xf32>
    %370 = vector.shape_cast %369 : vector<2x8xf32> to vector<2x1x8xf32>
    %371 = vector.broadcast %367 : vector<2x8x1xf32> to vector<2x8x8xf32>
    %372 = vector.broadcast %370 : vector<2x1x8xf32> to vector<2x8x8xf32>
    %373 = arith.addf %371, %372 : vector<2x8x8xf32>
    %cst_82 = arith.constant 2.000000e-01 : f32
    %374 = vector.broadcast %cst_82 : f32 to vector<2x8x8xf32>
    %375 = arith.mulf %374, %373 : vector<2x8x8xf32>
    %376 = arith.maximumf %373, %375 : vector<2x8x8xf32>
    %377 = vector.broadcast %1 : vector<1x8x8xf32> to vector<2x8x8xf32>
    %378 = arith.addf %376, %377 : vector<2x8x8xf32>
    %cst_83 = arith.constant dense<0xFF800000> : vector<2x8xf32>
    %379 = vector.multi_reduction <maximumf>, %378, %cst_83 [2] : vector<2x8x8xf32> to vector<2x8xf32>
    %380 = vector.shape_cast %379 : vector<2x8xf32> to vector<2x8x1xf32>
    %381 = vector.broadcast %380 : vector<2x8x1xf32> to vector<2x8x8xf32>
    %382 = arith.subf %378, %381 : vector<2x8x8xf32>
    %383 = math.exp %382 : vector<2x8x8xf32>
    %cst_84 = arith.constant dense<0.000000e+00> : vector<2x8xf32>
    %384 = vector.multi_reduction <add>, %383, %cst_84 [2] : vector<2x8x8xf32> to vector<2x8xf32>
    %385 = vector.shape_cast %384 : vector<2x8xf32> to vector<2x8x1xf32>
    %386 = vector.broadcast %385 : vector<2x8x1xf32> to vector<2x8x8xf32>
    %387 = arith.divf %383, %386 : vector<2x8x8xf32>
    %388 = arith.truncf %387 : vector<2x8x8xf32> to vector<2x8x8xbf16>
    %389 = arith.truncf %366 : vector<2x8x32xf32> to vector<2x8x32xbf16>
    "tpu.trace_start"() <{level = 10 : i32, message = "bij,bjh->bih"}> : () -> ()
    %cst_85 = arith.constant dense<0.000000e+00> : vector<2x8x32xf32>
    %390 = tpu.matmul %388, %389, %cst_85 {dimension_numbers = #tpu.dot_dimension_numbers<[2], [1], [1], [2], [0, 0, 0, 1, 1, 2], [0], [0]>} : vector<2x8x8xbf16>, vector<2x8x32xbf16>, vector<2x8x32xf32> -> vector<2x8x32xf32>
    "tpu.trace_stop"() : () -> ()
    %391 = math.tanh %390 : vector<2x8x32xf32>
    %cst_86 = arith.constant 2.500000e-01 : f32
    %392 = vector.broadcast %cst_86 : f32 to vector<2x8x32xf32>
    %393 = arith.mulf %392, %391 : vector<2x8x32xf32>
    %394 = arith.addf %295, %393 : vector<2x8x32xf32>
    %395 = vector.shape_cast %394 : vector<2x8x32xf32> to vector<16x32xf32>
    %396 = arith.truncf %395 : vector<16x32xf32> to vector<16x32xbf16>
    %cst_87 = arith.constant dense<0.000000e+00> : vector<16x34xf32>
    %397 = tpu.matmul %396, %2, %cst_87 {dimension_numbers = #tpu.dot_dimension_numbers<[1], [0], [0], [1], [0, 0, 1, 1], [], []>} : vector<16x32xbf16>, vector<32x34xbf16>, vector<16x34xf32> -> vector<16x34xf32>
    %398 = vector.shape_cast %397 : vector<16x34xf32> to vector<2x8x34xf32>
    %399 = vector.extract_strided_slice %398 {offsets = [0, 0, 0], sizes = [2, 8, 32], strides = [1, 1, 1]} : vector<2x8x34xf32> to vector<2x8x32xf32>
    %400 = vector.extract_strided_slice %398 {offsets = [0, 0, 32], sizes = [2, 8, 1], strides = [1, 1, 1]} : vector<2x8x34xf32> to vector<2x8x1xf32>
    %401 = vector.extract_strided_slice %398 {offsets = [0, 0, 33], sizes = [2, 8, 1], strides = [1, 1, 1]} : vector<2x8x34xf32> to vector<2x8x1xf32>
    %402 = vector.shape_cast %401 : vector<2x8x1xf32> to vector<2x8xf32>
    %403 = vector.shape_cast %402 : vector<2x8xf32> to vector<2x1x8xf32>
    %404 = vector.broadcast %400 : vector<2x8x1xf32> to vector<2x8x8xf32>
    %405 = vector.broadcast %403 : vector<2x1x8xf32> to vector<2x8x8xf32>
    %406 = arith.addf %404, %405 : vector<2x8x8xf32>
    %cst_88 = arith.constant 2.000000e-01 : f32
    %407 = vector.broadcast %cst_88 : f32 to vector<2x8x8xf32>
    %408 = arith.mulf %407, %406 : vector<2x8x8xf32>
    %409 = arith.maximumf %406, %408 : vector<2x8x8xf32>
    %410 = vector.broadcast %1 : vector<1x8x8xf32> to vector<2x8x8xf32>
    %411 = arith.addf %409, %410 : vector<2x8x8xf32>
    %cst_89 = arith.constant dense<0xFF800000> : vector<2x8xf32>
    %412 = vector.multi_reduction <maximumf>, %411, %cst_89 [2] : vector<2x8x8xf32> to vector<2x8xf32>
    %413 = vector.shape_cast %412 : vector<2x8xf32> to vector<2x8x1xf32>
    %414 = vector.broadcast %413 : vector<2x8x1xf32> to vector<2x8x8xf32>
    %415 = arith.subf %411, %414 : vector<2x8x8xf32>
    %416 = math.exp %415 : vector<2x8x8xf32>
    %cst_90 = arith.constant dense<0.000000e+00> : vector<2x8xf32>
    %417 = vector.multi_reduction <add>, %416, %cst_90 [2] : vector<2x8x8xf32> to vector<2x8xf32>
    %418 = vector.shape_cast %417 : vector<2x8xf32> to vector<2x8x1xf32>
    %419 = vector.broadcast %418 : vector<2x8x1xf32> to vector<2x8x8xf32>
    %420 = arith.divf %416, %419 : vector<2x8x8xf32>
    %421 = arith.truncf %420 : vector<2x8x8xf32> to vector<2x8x8xbf16>
    %422 = arith.truncf %399 : vector<2x8x32xf32> to vector<2x8x32xbf16>
    "tpu.trace_start"() <{level = 10 : i32, message = "bij,bjh->bih"}> : () -> ()
    %cst_91 = arith.constant dense<0.000000e+00> : vector<2x8x32xf32>
    %423 = tpu.matmul %421, %422, %cst_91 {dimension_numbers = #tpu.dot_dimension_numbers<[2], [1], [1], [2], [0, 0, 0, 1, 1, 2], [0], [0]>} : vector<2x8x8xbf16>, vector<2x8x32xbf16>, vector<2x8x32xf32> -> vector<2x8x32xf32>
    "tpu.trace_stop"() : () -> ()
    %424 = math.tanh %423 : vector<2x8x32xf32>
    %cst_92 = arith.constant 2.000000e+00 : f32
    %425 = vector.broadcast %cst_92 : f32 to vector<2x8x32xf32>
    %426 = arith.mulf %425, %358 : vector<2x8x32xf32>
    %427 = arith.addf %325, %426 : vector<2x8x32xf32>
    %cst_93 = arith.constant 2.000000e+00 : f32
    %428 = vector.broadcast %cst_93 : f32 to vector<2x8x32xf32>
    %429 = arith.mulf %428, %391 : vector<2x8x32xf32>
    %430 = arith.addf %427, %429 : vector<2x8x32xf32>
    %431 = arith.addf %430, %424 : vector<2x8x32xf32>
    %cst_94 = arith.constant 0.0416666679 : f32
    %432 = vector.broadcast %cst_94 : f32 to vector<2x8x32xf32>
    %433 = arith.mulf %432, %431 : vector<2x8x32xf32>
    %434 = arith.addf %295, %433 : vector<2x8x32xf32>
    %c3_i32 = arith.constant 3 : i32
    %435 = vector.shape_cast %434 : vector<2x8x32xf32> to vector<16x32xf32>
    %436 = arith.truncf %435 : vector<16x32xf32> to vector<16x32xbf16>
    %cst_95 = arith.constant dense<0.000000e+00> : vector<16x34xf32>
    %437 = tpu.matmul %436, %2, %cst_95 {dimension_numbers = #tpu.dot_dimension_numbers<[1], [0], [0], [1], [0, 0, 1, 1], [], []>} : vector<16x32xbf16>, vector<32x34xbf16>, vector<16x34xf32> -> vector<16x34xf32>
    %438 = vector.shape_cast %437 : vector<16x34xf32> to vector<2x8x34xf32>
    %439 = vector.extract_strided_slice %438 {offsets = [0, 0, 0], sizes = [2, 8, 32], strides = [1, 1, 1]} : vector<2x8x34xf32> to vector<2x8x32xf32>
    %440 = vector.extract_strided_slice %438 {offsets = [0, 0, 32], sizes = [2, 8, 1], strides = [1, 1, 1]} : vector<2x8x34xf32> to vector<2x8x1xf32>
    %441 = vector.extract_strided_slice %438 {offsets = [0, 0, 33], sizes = [2, 8, 1], strides = [1, 1, 1]} : vector<2x8x34xf32> to vector<2x8x1xf32>
    %442 = vector.shape_cast %441 : vector<2x8x1xf32> to vector<2x8xf32>
    %443 = vector.shape_cast %442 : vector<2x8xf32> to vector<2x1x8xf32>
    %444 = vector.broadcast %440 : vector<2x8x1xf32> to vector<2x8x8xf32>
    %445 = vector.broadcast %443 : vector<2x1x8xf32> to vector<2x8x8xf32>
    %446 = arith.addf %444, %445 : vector<2x8x8xf32>
    %cst_96 = arith.constant 2.000000e-01 : f32
    %447 = vector.broadcast %cst_96 : f32 to vector<2x8x8xf32>
    %448 = arith.mulf %447, %446 : vector<2x8x8xf32>
    %449 = arith.maximumf %446, %448 : vector<2x8x8xf32>
    %450 = vector.broadcast %1 : vector<1x8x8xf32> to vector<2x8x8xf32>
    %451 = arith.addf %449, %450 : vector<2x8x8xf32>
    %cst_97 = arith.constant dense<0xFF800000> : vector<2x8xf32>
    %452 = vector.multi_reduction <maximumf>, %451, %cst_97 [2] : vector<2x8x8xf32> to vector<2x8xf32>
    %453 = vector.shape_cast %452 : vector<2x8xf32> to vector<2x8x1xf32>
    %454 = vector.broadcast %453 : vector<2x8x1xf32> to vector<2x8x8xf32>
    %455 = arith.subf %451, %454 : vector<2x8x8xf32>
    %456 = math.exp %455 : vector<2x8x8xf32>
    %cst_98 = arith.constant dense<0.000000e+00> : vector<2x8xf32>
    %457 = vector.multi_reduction <add>, %456, %cst_98 [2] : vector<2x8x8xf32> to vector<2x8xf32>
    %458 = vector.shape_cast %457 : vector<2x8xf32> to vector<2x8x1xf32>
    %459 = vector.broadcast %458 : vector<2x8x1xf32> to vector<2x8x8xf32>
    %460 = arith.divf %456, %459 : vector<2x8x8xf32>
    %461 = arith.truncf %460 : vector<2x8x8xf32> to vector<2x8x8xbf16>
    %462 = arith.truncf %439 : vector<2x8x32xf32> to vector<2x8x32xbf16>
    "tpu.trace_start"() <{level = 10 : i32, message = "bij,bjh->bih"}> : () -> ()
    %cst_99 = arith.constant dense<0.000000e+00> : vector<2x8x32xf32>
    %463 = tpu.matmul %461, %462, %cst_99 {dimension_numbers = #tpu.dot_dimension_numbers<[2], [1], [1], [2], [0, 0, 0, 1, 1, 2], [0], [0]>} : vector<2x8x8xbf16>, vector<2x8x32xbf16>, vector<2x8x32xf32> -> vector<2x8x32xf32>
    "tpu.trace_stop"() : () -> ()
    %464 = math.tanh %463 : vector<2x8x32xf32>
    %cst_100 = arith.constant 1.250000e-01 : f32
    %465 = vector.broadcast %cst_100 : f32 to vector<2x8x32xf32>
    %466 = arith.mulf %465, %464 : vector<2x8x32xf32>
    %467 = arith.addf %434, %466 : vector<2x8x32xf32>
    %468 = vector.shape_cast %467 : vector<2x8x32xf32> to vector<16x32xf32>
    %469 = arith.truncf %468 : vector<16x32xf32> to vector<16x32xbf16>
    %cst_101 = arith.constant dense<0.000000e+00> : vector<16x34xf32>
    %470 = tpu.matmul %469, %2, %cst_101 {dimension_numbers = #tpu.dot_dimension_numbers<[1], [0], [0], [1], [0, 0, 1, 1], [], []>} : vector<16x32xbf16>, vector<32x34xbf16>, vector<16x34xf32> -> vector<16x34xf32>
    %471 = vector.shape_cast %470 : vector<16x34xf32> to vector<2x8x34xf32>
    %472 = vector.extract_strided_slice %471 {offsets = [0, 0, 0], sizes = [2, 8, 32], strides = [1, 1, 1]} : vector<2x8x34xf32> to vector<2x8x32xf32>
    %473 = vector.extract_strided_slice %471 {offsets = [0, 0, 32], sizes = [2, 8, 1], strides = [1, 1, 1]} : vector<2x8x34xf32> to vector<2x8x1xf32>
    %474 = vector.extract_strided_slice %471 {offsets = [0, 0, 33], sizes = [2, 8, 1], strides = [1, 1, 1]} : vector<2x8x34xf32> to vector<2x8x1xf32>
    %475 = vector.shape_cast %474 : vector<2x8x1xf32> to vector<2x8xf32>
    %476 = vector.shape_cast %475 : vector<2x8xf32> to vector<2x1x8xf32>
    %477 = vector.broadcast %473 : vector<2x8x1xf32> to vector<2x8x8xf32>
    %478 = vector.broadcast %476 : vector<2x1x8xf32> to vector<2x8x8xf32>
    %479 = arith.addf %477, %478 : vector<2x8x8xf32>
    %cst_102 = arith.constant 2.000000e-01 : f32
    %480 = vector.broadcast %cst_102 : f32 to vector<2x8x8xf32>
    %481 = arith.mulf %480, %479 : vector<2x8x8xf32>
    %482 = arith.maximumf %479, %481 : vector<2x8x8xf32>
    %483 = vector.broadcast %1 : vector<1x8x8xf32> to vector<2x8x8xf32>
    %484 = arith.addf %482, %483 : vector<2x8x8xf32>
    %cst_103 = arith.constant dense<0xFF800000> : vector<2x8xf32>
    %485 = vector.multi_reduction <maximumf>, %484, %cst_103 [2] : vector<2x8x8xf32> to vector<2x8xf32>
    %486 = vector.shape_cast %485 : vector<2x8xf32> to vector<2x8x1xf32>
    %487 = vector.broadcast %486 : vector<2x8x1xf32> to vector<2x8x8xf32>
    %488 = arith.subf %484, %487 : vector<2x8x8xf32>
    %489 = math.exp %488 : vector<2x8x8xf32>
    %cst_104 = arith.constant dense<0.000000e+00> : vector<2x8xf32>
    %490 = vector.multi_reduction <add>, %489, %cst_104 [2] : vector<2x8x8xf32> to vector<2x8xf32>
    %491 = vector.shape_cast %490 : vector<2x8xf32> to vector<2x8x1xf32>
    %492 = vector.broadcast %491 : vector<2x8x1xf32> to vector<2x8x8xf32>
    %493 = arith.divf %489, %492 : vector<2x8x8xf32>
    %494 = arith.truncf %493 : vector<2x8x8xf32> to vector<2x8x8xbf16>
    %495 = arith.truncf %472 : vector<2x8x32xf32> to vector<2x8x32xbf16>
    "tpu.trace_start"() <{level = 10 : i32, message = "bij,bjh->bih"}> : () -> ()
    %cst_105 = arith.constant dense<0.000000e+00> : vector<2x8x32xf32>
    %496 = tpu.matmul %494, %495, %cst_105 {dimension_numbers = #tpu.dot_dimension_numbers<[2], [1], [1], [2], [0, 0, 0, 1, 1, 2], [0], [0]>} : vector<2x8x8xbf16>, vector<2x8x32xbf16>, vector<2x8x32xf32> -> vector<2x8x32xf32>
    "tpu.trace_stop"() : () -> ()
    %497 = math.tanh %496 : vector<2x8x32xf32>
    %cst_106 = arith.constant 1.250000e-01 : f32
    %498 = vector.broadcast %cst_106 : f32 to vector<2x8x32xf32>
    %499 = arith.mulf %498, %497 : vector<2x8x32xf32>
    %500 = arith.addf %434, %499 : vector<2x8x32xf32>
    %501 = vector.shape_cast %500 : vector<2x8x32xf32> to vector<16x32xf32>
    %502 = arith.truncf %501 : vector<16x32xf32> to vector<16x32xbf16>
    %cst_107 = arith.constant dense<0.000000e+00> : vector<16x34xf32>
    %503 = tpu.matmul %502, %2, %cst_107 {dimension_numbers = #tpu.dot_dimension_numbers<[1], [0], [0], [1], [0, 0, 1, 1], [], []>} : vector<16x32xbf16>, vector<32x34xbf16>, vector<16x34xf32> -> vector<16x34xf32>
    %504 = vector.shape_cast %503 : vector<16x34xf32> to vector<2x8x34xf32>
    %505 = vector.extract_strided_slice %504 {offsets = [0, 0, 0], sizes = [2, 8, 32], strides = [1, 1, 1]} : vector<2x8x34xf32> to vector<2x8x32xf32>
    %506 = vector.extract_strided_slice %504 {offsets = [0, 0, 32], sizes = [2, 8, 1], strides = [1, 1, 1]} : vector<2x8x34xf32> to vector<2x8x1xf32>
    %507 = vector.extract_strided_slice %504 {offsets = [0, 0, 33], sizes = [2, 8, 1], strides = [1, 1, 1]} : vector<2x8x34xf32> to vector<2x8x1xf32>
    %508 = vector.shape_cast %507 : vector<2x8x1xf32> to vector<2x8xf32>
    %509 = vector.shape_cast %508 : vector<2x8xf32> to vector<2x1x8xf32>
    %510 = vector.broadcast %506 : vector<2x8x1xf32> to vector<2x8x8xf32>
    %511 = vector.broadcast %509 : vector<2x1x8xf32> to vector<2x8x8xf32>
    %512 = arith.addf %510, %511 : vector<2x8x8xf32>
    %cst_108 = arith.constant 2.000000e-01 : f32
    %513 = vector.broadcast %cst_108 : f32 to vector<2x8x8xf32>
    %514 = arith.mulf %513, %512 : vector<2x8x8xf32>
    %515 = arith.maximumf %512, %514 : vector<2x8x8xf32>
    %516 = vector.broadcast %1 : vector<1x8x8xf32> to vector<2x8x8xf32>
    %517 = arith.addf %515, %516 : vector<2x8x8xf32>
    %cst_109 = arith.constant dense<0xFF800000> : vector<2x8xf32>
    %518 = vector.multi_reduction <maximumf>, %517, %cst_109 [2] : vector<2x8x8xf32> to vector<2x8xf32>
    %519 = vector.shape_cast %518 : vector<2x8xf32> to vector<2x8x1xf32>
    %520 = vector.broadcast %519 : vector<2x8x1xf32> to vector<2x8x8xf32>
    %521 = arith.subf %517, %520 : vector<2x8x8xf32>
    %522 = math.exp %521 : vector<2x8x8xf32>
    %cst_110 = arith.constant dense<0.000000e+00> : vector<2x8xf32>
    %523 = vector.multi_reduction <add>, %522, %cst_110 [2] : vector<2x8x8xf32> to vector<2x8xf32>
    %524 = vector.shape_cast %523 : vector<2x8xf32> to vector<2x8x1xf32>
    %525 = vector.broadcast %524 : vector<2x8x1xf32> to vector<2x8x8xf32>
    %526 = arith.divf %522, %525 : vector<2x8x8xf32>
    %527 = arith.truncf %526 : vector<2x8x8xf32> to vector<2x8x8xbf16>
    %528 = arith.truncf %505 : vector<2x8x32xf32> to vector<2x8x32xbf16>
    "tpu.trace_start"() <{level = 10 : i32, message = "bij,bjh->bih"}> : () -> ()
    %cst_111 = arith.constant dense<0.000000e+00> : vector<2x8x32xf32>
    %529 = tpu.matmul %527, %528, %cst_111 {dimension_numbers = #tpu.dot_dimension_numbers<[2], [1], [1], [2], [0, 0, 0, 1, 1, 2], [0], [0]>} : vector<2x8x8xbf16>, vector<2x8x32xbf16>, vector<2x8x32xf32> -> vector<2x8x32xf32>
    "tpu.trace_stop"() : () -> ()
    %530 = math.tanh %529 : vector<2x8x32xf32>
    %cst_112 = arith.constant 2.500000e-01 : f32
    %531 = vector.broadcast %cst_112 : f32 to vector<2x8x32xf32>
    %532 = arith.mulf %531, %530 : vector<2x8x32xf32>
    %533 = arith.addf %434, %532 : vector<2x8x32xf32>
    %534 = vector.shape_cast %533 : vector<2x8x32xf32> to vector<16x32xf32>
    %535 = arith.truncf %534 : vector<16x32xf32> to vector<16x32xbf16>
    %cst_113 = arith.constant dense<0.000000e+00> : vector<16x34xf32>
    %536 = tpu.matmul %535, %2, %cst_113 {dimension_numbers = #tpu.dot_dimension_numbers<[1], [0], [0], [1], [0, 0, 1, 1], [], []>} : vector<16x32xbf16>, vector<32x34xbf16>, vector<16x34xf32> -> vector<16x34xf32>
    %537 = vector.shape_cast %536 : vector<16x34xf32> to vector<2x8x34xf32>
    %538 = vector.extract_strided_slice %537 {offsets = [0, 0, 0], sizes = [2, 8, 32], strides = [1, 1, 1]} : vector<2x8x34xf32> to vector<2x8x32xf32>
    %539 = vector.extract_strided_slice %537 {offsets = [0, 0, 32], sizes = [2, 8, 1], strides = [1, 1, 1]} : vector<2x8x34xf32> to vector<2x8x1xf32>
    %540 = vector.extract_strided_slice %537 {offsets = [0, 0, 33], sizes = [2, 8, 1], strides = [1, 1, 1]} : vector<2x8x34xf32> to vector<2x8x1xf32>
    %541 = vector.shape_cast %540 : vector<2x8x1xf32> to vector<2x8xf32>
    %542 = vector.shape_cast %541 : vector<2x8xf32> to vector<2x1x8xf32>
    %543 = vector.broadcast %539 : vector<2x8x1xf32> to vector<2x8x8xf32>
    %544 = vector.broadcast %542 : vector<2x1x8xf32> to vector<2x8x8xf32>
    %545 = arith.addf %543, %544 : vector<2x8x8xf32>
    %cst_114 = arith.constant 2.000000e-01 : f32
    %546 = vector.broadcast %cst_114 : f32 to vector<2x8x8xf32>
    %547 = arith.mulf %546, %545 : vector<2x8x8xf32>
    %548 = arith.maximumf %545, %547 : vector<2x8x8xf32>
    %549 = vector.broadcast %1 : vector<1x8x8xf32> to vector<2x8x8xf32>
    %550 = arith.addf %548, %549 : vector<2x8x8xf32>
    %cst_115 = arith.constant dense<0xFF800000> : vector<2x8xf32>
    %551 = vector.multi_reduction <maximumf>, %550, %cst_115 [2] : vector<2x8x8xf32> to vector<2x8xf32>
    %552 = vector.shape_cast %551 : vector<2x8xf32> to vector<2x8x1xf32>
    %553 = vector.broadcast %552 : vector<2x8x1xf32> to vector<2x8x8xf32>
    %554 = arith.subf %550, %553 : vector<2x8x8xf32>
    %555 = math.exp %554 : vector<2x8x8xf32>
    %cst_116 = arith.constant dense<0.000000e+00> : vector<2x8xf32>
    %556 = vector.multi_reduction <add>, %555, %cst_116 [2] : vector<2x8x8xf32> to vector<2x8xf32>
    %557 = vector.shape_cast %556 : vector<2x8xf32> to vector<2x8x1xf32>
    %558 = vector.broadcast %557 : vector<2x8x1xf32> to vector<2x8x8xf32>
    %559 = arith.divf %555, %558 : vector<2x8x8xf32>
    %560 = arith.truncf %559 : vector<2x8x8xf32> to vector<2x8x8xbf16>
    %561 = arith.truncf %538 : vector<2x8x32xf32> to vector<2x8x32xbf16>
    "tpu.trace_start"() <{level = 10 : i32, message = "bij,bjh->bih"}> : () -> ()
    %cst_117 = arith.constant dense<0.000000e+00> : vector<2x8x32xf32>
    %562 = tpu.matmul %560, %561, %cst_117 {dimension_numbers = #tpu.dot_dimension_numbers<[2], [1], [1], [2], [0, 0, 0, 1, 1, 2], [0], [0]>} : vector<2x8x8xbf16>, vector<2x8x32xbf16>, vector<2x8x32xf32> -> vector<2x8x32xf32>
    "tpu.trace_stop"() : () -> ()
    %563 = math.tanh %562 : vector<2x8x32xf32>
    %cst_118 = arith.constant 2.000000e+00 : f32
    %564 = vector.broadcast %cst_118 : f32 to vector<2x8x32xf32>
    %565 = arith.mulf %564, %497 : vector<2x8x32xf32>
    %566 = arith.addf %464, %565 : vector<2x8x32xf32>
    %cst_119 = arith.constant 2.000000e+00 : f32
    %567 = vector.broadcast %cst_119 : f32 to vector<2x8x32xf32>
    %568 = arith.mulf %567, %530 : vector<2x8x32xf32>
    %569 = arith.addf %566, %568 : vector<2x8x32xf32>
    %570 = arith.addf %569, %563 : vector<2x8x32xf32>
    %cst_120 = arith.constant 0.0416666679 : f32
    %571 = vector.broadcast %cst_120 : f32 to vector<2x8x32xf32>
    %572 = arith.mulf %571, %570 : vector<2x8x32xf32>
    %573 = arith.addf %434, %572 : vector<2x8x32xf32>
    %574 = vector.shape_cast %573 : vector<2x8x32xf32> to vector<16x32xf32>
    %cst_121 = arith.constant dense<0.000000e+00> : vector<16xf32>
    %575 = vector.multi_reduction <add>, %574, %cst_121 [1] : vector<16x32xf32> to vector<16xf32>
    %576 = vector.shape_cast %575 : vector<16xf32> to vector<16x1xf32>
    %cst_122 = arith.constant 3.200000e+01 : f32
    %577 = vector.broadcast %cst_122 : f32 to vector<16x1xf32>
    %578 = arith.divf %576, %577 : vector<16x1xf32>
    %579 = vector.broadcast %578 : vector<16x1xf32> to vector<16x32xf32>
    %580 = arith.subf %574, %579 : vector<16x32xf32>
    %581 = arith.mulf %580, %580 : vector<16x32xf32>
    %cst_123 = arith.constant dense<0.000000e+00> : vector<16xf32>
    %582 = vector.multi_reduction <add>, %581, %cst_123 [1] : vector<16x32xf32> to vector<16xf32>
    %583 = vector.shape_cast %582 : vector<16xf32> to vector<16x1xf32>
    %cst_124 = arith.constant 3.200000e+01 : f32
    %584 = vector.broadcast %cst_124 : f32 to vector<16x1xf32>
    %585 = arith.divf %583, %584 : vector<16x1xf32>
    %586 = vector.broadcast %578 : vector<16x1xf32> to vector<16x32xf32>
    %587 = arith.subf %574, %586 : vector<16x32xf32>
    %cst_125 = arith.constant 9.99999974E-6 : f32
    %588 = vector.broadcast %cst_125 : f32 to vector<16x1xf32>
    %589 = arith.addf %585, %588 : vector<16x1xf32>
    %590 = math.rsqrt %589 : vector<16x1xf32>
    %591 = vector.broadcast %590 : vector<16x1xf32> to vector<16x32xf32>
    %592 = arith.mulf %587, %591 : vector<16x32xf32>
    %593 = vector.shape_cast %592 : vector<16x32xf32> to vector<2x8x32xf32>
    %c0_i32_126 = arith.constant 0 : i32
    %594 = vector.shape_cast %593 : vector<2x8x32xf32> to vector<16x32xf32>
    %595 = arith.truncf %594 : vector<16x32xf32> to vector<16x32xbf16>
    %cst_127 = arith.constant dense<0.000000e+00> : vector<16x34xf32>
    %596 = tpu.matmul %595, %2, %cst_127 {dimension_numbers = #tpu.dot_dimension_numbers<[1], [0], [0], [1], [0, 0, 1, 1], [], []>} : vector<16x32xbf16>, vector<32x34xbf16>, vector<16x34xf32> -> vector<16x34xf32>
    %597 = vector.shape_cast %596 : vector<16x34xf32> to vector<2x8x34xf32>
    %598 = vector.extract_strided_slice %597 {offsets = [0, 0, 0], sizes = [2, 8, 32], strides = [1, 1, 1]} : vector<2x8x34xf32> to vector<2x8x32xf32>
    %599 = vector.extract_strided_slice %597 {offsets = [0, 0, 32], sizes = [2, 8, 1], strides = [1, 1, 1]} : vector<2x8x34xf32> to vector<2x8x1xf32>
    %600 = vector.extract_strided_slice %597 {offsets = [0, 0, 33], sizes = [2, 8, 1], strides = [1, 1, 1]} : vector<2x8x34xf32> to vector<2x8x1xf32>
    %601 = vector.shape_cast %600 : vector<2x8x1xf32> to vector<2x8xf32>
    %602 = vector.shape_cast %601 : vector<2x8xf32> to vector<2x1x8xf32>
    %603 = vector.broadcast %599 : vector<2x8x1xf32> to vector<2x8x8xf32>
    %604 = vector.broadcast %602 : vector<2x1x8xf32> to vector<2x8x8xf32>
    %605 = arith.addf %603, %604 : vector<2x8x8xf32>
    %cst_128 = arith.constant 2.000000e-01 : f32
    %606 = vector.broadcast %cst_128 : f32 to vector<2x8x8xf32>
    %607 = arith.mulf %606, %605 : vector<2x8x8xf32>
    %608 = arith.maximumf %605, %607 : vector<2x8x8xf32>
    %609 = vector.broadcast %1 : vector<1x8x8xf32> to vector<2x8x8xf32>
    %610 = arith.addf %608, %609 : vector<2x8x8xf32>
    %cst_129 = arith.constant dense<0xFF800000> : vector<2x8xf32>
    %611 = vector.multi_reduction <maximumf>, %610, %cst_129 [2] : vector<2x8x8xf32> to vector<2x8xf32>
    %612 = vector.shape_cast %611 : vector<2x8xf32> to vector<2x8x1xf32>
    %613 = vector.broadcast %612 : vector<2x8x1xf32> to vector<2x8x8xf32>
    %614 = arith.subf %610, %613 : vector<2x8x8xf32>
    %615 = math.exp %614 : vector<2x8x8xf32>
    %cst_130 = arith.constant dense<0.000000e+00> : vector<2x8xf32>
    %616 = vector.multi_reduction <add>, %615, %cst_130 [2] : vector<2x8x8xf32> to vector<2x8xf32>
    %617 = vector.shape_cast %616 : vector<2x8xf32> to vector<2x8x1xf32>
    %618 = vector.broadcast %617 : vector<2x8x1xf32> to vector<2x8x8xf32>
    %619 = arith.divf %615, %618 : vector<2x8x8xf32>
    %620 = arith.truncf %619 : vector<2x8x8xf32> to vector<2x8x8xbf16>
    %621 = arith.truncf %598 : vector<2x8x32xf32> to vector<2x8x32xbf16>
    "tpu.trace_start"() <{level = 10 : i32, message = "bij,bjh->bih"}> : () -> ()
    %cst_131 = arith.constant dense<0.000000e+00> : vector<2x8x32xf32>
    %622 = tpu.matmul %620, %621, %cst_131 {dimension_numbers = #tpu.dot_dimension_numbers<[2], [1], [1], [2], [0, 0, 0, 1, 1, 2], [0], [0]>} : vector<2x8x8xbf16>, vector<2x8x32xbf16>, vector<2x8x32xf32> -> vector<2x8x32xf32>
    "tpu.trace_stop"() : () -> ()
    %623 = math.tanh %622 : vector<2x8x32xf32>
    %cst_132 = arith.constant 1.250000e-01 : f32
    %624 = vector.broadcast %cst_132 : f32 to vector<2x8x32xf32>
    %625 = arith.mulf %624, %623 : vector<2x8x32xf32>
    %626 = arith.addf %593, %625 : vector<2x8x32xf32>
    %627 = vector.shape_cast %626 : vector<2x8x32xf32> to vector<16x32xf32>
    %628 = arith.truncf %627 : vector<16x32xf32> to vector<16x32xbf16>
    %cst_133 = arith.constant dense<0.000000e+00> : vector<16x34xf32>
    %629 = tpu.matmul %628, %2, %cst_133 {dimension_numbers = #tpu.dot_dimension_numbers<[1], [0], [0], [1], [0, 0, 1, 1], [], []>} : vector<16x32xbf16>, vector<32x34xbf16>, vector<16x34xf32> -> vector<16x34xf32>
    %630 = vector.shape_cast %629 : vector<16x34xf32> to vector<2x8x34xf32>
    %631 = vector.extract_strided_slice %630 {offsets = [0, 0, 0], sizes = [2, 8, 32], strides = [1, 1, 1]} : vector<2x8x34xf32> to vector<2x8x32xf32>
    %632 = vector.extract_strided_slice %630 {offsets = [0, 0, 32], sizes = [2, 8, 1], strides = [1, 1, 1]} : vector<2x8x34xf32> to vector<2x8x1xf32>
    %633 = vector.extract_strided_slice %630 {offsets = [0, 0, 33], sizes = [2, 8, 1], strides = [1, 1, 1]} : vector<2x8x34xf32> to vector<2x8x1xf32>
    %634 = vector.shape_cast %633 : vector<2x8x1xf32> to vector<2x8xf32>
    %635 = vector.shape_cast %634 : vector<2x8xf32> to vector<2x1x8xf32>
    %636 = vector.broadcast %632 : vector<2x8x1xf32> to vector<2x8x8xf32>
    %637 = vector.broadcast %635 : vector<2x1x8xf32> to vector<2x8x8xf32>
    %638 = arith.addf %636, %637 : vector<2x8x8xf32>
    %cst_134 = arith.constant 2.000000e-01 : f32
    %639 = vector.broadcast %cst_134 : f32 to vector<2x8x8xf32>
    %640 = arith.mulf %639, %638 : vector<2x8x8xf32>
    %641 = arith.maximumf %638, %640 : vector<2x8x8xf32>
    %642 = vector.broadcast %1 : vector<1x8x8xf32> to vector<2x8x8xf32>
    %643 = arith.addf %641, %642 : vector<2x8x8xf32>
    %cst_135 = arith.constant dense<0xFF800000> : vector<2x8xf32>
    %644 = vector.multi_reduction <maximumf>, %643, %cst_135 [2] : vector<2x8x8xf32> to vector<2x8xf32>
    %645 = vector.shape_cast %644 : vector<2x8xf32> to vector<2x8x1xf32>
    %646 = vector.broadcast %645 : vector<2x8x1xf32> to vector<2x8x8xf32>
    %647 = arith.subf %643, %646 : vector<2x8x8xf32>
    %648 = math.exp %647 : vector<2x8x8xf32>
    %cst_136 = arith.constant dense<0.000000e+00> : vector<2x8xf32>
    %649 = vector.multi_reduction <add>, %648, %cst_136 [2] : vector<2x8x8xf32> to vector<2x8xf32>
    %650 = vector.shape_cast %649 : vector<2x8xf32> to vector<2x8x1xf32>
    %651 = vector.broadcast %650 : vector<2x8x1xf32> to vector<2x8x8xf32>
    %652 = arith.divf %648, %651 : vector<2x8x8xf32>
    %653 = arith.truncf %652 : vector<2x8x8xf32> to vector<2x8x8xbf16>
    %654 = arith.truncf %631 : vector<2x8x32xf32> to vector<2x8x32xbf16>
    "tpu.trace_start"() <{level = 10 : i32, message = "bij,bjh->bih"}> : () -> ()
    %cst_137 = arith.constant dense<0.000000e+00> : vector<2x8x32xf32>
    %655 = tpu.matmul %653, %654, %cst_137 {dimension_numbers = #tpu.dot_dimension_numbers<[2], [1], [1], [2], [0, 0, 0, 1, 1, 2], [0], [0]>} : vector<2x8x8xbf16>, vector<2x8x32xbf16>, vector<2x8x32xf32> -> vector<2x8x32xf32>
    "tpu.trace_stop"() : () -> ()
    %656 = math.tanh %655 : vector<2x8x32xf32>
    %cst_138 = arith.constant 1.250000e-01 : f32
    %657 = vector.broadcast %cst_138 : f32 to vector<2x8x32xf32>
    %658 = arith.mulf %657, %656 : vector<2x8x32xf32>
    %659 = arith.addf %593, %658 : vector<2x8x32xf32>
    %660 = vector.shape_cast %659 : vector<2x8x32xf32> to vector<16x32xf32>
    %661 = arith.truncf %660 : vector<16x32xf32> to vector<16x32xbf16>
    %cst_139 = arith.constant dense<0.000000e+00> : vector<16x34xf32>
    %662 = tpu.matmul %661, %2, %cst_139 {dimension_numbers = #tpu.dot_dimension_numbers<[1], [0], [0], [1], [0, 0, 1, 1], [], []>} : vector<16x32xbf16>, vector<32x34xbf16>, vector<16x34xf32> -> vector<16x34xf32>
    %663 = vector.shape_cast %662 : vector<16x34xf32> to vector<2x8x34xf32>
    %664 = vector.extract_strided_slice %663 {offsets = [0, 0, 0], sizes = [2, 8, 32], strides = [1, 1, 1]} : vector<2x8x34xf32> to vector<2x8x32xf32>
    %665 = vector.extract_strided_slice %663 {offsets = [0, 0, 32], sizes = [2, 8, 1], strides = [1, 1, 1]} : vector<2x8x34xf32> to vector<2x8x1xf32>
    %666 = vector.extract_strided_slice %663 {offsets = [0, 0, 33], sizes = [2, 8, 1], strides = [1, 1, 1]} : vector<2x8x34xf32> to vector<2x8x1xf32>
    %667 = vector.shape_cast %666 : vector<2x8x1xf32> to vector<2x8xf32>
    %668 = vector.shape_cast %667 : vector<2x8xf32> to vector<2x1x8xf32>
    %669 = vector.broadcast %665 : vector<2x8x1xf32> to vector<2x8x8xf32>
    %670 = vector.broadcast %668 : vector<2x1x8xf32> to vector<2x8x8xf32>
    %671 = arith.addf %669, %670 : vector<2x8x8xf32>
    %cst_140 = arith.constant 2.000000e-01 : f32
    %672 = vector.broadcast %cst_140 : f32 to vector<2x8x8xf32>
    %673 = arith.mulf %672, %671 : vector<2x8x8xf32>
    %674 = arith.maximumf %671, %673 : vector<2x8x8xf32>
    %675 = vector.broadcast %1 : vector<1x8x8xf32> to vector<2x8x8xf32>
    %676 = arith.addf %674, %675 : vector<2x8x8xf32>
    %cst_141 = arith.constant dense<0xFF800000> : vector<2x8xf32>
    %677 = vector.multi_reduction <maximumf>, %676, %cst_141 [2] : vector<2x8x8xf32> to vector<2x8xf32>
    %678 = vector.shape_cast %677 : vector<2x8xf32> to vector<2x8x1xf32>
    %679 = vector.broadcast %678 : vector<2x8x1xf32> to vector<2x8x8xf32>
    %680 = arith.subf %676, %679 : vector<2x8x8xf32>
    %681 = math.exp %680 : vector<2x8x8xf32>
    %cst_142 = arith.constant dense<0.000000e+00> : vector<2x8xf32>
    %682 = vector.multi_reduction <add>, %681, %cst_142 [2] : vector<2x8x8xf32> to vector<2x8xf32>
    %683 = vector.shape_cast %682 : vector<2x8xf32> to vector<2x8x1xf32>
    %684 = vector.broadcast %683 : vector<2x8x1xf32> to vector<2x8x8xf32>
    %685 = arith.divf %681, %684 : vector<2x8x8xf32>
    %686 = arith.truncf %685 : vector<2x8x8xf32> to vector<2x8x8xbf16>
    %687 = arith.truncf %664 : vector<2x8x32xf32> to vector<2x8x32xbf16>
    "tpu.trace_start"() <{level = 10 : i32, message = "bij,bjh->bih"}> : () -> ()
    %cst_143 = arith.constant dense<0.000000e+00> : vector<2x8x32xf32>
    %688 = tpu.matmul %686, %687, %cst_143 {dimension_numbers = #tpu.dot_dimension_numbers<[2], [1], [1], [2], [0, 0, 0, 1, 1, 2], [0], [0]>} : vector<2x8x8xbf16>, vector<2x8x32xbf16>, vector<2x8x32xf32> -> vector<2x8x32xf32>
    "tpu.trace_stop"() : () -> ()
    %689 = math.tanh %688 : vector<2x8x32xf32>
    %cst_144 = arith.constant 2.500000e-01 : f32
    %690 = vector.broadcast %cst_144 : f32 to vector<2x8x32xf32>
    %691 = arith.mulf %690, %689 : vector<2x8x32xf32>
    %692 = arith.addf %593, %691 : vector<2x8x32xf32>
    %693 = vector.shape_cast %692 : vector<2x8x32xf32> to vector<16x32xf32>
    %694 = arith.truncf %693 : vector<16x32xf32> to vector<16x32xbf16>
    %cst_145 = arith.constant dense<0.000000e+00> : vector<16x34xf32>
    %695 = tpu.matmul %694, %2, %cst_145 {dimension_numbers = #tpu.dot_dimension_numbers<[1], [0], [0], [1], [0, 0, 1, 1], [], []>} : vector<16x32xbf16>, vector<32x34xbf16>, vector<16x34xf32> -> vector<16x34xf32>
    %696 = vector.shape_cast %695 : vector<16x34xf32> to vector<2x8x34xf32>
    %697 = vector.extract_strided_slice %696 {offsets = [0, 0, 0], sizes = [2, 8, 32], strides = [1, 1, 1]} : vector<2x8x34xf32> to vector<2x8x32xf32>
    %698 = vector.extract_strided_slice %696 {offsets = [0, 0, 32], sizes = [2, 8, 1], strides = [1, 1, 1]} : vector<2x8x34xf32> to vector<2x8x1xf32>
    %699 = vector.extract_strided_slice %696 {offsets = [0, 0, 33], sizes = [2, 8, 1], strides = [1, 1, 1]} : vector<2x8x34xf32> to vector<2x8x1xf32>
    %700 = vector.shape_cast %699 : vector<2x8x1xf32> to vector<2x8xf32>
    %701 = vector.shape_cast %700 : vector<2x8xf32> to vector<2x1x8xf32>
    %702 = vector.broadcast %698 : vector<2x8x1xf32> to vector<2x8x8xf32>
    %703 = vector.broadcast %701 : vector<2x1x8xf32> to vector<2x8x8xf32>
    %704 = arith.addf %702, %703 : vector<2x8x8xf32>
    %cst_146 = arith.constant 2.000000e-01 : f32
    %705 = vector.broadcast %cst_146 : f32 to vector<2x8x8xf32>
    %706 = arith.mulf %705, %704 : vector<2x8x8xf32>
    %707 = arith.maximumf %704, %706 : vector<2x8x8xf32>
    %708 = vector.broadcast %1 : vector<1x8x8xf32> to vector<2x8x8xf32>
    %709 = arith.addf %707, %708 : vector<2x8x8xf32>
    %cst_147 = arith.constant dense<0xFF800000> : vector<2x8xf32>
    %710 = vector.multi_reduction <maximumf>, %709, %cst_147 [2] : vector<2x8x8xf32> to vector<2x8xf32>
    %711 = vector.shape_cast %710 : vector<2x8xf32> to vector<2x8x1xf32>
    %712 = vector.broadcast %711 : vector<2x8x1xf32> to vector<2x8x8xf32>
    %713 = arith.subf %709, %712 : vector<2x8x8xf32>
    %714 = math.exp %713 : vector<2x8x8xf32>
    %cst_148 = arith.constant dense<0.000000e+00> : vector<2x8xf32>
    %715 = vector.multi_reduction <add>, %714, %cst_148 [2] : vector<2x8x8xf32> to vector<2x8xf32>
    %716 = vector.shape_cast %715 : vector<2x8xf32> to vector<2x8x1xf32>
    %717 = vector.broadcast %716 : vector<2x8x1xf32> to vector<2x8x8xf32>
    %718 = arith.divf %714, %717 : vector<2x8x8xf32>
    %719 = arith.truncf %718 : vector<2x8x8xf32> to vector<2x8x8xbf16>
    %720 = arith.truncf %697 : vector<2x8x32xf32> to vector<2x8x32xbf16>
    "tpu.trace_start"() <{level = 10 : i32, message = "bij,bjh->bih"}> : () -> ()
    %cst_149 = arith.constant dense<0.000000e+00> : vector<2x8x32xf32>
    %721 = tpu.matmul %719, %720, %cst_149 {dimension_numbers = #tpu.dot_dimension_numbers<[2], [1], [1], [2], [0, 0, 0, 1, 1, 2], [0], [0]>} : vector<2x8x8xbf16>, vector<2x8x32xbf16>, vector<2x8x32xf32> -> vector<2x8x32xf32>
    "tpu.trace_stop"() : () -> ()
    %722 = math.tanh %721 : vector<2x8x32xf32>
    %cst_150 = arith.constant 2.000000e+00 : f32
    %723 = vector.broadcast %cst_150 : f32 to vector<2x8x32xf32>
    %724 = arith.mulf %723, %656 : vector<2x8x32xf32>
    %725 = arith.addf %623, %724 : vector<2x8x32xf32>
    %cst_151 = arith.constant 2.000000e+00 : f32
    %726 = vector.broadcast %cst_151 : f32 to vector<2x8x32xf32>
    %727 = arith.mulf %726, %689 : vector<2x8x32xf32>
    %728 = arith.addf %725, %727 : vector<2x8x32xf32>
    %729 = arith.addf %728, %722 : vector<2x8x32xf32>
    %cst_152 = arith.constant 0.0416666679 : f32
    %730 = vector.broadcast %cst_152 : f32 to vector<2x8x32xf32>
    %731 = arith.mulf %730, %729 : vector<2x8x32xf32>
    %732 = arith.addf %593, %731 : vector<2x8x32xf32>
    %c1_i32_153 = arith.constant 1 : i32
    %733 = vector.shape_cast %732 : vector<2x8x32xf32> to vector<16x32xf32>
    %734 = arith.truncf %733 : vector<16x32xf32> to vector<16x32xbf16>
    %cst_154 = arith.constant dense<0.000000e+00> : vector<16x34xf32>
    %735 = tpu.matmul %734, %2, %cst_154 {dimension_numbers = #tpu.dot_dimension_numbers<[1], [0], [0], [1], [0, 0, 1, 1], [], []>} : vector<16x32xbf16>, vector<32x34xbf16>, vector<16x34xf32> -> vector<16x34xf32>
    %736 = vector.shape_cast %735 : vector<16x34xf32> to vector<2x8x34xf32>
    %737 = vector.extract_strided_slice %736 {offsets = [0, 0, 0], sizes = [2, 8, 32], strides = [1, 1, 1]} : vector<2x8x34xf32> to vector<2x8x32xf32>
    %738 = vector.extract_strided_slice %736 {offsets = [0, 0, 32], sizes = [2, 8, 1], strides = [1, 1, 1]} : vector<2x8x34xf32> to vector<2x8x1xf32>
    %739 = vector.extract_strided_slice %736 {offsets = [0, 0, 33], sizes = [2, 8, 1], strides = [1, 1, 1]} : vector<2x8x34xf32> to vector<2x8x1xf32>
    %740 = vector.shape_cast %739 : vector<2x8x1xf32> to vector<2x8xf32>
    %741 = vector.shape_cast %740 : vector<2x8xf32> to vector<2x1x8xf32>
    %742 = vector.broadcast %738 : vector<2x8x1xf32> to vector<2x8x8xf32>
    %743 = vector.broadcast %741 : vector<2x1x8xf32> to vector<2x8x8xf32>
    %744 = arith.addf %742, %743 : vector<2x8x8xf32>
    %cst_155 = arith.constant 2.000000e-01 : f32
    %745 = vector.broadcast %cst_155 : f32 to vector<2x8x8xf32>
    %746 = arith.mulf %745, %744 : vector<2x8x8xf32>
    %747 = arith.maximumf %744, %746 : vector<2x8x8xf32>
    %748 = vector.broadcast %1 : vector<1x8x8xf32> to vector<2x8x8xf32>
    %749 = arith.addf %747, %748 : vector<2x8x8xf32>
    %cst_156 = arith.constant dense<0xFF800000> : vector<2x8xf32>
    %750 = vector.multi_reduction <maximumf>, %749, %cst_156 [2] : vector<2x8x8xf32> to vector<2x8xf32>
    %751 = vector.shape_cast %750 : vector<2x8xf32> to vector<2x8x1xf32>
    %752 = vector.broadcast %751 : vector<2x8x1xf32> to vector<2x8x8xf32>
    %753 = arith.subf %749, %752 : vector<2x8x8xf32>
    %754 = math.exp %753 : vector<2x8x8xf32>
    %cst_157 = arith.constant dense<0.000000e+00> : vector<2x8xf32>
    %755 = vector.multi_reduction <add>, %754, %cst_157 [2] : vector<2x8x8xf32> to vector<2x8xf32>
    %756 = vector.shape_cast %755 : vector<2x8xf32> to vector<2x8x1xf32>
    %757 = vector.broadcast %756 : vector<2x8x1xf32> to vector<2x8x8xf32>
    %758 = arith.divf %754, %757 : vector<2x8x8xf32>
    %759 = arith.truncf %758 : vector<2x8x8xf32> to vector<2x8x8xbf16>
    %760 = arith.truncf %737 : vector<2x8x32xf32> to vector<2x8x32xbf16>
    "tpu.trace_start"() <{level = 10 : i32, message = "bij,bjh->bih"}> : () -> ()
    %cst_158 = arith.constant dense<0.000000e+00> : vector<2x8x32xf32>
    %761 = tpu.matmul %759, %760, %cst_158 {dimension_numbers = #tpu.dot_dimension_numbers<[2], [1], [1], [2], [0, 0, 0, 1, 1, 2], [0], [0]>} : vector<2x8x8xbf16>, vector<2x8x32xbf16>, vector<2x8x32xf32> -> vector<2x8x32xf32>
    "tpu.trace_stop"() : () -> ()
    %762 = math.tanh %761 : vector<2x8x32xf32>
    %cst_159 = arith.constant 1.250000e-01 : f32
    %763 = vector.broadcast %cst_159 : f32 to vector<2x8x32xf32>
    %764 = arith.mulf %763, %762 : vector<2x8x32xf32>
    %765 = arith.addf %732, %764 : vector<2x8x32xf32>
    %766 = vector.shape_cast %765 : vector<2x8x32xf32> to vector<16x32xf32>
    %767 = arith.truncf %766 : vector<16x32xf32> to vector<16x32xbf16>
    %cst_160 = arith.constant dense<0.000000e+00> : vector<16x34xf32>
    %768 = tpu.matmul %767, %2, %cst_160 {dimension_numbers = #tpu.dot_dimension_numbers<[1], [0], [0], [1], [0, 0, 1, 1], [], []>} : vector<16x32xbf16>, vector<32x34xbf16>, vector<16x34xf32> -> vector<16x34xf32>
    %769 = vector.shape_cast %768 : vector<16x34xf32> to vector<2x8x34xf32>
    %770 = vector.extract_strided_slice %769 {offsets = [0, 0, 0], sizes = [2, 8, 32], strides = [1, 1, 1]} : vector<2x8x34xf32> to vector<2x8x32xf32>
    %771 = vector.extract_strided_slice %769 {offsets = [0, 0, 32], sizes = [2, 8, 1], strides = [1, 1, 1]} : vector<2x8x34xf32> to vector<2x8x1xf32>
    %772 = vector.extract_strided_slice %769 {offsets = [0, 0, 33], sizes = [2, 8, 1], strides = [1, 1, 1]} : vector<2x8x34xf32> to vector<2x8x1xf32>
    %773 = vector.shape_cast %772 : vector<2x8x1xf32> to vector<2x8xf32>
    %774 = vector.shape_cast %773 : vector<2x8xf32> to vector<2x1x8xf32>
    %775 = vector.broadcast %771 : vector<2x8x1xf32> to vector<2x8x8xf32>
    %776 = vector.broadcast %774 : vector<2x1x8xf32> to vector<2x8x8xf32>
    %777 = arith.addf %775, %776 : vector<2x8x8xf32>
    %cst_161 = arith.constant 2.000000e-01 : f32
    %778 = vector.broadcast %cst_161 : f32 to vector<2x8x8xf32>
    %779 = arith.mulf %778, %777 : vector<2x8x8xf32>
    %780 = arith.maximumf %777, %779 : vector<2x8x8xf32>
    %781 = vector.broadcast %1 : vector<1x8x8xf32> to vector<2x8x8xf32>
    %782 = arith.addf %780, %781 : vector<2x8x8xf32>
    %cst_162 = arith.constant dense<0xFF800000> : vector<2x8xf32>
    %783 = vector.multi_reduction <maximumf>, %782, %cst_162 [2] : vector<2x8x8xf32> to vector<2x8xf32>
    %784 = vector.shape_cast %783 : vector<2x8xf32> to vector<2x8x1xf32>
    %785 = vector.broadcast %784 : vector<2x8x1xf32> to vector<2x8x8xf32>
    %786 = arith.subf %782, %785 : vector<2x8x8xf32>
    %787 = math.exp %786 : vector<2x8x8xf32>
    %cst_163 = arith.constant dense<0.000000e+00> : vector<2x8xf32>
    %788 = vector.multi_reduction <add>, %787, %cst_163 [2] : vector<2x8x8xf32> to vector<2x8xf32>
    %789 = vector.shape_cast %788 : vector<2x8xf32> to vector<2x8x1xf32>
    %790 = vector.broadcast %789 : vector<2x8x1xf32> to vector<2x8x8xf32>
    %791 = arith.divf %787, %790 : vector<2x8x8xf32>
    %792 = arith.truncf %791 : vector<2x8x8xf32> to vector<2x8x8xbf16>
    %793 = arith.truncf %770 : vector<2x8x32xf32> to vector<2x8x32xbf16>
    "tpu.trace_start"() <{level = 10 : i32, message = "bij,bjh->bih"}> : () -> ()
    %cst_164 = arith.constant dense<0.000000e+00> : vector<2x8x32xf32>
    %794 = tpu.matmul %792, %793, %cst_164 {dimension_numbers = #tpu.dot_dimension_numbers<[2], [1], [1], [2], [0, 0, 0, 1, 1, 2], [0], [0]>} : vector<2x8x8xbf16>, vector<2x8x32xbf16>, vector<2x8x32xf32> -> vector<2x8x32xf32>
    "tpu.trace_stop"() : () -> ()
    %795 = math.tanh %794 : vector<2x8x32xf32>
    %cst_165 = arith.constant 1.250000e-01 : f32
    %796 = vector.broadcast %cst_165 : f32 to vector<2x8x32xf32>
    %797 = arith.mulf %796, %795 : vector<2x8x32xf32>
    %798 = arith.addf %732, %797 : vector<2x8x32xf32>
    %799 = vector.shape_cast %798 : vector<2x8x32xf32> to vector<16x32xf32>
    %800 = arith.truncf %799 : vector<16x32xf32> to vector<16x32xbf16>
    %cst_166 = arith.constant dense<0.000000e+00> : vector<16x34xf32>
    %801 = tpu.matmul %800, %2, %cst_166 {dimension_numbers = #tpu.dot_dimension_numbers<[1], [0], [0], [1], [0, 0, 1, 1], [], []>} : vector<16x32xbf16>, vector<32x34xbf16>, vector<16x34xf32> -> vector<16x34xf32>
    %802 = vector.shape_cast %801 : vector<16x34xf32> to vector<2x8x34xf32>
    %803 = vector.extract_strided_slice %802 {offsets = [0, 0, 0], sizes = [2, 8, 32], strides = [1, 1, 1]} : vector<2x8x34xf32> to vector<2x8x32xf32>
    %804 = vector.extract_strided_slice %802 {offsets = [0, 0, 32], sizes = [2, 8, 1], strides = [1, 1, 1]} : vector<2x8x34xf32> to vector<2x8x1xf32>
    %805 = vector.extract_strided_slice %802 {offsets = [0, 0, 33], sizes = [2, 8, 1], strides = [1, 1, 1]} : vector<2x8x34xf32> to vector<2x8x1xf32>
    %806 = vector.shape_cast %805 : vector<2x8x1xf32> to vector<2x8xf32>
    %807 = vector.shape_cast %806 : vector<2x8xf32> to vector<2x1x8xf32>
    %808 = vector.broadcast %804 : vector<2x8x1xf32> to vector<2x8x8xf32>
    %809 = vector.broadcast %807 : vector<2x1x8xf32> to vector<2x8x8xf32>
    %810 = arith.addf %808, %809 : vector<2x8x8xf32>
    %cst_167 = arith.constant 2.000000e-01 : f32
    %811 = vector.broadcast %cst_167 : f32 to vector<2x8x8xf32>
    %812 = arith.mulf %811, %810 : vector<2x8x8xf32>
    %813 = arith.maximumf %810, %812 : vector<2x8x8xf32>
    %814 = vector.broadcast %1 : vector<1x8x8xf32> to vector<2x8x8xf32>
    %815 = arith.addf %813, %814 : vector<2x8x8xf32>
    %cst_168 = arith.constant dense<0xFF800000> : vector<2x8xf32>
    %816 = vector.multi_reduction <maximumf>, %815, %cst_168 [2] : vector<2x8x8xf32> to vector<2x8xf32>
    %817 = vector.shape_cast %816 : vector<2x8xf32> to vector<2x8x1xf32>
    %818 = vector.broadcast %817 : vector<2x8x1xf32> to vector<2x8x8xf32>
    %819 = arith.subf %815, %818 : vector<2x8x8xf32>
    %820 = math.exp %819 : vector<2x8x8xf32>
    %cst_169 = arith.constant dense<0.000000e+00> : vector<2x8xf32>
    %821 = vector.multi_reduction <add>, %820, %cst_169 [2] : vector<2x8x8xf32> to vector<2x8xf32>
    %822 = vector.shape_cast %821 : vector<2x8xf32> to vector<2x8x1xf32>
    %823 = vector.broadcast %822 : vector<2x8x1xf32> to vector<2x8x8xf32>
    %824 = arith.divf %820, %823 : vector<2x8x8xf32>
    %825 = arith.truncf %824 : vector<2x8x8xf32> to vector<2x8x8xbf16>
    %826 = arith.truncf %803 : vector<2x8x32xf32> to vector<2x8x32xbf16>
    "tpu.trace_start"() <{level = 10 : i32, message = "bij,bjh->bih"}> : () -> ()
    %cst_170 = arith.constant dense<0.000000e+00> : vector<2x8x32xf32>
    %827 = tpu.matmul %825, %826, %cst_170 {dimension_numbers = #tpu.dot_dimension_numbers<[2], [1], [1], [2], [0, 0, 0, 1, 1, 2], [0], [0]>} : vector<2x8x8xbf16>, vector<2x8x32xbf16>, vector<2x8x32xf32> -> vector<2x8x32xf32>
    "tpu.trace_stop"() : () -> ()
    %828 = math.tanh %827 : vector<2x8x32xf32>
    %cst_171 = arith.constant 2.500000e-01 : f32
    %829 = vector.broadcast %cst_171 : f32 to vector<2x8x32xf32>
    %830 = arith.mulf %829, %828 : vector<2x8x32xf32>
    %831 = arith.addf %732, %830 : vector<2x8x32xf32>
    %832 = vector.shape_cast %831 : vector<2x8x32xf32> to vector<16x32xf32>
    %833 = arith.truncf %832 : vector<16x32xf32> to vector<16x32xbf16>
    %cst_172 = arith.constant dense<0.000000e+00> : vector<16x34xf32>
    %834 = tpu.matmul %833, %2, %cst_172 {dimension_numbers = #tpu.dot_dimension_numbers<[1], [0], [0], [1], [0, 0, 1, 1], [], []>} : vector<16x32xbf16>, vector<32x34xbf16>, vector<16x34xf32> -> vector<16x34xf32>
    %835 = vector.shape_cast %834 : vector<16x34xf32> to vector<2x8x34xf32>
    %836 = vector.extract_strided_slice %835 {offsets = [0, 0, 0], sizes = [2, 8, 32], strides = [1, 1, 1]} : vector<2x8x34xf32> to vector<2x8x32xf32>
    %837 = vector.extract_strided_slice %835 {offsets = [0, 0, 32], sizes = [2, 8, 1], strides = [1, 1, 1]} : vector<2x8x34xf32> to vector<2x8x1xf32>
    %838 = vector.extract_strided_slice %835 {offsets = [0, 0, 33], sizes = [2, 8, 1], strides = [1, 1, 1]} : vector<2x8x34xf32> to vector<2x8x1xf32>
    %839 = vector.shape_cast %838 : vector<2x8x1xf32> to vector<2x8xf32>
    %840 = vector.shape_cast %839 : vector<2x8xf32> to vector<2x1x8xf32>
    %841 = vector.broadcast %837 : vector<2x8x1xf32> to vector<2x8x8xf32>
    %842 = vector.broadcast %840 : vector<2x1x8xf32> to vector<2x8x8xf32>
    %843 = arith.addf %841, %842 : vector<2x8x8xf32>
    %cst_173 = arith.constant 2.000000e-01 : f32
    %844 = vector.broadcast %cst_173 : f32 to vector<2x8x8xf32>
    %845 = arith.mulf %844, %843 : vector<2x8x8xf32>
    %846 = arith.maximumf %843, %845 : vector<2x8x8xf32>
    %847 = vector.broadcast %1 : vector<1x8x8xf32> to vector<2x8x8xf32>
    %848 = arith.addf %846, %847 : vector<2x8x8xf32>
    %cst_174 = arith.constant dense<0xFF800000> : vector<2x8xf32>
    %849 = vector.multi_reduction <maximumf>, %848, %cst_174 [2] : vector<2x8x8xf32> to vector<2x8xf32>
    %850 = vector.shape_cast %849 : vector<2x8xf32> to vector<2x8x1xf32>
    %851 = vector.broadcast %850 : vector<2x8x1xf32> to vector<2x8x8xf32>
    %852 = arith.subf %848, %851 : vector<2x8x8xf32>
    %853 = math.exp %852 : vector<2x8x8xf32>
    %cst_175 = arith.constant dense<0.000000e+00> : vector<2x8xf32>
    %854 = vector.multi_reduction <add>, %853, %cst_175 [2] : vector<2x8x8xf32> to vector<2x8xf32>
    %855 = vector.shape_cast %854 : vector<2x8xf32> to vector<2x8x1xf32>
    %856 = vector.broadcast %855 : vector<2x8x1xf32> to vector<2x8x8xf32>
    %857 = arith.divf %853, %856 : vector<2x8x8xf32>
    %858 = arith.truncf %857 : vector<2x8x8xf32> to vector<2x8x8xbf16>
    %859 = arith.truncf %836 : vector<2x8x32xf32> to vector<2x8x32xbf16>
    "tpu.trace_start"() <{level = 10 : i32, message = "bij,bjh->bih"}> : () -> ()
    %cst_176 = arith.constant dense<0.000000e+00> : vector<2x8x32xf32>
    %860 = tpu.matmul %858, %859, %cst_176 {dimension_numbers = #tpu.dot_dimension_numbers<[2], [1], [1], [2], [0, 0, 0, 1, 1, 2], [0], [0]>} : vector<2x8x8xbf16>, vector<2x8x32xbf16>, vector<2x8x32xf32> -> vector<2x8x32xf32>
    "tpu.trace_stop"() : () -> ()
    %861 = math.tanh %860 : vector<2x8x32xf32>
    %cst_177 = arith.constant 2.000000e+00 : f32
    %862 = vector.broadcast %cst_177 : f32 to vector<2x8x32xf32>
    %863 = arith.mulf %862, %795 : vector<2x8x32xf32>
    %864 = arith.addf %762, %863 : vector<2x8x32xf32>
    %cst_178 = arith.constant 2.000000e+00 : f32
    %865 = vector.broadcast %cst_178 : f32 to vector<2x8x32xf32>
    %866 = arith.mulf %865, %828 : vector<2x8x32xf32>
    %867 = arith.addf %864, %866 : vector<2x8x32xf32>
    %868 = arith.addf %867, %861 : vector<2x8x32xf32>
    %cst_179 = arith.constant 0.0416666679 : f32
    %869 = vector.broadcast %cst_179 : f32 to vector<2x8x32xf32>
    %870 = arith.mulf %869, %868 : vector<2x8x32xf32>
    %871 = arith.addf %732, %870 : vector<2x8x32xf32>
    %c2_i32_180 = arith.constant 2 : i32
    %872 = vector.shape_cast %871 : vector<2x8x32xf32> to vector<16x32xf32>
    %873 = arith.truncf %872 : vector<16x32xf32> to vector<16x32xbf16>
    %cst_181 = arith.constant dense<0.000000e+00> : vector<16x34xf32>
    %874 = tpu.matmul %873, %2, %cst_181 {dimension_numbers = #tpu.dot_dimension_numbers<[1], [0], [0], [1], [0, 0, 1, 1], [], []>} : vector<16x32xbf16>, vector<32x34xbf16>, vector<16x34xf32> -> vector<16x34xf32>
    %875 = vector.shape_cast %874 : vector<16x34xf32> to vector<2x8x34xf32>
    %876 = vector.extract_strided_slice %875 {offsets = [0, 0, 0], sizes = [2, 8, 32], strides = [1, 1, 1]} : vector<2x8x34xf32> to vector<2x8x32xf32>
    %877 = vector.extract_strided_slice %875 {offsets = [0, 0, 32], sizes = [2, 8, 1], strides = [1, 1, 1]} : vector<2x8x34xf32> to vector<2x8x1xf32>
    %878 = vector.extract_strided_slice %875 {offsets = [0, 0, 33], sizes = [2, 8, 1], strides = [1, 1, 1]} : vector<2x8x34xf32> to vector<2x8x1xf32>
    %879 = vector.shape_cast %878 : vector<2x8x1xf32> to vector<2x8xf32>
    %880 = vector.shape_cast %879 : vector<2x8xf32> to vector<2x1x8xf32>
    %881 = vector.broadcast %877 : vector<2x8x1xf32> to vector<2x8x8xf32>
    %882 = vector.broadcast %880 : vector<2x1x8xf32> to vector<2x8x8xf32>
    %883 = arith.addf %881, %882 : vector<2x8x8xf32>
    %cst_182 = arith.constant 2.000000e-01 : f32
    %884 = vector.broadcast %cst_182 : f32 to vector<2x8x8xf32>
    %885 = arith.mulf %884, %883 : vector<2x8x8xf32>
    %886 = arith.maximumf %883, %885 : vector<2x8x8xf32>
    %887 = vector.broadcast %1 : vector<1x8x8xf32> to vector<2x8x8xf32>
    %888 = arith.addf %886, %887 : vector<2x8x8xf32>
    %cst_183 = arith.constant dense<0xFF800000> : vector<2x8xf32>
    %889 = vector.multi_reduction <maximumf>, %888, %cst_183 [2] : vector<2x8x8xf32> to vector<2x8xf32>
    %890 = vector.shape_cast %889 : vector<2x8xf32> to vector<2x8x1xf32>
    %891 = vector.broadcast %890 : vector<2x8x1xf32> to vector<2x8x8xf32>
    %892 = arith.subf %888, %891 : vector<2x8x8xf32>
    %893 = math.exp %892 : vector<2x8x8xf32>
    %cst_184 = arith.constant dense<0.000000e+00> : vector<2x8xf32>
    %894 = vector.multi_reduction <add>, %893, %cst_184 [2] : vector<2x8x8xf32> to vector<2x8xf32>
    %895 = vector.shape_cast %894 : vector<2x8xf32> to vector<2x8x1xf32>
    %896 = vector.broadcast %895 : vector<2x8x1xf32> to vector<2x8x8xf32>
    %897 = arith.divf %893, %896 : vector<2x8x8xf32>
    %898 = arith.truncf %897 : vector<2x8x8xf32> to vector<2x8x8xbf16>
    %899 = arith.truncf %876 : vector<2x8x32xf32> to vector<2x8x32xbf16>
    "tpu.trace_start"() <{level = 10 : i32, message = "bij,bjh->bih"}> : () -> ()
    %cst_185 = arith.constant dense<0.000000e+00> : vector<2x8x32xf32>
    %900 = tpu.matmul %898, %899, %cst_185 {dimension_numbers = #tpu.dot_dimension_numbers<[2], [1], [1], [2], [0, 0, 0, 1, 1, 2], [0], [0]>} : vector<2x8x8xbf16>, vector<2x8x32xbf16>, vector<2x8x32xf32> -> vector<2x8x32xf32>
    "tpu.trace_stop"() : () -> ()
    %901 = math.tanh %900 : vector<2x8x32xf32>
    %cst_186 = arith.constant 1.250000e-01 : f32
    %902 = vector.broadcast %cst_186 : f32 to vector<2x8x32xf32>
    %903 = arith.mulf %902, %901 : vector<2x8x32xf32>
    %904 = arith.addf %871, %903 : vector<2x8x32xf32>
    %905 = vector.shape_cast %904 : vector<2x8x32xf32> to vector<16x32xf32>
    %906 = arith.truncf %905 : vector<16x32xf32> to vector<16x32xbf16>
    %cst_187 = arith.constant dense<0.000000e+00> : vector<16x34xf32>
    %907 = tpu.matmul %906, %2, %cst_187 {dimension_numbers = #tpu.dot_dimension_numbers<[1], [0], [0], [1], [0, 0, 1, 1], [], []>} : vector<16x32xbf16>, vector<32x34xbf16>, vector<16x34xf32> -> vector<16x34xf32>
    %908 = vector.shape_cast %907 : vector<16x34xf32> to vector<2x8x34xf32>
    %909 = vector.extract_strided_slice %908 {offsets = [0, 0, 0], sizes = [2, 8, 32], strides = [1, 1, 1]} : vector<2x8x34xf32> to vector<2x8x32xf32>
    %910 = vector.extract_strided_slice %908 {offsets = [0, 0, 32], sizes = [2, 8, 1], strides = [1, 1, 1]} : vector<2x8x34xf32> to vector<2x8x1xf32>
    %911 = vector.extract_strided_slice %908 {offsets = [0, 0, 33], sizes = [2, 8, 1], strides = [1, 1, 1]} : vector<2x8x34xf32> to vector<2x8x1xf32>
    %912 = vector.shape_cast %911 : vector<2x8x1xf32> to vector<2x8xf32>
    %913 = vector.shape_cast %912 : vector<2x8xf32> to vector<2x1x8xf32>
    %914 = vector.broadcast %910 : vector<2x8x1xf32> to vector<2x8x8xf32>
    %915 = vector.broadcast %913 : vector<2x1x8xf32> to vector<2x8x8xf32>
    %916 = arith.addf %914, %915 : vector<2x8x8xf32>
    %cst_188 = arith.constant 2.000000e-01 : f32
    %917 = vector.broadcast %cst_188 : f32 to vector<2x8x8xf32>
    %918 = arith.mulf %917, %916 : vector<2x8x8xf32>
    %919 = arith.maximumf %916, %918 : vector<2x8x8xf32>
    %920 = vector.broadcast %1 : vector<1x8x8xf32> to vector<2x8x8xf32>
    %921 = arith.addf %919, %920 : vector<2x8x8xf32>
    %cst_189 = arith.constant dense<0xFF800000> : vector<2x8xf32>
    %922 = vector.multi_reduction <maximumf>, %921, %cst_189 [2] : vector<2x8x8xf32> to vector<2x8xf32>
    %923 = vector.shape_cast %922 : vector<2x8xf32> to vector<2x8x1xf32>
    %924 = vector.broadcast %923 : vector<2x8x1xf32> to vector<2x8x8xf32>
    %925 = arith.subf %921, %924 : vector<2x8x8xf32>
    %926 = math.exp %925 : vector<2x8x8xf32>
    %cst_190 = arith.constant dense<0.000000e+00> : vector<2x8xf32>
    %927 = vector.multi_reduction <add>, %926, %cst_190 [2] : vector<2x8x8xf32> to vector<2x8xf32>
    %928 = vector.shape_cast %927 : vector<2x8xf32> to vector<2x8x1xf32>
    %929 = vector.broadcast %928 : vector<2x8x1xf32> to vector<2x8x8xf32>
    %930 = arith.divf %926, %929 : vector<2x8x8xf32>
    %931 = arith.truncf %930 : vector<2x8x8xf32> to vector<2x8x8xbf16>
    %932 = arith.truncf %909 : vector<2x8x32xf32> to vector<2x8x32xbf16>
    "tpu.trace_start"() <{level = 10 : i32, message = "bij,bjh->bih"}> : () -> ()
    %cst_191 = arith.constant dense<0.000000e+00> : vector<2x8x32xf32>
    %933 = tpu.matmul %931, %932, %cst_191 {dimension_numbers = #tpu.dot_dimension_numbers<[2], [1], [1], [2], [0, 0, 0, 1, 1, 2], [0], [0]>} : vector<2x8x8xbf16>, vector<2x8x32xbf16>, vector<2x8x32xf32> -> vector<2x8x32xf32>
    "tpu.trace_stop"() : () -> ()
    %934 = math.tanh %933 : vector<2x8x32xf32>
    %cst_192 = arith.constant 1.250000e-01 : f32
    %935 = vector.broadcast %cst_192 : f32 to vector<2x8x32xf32>
    %936 = arith.mulf %935, %934 : vector<2x8x32xf32>
    %937 = arith.addf %871, %936 : vector<2x8x32xf32>
    %938 = vector.shape_cast %937 : vector<2x8x32xf32> to vector<16x32xf32>
    %939 = arith.truncf %938 : vector<16x32xf32> to vector<16x32xbf16>
    %cst_193 = arith.constant dense<0.000000e+00> : vector<16x34xf32>
    %940 = tpu.matmul %939, %2, %cst_193 {dimension_numbers = #tpu.dot_dimension_numbers<[1], [0], [0], [1], [0, 0, 1, 1], [], []>} : vector<16x32xbf16>, vector<32x34xbf16>, vector<16x34xf32> -> vector<16x34xf32>
    %941 = vector.shape_cast %940 : vector<16x34xf32> to vector<2x8x34xf32>
    %942 = vector.extract_strided_slice %941 {offsets = [0, 0, 0], sizes = [2, 8, 32], strides = [1, 1, 1]} : vector<2x8x34xf32> to vector<2x8x32xf32>
    %943 = vector.extract_strided_slice %941 {offsets = [0, 0, 32], sizes = [2, 8, 1], strides = [1, 1, 1]} : vector<2x8x34xf32> to vector<2x8x1xf32>
    %944 = vector.extract_strided_slice %941 {offsets = [0, 0, 33], sizes = [2, 8, 1], strides = [1, 1, 1]} : vector<2x8x34xf32> to vector<2x8x1xf32>
    %945 = vector.shape_cast %944 : vector<2x8x1xf32> to vector<2x8xf32>
    %946 = vector.shape_cast %945 : vector<2x8xf32> to vector<2x1x8xf32>
    %947 = vector.broadcast %943 : vector<2x8x1xf32> to vector<2x8x8xf32>
    %948 = vector.broadcast %946 : vector<2x1x8xf32> to vector<2x8x8xf32>
    %949 = arith.addf %947, %948 : vector<2x8x8xf32>
    %cst_194 = arith.constant 2.000000e-01 : f32
    %950 = vector.broadcast %cst_194 : f32 to vector<2x8x8xf32>
    %951 = arith.mulf %950, %949 : vector<2x8x8xf32>
    %952 = arith.maximumf %949, %951 : vector<2x8x8xf32>
    %953 = vector.broadcast %1 : vector<1x8x8xf32> to vector<2x8x8xf32>
    %954 = arith.addf %952, %953 : vector<2x8x8xf32>
    %cst_195 = arith.constant dense<0xFF800000> : vector<2x8xf32>
    %955 = vector.multi_reduction <maximumf>, %954, %cst_195 [2] : vector<2x8x8xf32> to vector<2x8xf32>
    %956 = vector.shape_cast %955 : vector<2x8xf32> to vector<2x8x1xf32>
    %957 = vector.broadcast %956 : vector<2x8x1xf32> to vector<2x8x8xf32>
    %958 = arith.subf %954, %957 : vector<2x8x8xf32>
    %959 = math.exp %958 : vector<2x8x8xf32>
    %cst_196 = arith.constant dense<0.000000e+00> : vector<2x8xf32>
    %960 = vector.multi_reduction <add>, %959, %cst_196 [2] : vector<2x8x8xf32> to vector<2x8xf32>
    %961 = vector.shape_cast %960 : vector<2x8xf32> to vector<2x8x1xf32>
    %962 = vector.broadcast %961 : vector<2x8x1xf32> to vector<2x8x8xf32>
    %963 = arith.divf %959, %962 : vector<2x8x8xf32>
    %964 = arith.truncf %963 : vector<2x8x8xf32> to vector<2x8x8xbf16>
    %965 = arith.truncf %942 : vector<2x8x32xf32> to vector<2x8x32xbf16>
    "tpu.trace_start"() <{level = 10 : i32, message = "bij,bjh->bih"}> : () -> ()
    %cst_197 = arith.constant dense<0.000000e+00> : vector<2x8x32xf32>
    %966 = tpu.matmul %964, %965, %cst_197 {dimension_numbers = #tpu.dot_dimension_numbers<[2], [1], [1], [2], [0, 0, 0, 1, 1, 2], [0], [0]>} : vector<2x8x8xbf16>, vector<2x8x32xbf16>, vector<2x8x32xf32> -> vector<2x8x32xf32>
    "tpu.trace_stop"() : () -> ()
    %967 = math.tanh %966 : vector<2x8x32xf32>
    %cst_198 = arith.constant 2.500000e-01 : f32
    %968 = vector.broadcast %cst_198 : f32 to vector<2x8x32xf32>
    %969 = arith.mulf %968, %967 : vector<2x8x32xf32>
    %970 = arith.addf %871, %969 : vector<2x8x32xf32>
    %971 = vector.shape_cast %970 : vector<2x8x32xf32> to vector<16x32xf32>
    %972 = arith.truncf %971 : vector<16x32xf32> to vector<16x32xbf16>
    %cst_199 = arith.constant dense<0.000000e+00> : vector<16x34xf32>
    %973 = tpu.matmul %972, %2, %cst_199 {dimension_numbers = #tpu.dot_dimension_numbers<[1], [0], [0], [1], [0, 0, 1, 1], [], []>} : vector<16x32xbf16>, vector<32x34xbf16>, vector<16x34xf32> -> vector<16x34xf32>
    %974 = vector.shape_cast %973 : vector<16x34xf32> to vector<2x8x34xf32>
    %975 = vector.extract_strided_slice %974 {offsets = [0, 0, 0], sizes = [2, 8, 32], strides = [1, 1, 1]} : vector<2x8x34xf32> to vector<2x8x32xf32>
    %976 = vector.extract_strided_slice %974 {offsets = [0, 0, 32], sizes = [2, 8, 1], strides = [1, 1, 1]} : vector<2x8x34xf32> to vector<2x8x1xf32>
    %977 = vector.extract_strided_slice %974 {offsets = [0, 0, 33], sizes = [2, 8, 1], strides = [1, 1, 1]} : vector<2x8x34xf32> to vector<2x8x1xf32>
    %978 = vector.shape_cast %977 : vector<2x8x1xf32> to vector<2x8xf32>
    %979 = vector.shape_cast %978 : vector<2x8xf32> to vector<2x1x8xf32>
    %980 = vector.broadcast %976 : vector<2x8x1xf32> to vector<2x8x8xf32>
    %981 = vector.broadcast %979 : vector<2x1x8xf32> to vector<2x8x8xf32>
    %982 = arith.addf %980, %981 : vector<2x8x8xf32>
    %cst_200 = arith.constant 2.000000e-01 : f32
    %983 = vector.broadcast %cst_200 : f32 to vector<2x8x8xf32>
    %984 = arith.mulf %983, %982 : vector<2x8x8xf32>
    %985 = arith.maximumf %982, %984 : vector<2x8x8xf32>
    %986 = vector.broadcast %1 : vector<1x8x8xf32> to vector<2x8x8xf32>
    %987 = arith.addf %985, %986 : vector<2x8x8xf32>
    %cst_201 = arith.constant dense<0xFF800000> : vector<2x8xf32>
    %988 = vector.multi_reduction <maximumf>, %987, %cst_201 [2] : vector<2x8x8xf32> to vector<2x8xf32>
    %989 = vector.shape_cast %988 : vector<2x8xf32> to vector<2x8x1xf32>
    %990 = vector.broadcast %989 : vector<2x8x1xf32> to vector<2x8x8xf32>
    %991 = arith.subf %987, %990 : vector<2x8x8xf32>
    %992 = math.exp %991 : vector<2x8x8xf32>
    %cst_202 = arith.constant dense<0.000000e+00> : vector<2x8xf32>
    %993 = vector.multi_reduction <add>, %992, %cst_202 [2] : vector<2x8x8xf32> to vector<2x8xf32>
    %994 = vector.shape_cast %993 : vector<2x8xf32> to vector<2x8x1xf32>
    %995 = vector.broadcast %994 : vector<2x8x1xf32> to vector<2x8x8xf32>
    %996 = arith.divf %992, %995 : vector<2x8x8xf32>
    %997 = arith.truncf %996 : vector<2x8x8xf32> to vector<2x8x8xbf16>
    %998 = arith.truncf %975 : vector<2x8x32xf32> to vector<2x8x32xbf16>
    "tpu.trace_start"() <{level = 10 : i32, message = "bij,bjh->bih"}> : () -> ()
    %cst_203 = arith.constant dense<0.000000e+00> : vector<2x8x32xf32>
    %999 = tpu.matmul %997, %998, %cst_203 {dimension_numbers = #tpu.dot_dimension_numbers<[2], [1], [1], [2], [0, 0, 0, 1, 1, 2], [0], [0]>} : vector<2x8x8xbf16>, vector<2x8x32xbf16>, vector<2x8x32xf32> -> vector<2x8x32xf32>
    "tpu.trace_stop"() : () -> ()
    %1000 = math.tanh %999 : vector<2x8x32xf32>
    %cst_204 = arith.constant 2.000000e+00 : f32
    %1001 = vector.broadcast %cst_204 : f32 to vector<2x8x32xf32>
    %1002 = arith.mulf %1001, %934 : vector<2x8x32xf32>
    %1003 = arith.addf %901, %1002 : vector<2x8x32xf32>
    %cst_205 = arith.constant 2.000000e+00 : f32
    %1004 = vector.broadcast %cst_205 : f32 to vector<2x8x32xf32>
    %1005 = arith.mulf %1004, %967 : vector<2x8x32xf32>
    %1006 = arith.addf %1003, %1005 : vector<2x8x32xf32>
    %1007 = arith.addf %1006, %1000 : vector<2x8x32xf32>
    %cst_206 = arith.constant 0.0416666679 : f32
    %1008 = vector.broadcast %cst_206 : f32 to vector<2x8x32xf32>
    %1009 = arith.mulf %1008, %1007 : vector<2x8x32xf32>
    %1010 = arith.addf %871, %1009 : vector<2x8x32xf32>
    %c3_i32_207 = arith.constant 3 : i32
    %1011 = vector.shape_cast %1010 : vector<2x8x32xf32> to vector<16x32xf32>
    %1012 = arith.truncf %1011 : vector<16x32xf32> to vector<16x32xbf16>
    %cst_208 = arith.constant dense<0.000000e+00> : vector<16x34xf32>
    %1013 = tpu.matmul %1012, %2, %cst_208 {dimension_numbers = #tpu.dot_dimension_numbers<[1], [0], [0], [1], [0, 0, 1, 1], [], []>} : vector<16x32xbf16>, vector<32x34xbf16>, vector<16x34xf32> -> vector<16x34xf32>
    %1014 = vector.shape_cast %1013 : vector<16x34xf32> to vector<2x8x34xf32>
    %1015 = vector.extract_strided_slice %1014 {offsets = [0, 0, 0], sizes = [2, 8, 32], strides = [1, 1, 1]} : vector<2x8x34xf32> to vector<2x8x32xf32>
    %1016 = vector.extract_strided_slice %1014 {offsets = [0, 0, 32], sizes = [2, 8, 1], strides = [1, 1, 1]} : vector<2x8x34xf32> to vector<2x8x1xf32>
    %1017 = vector.extract_strided_slice %1014 {offsets = [0, 0, 33], sizes = [2, 8, 1], strides = [1, 1, 1]} : vector<2x8x34xf32> to vector<2x8x1xf32>
    %1018 = vector.shape_cast %1017 : vector<2x8x1xf32> to vector<2x8xf32>
    %1019 = vector.shape_cast %1018 : vector<2x8xf32> to vector<2x1x8xf32>
    %1020 = vector.broadcast %1016 : vector<2x8x1xf32> to vector<2x8x8xf32>
    %1021 = vector.broadcast %1019 : vector<2x1x8xf32> to vector<2x8x8xf32>
    %1022 = arith.addf %1020, %1021 : vector<2x8x8xf32>
    %cst_209 = arith.constant 2.000000e-01 : f32
    %1023 = vector.broadcast %cst_209 : f32 to vector<2x8x8xf32>
    %1024 = arith.mulf %1023, %1022 : vector<2x8x8xf32>
    %1025 = arith.maximumf %1022, %1024 : vector<2x8x8xf32>
    %1026 = vector.broadcast %1 : vector<1x8x8xf32> to vector<2x8x8xf32>
    %1027 = arith.addf %1025, %1026 : vector<2x8x8xf32>
    %cst_210 = arith.constant dense<0xFF800000> : vector<2x8xf32>
    %1028 = vector.multi_reduction <maximumf>, %1027, %cst_210 [2] : vector<2x8x8xf32> to vector<2x8xf32>
    %1029 = vector.shape_cast %1028 : vector<2x8xf32> to vector<2x8x1xf32>
    %1030 = vector.broadcast %1029 : vector<2x8x1xf32> to vector<2x8x8xf32>
    %1031 = arith.subf %1027, %1030 : vector<2x8x8xf32>
    %1032 = math.exp %1031 : vector<2x8x8xf32>
    %cst_211 = arith.constant dense<0.000000e+00> : vector<2x8xf32>
    %1033 = vector.multi_reduction <add>, %1032, %cst_211 [2] : vector<2x8x8xf32> to vector<2x8xf32>
    %1034 = vector.shape_cast %1033 : vector<2x8xf32> to vector<2x8x1xf32>
    %1035 = vector.broadcast %1034 : vector<2x8x1xf32> to vector<2x8x8xf32>
    %1036 = arith.divf %1032, %1035 : vector<2x8x8xf32>
    %1037 = arith.truncf %1036 : vector<2x8x8xf32> to vector<2x8x8xbf16>
    %1038 = arith.truncf %1015 : vector<2x8x32xf32> to vector<2x8x32xbf16>
    "tpu.trace_start"() <{level = 10 : i32, message = "bij,bjh->bih"}> : () -> ()
    %cst_212 = arith.constant dense<0.000000e+00> : vector<2x8x32xf32>
    %1039 = tpu.matmul %1037, %1038, %cst_212 {dimension_numbers = #tpu.dot_dimension_numbers<[2], [1], [1], [2], [0, 0, 0, 1, 1, 2], [0], [0]>} : vector<2x8x8xbf16>, vector<2x8x32xbf16>, vector<2x8x32xf32> -> vector<2x8x32xf32>
    "tpu.trace_stop"() : () -> ()
    %1040 = math.tanh %1039 : vector<2x8x32xf32>
    %cst_213 = arith.constant 1.250000e-01 : f32
    %1041 = vector.broadcast %cst_213 : f32 to vector<2x8x32xf32>
    %1042 = arith.mulf %1041, %1040 : vector<2x8x32xf32>
    %1043 = arith.addf %1010, %1042 : vector<2x8x32xf32>
    %1044 = vector.shape_cast %1043 : vector<2x8x32xf32> to vector<16x32xf32>
    %1045 = arith.truncf %1044 : vector<16x32xf32> to vector<16x32xbf16>
    %cst_214 = arith.constant dense<0.000000e+00> : vector<16x34xf32>
    %1046 = tpu.matmul %1045, %2, %cst_214 {dimension_numbers = #tpu.dot_dimension_numbers<[1], [0], [0], [1], [0, 0, 1, 1], [], []>} : vector<16x32xbf16>, vector<32x34xbf16>, vector<16x34xf32> -> vector<16x34xf32>
    %1047 = vector.shape_cast %1046 : vector<16x34xf32> to vector<2x8x34xf32>
    %1048 = vector.extract_strided_slice %1047 {offsets = [0, 0, 0], sizes = [2, 8, 32], strides = [1, 1, 1]} : vector<2x8x34xf32> to vector<2x8x32xf32>
    %1049 = vector.extract_strided_slice %1047 {offsets = [0, 0, 32], sizes = [2, 8, 1], strides = [1, 1, 1]} : vector<2x8x34xf32> to vector<2x8x1xf32>
    %1050 = vector.extract_strided_slice %1047 {offsets = [0, 0, 33], sizes = [2, 8, 1], strides = [1, 1, 1]} : vector<2x8x34xf32> to vector<2x8x1xf32>
    %1051 = vector.shape_cast %1050 : vector<2x8x1xf32> to vector<2x8xf32>
    %1052 = vector.shape_cast %1051 : vector<2x8xf32> to vector<2x1x8xf32>
    %1053 = vector.broadcast %1049 : vector<2x8x1xf32> to vector<2x8x8xf32>
    %1054 = vector.broadcast %1052 : vector<2x1x8xf32> to vector<2x8x8xf32>
    %1055 = arith.addf %1053, %1054 : vector<2x8x8xf32>
    %cst_215 = arith.constant 2.000000e-01 : f32
    %1056 = vector.broadcast %cst_215 : f32 to vector<2x8x8xf32>
    %1057 = arith.mulf %1056, %1055 : vector<2x8x8xf32>
    %1058 = arith.maximumf %1055, %1057 : vector<2x8x8xf32>
    %1059 = vector.broadcast %1 : vector<1x8x8xf32> to vector<2x8x8xf32>
    %1060 = arith.addf %1058, %1059 : vector<2x8x8xf32>
    %cst_216 = arith.constant dense<0xFF800000> : vector<2x8xf32>
    %1061 = vector.multi_reduction <maximumf>, %1060, %cst_216 [2] : vector<2x8x8xf32> to vector<2x8xf32>
    %1062 = vector.shape_cast %1061 : vector<2x8xf32> to vector<2x8x1xf32>
    %1063 = vector.broadcast %1062 : vector<2x8x1xf32> to vector<2x8x8xf32>
    %1064 = arith.subf %1060, %1063 : vector<2x8x8xf32>
    %1065 = math.exp %1064 : vector<2x8x8xf32>
    %cst_217 = arith.constant dense<0.000000e+00> : vector<2x8xf32>
    %1066 = vector.multi_reduction <add>, %1065, %cst_217 [2] : vector<2x8x8xf32> to vector<2x8xf32>
    %1067 = vector.shape_cast %1066 : vector<2x8xf32> to vector<2x8x1xf32>
    %1068 = vector.broadcast %1067 : vector<2x8x1xf32> to vector<2x8x8xf32>
    %1069 = arith.divf %1065, %1068 : vector<2x8x8xf32>
    %1070 = arith.truncf %1069 : vector<2x8x8xf32> to vector<2x8x8xbf16>
    %1071 = arith.truncf %1048 : vector<2x8x32xf32> to vector<2x8x32xbf16>
    "tpu.trace_start"() <{level = 10 : i32, message = "bij,bjh->bih"}> : () -> ()
    %cst_218 = arith.constant dense<0.000000e+00> : vector<2x8x32xf32>
    %1072 = tpu.matmul %1070, %1071, %cst_218 {dimension_numbers = #tpu.dot_dimension_numbers<[2], [1], [1], [2], [0, 0, 0, 1, 1, 2], [0], [0]>} : vector<2x8x8xbf16>, vector<2x8x32xbf16>, vector<2x8x32xf32> -> vector<2x8x32xf32>
    "tpu.trace_stop"() : () -> ()
    %1073 = math.tanh %1072 : vector<2x8x32xf32>
    %cst_219 = arith.constant 1.250000e-01 : f32
    %1074 = vector.broadcast %cst_219 : f32 to vector<2x8x32xf32>
    %1075 = arith.mulf %1074, %1073 : vector<2x8x32xf32>
    %1076 = arith.addf %1010, %1075 : vector<2x8x32xf32>
    %1077 = vector.shape_cast %1076 : vector<2x8x32xf32> to vector<16x32xf32>
    %1078 = arith.truncf %1077 : vector<16x32xf32> to vector<16x32xbf16>
    %cst_220 = arith.constant dense<0.000000e+00> : vector<16x34xf32>
    %1079 = tpu.matmul %1078, %2, %cst_220 {dimension_numbers = #tpu.dot_dimension_numbers<[1], [0], [0], [1], [0, 0, 1, 1], [], []>} : vector<16x32xbf16>, vector<32x34xbf16>, vector<16x34xf32> -> vector<16x34xf32>
    %1080 = vector.shape_cast %1079 : vector<16x34xf32> to vector<2x8x34xf32>
    %1081 = vector.extract_strided_slice %1080 {offsets = [0, 0, 0], sizes = [2, 8, 32], strides = [1, 1, 1]} : vector<2x8x34xf32> to vector<2x8x32xf32>
    %1082 = vector.extract_strided_slice %1080 {offsets = [0, 0, 32], sizes = [2, 8, 1], strides = [1, 1, 1]} : vector<2x8x34xf32> to vector<2x8x1xf32>
    %1083 = vector.extract_strided_slice %1080 {offsets = [0, 0, 33], sizes = [2, 8, 1], strides = [1, 1, 1]} : vector<2x8x34xf32> to vector<2x8x1xf32>
    %1084 = vector.shape_cast %1083 : vector<2x8x1xf32> to vector<2x8xf32>
    %1085 = vector.shape_cast %1084 : vector<2x8xf32> to vector<2x1x8xf32>
    %1086 = vector.broadcast %1082 : vector<2x8x1xf32> to vector<2x8x8xf32>
    %1087 = vector.broadcast %1085 : vector<2x1x8xf32> to vector<2x8x8xf32>
    %1088 = arith.addf %1086, %1087 : vector<2x8x8xf32>
    %cst_221 = arith.constant 2.000000e-01 : f32
    %1089 = vector.broadcast %cst_221 : f32 to vector<2x8x8xf32>
    %1090 = arith.mulf %1089, %1088 : vector<2x8x8xf32>
    %1091 = arith.maximumf %1088, %1090 : vector<2x8x8xf32>
    %1092 = vector.broadcast %1 : vector<1x8x8xf32> to vector<2x8x8xf32>
    %1093 = arith.addf %1091, %1092 : vector<2x8x8xf32>
    %cst_222 = arith.constant dense<0xFF800000> : vector<2x8xf32>
    %1094 = vector.multi_reduction <maximumf>, %1093, %cst_222 [2] : vector<2x8x8xf32> to vector<2x8xf32>
    %1095 = vector.shape_cast %1094 : vector<2x8xf32> to vector<2x8x1xf32>
    %1096 = vector.broadcast %1095 : vector<2x8x1xf32> to vector<2x8x8xf32>
    %1097 = arith.subf %1093, %1096 : vector<2x8x8xf32>
    %1098 = math.exp %1097 : vector<2x8x8xf32>
    %cst_223 = arith.constant dense<0.000000e+00> : vector<2x8xf32>
    %1099 = vector.multi_reduction <add>, %1098, %cst_223 [2] : vector<2x8x8xf32> to vector<2x8xf32>
    %1100 = vector.shape_cast %1099 : vector<2x8xf32> to vector<2x8x1xf32>
    %1101 = vector.broadcast %1100 : vector<2x8x1xf32> to vector<2x8x8xf32>
    %1102 = arith.divf %1098, %1101 : vector<2x8x8xf32>
    %1103 = arith.truncf %1102 : vector<2x8x8xf32> to vector<2x8x8xbf16>
    %1104 = arith.truncf %1081 : vector<2x8x32xf32> to vector<2x8x32xbf16>
    "tpu.trace_start"() <{level = 10 : i32, message = "bij,bjh->bih"}> : () -> ()
    %cst_224 = arith.constant dense<0.000000e+00> : vector<2x8x32xf32>
    %1105 = tpu.matmul %1103, %1104, %cst_224 {dimension_numbers = #tpu.dot_dimension_numbers<[2], [1], [1], [2], [0, 0, 0, 1, 1, 2], [0], [0]>} : vector<2x8x8xbf16>, vector<2x8x32xbf16>, vector<2x8x32xf32> -> vector<2x8x32xf32>
    "tpu.trace_stop"() : () -> ()
    %1106 = math.tanh %1105 : vector<2x8x32xf32>
    %cst_225 = arith.constant 2.500000e-01 : f32
    %1107 = vector.broadcast %cst_225 : f32 to vector<2x8x32xf32>
    %1108 = arith.mulf %1107, %1106 : vector<2x8x32xf32>
    %1109 = arith.addf %1010, %1108 : vector<2x8x32xf32>
    %1110 = vector.shape_cast %1109 : vector<2x8x32xf32> to vector<16x32xf32>
    %1111 = arith.truncf %1110 : vector<16x32xf32> to vector<16x32xbf16>
    %cst_226 = arith.constant dense<0.000000e+00> : vector<16x34xf32>
    %1112 = tpu.matmul %1111, %2, %cst_226 {dimension_numbers = #tpu.dot_dimension_numbers<[1], [0], [0], [1], [0, 0, 1, 1], [], []>} : vector<16x32xbf16>, vector<32x34xbf16>, vector<16x34xf32> -> vector<16x34xf32>
    %1113 = vector.shape_cast %1112 : vector<16x34xf32> to vector<2x8x34xf32>
    %1114 = vector.extract_strided_slice %1113 {offsets = [0, 0, 0], sizes = [2, 8, 32], strides = [1, 1, 1]} : vector<2x8x34xf32> to vector<2x8x32xf32>
    %1115 = vector.extract_strided_slice %1113 {offsets = [0, 0, 32], sizes = [2, 8, 1], strides = [1, 1, 1]} : vector<2x8x34xf32> to vector<2x8x1xf32>
    %1116 = vector.extract_strided_slice %1113 {offsets = [0, 0, 33], sizes = [2, 8, 1], strides = [1, 1, 1]} : vector<2x8x34xf32> to vector<2x8x1xf32>
    %1117 = vector.shape_cast %1116 : vector<2x8x1xf32> to vector<2x8xf32>
    %1118 = vector.shape_cast %1117 : vector<2x8xf32> to vector<2x1x8xf32>
    %1119 = vector.broadcast %1115 : vector<2x8x1xf32> to vector<2x8x8xf32>
    %1120 = vector.broadcast %1118 : vector<2x1x8xf32> to vector<2x8x8xf32>
    %1121 = arith.addf %1119, %1120 : vector<2x8x8xf32>
    %cst_227 = arith.constant 2.000000e-01 : f32
    %1122 = vector.broadcast %cst_227 : f32 to vector<2x8x8xf32>
    %1123 = arith.mulf %1122, %1121 : vector<2x8x8xf32>
    %1124 = arith.maximumf %1121, %1123 : vector<2x8x8xf32>
    %1125 = vector.broadcast %1 : vector<1x8x8xf32> to vector<2x8x8xf32>
    %1126 = arith.addf %1124, %1125 : vector<2x8x8xf32>
    %cst_228 = arith.constant dense<0xFF800000> : vector<2x8xf32>
    %1127 = vector.multi_reduction <maximumf>, %1126, %cst_228 [2] : vector<2x8x8xf32> to vector<2x8xf32>
    %1128 = vector.shape_cast %1127 : vector<2x8xf32> to vector<2x8x1xf32>
    %1129 = vector.broadcast %1128 : vector<2x8x1xf32> to vector<2x8x8xf32>
    %1130 = arith.subf %1126, %1129 : vector<2x8x8xf32>
    %1131 = math.exp %1130 : vector<2x8x8xf32>
    %cst_229 = arith.constant dense<0.000000e+00> : vector<2x8xf32>
    %1132 = vector.multi_reduction <add>, %1131, %cst_229 [2] : vector<2x8x8xf32> to vector<2x8xf32>
    %1133 = vector.shape_cast %1132 : vector<2x8xf32> to vector<2x8x1xf32>
    %1134 = vector.broadcast %1133 : vector<2x8x1xf32> to vector<2x8x8xf32>
    %1135 = arith.divf %1131, %1134 : vector<2x8x8xf32>
    %1136 = arith.truncf %1135 : vector<2x8x8xf32> to vector<2x8x8xbf16>
    %1137 = arith.truncf %1114 : vector<2x8x32xf32> to vector<2x8x32xbf16>
    "tpu.trace_start"() <{level = 10 : i32, message = "bij,bjh->bih"}> : () -> ()
    %cst_230 = arith.constant dense<0.000000e+00> : vector<2x8x32xf32>
    %1138 = tpu.matmul %1136, %1137, %cst_230 {dimension_numbers = #tpu.dot_dimension_numbers<[2], [1], [1], [2], [0, 0, 0, 1, 1, 2], [0], [0]>} : vector<2x8x8xbf16>, vector<2x8x32xbf16>, vector<2x8x32xf32> -> vector<2x8x32xf32>
    "tpu.trace_stop"() : () -> ()
    %1139 = math.tanh %1138 : vector<2x8x32xf32>
    %cst_231 = arith.constant 2.000000e+00 : f32
    %1140 = vector.broadcast %cst_231 : f32 to vector<2x8x32xf32>
    %1141 = arith.mulf %1140, %1073 : vector<2x8x32xf32>
    %1142 = arith.addf %1040, %1141 : vector<2x8x32xf32>
    %cst_232 = arith.constant 2.000000e+00 : f32
    %1143 = vector.broadcast %cst_232 : f32 to vector<2x8x32xf32>
    %1144 = arith.mulf %1143, %1106 : vector<2x8x32xf32>
    %1145 = arith.addf %1142, %1144 : vector<2x8x32xf32>
    %1146 = arith.addf %1145, %1139 : vector<2x8x32xf32>
    %cst_233 = arith.constant 0.0416666679 : f32
    %1147 = vector.broadcast %cst_233 : f32 to vector<2x8x32xf32>
    %1148 = arith.mulf %1147, %1146 : vector<2x8x32xf32>
    %1149 = arith.addf %1010, %1148 : vector<2x8x32xf32>
    %1150 = vector.shape_cast %1149 : vector<2x8x32xf32> to vector<16x32xf32>
    %cst_234 = arith.constant dense<0.000000e+00> : vector<16x32xf32>
    %1151 = tpu.matmul %1150, %3, %cst_234 {dimension_numbers = #tpu.dot_dimension_numbers<[1], [0], [0], [1], [0, 0, 1, 1], [], []>} : vector<16x32xf32>, vector<32x32xf32>, vector<16x32xf32> -> vector<16x32xf32>
    %1152 = vector.extract_strided_slice %15 {offsets = [1, 0, 0, 0], sizes = [1, 2, 8, 32], strides = [1, 1, 1, 1]} : vector<3x2x8x32xf32> to vector<1x2x8x32xf32>
    %1153 = vector.shape_cast %1152 : vector<1x2x8x32xf32> to vector<2x8x32xf32>
    %1154 = vector.shape_cast %1153 : vector<2x8x32xf32> to vector<16x32xf32>
    %cst_235 = arith.constant dense<0.000000e+00> : vector<16x32xf32>
    %1155 = tpu.matmul %1154, %4, %cst_235 {dimension_numbers = #tpu.dot_dimension_numbers<[1], [0], [0], [1], [0, 0, 1, 1], [], []>} : vector<16x32xf32>, vector<32x32xf32>, vector<16x32xf32> -> vector<16x32xf32>
    %1156 = arith.addf %1151, %1155 : vector<16x32xf32>
    %1157 = arith.addf %1156, %7 : vector<16x32xf32>
    %1158 = math.tanh %1157 : vector<16x32xf32>
    %1159 = vector.shape_cast %1158 : vector<16x32xf32> to vector<2x8x32xf32>
    %1160 = vector.shape_cast %1159 : vector<2x8x32xf32> to vector<16x32xf32>
    %cst_236 = arith.constant dense<0.000000e+00> : vector<16xf32>
    %1161 = vector.multi_reduction <add>, %1160, %cst_236 [1] : vector<16x32xf32> to vector<16xf32>
    %1162 = vector.shape_cast %1161 : vector<16xf32> to vector<16x1xf32>
    %cst_237 = arith.constant 3.200000e+01 : f32
    %1163 = vector.broadcast %cst_237 : f32 to vector<16x1xf32>
    %1164 = arith.divf %1162, %1163 : vector<16x1xf32>
    %1165 = vector.broadcast %1164 : vector<16x1xf32> to vector<16x32xf32>
    %1166 = arith.subf %1160, %1165 : vector<16x32xf32>
    %1167 = arith.mulf %1166, %1166 : vector<16x32xf32>
    %cst_238 = arith.constant dense<0.000000e+00> : vector<16xf32>
    %1168 = vector.multi_reduction <add>, %1167, %cst_238 [1] : vector<16x32xf32> to vector<16xf32>
    %1169 = vector.shape_cast %1168 : vector<16xf32> to vector<16x1xf32>
    %cst_239 = arith.constant 3.200000e+01 : f32
    %1170 = vector.broadcast %cst_239 : f32 to vector<16x1xf32>
    %1171 = arith.divf %1169, %1170 : vector<16x1xf32>
    %1172 = vector.broadcast %1164 : vector<16x1xf32> to vector<16x32xf32>
    %1173 = arith.subf %1160, %1172 : vector<16x32xf32>
    %cst_240 = arith.constant 9.99999974E-6 : f32
    %1174 = vector.broadcast %cst_240 : f32 to vector<16x1xf32>
    %1175 = arith.addf %1171, %1174 : vector<16x1xf32>
    %1176 = math.rsqrt %1175 : vector<16x1xf32>
    %1177 = vector.broadcast %1176 : vector<16x1xf32> to vector<16x32xf32>
    %1178 = arith.mulf %1173, %1177 : vector<16x32xf32>
    %1179 = vector.shape_cast %1178 : vector<16x32xf32> to vector<2x8x32xf32>
    %c0_i32_241 = arith.constant 0 : i32
    %1180 = vector.shape_cast %1179 : vector<2x8x32xf32> to vector<16x32xf32>
    %1181 = arith.truncf %1180 : vector<16x32xf32> to vector<16x32xbf16>
    %cst_242 = arith.constant dense<0.000000e+00> : vector<16x34xf32>
    %1182 = tpu.matmul %1181, %2, %cst_242 {dimension_numbers = #tpu.dot_dimension_numbers<[1], [0], [0], [1], [0, 0, 1, 1], [], []>} : vector<16x32xbf16>, vector<32x34xbf16>, vector<16x34xf32> -> vector<16x34xf32>
    %1183 = vector.shape_cast %1182 : vector<16x34xf32> to vector<2x8x34xf32>
    %1184 = vector.extract_strided_slice %1183 {offsets = [0, 0, 0], sizes = [2, 8, 32], strides = [1, 1, 1]} : vector<2x8x34xf32> to vector<2x8x32xf32>
    %1185 = vector.extract_strided_slice %1183 {offsets = [0, 0, 32], sizes = [2, 8, 1], strides = [1, 1, 1]} : vector<2x8x34xf32> to vector<2x8x1xf32>
    %1186 = vector.extract_strided_slice %1183 {offsets = [0, 0, 33], sizes = [2, 8, 1], strides = [1, 1, 1]} : vector<2x8x34xf32> to vector<2x8x1xf32>
    %1187 = vector.shape_cast %1186 : vector<2x8x1xf32> to vector<2x8xf32>
    %1188 = vector.shape_cast %1187 : vector<2x8xf32> to vector<2x1x8xf32>
    %1189 = vector.broadcast %1185 : vector<2x8x1xf32> to vector<2x8x8xf32>
    %1190 = vector.broadcast %1188 : vector<2x1x8xf32> to vector<2x8x8xf32>
    %1191 = arith.addf %1189, %1190 : vector<2x8x8xf32>
    %cst_243 = arith.constant 2.000000e-01 : f32
    %1192 = vector.broadcast %cst_243 : f32 to vector<2x8x8xf32>
    %1193 = arith.mulf %1192, %1191 : vector<2x8x8xf32>
    %1194 = arith.maximumf %1191, %1193 : vector<2x8x8xf32>
    %1195 = vector.broadcast %1 : vector<1x8x8xf32> to vector<2x8x8xf32>
    %1196 = arith.addf %1194, %1195 : vector<2x8x8xf32>
    %cst_244 = arith.constant dense<0xFF800000> : vector<2x8xf32>
    %1197 = vector.multi_reduction <maximumf>, %1196, %cst_244 [2] : vector<2x8x8xf32> to vector<2x8xf32>
    %1198 = vector.shape_cast %1197 : vector<2x8xf32> to vector<2x8x1xf32>
    %1199 = vector.broadcast %1198 : vector<2x8x1xf32> to vector<2x8x8xf32>
    %1200 = arith.subf %1196, %1199 : vector<2x8x8xf32>
    %1201 = math.exp %1200 : vector<2x8x8xf32>
    %cst_245 = arith.constant dense<0.000000e+00> : vector<2x8xf32>
    %1202 = vector.multi_reduction <add>, %1201, %cst_245 [2] : vector<2x8x8xf32> to vector<2x8xf32>
    %1203 = vector.shape_cast %1202 : vector<2x8xf32> to vector<2x8x1xf32>
    %1204 = vector.broadcast %1203 : vector<2x8x1xf32> to vector<2x8x8xf32>
    %1205 = arith.divf %1201, %1204 : vector<2x8x8xf32>
    %1206 = arith.truncf %1205 : vector<2x8x8xf32> to vector<2x8x8xbf16>
    %1207 = arith.truncf %1184 : vector<2x8x32xf32> to vector<2x8x32xbf16>
    "tpu.trace_start"() <{level = 10 : i32, message = "bij,bjh->bih"}> : () -> ()
    %cst_246 = arith.constant dense<0.000000e+00> : vector<2x8x32xf32>
    %1208 = tpu.matmul %1206, %1207, %cst_246 {dimension_numbers = #tpu.dot_dimension_numbers<[2], [1], [1], [2], [0, 0, 0, 1, 1, 2], [0], [0]>} : vector<2x8x8xbf16>, vector<2x8x32xbf16>, vector<2x8x32xf32> -> vector<2x8x32xf32>
    "tpu.trace_stop"() : () -> ()
    %1209 = math.tanh %1208 : vector<2x8x32xf32>
    %cst_247 = arith.constant 1.250000e-01 : f32
    %1210 = vector.broadcast %cst_247 : f32 to vector<2x8x32xf32>
    %1211 = arith.mulf %1210, %1209 : vector<2x8x32xf32>
    %1212 = arith.addf %1179, %1211 : vector<2x8x32xf32>
    %1213 = vector.shape_cast %1212 : vector<2x8x32xf32> to vector<16x32xf32>
    %1214 = arith.truncf %1213 : vector<16x32xf32> to vector<16x32xbf16>
    %cst_248 = arith.constant dense<0.000000e+00> : vector<16x34xf32>
    %1215 = tpu.matmul %1214, %2, %cst_248 {dimension_numbers = #tpu.dot_dimension_numbers<[1], [0], [0], [1], [0, 0, 1, 1], [], []>} : vector<16x32xbf16>, vector<32x34xbf16>, vector<16x34xf32> -> vector<16x34xf32>
    %1216 = vector.shape_cast %1215 : vector<16x34xf32> to vector<2x8x34xf32>
    %1217 = vector.extract_strided_slice %1216 {offsets = [0, 0, 0], sizes = [2, 8, 32], strides = [1, 1, 1]} : vector<2x8x34xf32> to vector<2x8x32xf32>
    %1218 = vector.extract_strided_slice %1216 {offsets = [0, 0, 32], sizes = [2, 8, 1], strides = [1, 1, 1]} : vector<2x8x34xf32> to vector<2x8x1xf32>
    %1219 = vector.extract_strided_slice %1216 {offsets = [0, 0, 33], sizes = [2, 8, 1], strides = [1, 1, 1]} : vector<2x8x34xf32> to vector<2x8x1xf32>
    %1220 = vector.shape_cast %1219 : vector<2x8x1xf32> to vector<2x8xf32>
    %1221 = vector.shape_cast %1220 : vector<2x8xf32> to vector<2x1x8xf32>
    %1222 = vector.broadcast %1218 : vector<2x8x1xf32> to vector<2x8x8xf32>
    %1223 = vector.broadcast %1221 : vector<2x1x8xf32> to vector<2x8x8xf32>
    %1224 = arith.addf %1222, %1223 : vector<2x8x8xf32>
    %cst_249 = arith.constant 2.000000e-01 : f32
    %1225 = vector.broadcast %cst_249 : f32 to vector<2x8x8xf32>
    %1226 = arith.mulf %1225, %1224 : vector<2x8x8xf32>
    %1227 = arith.maximumf %1224, %1226 : vector<2x8x8xf32>
    %1228 = vector.broadcast %1 : vector<1x8x8xf32> to vector<2x8x8xf32>
    %1229 = arith.addf %1227, %1228 : vector<2x8x8xf32>
    %cst_250 = arith.constant dense<0xFF800000> : vector<2x8xf32>
    %1230 = vector.multi_reduction <maximumf>, %1229, %cst_250 [2] : vector<2x8x8xf32> to vector<2x8xf32>
    %1231 = vector.shape_cast %1230 : vector<2x8xf32> to vector<2x8x1xf32>
    %1232 = vector.broadcast %1231 : vector<2x8x1xf32> to vector<2x8x8xf32>
    %1233 = arith.subf %1229, %1232 : vector<2x8x8xf32>
    %1234 = math.exp %1233 : vector<2x8x8xf32>
    %cst_251 = arith.constant dense<0.000000e+00> : vector<2x8xf32>
    %1235 = vector.multi_reduction <add>, %1234, %cst_251 [2] : vector<2x8x8xf32> to vector<2x8xf32>
    %1236 = vector.shape_cast %1235 : vector<2x8xf32> to vector<2x8x1xf32>
    %1237 = vector.broadcast %1236 : vector<2x8x1xf32> to vector<2x8x8xf32>
    %1238 = arith.divf %1234, %1237 : vector<2x8x8xf32>
    %1239 = arith.truncf %1238 : vector<2x8x8xf32> to vector<2x8x8xbf16>
    %1240 = arith.truncf %1217 : vector<2x8x32xf32> to vector<2x8x32xbf16>
    "tpu.trace_start"() <{level = 10 : i32, message = "bij,bjh->bih"}> : () -> ()
    %cst_252 = arith.constant dense<0.000000e+00> : vector<2x8x32xf32>
    %1241 = tpu.matmul %1239, %1240, %cst_252 {dimension_numbers = #tpu.dot_dimension_numbers<[2], [1], [1], [2], [0, 0, 0, 1, 1, 2], [0], [0]>} : vector<2x8x8xbf16>, vector<2x8x32xbf16>, vector<2x8x32xf32> -> vector<2x8x32xf32>
    "tpu.trace_stop"() : () -> ()
    %1242 = math.tanh %1241 : vector<2x8x32xf32>
    %cst_253 = arith.constant 1.250000e-01 : f32
    %1243 = vector.broadcast %cst_253 : f32 to vector<2x8x32xf32>
    %1244 = arith.mulf %1243, %1242 : vector<2x8x32xf32>
    %1245 = arith.addf %1179, %1244 : vector<2x8x32xf32>
    %1246 = vector.shape_cast %1245 : vector<2x8x32xf32> to vector<16x32xf32>
    %1247 = arith.truncf %1246 : vector<16x32xf32> to vector<16x32xbf16>
    %cst_254 = arith.constant dense<0.000000e+00> : vector<16x34xf32>
    %1248 = tpu.matmul %1247, %2, %cst_254 {dimension_numbers = #tpu.dot_dimension_numbers<[1], [0], [0], [1], [0, 0, 1, 1], [], []>} : vector<16x32xbf16>, vector<32x34xbf16>, vector<16x34xf32> -> vector<16x34xf32>
    %1249 = vector.shape_cast %1248 : vector<16x34xf32> to vector<2x8x34xf32>
    %1250 = vector.extract_strided_slice %1249 {offsets = [0, 0, 0], sizes = [2, 8, 32], strides = [1, 1, 1]} : vector<2x8x34xf32> to vector<2x8x32xf32>
    %1251 = vector.extract_strided_slice %1249 {offsets = [0, 0, 32], sizes = [2, 8, 1], strides = [1, 1, 1]} : vector<2x8x34xf32> to vector<2x8x1xf32>
    %1252 = vector.extract_strided_slice %1249 {offsets = [0, 0, 33], sizes = [2, 8, 1], strides = [1, 1, 1]} : vector<2x8x34xf32> to vector<2x8x1xf32>
    %1253 = vector.shape_cast %1252 : vector<2x8x1xf32> to vector<2x8xf32>
    %1254 = vector.shape_cast %1253 : vector<2x8xf32> to vector<2x1x8xf32>
    %1255 = vector.broadcast %1251 : vector<2x8x1xf32> to vector<2x8x8xf32>
    %1256 = vector.broadcast %1254 : vector<2x1x8xf32> to vector<2x8x8xf32>
    %1257 = arith.addf %1255, %1256 : vector<2x8x8xf32>
    %cst_255 = arith.constant 2.000000e-01 : f32
    %1258 = vector.broadcast %cst_255 : f32 to vector<2x8x8xf32>
    %1259 = arith.mulf %1258, %1257 : vector<2x8x8xf32>
    %1260 = arith.maximumf %1257, %1259 : vector<2x8x8xf32>
    %1261 = vector.broadcast %1 : vector<1x8x8xf32> to vector<2x8x8xf32>
    %1262 = arith.addf %1260, %1261 : vector<2x8x8xf32>
    %cst_256 = arith.constant dense<0xFF800000> : vector<2x8xf32>
    %1263 = vector.multi_reduction <maximumf>, %1262, %cst_256 [2] : vector<2x8x8xf32> to vector<2x8xf32>
    %1264 = vector.shape_cast %1263 : vector<2x8xf32> to vector<2x8x1xf32>
    %1265 = vector.broadcast %1264 : vector<2x8x1xf32> to vector<2x8x8xf32>
    %1266 = arith.subf %1262, %1265 : vector<2x8x8xf32>
    %1267 = math.exp %1266 : vector<2x8x8xf32>
    %cst_257 = arith.constant dense<0.000000e+00> : vector<2x8xf32>
    %1268 = vector.multi_reduction <add>, %1267, %cst_257 [2] : vector<2x8x8xf32> to vector<2x8xf32>
    %1269 = vector.shape_cast %1268 : vector<2x8xf32> to vector<2x8x1xf32>
    %1270 = vector.broadcast %1269 : vector<2x8x1xf32> to vector<2x8x8xf32>
    %1271 = arith.divf %1267, %1270 : vector<2x8x8xf32>
    %1272 = arith.truncf %1271 : vector<2x8x8xf32> to vector<2x8x8xbf16>
    %1273 = arith.truncf %1250 : vector<2x8x32xf32> to vector<2x8x32xbf16>
    "tpu.trace_start"() <{level = 10 : i32, message = "bij,bjh->bih"}> : () -> ()
    %cst_258 = arith.constant dense<0.000000e+00> : vector<2x8x32xf32>
    %1274 = tpu.matmul %1272, %1273, %cst_258 {dimension_numbers = #tpu.dot_dimension_numbers<[2], [1], [1], [2], [0, 0, 0, 1, 1, 2], [0], [0]>} : vector<2x8x8xbf16>, vector<2x8x32xbf16>, vector<2x8x32xf32> -> vector<2x8x32xf32>
    "tpu.trace_stop"() : () -> ()
    %1275 = math.tanh %1274 : vector<2x8x32xf32>
    %cst_259 = arith.constant 2.500000e-01 : f32
    %1276 = vector.broadcast %cst_259 : f32 to vector<2x8x32xf32>
    %1277 = arith.mulf %1276, %1275 : vector<2x8x32xf32>
    %1278 = arith.addf %1179, %1277 : vector<2x8x32xf32>
    %1279 = vector.shape_cast %1278 : vector<2x8x32xf32> to vector<16x32xf32>
    %1280 = arith.truncf %1279 : vector<16x32xf32> to vector<16x32xbf16>
    %cst_260 = arith.constant dense<0.000000e+00> : vector<16x34xf32>
    %1281 = tpu.matmul %1280, %2, %cst_260 {dimension_numbers = #tpu.dot_dimension_numbers<[1], [0], [0], [1], [0, 0, 1, 1], [], []>} : vector<16x32xbf16>, vector<32x34xbf16>, vector<16x34xf32> -> vector<16x34xf32>
    %1282 = vector.shape_cast %1281 : vector<16x34xf32> to vector<2x8x34xf32>
    %1283 = vector.extract_strided_slice %1282 {offsets = [0, 0, 0], sizes = [2, 8, 32], strides = [1, 1, 1]} : vector<2x8x34xf32> to vector<2x8x32xf32>
    %1284 = vector.extract_strided_slice %1282 {offsets = [0, 0, 32], sizes = [2, 8, 1], strides = [1, 1, 1]} : vector<2x8x34xf32> to vector<2x8x1xf32>
    %1285 = vector.extract_strided_slice %1282 {offsets = [0, 0, 33], sizes = [2, 8, 1], strides = [1, 1, 1]} : vector<2x8x34xf32> to vector<2x8x1xf32>
    %1286 = vector.shape_cast %1285 : vector<2x8x1xf32> to vector<2x8xf32>
    %1287 = vector.shape_cast %1286 : vector<2x8xf32> to vector<2x1x8xf32>
    %1288 = vector.broadcast %1284 : vector<2x8x1xf32> to vector<2x8x8xf32>
    %1289 = vector.broadcast %1287 : vector<2x1x8xf32> to vector<2x8x8xf32>
    %1290 = arith.addf %1288, %1289 : vector<2x8x8xf32>
    %cst_261 = arith.constant 2.000000e-01 : f32
    %1291 = vector.broadcast %cst_261 : f32 to vector<2x8x8xf32>
    %1292 = arith.mulf %1291, %1290 : vector<2x8x8xf32>
    %1293 = arith.maximumf %1290, %1292 : vector<2x8x8xf32>
    %1294 = vector.broadcast %1 : vector<1x8x8xf32> to vector<2x8x8xf32>
    %1295 = arith.addf %1293, %1294 : vector<2x8x8xf32>
    %cst_262 = arith.constant dense<0xFF800000> : vector<2x8xf32>
    %1296 = vector.multi_reduction <maximumf>, %1295, %cst_262 [2] : vector<2x8x8xf32> to vector<2x8xf32>
    %1297 = vector.shape_cast %1296 : vector<2x8xf32> to vector<2x8x1xf32>
    %1298 = vector.broadcast %1297 : vector<2x8x1xf32> to vector<2x8x8xf32>
    %1299 = arith.subf %1295, %1298 : vector<2x8x8xf32>
    %1300 = math.exp %1299 : vector<2x8x8xf32>
    %cst_263 = arith.constant dense<0.000000e+00> : vector<2x8xf32>
    %1301 = vector.multi_reduction <add>, %1300, %cst_263 [2] : vector<2x8x8xf32> to vector<2x8xf32>
    %1302 = vector.shape_cast %1301 : vector<2x8xf32> to vector<2x8x1xf32>
    %1303 = vector.broadcast %1302 : vector<2x8x1xf32> to vector<2x8x8xf32>
    %1304 = arith.divf %1300, %1303 : vector<2x8x8xf32>
    %1305 = arith.truncf %1304 : vector<2x8x8xf32> to vector<2x8x8xbf16>
    %1306 = arith.truncf %1283 : vector<2x8x32xf32> to vector<2x8x32xbf16>
    "tpu.trace_start"() <{level = 10 : i32, message = "bij,bjh->bih"}> : () -> ()
    %cst_264 = arith.constant dense<0.000000e+00> : vector<2x8x32xf32>
    %1307 = tpu.matmul %1305, %1306, %cst_264 {dimension_numbers = #tpu.dot_dimension_numbers<[2], [1], [1], [2], [0, 0, 0, 1, 1, 2], [0], [0]>} : vector<2x8x8xbf16>, vector<2x8x32xbf16>, vector<2x8x32xf32> -> vector<2x8x32xf32>
    "tpu.trace_stop"() : () -> ()
    %1308 = math.tanh %1307 : vector<2x8x32xf32>
    %cst_265 = arith.constant 2.000000e+00 : f32
    %1309 = vector.broadcast %cst_265 : f32 to vector<2x8x32xf32>
    %1310 = arith.mulf %1309, %1242 : vector<2x8x32xf32>
    %1311 = arith.addf %1209, %1310 : vector<2x8x32xf32>
    %cst_266 = arith.constant 2.000000e+00 : f32
    %1312 = vector.broadcast %cst_266 : f32 to vector<2x8x32xf32>
    %1313 = arith.mulf %1312, %1275 : vector<2x8x32xf32>
    %1314 = arith.addf %1311, %1313 : vector<2x8x32xf32>
    %1315 = arith.addf %1314, %1308 : vector<2x8x32xf32>
    %cst_267 = arith.constant 0.0416666679 : f32
    %1316 = vector.broadcast %cst_267 : f32 to vector<2x8x32xf32>
    %1317 = arith.mulf %1316, %1315 : vector<2x8x32xf32>
    %1318 = arith.addf %1179, %1317 : vector<2x8x32xf32>
    %c1_i32_268 = arith.constant 1 : i32
    %1319 = vector.shape_cast %1318 : vector<2x8x32xf32> to vector<16x32xf32>
    %1320 = arith.truncf %1319 : vector<16x32xf32> to vector<16x32xbf16>
    %cst_269 = arith.constant dense<0.000000e+00> : vector<16x34xf32>
    %1321 = tpu.matmul %1320, %2, %cst_269 {dimension_numbers = #tpu.dot_dimension_numbers<[1], [0], [0], [1], [0, 0, 1, 1], [], []>} : vector<16x32xbf16>, vector<32x34xbf16>, vector<16x34xf32> -> vector<16x34xf32>
    %1322 = vector.shape_cast %1321 : vector<16x34xf32> to vector<2x8x34xf32>
    %1323 = vector.extract_strided_slice %1322 {offsets = [0, 0, 0], sizes = [2, 8, 32], strides = [1, 1, 1]} : vector<2x8x34xf32> to vector<2x8x32xf32>
    %1324 = vector.extract_strided_slice %1322 {offsets = [0, 0, 32], sizes = [2, 8, 1], strides = [1, 1, 1]} : vector<2x8x34xf32> to vector<2x8x1xf32>
    %1325 = vector.extract_strided_slice %1322 {offsets = [0, 0, 33], sizes = [2, 8, 1], strides = [1, 1, 1]} : vector<2x8x34xf32> to vector<2x8x1xf32>
    %1326 = vector.shape_cast %1325 : vector<2x8x1xf32> to vector<2x8xf32>
    %1327 = vector.shape_cast %1326 : vector<2x8xf32> to vector<2x1x8xf32>
    %1328 = vector.broadcast %1324 : vector<2x8x1xf32> to vector<2x8x8xf32>
    %1329 = vector.broadcast %1327 : vector<2x1x8xf32> to vector<2x8x8xf32>
    %1330 = arith.addf %1328, %1329 : vector<2x8x8xf32>
    %cst_270 = arith.constant 2.000000e-01 : f32
    %1331 = vector.broadcast %cst_270 : f32 to vector<2x8x8xf32>
    %1332 = arith.mulf %1331, %1330 : vector<2x8x8xf32>
    %1333 = arith.maximumf %1330, %1332 : vector<2x8x8xf32>
    %1334 = vector.broadcast %1 : vector<1x8x8xf32> to vector<2x8x8xf32>
    %1335 = arith.addf %1333, %1334 : vector<2x8x8xf32>
    %cst_271 = arith.constant dense<0xFF800000> : vector<2x8xf32>
    %1336 = vector.multi_reduction <maximumf>, %1335, %cst_271 [2] : vector<2x8x8xf32> to vector<2x8xf32>
    %1337 = vector.shape_cast %1336 : vector<2x8xf32> to vector<2x8x1xf32>
    %1338 = vector.broadcast %1337 : vector<2x8x1xf32> to vector<2x8x8xf32>
    %1339 = arith.subf %1335, %1338 : vector<2x8x8xf32>
    %1340 = math.exp %1339 : vector<2x8x8xf32>
    %cst_272 = arith.constant dense<0.000000e+00> : vector<2x8xf32>
    %1341 = vector.multi_reduction <add>, %1340, %cst_272 [2] : vector<2x8x8xf32> to vector<2x8xf32>
    %1342 = vector.shape_cast %1341 : vector<2x8xf32> to vector<2x8x1xf32>
    %1343 = vector.broadcast %1342 : vector<2x8x1xf32> to vector<2x8x8xf32>
    %1344 = arith.divf %1340, %1343 : vector<2x8x8xf32>
    %1345 = arith.truncf %1344 : vector<2x8x8xf32> to vector<2x8x8xbf16>
    %1346 = arith.truncf %1323 : vector<2x8x32xf32> to vector<2x8x32xbf16>
    "tpu.trace_start"() <{level = 10 : i32, message = "bij,bjh->bih"}> : () -> ()
    %cst_273 = arith.constant dense<0.000000e+00> : vector<2x8x32xf32>
    %1347 = tpu.matmul %1345, %1346, %cst_273 {dimension_numbers = #tpu.dot_dimension_numbers<[2], [1], [1], [2], [0, 0, 0, 1, 1, 2], [0], [0]>} : vector<2x8x8xbf16>, vector<2x8x32xbf16>, vector<2x8x32xf32> -> vector<2x8x32xf32>
    "tpu.trace_stop"() : () -> ()
    %1348 = math.tanh %1347 : vector<2x8x32xf32>
    %cst_274 = arith.constant 1.250000e-01 : f32
    %1349 = vector.broadcast %cst_274 : f32 to vector<2x8x32xf32>
    %1350 = arith.mulf %1349, %1348 : vector<2x8x32xf32>
    %1351 = arith.addf %1318, %1350 : vector<2x8x32xf32>
    %1352 = vector.shape_cast %1351 : vector<2x8x32xf32> to vector<16x32xf32>
    %1353 = arith.truncf %1352 : vector<16x32xf32> to vector<16x32xbf16>
    %cst_275 = arith.constant dense<0.000000e+00> : vector<16x34xf32>
    %1354 = tpu.matmul %1353, %2, %cst_275 {dimension_numbers = #tpu.dot_dimension_numbers<[1], [0], [0], [1], [0, 0, 1, 1], [], []>} : vector<16x32xbf16>, vector<32x34xbf16>, vector<16x34xf32> -> vector<16x34xf32>
    %1355 = vector.shape_cast %1354 : vector<16x34xf32> to vector<2x8x34xf32>
    %1356 = vector.extract_strided_slice %1355 {offsets = [0, 0, 0], sizes = [2, 8, 32], strides = [1, 1, 1]} : vector<2x8x34xf32> to vector<2x8x32xf32>
    %1357 = vector.extract_strided_slice %1355 {offsets = [0, 0, 32], sizes = [2, 8, 1], strides = [1, 1, 1]} : vector<2x8x34xf32> to vector<2x8x1xf32>
    %1358 = vector.extract_strided_slice %1355 {offsets = [0, 0, 33], sizes = [2, 8, 1], strides = [1, 1, 1]} : vector<2x8x34xf32> to vector<2x8x1xf32>
    %1359 = vector.shape_cast %1358 : vector<2x8x1xf32> to vector<2x8xf32>
    %1360 = vector.shape_cast %1359 : vector<2x8xf32> to vector<2x1x8xf32>
    %1361 = vector.broadcast %1357 : vector<2x8x1xf32> to vector<2x8x8xf32>
    %1362 = vector.broadcast %1360 : vector<2x1x8xf32> to vector<2x8x8xf32>
    %1363 = arith.addf %1361, %1362 : vector<2x8x8xf32>
    %cst_276 = arith.constant 2.000000e-01 : f32
    %1364 = vector.broadcast %cst_276 : f32 to vector<2x8x8xf32>
    %1365 = arith.mulf %1364, %1363 : vector<2x8x8xf32>
    %1366 = arith.maximumf %1363, %1365 : vector<2x8x8xf32>
    %1367 = vector.broadcast %1 : vector<1x8x8xf32> to vector<2x8x8xf32>
    %1368 = arith.addf %1366, %1367 : vector<2x8x8xf32>
    %cst_277 = arith.constant dense<0xFF800000> : vector<2x8xf32>
    %1369 = vector.multi_reduction <maximumf>, %1368, %cst_277 [2] : vector<2x8x8xf32> to vector<2x8xf32>
    %1370 = vector.shape_cast %1369 : vector<2x8xf32> to vector<2x8x1xf32>
    %1371 = vector.broadcast %1370 : vector<2x8x1xf32> to vector<2x8x8xf32>
    %1372 = arith.subf %1368, %1371 : vector<2x8x8xf32>
    %1373 = math.exp %1372 : vector<2x8x8xf32>
    %cst_278 = arith.constant dense<0.000000e+00> : vector<2x8xf32>
    %1374 = vector.multi_reduction <add>, %1373, %cst_278 [2] : vector<2x8x8xf32> to vector<2x8xf32>
    %1375 = vector.shape_cast %1374 : vector<2x8xf32> to vector<2x8x1xf32>
    %1376 = vector.broadcast %1375 : vector<2x8x1xf32> to vector<2x8x8xf32>
    %1377 = arith.divf %1373, %1376 : vector<2x8x8xf32>
    %1378 = arith.truncf %1377 : vector<2x8x8xf32> to vector<2x8x8xbf16>
    %1379 = arith.truncf %1356 : vector<2x8x32xf32> to vector<2x8x32xbf16>
    "tpu.trace_start"() <{level = 10 : i32, message = "bij,bjh->bih"}> : () -> ()
    %cst_279 = arith.constant dense<0.000000e+00> : vector<2x8x32xf32>
    %1380 = tpu.matmul %1378, %1379, %cst_279 {dimension_numbers = #tpu.dot_dimension_numbers<[2], [1], [1], [2], [0, 0, 0, 1, 1, 2], [0], [0]>} : vector<2x8x8xbf16>, vector<2x8x32xbf16>, vector<2x8x32xf32> -> vector<2x8x32xf32>
    "tpu.trace_stop"() : () -> ()
    %1381 = math.tanh %1380 : vector<2x8x32xf32>
    %cst_280 = arith.constant 1.250000e-01 : f32
    %1382 = vector.broadcast %cst_280 : f32 to vector<2x8x32xf32>
    %1383 = arith.mulf %1382, %1381 : vector<2x8x32xf32>
    %1384 = arith.addf %1318, %1383 : vector<2x8x32xf32>
    %1385 = vector.shape_cast %1384 : vector<2x8x32xf32> to vector<16x32xf32>
    %1386 = arith.truncf %1385 : vector<16x32xf32> to vector<16x32xbf16>
    %cst_281 = arith.constant dense<0.000000e+00> : vector<16x34xf32>
    %1387 = tpu.matmul %1386, %2, %cst_281 {dimension_numbers = #tpu.dot_dimension_numbers<[1], [0], [0], [1], [0, 0, 1, 1], [], []>} : vector<16x32xbf16>, vector<32x34xbf16>, vector<16x34xf32> -> vector<16x34xf32>
    %1388 = vector.shape_cast %1387 : vector<16x34xf32> to vector<2x8x34xf32>
    %1389 = vector.extract_strided_slice %1388 {offsets = [0, 0, 0], sizes = [2, 8, 32], strides = [1, 1, 1]} : vector<2x8x34xf32> to vector<2x8x32xf32>
    %1390 = vector.extract_strided_slice %1388 {offsets = [0, 0, 32], sizes = [2, 8, 1], strides = [1, 1, 1]} : vector<2x8x34xf32> to vector<2x8x1xf32>
    %1391 = vector.extract_strided_slice %1388 {offsets = [0, 0, 33], sizes = [2, 8, 1], strides = [1, 1, 1]} : vector<2x8x34xf32> to vector<2x8x1xf32>
    %1392 = vector.shape_cast %1391 : vector<2x8x1xf32> to vector<2x8xf32>
    %1393 = vector.shape_cast %1392 : vector<2x8xf32> to vector<2x1x8xf32>
    %1394 = vector.broadcast %1390 : vector<2x8x1xf32> to vector<2x8x8xf32>
    %1395 = vector.broadcast %1393 : vector<2x1x8xf32> to vector<2x8x8xf32>
    %1396 = arith.addf %1394, %1395 : vector<2x8x8xf32>
    %cst_282 = arith.constant 2.000000e-01 : f32
    %1397 = vector.broadcast %cst_282 : f32 to vector<2x8x8xf32>
    %1398 = arith.mulf %1397, %1396 : vector<2x8x8xf32>
    %1399 = arith.maximumf %1396, %1398 : vector<2x8x8xf32>
    %1400 = vector.broadcast %1 : vector<1x8x8xf32> to vector<2x8x8xf32>
    %1401 = arith.addf %1399, %1400 : vector<2x8x8xf32>
    %cst_283 = arith.constant dense<0xFF800000> : vector<2x8xf32>
    %1402 = vector.multi_reduction <maximumf>, %1401, %cst_283 [2] : vector<2x8x8xf32> to vector<2x8xf32>
    %1403 = vector.shape_cast %1402 : vector<2x8xf32> to vector<2x8x1xf32>
    %1404 = vector.broadcast %1403 : vector<2x8x1xf32> to vector<2x8x8xf32>
    %1405 = arith.subf %1401, %1404 : vector<2x8x8xf32>
    %1406 = math.exp %1405 : vector<2x8x8xf32>
    %cst_284 = arith.constant dense<0.000000e+00> : vector<2x8xf32>
    %1407 = vector.multi_reduction <add>, %1406, %cst_284 [2] : vector<2x8x8xf32> to vector<2x8xf32>
    %1408 = vector.shape_cast %1407 : vector<2x8xf32> to vector<2x8x1xf32>
    %1409 = vector.broadcast %1408 : vector<2x8x1xf32> to vector<2x8x8xf32>
    %1410 = arith.divf %1406, %1409 : vector<2x8x8xf32>
    %1411 = arith.truncf %1410 : vector<2x8x8xf32> to vector<2x8x8xbf16>
    %1412 = arith.truncf %1389 : vector<2x8x32xf32> to vector<2x8x32xbf16>
    "tpu.trace_start"() <{level = 10 : i32, message = "bij,bjh->bih"}> : () -> ()
    %cst_285 = arith.constant dense<0.000000e+00> : vector<2x8x32xf32>
    %1413 = tpu.matmul %1411, %1412, %cst_285 {dimension_numbers = #tpu.dot_dimension_numbers<[2], [1], [1], [2], [0, 0, 0, 1, 1, 2], [0], [0]>} : vector<2x8x8xbf16>, vector<2x8x32xbf16>, vector<2x8x32xf32> -> vector<2x8x32xf32>
    "tpu.trace_stop"() : () -> ()
    %1414 = math.tanh %1413 : vector<2x8x32xf32>
    %cst_286 = arith.constant 2.500000e-01 : f32
    %1415 = vector.broadcast %cst_286 : f32 to vector<2x8x32xf32>
    %1416 = arith.mulf %1415, %1414 : vector<2x8x32xf32>
    %1417 = arith.addf %1318, %1416 : vector<2x8x32xf32>
    %1418 = vector.shape_cast %1417 : vector<2x8x32xf32> to vector<16x32xf32>
    %1419 = arith.truncf %1418 : vector<16x32xf32> to vector<16x32xbf16>
    %cst_287 = arith.constant dense<0.000000e+00> : vector<16x34xf32>
    %1420 = tpu.matmul %1419, %2, %cst_287 {dimension_numbers = #tpu.dot_dimension_numbers<[1], [0], [0], [1], [0, 0, 1, 1], [], []>} : vector<16x32xbf16>, vector<32x34xbf16>, vector<16x34xf32> -> vector<16x34xf32>
    %1421 = vector.shape_cast %1420 : vector<16x34xf32> to vector<2x8x34xf32>
    %1422 = vector.extract_strided_slice %1421 {offsets = [0, 0, 0], sizes = [2, 8, 32], strides = [1, 1, 1]} : vector<2x8x34xf32> to vector<2x8x32xf32>
    %1423 = vector.extract_strided_slice %1421 {offsets = [0, 0, 32], sizes = [2, 8, 1], strides = [1, 1, 1]} : vector<2x8x34xf32> to vector<2x8x1xf32>
    %1424 = vector.extract_strided_slice %1421 {offsets = [0, 0, 33], sizes = [2, 8, 1], strides = [1, 1, 1]} : vector<2x8x34xf32> to vector<2x8x1xf32>
    %1425 = vector.shape_cast %1424 : vector<2x8x1xf32> to vector<2x8xf32>
    %1426 = vector.shape_cast %1425 : vector<2x8xf32> to vector<2x1x8xf32>
    %1427 = vector.broadcast %1423 : vector<2x8x1xf32> to vector<2x8x8xf32>
    %1428 = vector.broadcast %1426 : vector<2x1x8xf32> to vector<2x8x8xf32>
    %1429 = arith.addf %1427, %1428 : vector<2x8x8xf32>
    %cst_288 = arith.constant 2.000000e-01 : f32
    %1430 = vector.broadcast %cst_288 : f32 to vector<2x8x8xf32>
    %1431 = arith.mulf %1430, %1429 : vector<2x8x8xf32>
    %1432 = arith.maximumf %1429, %1431 : vector<2x8x8xf32>
    %1433 = vector.broadcast %1 : vector<1x8x8xf32> to vector<2x8x8xf32>
    %1434 = arith.addf %1432, %1433 : vector<2x8x8xf32>
    %cst_289 = arith.constant dense<0xFF800000> : vector<2x8xf32>
    %1435 = vector.multi_reduction <maximumf>, %1434, %cst_289 [2] : vector<2x8x8xf32> to vector<2x8xf32>
    %1436 = vector.shape_cast %1435 : vector<2x8xf32> to vector<2x8x1xf32>
    %1437 = vector.broadcast %1436 : vector<2x8x1xf32> to vector<2x8x8xf32>
    %1438 = arith.subf %1434, %1437 : vector<2x8x8xf32>
    %1439 = math.exp %1438 : vector<2x8x8xf32>
    %cst_290 = arith.constant dense<0.000000e+00> : vector<2x8xf32>
    %1440 = vector.multi_reduction <add>, %1439, %cst_290 [2] : vector<2x8x8xf32> to vector<2x8xf32>
    %1441 = vector.shape_cast %1440 : vector<2x8xf32> to vector<2x8x1xf32>
    %1442 = vector.broadcast %1441 : vector<2x8x1xf32> to vector<2x8x8xf32>
    %1443 = arith.divf %1439, %1442 : vector<2x8x8xf32>
    %1444 = arith.truncf %1443 : vector<2x8x8xf32> to vector<2x8x8xbf16>
    %1445 = arith.truncf %1422 : vector<2x8x32xf32> to vector<2x8x32xbf16>
    "tpu.trace_start"() <{level = 10 : i32, message = "bij,bjh->bih"}> : () -> ()
    %cst_291 = arith.constant dense<0.000000e+00> : vector<2x8x32xf32>
    %1446 = tpu.matmul %1444, %1445, %cst_291 {dimension_numbers = #tpu.dot_dimension_numbers<[2], [1], [1], [2], [0, 0, 0, 1, 1, 2], [0], [0]>} : vector<2x8x8xbf16>, vector<2x8x32xbf16>, vector<2x8x32xf32> -> vector<2x8x32xf32>
    "tpu.trace_stop"() : () -> ()
    %1447 = math.tanh %1446 : vector<2x8x32xf32>
    %cst_292 = arith.constant 2.000000e+00 : f32
    %1448 = vector.broadcast %cst_292 : f32 to vector<2x8x32xf32>
    %1449 = arith.mulf %1448, %1381 : vector<2x8x32xf32>
    %1450 = arith.addf %1348, %1449 : vector<2x8x32xf32>
    %cst_293 = arith.constant 2.000000e+00 : f32
    %1451 = vector.broadcast %cst_293 : f32 to vector<2x8x32xf32>
    %1452 = arith.mulf %1451, %1414 : vector<2x8x32xf32>
    %1453 = arith.addf %1450, %1452 : vector<2x8x32xf32>
    %1454 = arith.addf %1453, %1447 : vector<2x8x32xf32>
    %cst_294 = arith.constant 0.0416666679 : f32
    %1455 = vector.broadcast %cst_294 : f32 to vector<2x8x32xf32>
    %1456 = arith.mulf %1455, %1454 : vector<2x8x32xf32>
    %1457 = arith.addf %1318, %1456 : vector<2x8x32xf32>
    %c2_i32_295 = arith.constant 2 : i32
    %1458 = vector.shape_cast %1457 : vector<2x8x32xf32> to vector<16x32xf32>
    %1459 = arith.truncf %1458 : vector<16x32xf32> to vector<16x32xbf16>
    %cst_296 = arith.constant dense<0.000000e+00> : vector<16x34xf32>
    %1460 = tpu.matmul %1459, %2, %cst_296 {dimension_numbers = #tpu.dot_dimension_numbers<[1], [0], [0], [1], [0, 0, 1, 1], [], []>} : vector<16x32xbf16>, vector<32x34xbf16>, vector<16x34xf32> -> vector<16x34xf32>
    %1461 = vector.shape_cast %1460 : vector<16x34xf32> to vector<2x8x34xf32>
    %1462 = vector.extract_strided_slice %1461 {offsets = [0, 0, 0], sizes = [2, 8, 32], strides = [1, 1, 1]} : vector<2x8x34xf32> to vector<2x8x32xf32>
    %1463 = vector.extract_strided_slice %1461 {offsets = [0, 0, 32], sizes = [2, 8, 1], strides = [1, 1, 1]} : vector<2x8x34xf32> to vector<2x8x1xf32>
    %1464 = vector.extract_strided_slice %1461 {offsets = [0, 0, 33], sizes = [2, 8, 1], strides = [1, 1, 1]} : vector<2x8x34xf32> to vector<2x8x1xf32>
    %1465 = vector.shape_cast %1464 : vector<2x8x1xf32> to vector<2x8xf32>
    %1466 = vector.shape_cast %1465 : vector<2x8xf32> to vector<2x1x8xf32>
    %1467 = vector.broadcast %1463 : vector<2x8x1xf32> to vector<2x8x8xf32>
    %1468 = vector.broadcast %1466 : vector<2x1x8xf32> to vector<2x8x8xf32>
    %1469 = arith.addf %1467, %1468 : vector<2x8x8xf32>
    %cst_297 = arith.constant 2.000000e-01 : f32
    %1470 = vector.broadcast %cst_297 : f32 to vector<2x8x8xf32>
    %1471 = arith.mulf %1470, %1469 : vector<2x8x8xf32>
    %1472 = arith.maximumf %1469, %1471 : vector<2x8x8xf32>
    %1473 = vector.broadcast %1 : vector<1x8x8xf32> to vector<2x8x8xf32>
    %1474 = arith.addf %1472, %1473 : vector<2x8x8xf32>
    %cst_298 = arith.constant dense<0xFF800000> : vector<2x8xf32>
    %1475 = vector.multi_reduction <maximumf>, %1474, %cst_298 [2] : vector<2x8x8xf32> to vector<2x8xf32>
    %1476 = vector.shape_cast %1475 : vector<2x8xf32> to vector<2x8x1xf32>
    %1477 = vector.broadcast %1476 : vector<2x8x1xf32> to vector<2x8x8xf32>
    %1478 = arith.subf %1474, %1477 : vector<2x8x8xf32>
    %1479 = math.exp %1478 : vector<2x8x8xf32>
    %cst_299 = arith.constant dense<0.000000e+00> : vector<2x8xf32>
    %1480 = vector.multi_reduction <add>, %1479, %cst_299 [2] : vector<2x8x8xf32> to vector<2x8xf32>
    %1481 = vector.shape_cast %1480 : vector<2x8xf32> to vector<2x8x1xf32>
    %1482 = vector.broadcast %1481 : vector<2x8x1xf32> to vector<2x8x8xf32>
    %1483 = arith.divf %1479, %1482 : vector<2x8x8xf32>
    %1484 = arith.truncf %1483 : vector<2x8x8xf32> to vector<2x8x8xbf16>
    %1485 = arith.truncf %1462 : vector<2x8x32xf32> to vector<2x8x32xbf16>
    "tpu.trace_start"() <{level = 10 : i32, message = "bij,bjh->bih"}> : () -> ()
    %cst_300 = arith.constant dense<0.000000e+00> : vector<2x8x32xf32>
    %1486 = tpu.matmul %1484, %1485, %cst_300 {dimension_numbers = #tpu.dot_dimension_numbers<[2], [1], [1], [2], [0, 0, 0, 1, 1, 2], [0], [0]>} : vector<2x8x8xbf16>, vector<2x8x32xbf16>, vector<2x8x32xf32> -> vector<2x8x32xf32>
    "tpu.trace_stop"() : () -> ()
    %1487 = math.tanh %1486 : vector<2x8x32xf32>
    %cst_301 = arith.constant 1.250000e-01 : f32
    %1488 = vector.broadcast %cst_301 : f32 to vector<2x8x32xf32>
    %1489 = arith.mulf %1488, %1487 : vector<2x8x32xf32>
    %1490 = arith.addf %1457, %1489 : vector<2x8x32xf32>
    %1491 = vector.shape_cast %1490 : vector<2x8x32xf32> to vector<16x32xf32>
    %1492 = arith.truncf %1491 : vector<16x32xf32> to vector<16x32xbf16>
    %cst_302 = arith.constant dense<0.000000e+00> : vector<16x34xf32>
    %1493 = tpu.matmul %1492, %2, %cst_302 {dimension_numbers = #tpu.dot_dimension_numbers<[1], [0], [0], [1], [0, 0, 1, 1], [], []>} : vector<16x32xbf16>, vector<32x34xbf16>, vector<16x34xf32> -> vector<16x34xf32>
    %1494 = vector.shape_cast %1493 : vector<16x34xf32> to vector<2x8x34xf32>
    %1495 = vector.extract_strided_slice %1494 {offsets = [0, 0, 0], sizes = [2, 8, 32], strides = [1, 1, 1]} : vector<2x8x34xf32> to vector<2x8x32xf32>
    %1496 = vector.extract_strided_slice %1494 {offsets = [0, 0, 32], sizes = [2, 8, 1], strides = [1, 1, 1]} : vector<2x8x34xf32> to vector<2x8x1xf32>
    %1497 = vector.extract_strided_slice %1494 {offsets = [0, 0, 33], sizes = [2, 8, 1], strides = [1, 1, 1]} : vector<2x8x34xf32> to vector<2x8x1xf32>
    %1498 = vector.shape_cast %1497 : vector<2x8x1xf32> to vector<2x8xf32>
    %1499 = vector.shape_cast %1498 : vector<2x8xf32> to vector<2x1x8xf32>
    %1500 = vector.broadcast %1496 : vector<2x8x1xf32> to vector<2x8x8xf32>
    %1501 = vector.broadcast %1499 : vector<2x1x8xf32> to vector<2x8x8xf32>
    %1502 = arith.addf %1500, %1501 : vector<2x8x8xf32>
    %cst_303 = arith.constant 2.000000e-01 : f32
    %1503 = vector.broadcast %cst_303 : f32 to vector<2x8x8xf32>
    %1504 = arith.mulf %1503, %1502 : vector<2x8x8xf32>
    %1505 = arith.maximumf %1502, %1504 : vector<2x8x8xf32>
    %1506 = vector.broadcast %1 : vector<1x8x8xf32> to vector<2x8x8xf32>
    %1507 = arith.addf %1505, %1506 : vector<2x8x8xf32>
    %cst_304 = arith.constant dense<0xFF800000> : vector<2x8xf32>
    %1508 = vector.multi_reduction <maximumf>, %1507, %cst_304 [2] : vector<2x8x8xf32> to vector<2x8xf32>
    %1509 = vector.shape_cast %1508 : vector<2x8xf32> to vector<2x8x1xf32>
    %1510 = vector.broadcast %1509 : vector<2x8x1xf32> to vector<2x8x8xf32>
    %1511 = arith.subf %1507, %1510 : vector<2x8x8xf32>
    %1512 = math.exp %1511 : vector<2x8x8xf32>
    %cst_305 = arith.constant dense<0.000000e+00> : vector<2x8xf32>
    %1513 = vector.multi_reduction <add>, %1512, %cst_305 [2] : vector<2x8x8xf32> to vector<2x8xf32>
    %1514 = vector.shape_cast %1513 : vector<2x8xf32> to vector<2x8x1xf32>
    %1515 = vector.broadcast %1514 : vector<2x8x1xf32> to vector<2x8x8xf32>
    %1516 = arith.divf %1512, %1515 : vector<2x8x8xf32>
    %1517 = arith.truncf %1516 : vector<2x8x8xf32> to vector<2x8x8xbf16>
    %1518 = arith.truncf %1495 : vector<2x8x32xf32> to vector<2x8x32xbf16>
    "tpu.trace_start"() <{level = 10 : i32, message = "bij,bjh->bih"}> : () -> ()
    %cst_306 = arith.constant dense<0.000000e+00> : vector<2x8x32xf32>
    %1519 = tpu.matmul %1517, %1518, %cst_306 {dimension_numbers = #tpu.dot_dimension_numbers<[2], [1], [1], [2], [0, 0, 0, 1, 1, 2], [0], [0]>} : vector<2x8x8xbf16>, vector<2x8x32xbf16>, vector<2x8x32xf32> -> vector<2x8x32xf32>
    "tpu.trace_stop"() : () -> ()
    %1520 = math.tanh %1519 : vector<2x8x32xf32>
    %cst_307 = arith.constant 1.250000e-01 : f32
    %1521 = vector.broadcast %cst_307 : f32 to vector<2x8x32xf32>
    %1522 = arith.mulf %1521, %1520 : vector<2x8x32xf32>
    %1523 = arith.addf %1457, %1522 : vector<2x8x32xf32>
    %1524 = vector.shape_cast %1523 : vector<2x8x32xf32> to vector<16x32xf32>
    %1525 = arith.truncf %1524 : vector<16x32xf32> to vector<16x32xbf16>
    %cst_308 = arith.constant dense<0.000000e+00> : vector<16x34xf32>
    %1526 = tpu.matmul %1525, %2, %cst_308 {dimension_numbers = #tpu.dot_dimension_numbers<[1], [0], [0], [1], [0, 0, 1, 1], [], []>} : vector<16x32xbf16>, vector<32x34xbf16>, vector<16x34xf32> -> vector<16x34xf32>
    %1527 = vector.shape_cast %1526 : vector<16x34xf32> to vector<2x8x34xf32>
    %1528 = vector.extract_strided_slice %1527 {offsets = [0, 0, 0], sizes = [2, 8, 32], strides = [1, 1, 1]} : vector<2x8x34xf32> to vector<2x8x32xf32>
    %1529 = vector.extract_strided_slice %1527 {offsets = [0, 0, 32], sizes = [2, 8, 1], strides = [1, 1, 1]} : vector<2x8x34xf32> to vector<2x8x1xf32>
    %1530 = vector.extract_strided_slice %1527 {offsets = [0, 0, 33], sizes = [2, 8, 1], strides = [1, 1, 1]} : vector<2x8x34xf32> to vector<2x8x1xf32>
    %1531 = vector.shape_cast %1530 : vector<2x8x1xf32> to vector<2x8xf32>
    %1532 = vector.shape_cast %1531 : vector<2x8xf32> to vector<2x1x8xf32>
    %1533 = vector.broadcast %1529 : vector<2x8x1xf32> to vector<2x8x8xf32>
    %1534 = vector.broadcast %1532 : vector<2x1x8xf32> to vector<2x8x8xf32>
    %1535 = arith.addf %1533, %1534 : vector<2x8x8xf32>
    %cst_309 = arith.constant 2.000000e-01 : f32
    %1536 = vector.broadcast %cst_309 : f32 to vector<2x8x8xf32>
    %1537 = arith.mulf %1536, %1535 : vector<2x8x8xf32>
    %1538 = arith.maximumf %1535, %1537 : vector<2x8x8xf32>
    %1539 = vector.broadcast %1 : vector<1x8x8xf32> to vector<2x8x8xf32>
    %1540 = arith.addf %1538, %1539 : vector<2x8x8xf32>
    %cst_310 = arith.constant dense<0xFF800000> : vector<2x8xf32>
    %1541 = vector.multi_reduction <maximumf>, %1540, %cst_310 [2] : vector<2x8x8xf32> to vector<2x8xf32>
    %1542 = vector.shape_cast %1541 : vector<2x8xf32> to vector<2x8x1xf32>
    %1543 = vector.broadcast %1542 : vector<2x8x1xf32> to vector<2x8x8xf32>
    %1544 = arith.subf %1540, %1543 : vector<2x8x8xf32>
    %1545 = math.exp %1544 : vector<2x8x8xf32>
    %cst_311 = arith.constant dense<0.000000e+00> : vector<2x8xf32>
    %1546 = vector.multi_reduction <add>, %1545, %cst_311 [2] : vector<2x8x8xf32> to vector<2x8xf32>
    %1547 = vector.shape_cast %1546 : vector<2x8xf32> to vector<2x8x1xf32>
    %1548 = vector.broadcast %1547 : vector<2x8x1xf32> to vector<2x8x8xf32>
    %1549 = arith.divf %1545, %1548 : vector<2x8x8xf32>
    %1550 = arith.truncf %1549 : vector<2x8x8xf32> to vector<2x8x8xbf16>
    %1551 = arith.truncf %1528 : vector<2x8x32xf32> to vector<2x8x32xbf16>
    "tpu.trace_start"() <{level = 10 : i32, message = "bij,bjh->bih"}> : () -> ()
    %cst_312 = arith.constant dense<0.000000e+00> : vector<2x8x32xf32>
    %1552 = tpu.matmul %1550, %1551, %cst_312 {dimension_numbers = #tpu.dot_dimension_numbers<[2], [1], [1], [2], [0, 0, 0, 1, 1, 2], [0], [0]>} : vector<2x8x8xbf16>, vector<2x8x32xbf16>, vector<2x8x32xf32> -> vector<2x8x32xf32>
    "tpu.trace_stop"() : () -> ()
    %1553 = math.tanh %1552 : vector<2x8x32xf32>
    %cst_313 = arith.constant 2.500000e-01 : f32
    %1554 = vector.broadcast %cst_313 : f32 to vector<2x8x32xf32>
    %1555 = arith.mulf %1554, %1553 : vector<2x8x32xf32>
    %1556 = arith.addf %1457, %1555 : vector<2x8x32xf32>
    %1557 = vector.shape_cast %1556 : vector<2x8x32xf32> to vector<16x32xf32>
    %1558 = arith.truncf %1557 : vector<16x32xf32> to vector<16x32xbf16>
    %cst_314 = arith.constant dense<0.000000e+00> : vector<16x34xf32>
    %1559 = tpu.matmul %1558, %2, %cst_314 {dimension_numbers = #tpu.dot_dimension_numbers<[1], [0], [0], [1], [0, 0, 1, 1], [], []>} : vector<16x32xbf16>, vector<32x34xbf16>, vector<16x34xf32> -> vector<16x34xf32>
    %1560 = vector.shape_cast %1559 : vector<16x34xf32> to vector<2x8x34xf32>
    %1561 = vector.extract_strided_slice %1560 {offsets = [0, 0, 0], sizes = [2, 8, 32], strides = [1, 1, 1]} : vector<2x8x34xf32> to vector<2x8x32xf32>
    %1562 = vector.extract_strided_slice %1560 {offsets = [0, 0, 32], sizes = [2, 8, 1], strides = [1, 1, 1]} : vector<2x8x34xf32> to vector<2x8x1xf32>
    %1563 = vector.extract_strided_slice %1560 {offsets = [0, 0, 33], sizes = [2, 8, 1], strides = [1, 1, 1]} : vector<2x8x34xf32> to vector<2x8x1xf32>
    %1564 = vector.shape_cast %1563 : vector<2x8x1xf32> to vector<2x8xf32>
    %1565 = vector.shape_cast %1564 : vector<2x8xf32> to vector<2x1x8xf32>
    %1566 = vector.broadcast %1562 : vector<2x8x1xf32> to vector<2x8x8xf32>
    %1567 = vector.broadcast %1565 : vector<2x1x8xf32> to vector<2x8x8xf32>
    %1568 = arith.addf %1566, %1567 : vector<2x8x8xf32>
    %cst_315 = arith.constant 2.000000e-01 : f32
    %1569 = vector.broadcast %cst_315 : f32 to vector<2x8x8xf32>
    %1570 = arith.mulf %1569, %1568 : vector<2x8x8xf32>
    %1571 = arith.maximumf %1568, %1570 : vector<2x8x8xf32>
    %1572 = vector.broadcast %1 : vector<1x8x8xf32> to vector<2x8x8xf32>
    %1573 = arith.addf %1571, %1572 : vector<2x8x8xf32>
    %cst_316 = arith.constant dense<0xFF800000> : vector<2x8xf32>
    %1574 = vector.multi_reduction <maximumf>, %1573, %cst_316 [2] : vector<2x8x8xf32> to vector<2x8xf32>
    %1575 = vector.shape_cast %1574 : vector<2x8xf32> to vector<2x8x1xf32>
    %1576 = vector.broadcast %1575 : vector<2x8x1xf32> to vector<2x8x8xf32>
    %1577 = arith.subf %1573, %1576 : vector<2x8x8xf32>
    %1578 = math.exp %1577 : vector<2x8x8xf32>
    %cst_317 = arith.constant dense<0.000000e+00> : vector<2x8xf32>
    %1579 = vector.multi_reduction <add>, %1578, %cst_317 [2] : vector<2x8x8xf32> to vector<2x8xf32>
    %1580 = vector.shape_cast %1579 : vector<2x8xf32> to vector<2x8x1xf32>
    %1581 = vector.broadcast %1580 : vector<2x8x1xf32> to vector<2x8x8xf32>
    %1582 = arith.divf %1578, %1581 : vector<2x8x8xf32>
    %1583 = arith.truncf %1582 : vector<2x8x8xf32> to vector<2x8x8xbf16>
    %1584 = arith.truncf %1561 : vector<2x8x32xf32> to vector<2x8x32xbf16>
    "tpu.trace_start"() <{level = 10 : i32, message = "bij,bjh->bih"}> : () -> ()
    %cst_318 = arith.constant dense<0.000000e+00> : vector<2x8x32xf32>
    %1585 = tpu.matmul %1583, %1584, %cst_318 {dimension_numbers = #tpu.dot_dimension_numbers<[2], [1], [1], [2], [0, 0, 0, 1, 1, 2], [0], [0]>} : vector<2x8x8xbf16>, vector<2x8x32xbf16>, vector<2x8x32xf32> -> vector<2x8x32xf32>
    "tpu.trace_stop"() : () -> ()
    %1586 = math.tanh %1585 : vector<2x8x32xf32>
    %cst_319 = arith.constant 2.000000e+00 : f32
    %1587 = vector.broadcast %cst_319 : f32 to vector<2x8x32xf32>
    %1588 = arith.mulf %1587, %1520 : vector<2x8x32xf32>
    %1589 = arith.addf %1487, %1588 : vector<2x8x32xf32>
    %cst_320 = arith.constant 2.000000e+00 : f32
    %1590 = vector.broadcast %cst_320 : f32 to vector<2x8x32xf32>
    %1591 = arith.mulf %1590, %1553 : vector<2x8x32xf32>
    %1592 = arith.addf %1589, %1591 : vector<2x8x32xf32>
    %1593 = arith.addf %1592, %1586 : vector<2x8x32xf32>
    %cst_321 = arith.constant 0.0416666679 : f32
    %1594 = vector.broadcast %cst_321 : f32 to vector<2x8x32xf32>
    %1595 = arith.mulf %1594, %1593 : vector<2x8x32xf32>
    %1596 = arith.addf %1457, %1595 : vector<2x8x32xf32>
    %c3_i32_322 = arith.constant 3 : i32
    %1597 = vector.shape_cast %1596 : vector<2x8x32xf32> to vector<16x32xf32>
    %1598 = arith.truncf %1597 : vector<16x32xf32> to vector<16x32xbf16>
    %cst_323 = arith.constant dense<0.000000e+00> : vector<16x34xf32>
    %1599 = tpu.matmul %1598, %2, %cst_323 {dimension_numbers = #tpu.dot_dimension_numbers<[1], [0], [0], [1], [0, 0, 1, 1], [], []>} : vector<16x32xbf16>, vector<32x34xbf16>, vector<16x34xf32> -> vector<16x34xf32>
    %1600 = vector.shape_cast %1599 : vector<16x34xf32> to vector<2x8x34xf32>
    %1601 = vector.extract_strided_slice %1600 {offsets = [0, 0, 0], sizes = [2, 8, 32], strides = [1, 1, 1]} : vector<2x8x34xf32> to vector<2x8x32xf32>
    %1602 = vector.extract_strided_slice %1600 {offsets = [0, 0, 32], sizes = [2, 8, 1], strides = [1, 1, 1]} : vector<2x8x34xf32> to vector<2x8x1xf32>
    %1603 = vector.extract_strided_slice %1600 {offsets = [0, 0, 33], sizes = [2, 8, 1], strides = [1, 1, 1]} : vector<2x8x34xf32> to vector<2x8x1xf32>
    %1604 = vector.shape_cast %1603 : vector<2x8x1xf32> to vector<2x8xf32>
    %1605 = vector.shape_cast %1604 : vector<2x8xf32> to vector<2x1x8xf32>
    %1606 = vector.broadcast %1602 : vector<2x8x1xf32> to vector<2x8x8xf32>
    %1607 = vector.broadcast %1605 : vector<2x1x8xf32> to vector<2x8x8xf32>
    %1608 = arith.addf %1606, %1607 : vector<2x8x8xf32>
    %cst_324 = arith.constant 2.000000e-01 : f32
    %1609 = vector.broadcast %cst_324 : f32 to vector<2x8x8xf32>
    %1610 = arith.mulf %1609, %1608 : vector<2x8x8xf32>
    %1611 = arith.maximumf %1608, %1610 : vector<2x8x8xf32>
    %1612 = vector.broadcast %1 : vector<1x8x8xf32> to vector<2x8x8xf32>
    %1613 = arith.addf %1611, %1612 : vector<2x8x8xf32>
    %cst_325 = arith.constant dense<0xFF800000> : vector<2x8xf32>
    %1614 = vector.multi_reduction <maximumf>, %1613, %cst_325 [2] : vector<2x8x8xf32> to vector<2x8xf32>
    %1615 = vector.shape_cast %1614 : vector<2x8xf32> to vector<2x8x1xf32>
    %1616 = vector.broadcast %1615 : vector<2x8x1xf32> to vector<2x8x8xf32>
    %1617 = arith.subf %1613, %1616 : vector<2x8x8xf32>
    %1618 = math.exp %1617 : vector<2x8x8xf32>
    %cst_326 = arith.constant dense<0.000000e+00> : vector<2x8xf32>
    %1619 = vector.multi_reduction <add>, %1618, %cst_326 [2] : vector<2x8x8xf32> to vector<2x8xf32>
    %1620 = vector.shape_cast %1619 : vector<2x8xf32> to vector<2x8x1xf32>
    %1621 = vector.broadcast %1620 : vector<2x8x1xf32> to vector<2x8x8xf32>
    %1622 = arith.divf %1618, %1621 : vector<2x8x8xf32>
    %1623 = arith.truncf %1622 : vector<2x8x8xf32> to vector<2x8x8xbf16>
    %1624 = arith.truncf %1601 : vector<2x8x32xf32> to vector<2x8x32xbf16>
    "tpu.trace_start"() <{level = 10 : i32, message = "bij,bjh->bih"}> : () -> ()
    %cst_327 = arith.constant dense<0.000000e+00> : vector<2x8x32xf32>
    %1625 = tpu.matmul %1623, %1624, %cst_327 {dimension_numbers = #tpu.dot_dimension_numbers<[2], [1], [1], [2], [0, 0, 0, 1, 1, 2], [0], [0]>} : vector<2x8x8xbf16>, vector<2x8x32xbf16>, vector<2x8x32xf32> -> vector<2x8x32xf32>
    "tpu.trace_stop"() : () -> ()
    %1626 = math.tanh %1625 : vector<2x8x32xf32>
    %cst_328 = arith.constant 1.250000e-01 : f32
    %1627 = vector.broadcast %cst_328 : f32 to vector<2x8x32xf32>
    %1628 = arith.mulf %1627, %1626 : vector<2x8x32xf32>
    %1629 = arith.addf %1596, %1628 : vector<2x8x32xf32>
    %1630 = vector.shape_cast %1629 : vector<2x8x32xf32> to vector<16x32xf32>
    %1631 = arith.truncf %1630 : vector<16x32xf32> to vector<16x32xbf16>
    %cst_329 = arith.constant dense<0.000000e+00> : vector<16x34xf32>
    %1632 = tpu.matmul %1631, %2, %cst_329 {dimension_numbers = #tpu.dot_dimension_numbers<[1], [0], [0], [1], [0, 0, 1, 1], [], []>} : vector<16x32xbf16>, vector<32x34xbf16>, vector<16x34xf32> -> vector<16x34xf32>
    %1633 = vector.shape_cast %1632 : vector<16x34xf32> to vector<2x8x34xf32>
    %1634 = vector.extract_strided_slice %1633 {offsets = [0, 0, 0], sizes = [2, 8, 32], strides = [1, 1, 1]} : vector<2x8x34xf32> to vector<2x8x32xf32>
    %1635 = vector.extract_strided_slice %1633 {offsets = [0, 0, 32], sizes = [2, 8, 1], strides = [1, 1, 1]} : vector<2x8x34xf32> to vector<2x8x1xf32>
    %1636 = vector.extract_strided_slice %1633 {offsets = [0, 0, 33], sizes = [2, 8, 1], strides = [1, 1, 1]} : vector<2x8x34xf32> to vector<2x8x1xf32>
    %1637 = vector.shape_cast %1636 : vector<2x8x1xf32> to vector<2x8xf32>
    %1638 = vector.shape_cast %1637 : vector<2x8xf32> to vector<2x1x8xf32>
    %1639 = vector.broadcast %1635 : vector<2x8x1xf32> to vector<2x8x8xf32>
    %1640 = vector.broadcast %1638 : vector<2x1x8xf32> to vector<2x8x8xf32>
    %1641 = arith.addf %1639, %1640 : vector<2x8x8xf32>
    %cst_330 = arith.constant 2.000000e-01 : f32
    %1642 = vector.broadcast %cst_330 : f32 to vector<2x8x8xf32>
    %1643 = arith.mulf %1642, %1641 : vector<2x8x8xf32>
    %1644 = arith.maximumf %1641, %1643 : vector<2x8x8xf32>
    %1645 = vector.broadcast %1 : vector<1x8x8xf32> to vector<2x8x8xf32>
    %1646 = arith.addf %1644, %1645 : vector<2x8x8xf32>
    %cst_331 = arith.constant dense<0xFF800000> : vector<2x8xf32>
    %1647 = vector.multi_reduction <maximumf>, %1646, %cst_331 [2] : vector<2x8x8xf32> to vector<2x8xf32>
    %1648 = vector.shape_cast %1647 : vector<2x8xf32> to vector<2x8x1xf32>
    %1649 = vector.broadcast %1648 : vector<2x8x1xf32> to vector<2x8x8xf32>
    %1650 = arith.subf %1646, %1649 : vector<2x8x8xf32>
    %1651 = math.exp %1650 : vector<2x8x8xf32>
    %cst_332 = arith.constant dense<0.000000e+00> : vector<2x8xf32>
    %1652 = vector.multi_reduction <add>, %1651, %cst_332 [2] : vector<2x8x8xf32> to vector<2x8xf32>
    %1653 = vector.shape_cast %1652 : vector<2x8xf32> to vector<2x8x1xf32>
    %1654 = vector.broadcast %1653 : vector<2x8x1xf32> to vector<2x8x8xf32>
    %1655 = arith.divf %1651, %1654 : vector<2x8x8xf32>
    %1656 = arith.truncf %1655 : vector<2x8x8xf32> to vector<2x8x8xbf16>
    %1657 = arith.truncf %1634 : vector<2x8x32xf32> to vector<2x8x32xbf16>
    "tpu.trace_start"() <{level = 10 : i32, message = "bij,bjh->bih"}> : () -> ()
    %cst_333 = arith.constant dense<0.000000e+00> : vector<2x8x32xf32>
    %1658 = tpu.matmul %1656, %1657, %cst_333 {dimension_numbers = #tpu.dot_dimension_numbers<[2], [1], [1], [2], [0, 0, 0, 1, 1, 2], [0], [0]>} : vector<2x8x8xbf16>, vector<2x8x32xbf16>, vector<2x8x32xf32> -> vector<2x8x32xf32>
    "tpu.trace_stop"() : () -> ()
    %1659 = math.tanh %1658 : vector<2x8x32xf32>
    %cst_334 = arith.constant 1.250000e-01 : f32
    %1660 = vector.broadcast %cst_334 : f32 to vector<2x8x32xf32>
    %1661 = arith.mulf %1660, %1659 : vector<2x8x32xf32>
    %1662 = arith.addf %1596, %1661 : vector<2x8x32xf32>
    %1663 = vector.shape_cast %1662 : vector<2x8x32xf32> to vector<16x32xf32>
    %1664 = arith.truncf %1663 : vector<16x32xf32> to vector<16x32xbf16>
    %cst_335 = arith.constant dense<0.000000e+00> : vector<16x34xf32>
    %1665 = tpu.matmul %1664, %2, %cst_335 {dimension_numbers = #tpu.dot_dimension_numbers<[1], [0], [0], [1], [0, 0, 1, 1], [], []>} : vector<16x32xbf16>, vector<32x34xbf16>, vector<16x34xf32> -> vector<16x34xf32>
    %1666 = vector.shape_cast %1665 : vector<16x34xf32> to vector<2x8x34xf32>
    %1667 = vector.extract_strided_slice %1666 {offsets = [0, 0, 0], sizes = [2, 8, 32], strides = [1, 1, 1]} : vector<2x8x34xf32> to vector<2x8x32xf32>
    %1668 = vector.extract_strided_slice %1666 {offsets = [0, 0, 32], sizes = [2, 8, 1], strides = [1, 1, 1]} : vector<2x8x34xf32> to vector<2x8x1xf32>
    %1669 = vector.extract_strided_slice %1666 {offsets = [0, 0, 33], sizes = [2, 8, 1], strides = [1, 1, 1]} : vector<2x8x34xf32> to vector<2x8x1xf32>
    %1670 = vector.shape_cast %1669 : vector<2x8x1xf32> to vector<2x8xf32>
    %1671 = vector.shape_cast %1670 : vector<2x8xf32> to vector<2x1x8xf32>
    %1672 = vector.broadcast %1668 : vector<2x8x1xf32> to vector<2x8x8xf32>
    %1673 = vector.broadcast %1671 : vector<2x1x8xf32> to vector<2x8x8xf32>
    %1674 = arith.addf %1672, %1673 : vector<2x8x8xf32>
    %cst_336 = arith.constant 2.000000e-01 : f32
    %1675 = vector.broadcast %cst_336 : f32 to vector<2x8x8xf32>
    %1676 = arith.mulf %1675, %1674 : vector<2x8x8xf32>
    %1677 = arith.maximumf %1674, %1676 : vector<2x8x8xf32>
    %1678 = vector.broadcast %1 : vector<1x8x8xf32> to vector<2x8x8xf32>
    %1679 = arith.addf %1677, %1678 : vector<2x8x8xf32>
    %cst_337 = arith.constant dense<0xFF800000> : vector<2x8xf32>
    %1680 = vector.multi_reduction <maximumf>, %1679, %cst_337 [2] : vector<2x8x8xf32> to vector<2x8xf32>
    %1681 = vector.shape_cast %1680 : vector<2x8xf32> to vector<2x8x1xf32>
    %1682 = vector.broadcast %1681 : vector<2x8x1xf32> to vector<2x8x8xf32>
    %1683 = arith.subf %1679, %1682 : vector<2x8x8xf32>
    %1684 = math.exp %1683 : vector<2x8x8xf32>
    %cst_338 = arith.constant dense<0.000000e+00> : vector<2x8xf32>
    %1685 = vector.multi_reduction <add>, %1684, %cst_338 [2] : vector<2x8x8xf32> to vector<2x8xf32>
    %1686 = vector.shape_cast %1685 : vector<2x8xf32> to vector<2x8x1xf32>
    %1687 = vector.broadcast %1686 : vector<2x8x1xf32> to vector<2x8x8xf32>
    %1688 = arith.divf %1684, %1687 : vector<2x8x8xf32>
    %1689 = arith.truncf %1688 : vector<2x8x8xf32> to vector<2x8x8xbf16>
    %1690 = arith.truncf %1667 : vector<2x8x32xf32> to vector<2x8x32xbf16>
    "tpu.trace_start"() <{level = 10 : i32, message = "bij,bjh->bih"}> : () -> ()
    %cst_339 = arith.constant dense<0.000000e+00> : vector<2x8x32xf32>
    %1691 = tpu.matmul %1689, %1690, %cst_339 {dimension_numbers = #tpu.dot_dimension_numbers<[2], [1], [1], [2], [0, 0, 0, 1, 1, 2], [0], [0]>} : vector<2x8x8xbf16>, vector<2x8x32xbf16>, vector<2x8x32xf32> -> vector<2x8x32xf32>
    "tpu.trace_stop"() : () -> ()
    %1692 = math.tanh %1691 : vector<2x8x32xf32>
    %cst_340 = arith.constant 2.500000e-01 : f32
    %1693 = vector.broadcast %cst_340 : f32 to vector<2x8x32xf32>
    %1694 = arith.mulf %1693, %1692 : vector<2x8x32xf32>
    %1695 = arith.addf %1596, %1694 : vector<2x8x32xf32>
    %1696 = vector.shape_cast %1695 : vector<2x8x32xf32> to vector<16x32xf32>
    %1697 = arith.truncf %1696 : vector<16x32xf32> to vector<16x32xbf16>
    %cst_341 = arith.constant dense<0.000000e+00> : vector<16x34xf32>
    %1698 = tpu.matmul %1697, %2, %cst_341 {dimension_numbers = #tpu.dot_dimension_numbers<[1], [0], [0], [1], [0, 0, 1, 1], [], []>} : vector<16x32xbf16>, vector<32x34xbf16>, vector<16x34xf32> -> vector<16x34xf32>
    %1699 = vector.shape_cast %1698 : vector<16x34xf32> to vector<2x8x34xf32>
    %1700 = vector.extract_strided_slice %1699 {offsets = [0, 0, 0], sizes = [2, 8, 32], strides = [1, 1, 1]} : vector<2x8x34xf32> to vector<2x8x32xf32>
    %1701 = vector.extract_strided_slice %1699 {offsets = [0, 0, 32], sizes = [2, 8, 1], strides = [1, 1, 1]} : vector<2x8x34xf32> to vector<2x8x1xf32>
    %1702 = vector.extract_strided_slice %1699 {offsets = [0, 0, 33], sizes = [2, 8, 1], strides = [1, 1, 1]} : vector<2x8x34xf32> to vector<2x8x1xf32>
    %1703 = vector.shape_cast %1702 : vector<2x8x1xf32> to vector<2x8xf32>
    %1704 = vector.shape_cast %1703 : vector<2x8xf32> to vector<2x1x8xf32>
    %1705 = vector.broadcast %1701 : vector<2x8x1xf32> to vector<2x8x8xf32>
    %1706 = vector.broadcast %1704 : vector<2x1x8xf32> to vector<2x8x8xf32>
    %1707 = arith.addf %1705, %1706 : vector<2x8x8xf32>
    %cst_342 = arith.constant 2.000000e-01 : f32
    %1708 = vector.broadcast %cst_342 : f32 to vector<2x8x8xf32>
    %1709 = arith.mulf %1708, %1707 : vector<2x8x8xf32>
    %1710 = arith.maximumf %1707, %1709 : vector<2x8x8xf32>
    %1711 = vector.broadcast %1 : vector<1x8x8xf32> to vector<2x8x8xf32>
    %1712 = arith.addf %1710, %1711 : vector<2x8x8xf32>
    %cst_343 = arith.constant dense<0xFF800000> : vector<2x8xf32>
    %1713 = vector.multi_reduction <maximumf>, %1712, %cst_343 [2] : vector<2x8x8xf32> to vector<2x8xf32>
    %1714 = vector.shape_cast %1713 : vector<2x8xf32> to vector<2x8x1xf32>
    %1715 = vector.broadcast %1714 : vector<2x8x1xf32> to vector<2x8x8xf32>
    %1716 = arith.subf %1712, %1715 : vector<2x8x8xf32>
    %1717 = math.exp %1716 : vector<2x8x8xf32>
    %cst_344 = arith.constant dense<0.000000e+00> : vector<2x8xf32>
    %1718 = vector.multi_reduction <add>, %1717, %cst_344 [2] : vector<2x8x8xf32> to vector<2x8xf32>
    %1719 = vector.shape_cast %1718 : vector<2x8xf32> to vector<2x8x1xf32>
    %1720 = vector.broadcast %1719 : vector<2x8x1xf32> to vector<2x8x8xf32>
    %1721 = arith.divf %1717, %1720 : vector<2x8x8xf32>
    %1722 = arith.truncf %1721 : vector<2x8x8xf32> to vector<2x8x8xbf16>
    %1723 = arith.truncf %1700 : vector<2x8x32xf32> to vector<2x8x32xbf16>
    "tpu.trace_start"() <{level = 10 : i32, message = "bij,bjh->bih"}> : () -> ()
    %cst_345 = arith.constant dense<0.000000e+00> : vector<2x8x32xf32>
    %1724 = tpu.matmul %1722, %1723, %cst_345 {dimension_numbers = #tpu.dot_dimension_numbers<[2], [1], [1], [2], [0, 0, 0, 1, 1, 2], [0], [0]>} : vector<2x8x8xbf16>, vector<2x8x32xbf16>, vector<2x8x32xf32> -> vector<2x8x32xf32>
    "tpu.trace_stop"() : () -> ()
    %1725 = math.tanh %1724 : vector<2x8x32xf32>
    %cst_346 = arith.constant 2.000000e+00 : f32
    %1726 = vector.broadcast %cst_346 : f32 to vector<2x8x32xf32>
    %1727 = arith.mulf %1726, %1659 : vector<2x8x32xf32>
    %1728 = arith.addf %1626, %1727 : vector<2x8x32xf32>
    %cst_347 = arith.constant 2.000000e+00 : f32
    %1729 = vector.broadcast %cst_347 : f32 to vector<2x8x32xf32>
    %1730 = arith.mulf %1729, %1692 : vector<2x8x32xf32>
    %1731 = arith.addf %1728, %1730 : vector<2x8x32xf32>
    %1732 = arith.addf %1731, %1725 : vector<2x8x32xf32>
    %cst_348 = arith.constant 0.0416666679 : f32
    %1733 = vector.broadcast %cst_348 : f32 to vector<2x8x32xf32>
    %1734 = arith.mulf %1733, %1732 : vector<2x8x32xf32>
    %1735 = arith.addf %1596, %1734 : vector<2x8x32xf32>
    %1736 = vector.shape_cast %1735 : vector<2x8x32xf32> to vector<16x32xf32>
    %cst_349 = arith.constant dense<0.000000e+00> : vector<16x32xf32>
    %1737 = tpu.matmul %1736, %3, %cst_349 {dimension_numbers = #tpu.dot_dimension_numbers<[1], [0], [0], [1], [0, 0, 1, 1], [], []>} : vector<16x32xf32>, vector<32x32xf32>, vector<16x32xf32> -> vector<16x32xf32>
    %1738 = vector.extract_strided_slice %15 {offsets = [2, 0, 0, 0], sizes = [1, 2, 8, 32], strides = [1, 1, 1, 1]} : vector<3x2x8x32xf32> to vector<1x2x8x32xf32>
    %1739 = vector.shape_cast %1738 : vector<1x2x8x32xf32> to vector<2x8x32xf32>
    %1740 = vector.shape_cast %1739 : vector<2x8x32xf32> to vector<16x32xf32>
    %cst_350 = arith.constant dense<0.000000e+00> : vector<16x32xf32>
    %1741 = tpu.matmul %1740, %4, %cst_350 {dimension_numbers = #tpu.dot_dimension_numbers<[1], [0], [0], [1], [0, 0, 1, 1], [], []>} : vector<16x32xf32>, vector<32x32xf32>, vector<16x32xf32> -> vector<16x32xf32>
    %1742 = arith.addf %1737, %1741 : vector<16x32xf32>
    %1743 = arith.addf %1742, %7 : vector<16x32xf32>
    %1744 = math.tanh %1743 : vector<16x32xf32>
    %1745 = vector.shape_cast %1744 : vector<16x32xf32> to vector<2x8x32xf32>
    %1746 = vector.shape_cast %1745 : vector<2x8x32xf32> to vector<16x32xf32>
    %cst_351 = arith.constant dense<0.000000e+00> : vector<16xf32>
    %1747 = vector.multi_reduction <add>, %1746, %cst_351 [1] : vector<16x32xf32> to vector<16xf32>
    %1748 = vector.shape_cast %1747 : vector<16xf32> to vector<16x1xf32>
    %cst_352 = arith.constant 3.200000e+01 : f32
    %1749 = vector.broadcast %cst_352 : f32 to vector<16x1xf32>
    %1750 = arith.divf %1748, %1749 : vector<16x1xf32>
    %1751 = vector.broadcast %1750 : vector<16x1xf32> to vector<16x32xf32>
    %1752 = arith.subf %1746, %1751 : vector<16x32xf32>
    %1753 = arith.mulf %1752, %1752 : vector<16x32xf32>
    %cst_353 = arith.constant dense<0.000000e+00> : vector<16xf32>
    %1754 = vector.multi_reduction <add>, %1753, %cst_353 [1] : vector<16x32xf32> to vector<16xf32>
    %1755 = vector.shape_cast %1754 : vector<16xf32> to vector<16x1xf32>
    %cst_354 = arith.constant 3.200000e+01 : f32
    %1756 = vector.broadcast %cst_354 : f32 to vector<16x1xf32>
    %1757 = arith.divf %1755, %1756 : vector<16x1xf32>
    %1758 = vector.broadcast %1750 : vector<16x1xf32> to vector<16x32xf32>
    %1759 = arith.subf %1746, %1758 : vector<16x32xf32>
    %cst_355 = arith.constant 9.99999974E-6 : f32
    %1760 = vector.broadcast %cst_355 : f32 to vector<16x1xf32>
    %1761 = arith.addf %1757, %1760 : vector<16x1xf32>
    %1762 = math.rsqrt %1761 : vector<16x1xf32>
    %1763 = vector.broadcast %1762 : vector<16x1xf32> to vector<16x32xf32>
    %1764 = arith.mulf %1759, %1763 : vector<16x32xf32>
    %1765 = vector.shape_cast %1764 : vector<16x32xf32> to vector<2x8x32xf32>
    %1766 = vector.shape_cast %1765 : vector<2x8x32xf32> to vector<16x32xf32>
    %c0_356 = arith.constant 0 : index
    %c0_357 = arith.constant 0 : index
    %1767 = vector.load %arg9[%c0_356, %c0_357] : memref<32x32xf32, #tpu.memory_space<vmem>>, vector<32x32xf32>
    %cst_358 = arith.constant dense<0.000000e+00> : vector<16x32xf32>
    %1768 = tpu.matmul %1766, %1767, %cst_358 {dimension_numbers = #tpu.dot_dimension_numbers<[1], [0], [0], [1], [0, 0, 1, 1], [], []>} : vector<16x32xf32>, vector<32x32xf32>, vector<16x32xf32> -> vector<16x32xf32>
    %c0_359 = arith.constant 0 : index
    %c0_360 = arith.constant 0 : index
    %1769 = vector.load %arg10[%c0_359, %c0_360] : memref<1x32xf32, #tpu.memory_space<vmem>>, vector<1x32xf32>
    %1770 = vector.broadcast %1769 : vector<1x32xf32> to vector<16x32xf32>
    %1771 = arith.addf %1768, %1770 : vector<16x32xf32>
    %1772 = math.tanh %1771 : vector<16x32xf32>
    %c0_361 = arith.constant 0 : index
    %c0_362 = arith.constant 0 : index
    %1773 = vector.load %arg11[%c0_361, %c0_362] : memref<32x32xf32, #tpu.memory_space<vmem>>, vector<32x32xf32>
    %cst_363 = arith.constant dense<0.000000e+00> : vector<16x32xf32>
    %1774 = tpu.matmul %1772, %1773, %cst_363 {dimension_numbers = #tpu.dot_dimension_numbers<[1], [0], [0], [1], [0, 0, 1, 1], [], []>} : vector<16x32xf32>, vector<32x32xf32>, vector<16x32xf32> -> vector<16x32xf32>
    %c0_364 = arith.constant 0 : index
    %c0_365 = arith.constant 0 : index
    %1775 = vector.load %arg12[%c0_364, %c0_365] : memref<1x32xf32, #tpu.memory_space<vmem>>, vector<1x32xf32>
    %1776 = vector.broadcast %1775 : vector<1x32xf32> to vector<16x32xf32>
    %1777 = arith.addf %1774, %1776 : vector<16x32xf32>
    %1778 = vector.shape_cast %1777 : vector<16x32xf32> to vector<2x8x32xf32>
    %c0_366 = arith.constant 0 : index
    %c0_367 = arith.constant 0 : index
    %c0_368 = arith.constant 0 : index
    %1779 = vector.load %arg13[%c0_366, %c0_367, %c0_368] : memref<2x8x32xf32, #tpu.memory_space<vmem>>, vector<2x8x32xf32>
    tpu.vector_store %arg13[%c0_366, %c0_367, %c0_368], %1778 {strides = array<i32>} : memref<2x8x32xf32, #tpu.memory_space<vmem>>, vector<2x8x32xf32>,
    return
  }
  func.func @transform_0(%arg0: i32) -> (i32, i32, i32, i32) {
    %c0_i32 = arith.constant 0 : i32
    %c0_i32_0 = arith.constant 0 : i32
    %c0_i32_1 = arith.constant 0 : i32
    %c0_i32_2 = arith.constant 0 : i32
    return %c0_i32, %arg0, %c0_i32_0, %c0_i32_1 : i32, i32, i32, i32
  }
  func.func @transform_1(%arg0: i32) -> (i32, i32) {
    %c0_i32 = arith.constant 0 : i32
    %c0_i32_0 = arith.constant 0 : i32
    %c0_i32_1 = arith.constant 0 : i32
    return %c0_i32, %c0_i32_0 : i32, i32
  }
  func.func @transform_2(%arg0: i32) -> (i32, i32) {
    %c0_i32 = arith.constant 0 : i32
    %c0_i32_0 = arith.constant 0 : i32
    %c0_i32_1 = arith.constant 0 : i32
    return %c0_i32, %c0_i32_0 : i32, i32
  }
  func.func @transform_3(%arg0: i32) -> (i32, i32) {
    %c0_i32 = arith.constant 0 : i32
    %c0_i32_0 = arith.constant 0 : i32
    %c0_i32_1 = arith.constant 0 : i32
    return %c0_i32, %c0_i32_0 : i32, i32
  }
  func.func @transform_4(%arg0: i32) -> (i32, i32) {
    %c0_i32 = arith.constant 0 : i32
    %c0_i32_0 = arith.constant 0 : i32
    %c0_i32_1 = arith.constant 0 : i32
    return %c0_i32, %c0_i32_0 : i32, i32
  }
  func.func @transform_5(%arg0: i32) -> (i32, i32) {
    %c0_i32 = arith.constant 0 : i32
    %c0_i32_0 = arith.constant 0 : i32
    %c0_i32_1 = arith.constant 0 : i32
    return %c0_i32, %c0_i32_0 : i32, i32
  }
  func.func @transform_6(%arg0: i32) -> (i32, i32) {
    %c0_i32 = arith.constant 0 : i32
    %c0_i32_0 = arith.constant 0 : i32
    %c0_i32_1 = arith.constant 0 : i32
    return %c0_i32, %c0_i32_0 : i32, i32
  }
  func.func @transform_7(%arg0: i32) -> (i32, i32) {
    %c0_i32 = arith.constant 0 : i32
    %c0_i32_0 = arith.constant 0 : i32
    %c0_i32_1 = arith.constant 0 : i32
    return %c0_i32, %c0_i32_0 : i32, i32
  }
  func.func @transform_8(%arg0: i32) -> (i32, i32) {
    %c0_i32 = arith.constant 0 : i32
    %c0_i32_0 = arith.constant 0 : i32
    %c0_i32_1 = arith.constant 0 : i32
    return %c0_i32, %c0_i32_0 : i32, i32
  }
  func.func @transform_9(%arg0: i32) -> (i32, i32) {
    %c0_i32 = arith.constant 0 : i32
    %c0_i32_0 = arith.constant 0 : i32
    %c0_i32_1 = arith.constant 0 : i32
    return %c0_i32, %c0_i32_0 : i32, i32
  }
  func.func @transform_10(%arg0: i32) -> (i32, i32) {
    %c0_i32 = arith.constant 0 : i32
    %c0_i32_0 = arith.constant 0 : i32
    %c0_i32_1 = arith.constant 0 : i32
    return %c0_i32, %c0_i32_0 : i32, i32
  }
  func.func @transform_11(%arg0: i32) -> (i32, i32) {
    %c0_i32 = arith.constant 0 : i32
    %c0_i32_0 = arith.constant 0 : i32
    %c0_i32_1 = arith.constant 0 : i32
    return %c0_i32, %c0_i32_0 : i32, i32
  }
  func.func @transform_12(%arg0: i32) -> (i32, i32, i32) {
    %c0_i32 = arith.constant 0 : i32
    %c0_i32_0 = arith.constant 0 : i32
    %c0_i32_1 = arith.constant 0 : i32
    return %arg0, %c0_i32, %c0_i32_0 : i32, i32, i32
  }
}

</mosaic_0001>

<llo_original>
// kernel: tpu_custom_call.1
$region0: #{tpu_custom_call.1}
  #allocation0 [shape = 'u32[]', space=smem, size = 0x4, offset = 0x4, fixed_abs, tag = 'smem constant byte address 0x4 - core index']
  #allocation1 [shape = 'u32[72,128]{1,0:T(1,128)}', space=vmem, size = 0x9000, scoped, tag = 'internal scratch']
  %s0 = inlined_call_operand.vmem [shape: f32[3,2,8,4], index: 0, kind: input, shape index: {}]
  %s1 = inlined_call_operand.vmem [shape: f32[8,8], index: 1, kind: input, shape index: {}]
  %s2 = inlined_call_operand.hbm [shape: f32[4,32], index: 2, kind: input, shape index: {}]
  %s3 = inlined_call_operand.vmem [shape: f32[1,32], index: 3, kind: input, shape index: {}]
  %s4 = inlined_call_operand.hbm [shape: bf16[32,34], index: 4, kind: input, shape index: {}]
  %s5 = inlined_call_operand.vmem [shape: f32[32,32], index: 5, kind: input, shape index: {}]
  %s6 = inlined_call_operand.vmem [shape: f32[32,32], index: 6, kind: input, shape index: {}]
  %s7 = inlined_call_operand.vmem [shape: f32[1,32], index: 7, kind: input, shape index: {}]
  %s8 = inlined_call_operand.hbm [shape: f32[32,32], index: 8, kind: input, shape index: {}]
  %s9 = inlined_call_operand.vmem [shape: f32[1,32], index: 9, kind: input, shape index: {}]
  %s10 = inlined_call_operand.hbm [shape: f32[32,32], index: 10, kind: input, shape index: {}]
  %s11 = inlined_call_operand.vmem [shape: f32[1,32], index: 11, kind: input, shape index: {}]
  %s12 = inlined_call_operand.hbm [shape: f32[2,8,32], index: 12, kind: output, shape index: {}]
  %s13 = sld [smem:[#allocation0]]
  $region74: #{tpu_custom_call.1} parent=0
    _
  %s15 = ssub.s32 1, %s13
  %s16 = scalar_select 0, %s15, %s13
  $region1: #{tpu_custom_call.1} parent=0
    #allocation2 [shape = 'u8[2048]{0}', space=vmem, size = 0x800, scoped, tag = 'input window, operand 2, single buffered']
    #allocation3 [shape = 's32[1]{0}', space=sflag, size = 0x4, scoped, tag = 'scoped memory for tpu_custom_call.1']
    #allocation4 [shape = 's32[1]{0}', space=sflag, size = 0x4, scoped, tag = 'scoped memory for tpu_custom_call.1']
    #allocation5 [shape = 'u8[8192]{0}', space=vmem, size = 0x2000, scoped, tag = 'input window, operand 4, single buffered']
    #allocation6 [shape = 's32[1]{0}', space=sflag, size = 0x4, scoped, tag = 'scoped memory for tpu_custom_call.1']
    #allocation7 [shape = 'u8[16384]{0}', space=vmem, size = 0x4000, scoped, tag = 'input window, operand 8, single buffered']
    #allocation8 [shape = 'u8[16384]{0}', space=vmem, size = 0x4000, scoped, tag = 'input window, operand 10, single buffered']
    #allocation9 [shape = 's32[1]{0}', space=sflag, size = 0x4, scoped, tag = 'scoped memory for tpu_custom_call.1']
    #allocation10 [shape = 'u8[8192]{0}', space=vmem, size = 0x2000, scoped, tag = 'output window, operand 0, single buffered']
    %17 = vsyncpa [#allocation3], 0
    %18 = vsyncpa [#allocation6], 0
    %19 = vsyncpa [#allocation9], 0
    %20 = vsyncpa [#allocation4], 0
    // Predicated region
    $region2: #{tpu_custom_call.1} parent=1 // pred_check
      _
    $region3: #{tpu_custom_call.1} parent=1 // pred_check_branch
      %22 = sbr.rel (0) target = $region5
    $region4: #{tpu_custom_call.1} parent=1 // pred_region
      _
    $region5: #{tpu_custom_call.1} parent=1 // pred_fallthru
      _
    // Predicated region
    $region6: #{tpu_custom_call.1} parent=1 // pred_check
      _
    $region7: #{tpu_custom_call.1} parent=1 // pred_check_branch
      %24 = sbr.rel (0) target = $region9
    $region8: #{tpu_custom_call.1} parent=1 // pred_region
      _
    $region9: #{tpu_custom_call.1} parent=1 // pred_fallthru
      _
    // Predicated region
    $region10: #{tpu_custom_call.1} parent=1 // pred_check
      _
    $region11: #{tpu_custom_call.1} parent=1 // pred_check_branch
      %26 = sbr.rel (0) target = $region13
    $region12: #{tpu_custom_call.1} parent=1 // pred_region
      %28 = vsyncadd [#allocation3], 0
      %s30 = sshll.u32 %s2, 4
      %s31 = int_to_ptr.hbm [resolvable:$true] %s30
      %s32 = sshll.u32 [#allocation2], 4
      %s33 = int_to_ptr.vmem [resolvable:$true] %s32
      %35 = dma.hbm_to_vmem [thread:$0]  %s31, 64, %s33, [#allocation3]
    $region13: #{tpu_custom_call.1} parent=1 // pred_fallthru
      _
    // Predicated region
    $region14: #{tpu_custom_call.1} parent=1 // pred_check
      _
    $region15: #{tpu_custom_call.1} parent=1 // pred_check_branch
      %37 = sbr.rel (0) target = $region17
    $region16: #{tpu_custom_call.1} parent=1 // pred_region
      _
    $region17: #{tpu_custom_call.1} parent=1 // pred_fallthru
      _
    // Predicated region
    $region18: #{tpu_custom_call.1} parent=1 // pred_check
      _
    $region19: #{tpu_custom_call.1} parent=1 // pred_check_branch
      %39 = sbr.rel (0) target = $region21
    $region20: #{tpu_custom_call.1} parent=1 // pred_region
      %41 = vsyncadd [#allocation6], 0
      %s42 = sshll.u32 %s4, 4
      %s43 = int_to_ptr.hbm [resolvable:$true] %s42
      %s44 = sshll.u32 [#allocation5], 4
      %s45 = int_to_ptr.vmem [resolvable:$true] %s44
      %50 = dma.hbm_to_vmem [thread:$0]  %s43, 256, %s45, [#allocation6], 64, 64, 4
    $region21: #{tpu_custom_call.1} parent=1 // pred_fallthru
      _
    // Predicated region
    $region22: #{tpu_custom_call.1} parent=1 // pred_check
      _
    $region23: #{tpu_custom_call.1} parent=1 // pred_check_branch
      %52 = sbr.rel (0) target = $region25
    $region24: #{tpu_custom_call.1} parent=1 // pred_region
      _
    $region25: #{tpu_custom_call.1} parent=1 // pred_fallthru
      _
    // Predicated region
    $region26: #{tpu_custom_call.1} parent=1 // pred_check
      _
    $region27: #{tpu_custom_call.1} parent=1 // pred_check_branch
      %54 = sbr.rel (0) target = $region29
    $region28: #{tpu_custom_call.1} parent=1 // pred_region
      _
    $region29: #{tpu_custom_call.1} parent=1 // pred_fallthru
      _
    // Predicated region
    $region30: #{tpu_custom_call.1} parent=1 // pred_check
      _
    $region31: #{tpu_custom_call.1} parent=1 // pred_check_branch
      %56 = sbr.rel (0) target = $region33
    $region32: #{tpu_custom_call.1} parent=1 // pred_region
      _
    $region33: #{tpu_custom_call.1} parent=1 // pred_fallthru
      _
    // Predicated region
    $region34: #{tpu_custom_call.1} parent=1 // pred_check
      _
    $region35: #{tpu_custom_call.1} parent=1 // pred_check_branch
      %58 = sbr.rel (0) target = $region37
    $region36: #{tpu_custom_call.1} parent=1 // pred_region
      %60 = vsyncadd [#allocation6], 0
      %s61 = sshll.u32 %s8, 4
      %s62 = int_to_ptr.hbm [resolvable:$true] %s61
      %s63 = sshll.u32 [#allocation7], 4
      %s64 = int_to_ptr.vmem [resolvable:$true] %s63
      %69 = dma.hbm_to_vmem [thread:$0]  %s62, 512, %s64, [#allocation6], 128, 128, 8
    $region37: #{tpu_custom_call.1} parent=1 // pred_fallthru
      _
    // Predicated region
    $region38: #{tpu_custom_call.1} parent=1 // pred_check
      _
    $region39: #{tpu_custom_call.1} parent=1 // pred_check_branch
      %71 = sbr.rel (0) target = $region41
    $region40: #{tpu_custom_call.1} parent=1 // pred_region
      _
    $region41: #{tpu_custom_call.1} parent=1 // pred_fallthru
      _
    // Predicated region
    $region42: #{tpu_custom_call.1} parent=1 // pred_check
      _
    $region43: #{tpu_custom_call.1} parent=1 // pred_check_branch
      %73 = sbr.rel (0) target = $region45
    $region44: #{tpu_custom_call.1} parent=1 // pred_region
      %75 = vsyncadd [#allocation9], 0
      %s76 = sshll.u32 %s10, 4
      %s77 = int_to_ptr.hbm [resolvable:$true] %s76
      %s78 = sshll.u32 [#allocation8], 4
      %s79 = int_to_ptr.vmem [resolvable:$true] %s78
      %84 = dma.hbm_to_vmem [thread:$0]  %s77, 512, %s79, [#allocation9], 128, 128, 8
    $region45: #{tpu_custom_call.1} parent=1 // pred_fallthru
      _
    // Predicated region
    $region46: #{tpu_custom_call.1} parent=1 // pred_check
      _
    $region47: #{tpu_custom_call.1} parent=1 // pred_check_branch
      %86 = sbr.rel (0) target = $region49
    $region48: #{tpu_custom_call.1} parent=1 // pred_region
      _
    $region49: #{tpu_custom_call.1} parent=1 // pred_fallthru
      _
    // Predicated region
    $region50: #{tpu_custom_call.1} parent=1 // pred_check
      _
    $region51: #{tpu_custom_call.1} parent=1 // pred_check_branch
      %88 = sbr.rel (0) target = $region53
    $region52: #{tpu_custom_call.1} parent=1 // pred_region
      %90 = dma.done [#allocation3], 64
    $region53: #{tpu_custom_call.1} parent=1 // pred_fallthru
      _
    // Predicated region
    $region54: #{tpu_custom_call.1} parent=1 // pred_check
      _
    $region55: #{tpu_custom_call.1} parent=1 // pred_check_branch
      %92 = sbr.rel (0) target = $region57
    $region56: #{tpu_custom_call.1} parent=1 // pred_region
      %94 = dma.done [#allocation6], 256
    $region57: #{tpu_custom_call.1} parent=1 // pred_fallthru
      _
    // Predicated region
    $region58: #{tpu_custom_call.1} parent=1 // pred_check
      _
    $region59: #{tpu_custom_call.1} parent=1 // pred_check_branch
      %96 = sbr.rel (0) target = $region61
    $region60: #{tpu_custom_call.1} parent=1 // pred_region
      %98 = dma.done [#allocation6], 512
    $region61: #{tpu_custom_call.1} parent=1 // pred_fallthru
      _
    // Predicated region
    $region62: #{tpu_custom_call.1} parent=1 // pred_check
      _
    $region63: #{tpu_custom_call.1} parent=1 // pred_check_branch
      %100 = sbr.rel (0) target = $region65
    $region64: #{tpu_custom_call.1} parent=1 // pred_region
      %102 = dma.done [#allocation9], 512
    $region65: #{tpu_custom_call.1} parent=1 // pred_fallthru
      _
    %v104 = vld [vmem:[%s1] sm:$0xff]
    %v105 = vld [vmem:[#allocation5] sm:$0xf]
    %v106 = vld [vmem:[#allocation5 + $0x4] sm:$0xf]
    %v107 = vld [vmem:[#allocation5 + $0x8] sm:$0xf]
    %v108 = vld [vmem:[#allocation5 + $0xc] sm:$0xf]
    %v109 = vld [vmem:[%s5] sm:$0xff]
    %v110 = vld [vmem:[%s5 + $0x8] sm:$0xff]
    %v111 = vld [vmem:[%s5 + $0x10] sm:$0xff]
    %v112 = vld [vmem:[%s5 + $0x18] sm:$0xff]
    %v113 = vld [vmem:[%s6] sm:$0xff]
    %v114 = vld [vmem:[%s6 + $0x8] sm:$0xff]
    %v115 = vld [vmem:[%s6 + $0x10] sm:$0xff]
    %v116 = vld [vmem:[%s6 + $0x18] sm:$0xff]
    %v117 = vld [vmem:[%s7] sm:$0x1]
    %v119 = vperm.slane %v117, 0
    %v121 = vld [vmem:[%s0] sm:$0xff]
    %v122 = vld [vmem:[%s0 + $0x8] sm:$0xff]
    %v123 = vld [vmem:[%s0 + $0x10] sm:$0xff]
    %v124 = vld [vmem:[%s0 + $0x18] sm:$0xff]
    %v125 = vld [vmem:[%s0 + $0x20] sm:$0xff]
    %v126 = vld [vmem:[%s0 + $0x28] sm:$0xff]
    %v127 = vld [vmem:[#allocation2] sm:$0xf]
    %v128 = vld [vmem:[%s3] sm:$0x1]
    %v130 = vperm.slane %v128, 0
    %vm132 = vcmask 31744
    %v134 = vsel %vm132, %v121, 0
    %v137 = vsel %vm132, %v122, 0
    %v140 = vsel %vm132, %v123, 0
    %v143 = vsel %vm132, %v124, 0
    %v146 = vsel %vm132, %v125, 0
    %v149 = vsel %vm132, %v126, 0
    %vm151 = vcmask 1043456
    %v153 = vsel %vm151, %v127, 0
    %155 = vmatpush.msra.mxu0 0.0
    %156 = vmatpush.msra.mxu0 0.0
    %157 = vmatpush.msra.mxu0 0.0
    %158 = vmatpush.msra.mxu0 0.0
    %159 = vmatpush.msra.mxu0 0.0
    %160 = vmatpush.msra.mxu0 0.0
    %161 = vmatpush.msra.mxu0 0.0
    %162 = vmatpush.msra.mxu0 0.0
    %163 = vmatpush.msra.mxu0 0.0
    %164 = vmatpush.msra.mxu0 0.0
    %165 = vmatpush.msra.mxu0 0.0
    %166 = vmatpush.msra.mxu0 0.0
    %167 = vmatpush.msra.mxu0 0.0
    %168 = vmatpush.msra.mxu0 0.0
    %169 = vmatpush.msra.mxu0 0.0
    %170 = vmatpush.msra.mxu0 %v153
    %171 = vmatmul.f32.gmra.mxu0 %v134
    %v172 = vpop.f32.mrf.mxu0
    %v173 = vadd.f32 %v130, %v172
    %174 = vmatmul.f32.gmra.mxu0 %v137
    %v175 = vpop.f32.mrf.mxu0
    %v176 = vadd.f32 %v130, %v175
    %177 = vmatmul.f32.gmra.mxu0 %v140
    %v178 = vpop.f32.mrf.mxu0
    %v179 = vadd.f32 %v130, %v178
    %180 = vmatmul.f32.gmra.mxu0 %v143
    %v181 = vpop.f32.mrf.mxu0
    %v182 = vadd.f32 %v130, %v181
    %183 = vmatmul.f32.gmra.mxu0 %v146
    %v184 = vpop.f32.mrf.mxu0
    %v185 = vadd.f32 %v130, %v184
    %186 = vmatmul.f32.gmra.mxu0 %v149
    %v187 = vpop.f32.mrf.mxu0
    %v188 = vadd.f32 %v130, %v187
    %189 = vdwg.mxu0
    %v190 = vpack.c.bf16 %v176, %v173
    %v195 = vunpack.c.l.b16 %v105
    %v196 = vunpack.c.l.b16 %v106
    %v197 = vunpack.c.l.b16 %v107
    %v198 = vunpack.c.l.b16 %v108
    %v199 = vpack.c.b16 %v196, %v195
    %v200 = vpack.c.b16 %v198, %v197
    %vm203 = vcmask 261120
    %v205 = vsel %vm203, %v190, 0
    %207 = vmatpush.bf16.msra.mxu0 0
    %208 = vmatpush.bf16.msra.mxu0 0
    %209 = vmatpush.bf16.msra.mxu0 0
    %210 = vmatpush.bf16.msra.mxu0 0
    %211 = vmatpush.bf16.msra.mxu0 0
    %212 = vmatpush.bf16.msra.mxu0 0
    %213 = vmatpush.bf16.msra.mxu0 %v200
    %214 = vmatpush.bf16.msra.mxu0 %v199
    %215 = vmatmul.bf16.gmra.mxu0 %v205
    %v216 = vpop.f32.mrf.mxu0
    %v217 = vadd.f32 0.0, %v216
    %v218 = vpop.f32.mrf.mxu0
    %v219 = vadd.f32 0.0, %v218
    %220 = vdwg.mxu0
    %222 = vset.pattern.permute.xlu0 32
    %223 = vperm.xlu0 %222, %v217
    %v224 = vpop.permute.xlu0 %223
    %227 = vset.pattern.permute.xlu0 32
    %228 = vperm.xlu0 %227, %v219
    %v229 = vpop.permute.xlu0 %228
    %231 = vset.pattern.permute.xlu0 33
    %232 = vperm.xlu0 %231, %v217
    %v233 = vpop.permute.xlu0 %232
    %234 = vset.pattern.permute.xlu0 33
    %235 = vperm.xlu0 %234, %v219
    %v236 = vpop.permute.xlu0 %235
    %v237 = vlaneseq
    %v238 = vand.u32 %v237, 127
    %v239 = vperm.slane %v233, %v238
    %v240 = vperm.slane %v236, %v238
    %vm241 = vcmask 1042434
    %v242 = vsel %vm241, %v239, %v239
    %vm243 = vcmask 1043459
    %v244 = vsel %vm243, %v239, %v242
    %vm245 = vcmask 1044484
    %v246 = vsel %vm245, %v239, %v244
    %vm247 = vcmask 1045509
    %v248 = vsel %vm247, %v239, %v246
    %vm249 = vcmask 1046534
    %v250 = vsel %vm249, %v239, %v248
    %vm251 = vcmask 1047559
    %v252 = vsel %vm251, %v239, %v250
    %v253 = vsel %vm241, %v240, %v240
    %v254 = vsel %vm243, %v240, %v253
    %v255 = vsel %vm245, %v240, %v254
    %v256 = vsel %vm247, %v240, %v255
    %v257 = vsel %vm249, %v240, %v256
    %v258 = vsel %vm251, %v240, %v257
    %v261 = vadd.f32 %v224, %v252
    %v262 = vadd.f32 %v229, %v258
    %v263 = vmul.f32 %v261, 0.2
    %v264 = vmul.f32 %v262, 0.2
    %v265 = vmax.f32 %v261, %v263
    %v266 = vmax.f32 %v262, %v264
    %v267 = vadd.f32 %v265, %v104
    %v268 = vadd.f32 %v266, %v104
    %vm269 = vcmask 64512
    %v270 = vsel %vm269, %v267, -inf
    %271 = vmax.xlane.f32.xlu0 %v270
    %v272 = vpop.xlane.xlu0 %271
    %v273 = vsel %vm269, %v268, -inf
    %274 = vmax.xlane.f32.xlu0 %v273
    %v275 = vpop.xlane.xlu0 %274
    %v276 = vsub.f32 %v267, %v272
    %v277 = vsub.f32 %v268, %v275
    %v278 = vmul.f32 %v276, 1.442695
    %v279 = vpow.pop %v278
    %v280 = vmul.f32 %v277, 1.442695
    %v281 = vpow.pop %v280
    %v282 = vsel %vm269, %v279, 0.0
    %283 = vadd.xlane.f32.xlu0 %v282
    %v284 = vpop.xlane.xlu0 %283
    %v285 = vsel %vm269, %v281, 0.0
    %286 = vadd.xlane.f32.xlu0 %v285
    %v287 = vpop.xlane.xlu0 %286
    %v288 = vrcp.pop %v284
    %v289 = vmul.f32 %v284, %v288
    %v290 = vsub.f32 1.0, %v289
    %v291 = vmul.f32 %v288, %v290
    %v292 = vadd.f32 %v288, %v291
    %vm293 = vweird.f32 %v284
    %vm294 = vweird.f32 %v288
    %vm295 = vmor %vm293, %vm294
    %v296 = vsel %vm295, %v288, %v292
    %v297 = vand.u32 2147483647, %v284
    %vm298 = vcmp.eq.f32.partialorder %v297, 8.507059e+37
    %v299 = vand.u32 %v284, 2147483648
    %v300 = vor.u32 1.1754944e-38, %v299
    %v301 = vsel %vm298, %v300, %v296
    %v302 = vmul.f32 %v279, %v301
    %v303 = vrcp.pop %v287
    %v304 = vmul.f32 %v287, %v303
    %v305 = vsub.f32 1.0, %v304
    %v306 = vmul.f32 %v303, %v305
    %v307 = vadd.f32 %v303, %v306
    %vm308 = vweird.f32 %v287
    %vm309 = vweird.f32 %v303
    %vm310 = vmor %vm308, %vm309
    %v311 = vsel %vm310, %v303, %v307
    %v312 = vand.u32 2147483647, %v287
    %vm313 = vcmp.eq.f32.partialorder %v312, 8.507059e+37
    %v314 = vand.u32 %v287, 2147483648
    %v315 = vor.u32 1.1754944e-38, %v314
    %v316 = vsel %vm313, %v315, %v311
    %v317 = vmul.f32 %v281, %v316
    %v318 = vpack.c.bf16 %v302, %v302
    %v319 = vpack.c.bf16 %v317, %v317
    %v320 = vpack.c.bf16 %v217, %v217
    %v321 = vpack.c.bf16 %v219, %v219
    %v323 = vsel %vm269, %v318, 0
    %v326 = vsel %vm151, %v320, 0
    %328 = vmatpush.bf16.msra.mxu0 0
    %329 = vmatpush.bf16.msra.mxu0 0
    %330 = vmatpush.bf16.msra.mxu0 0
    %331 = vmatpush.bf16.msra.mxu0 0
    %332 = vmatpush.bf16.msra.mxu0 0
    %333 = vmatpush.bf16.msra.mxu0 0
    %334 = vmatpush.bf16.msra.mxu0 0
    %335 = vmatpush.bf16.msra.mxu0 %v326
    %336 = vmatmul.bf16.gmra.mxu0 %v323
    %v337 = vpop.f32.mrf.mxu0
    %v338 = vadd.f32 0.0, %v337
    %v339 = vpop.f32.mrf.mxu0
    %340 = vdwg.mxu0
    %v342 = vsel %vm269, %v319, 0
    %v345 = vsel %vm151, %v321, 0
    %347 = vmatpush.bf16.msra.mxu0 0
    %348 = vmatpush.bf16.msra.mxu0 0
    %349 = vmatpush.bf16.msra.mxu0 0
    %350 = vmatpush.bf16.msra.mxu0 0
    %351 = vmatpush.bf16.msra.mxu0 0
    %352 = vmatpush.bf16.msra.mxu0 0
    %353 = vmatpush.bf16.msra.mxu0 0
    %354 = vmatpush.bf16.msra.mxu0 %v345
    %355 = vmatmul.bf16.gmra.mxu0 %v342
    %v356 = vpop.f32.mrf.mxu0
    %v357 = vadd.f32 0.0, %v356
    %v358 = vpop.f32.mrf.mxu0
    %359 = vdwg.mxu0
    %v360 = vtanh.pop %v338
    %v361 = vtanh.pop %v357
    %v362 = vmul.f32 %v360, 0.125
    %v363 = vmul.f32 %v361, 0.125
    %v364 = vadd.f32 %v173, %v362
    %v365 = vadd.f32 %v176, %v363
    %v366 = vpack.c.bf16 %v365, %v364
    %v368 = vsel %vm203, %v366, 0
    %370 = vmatpush.bf16.msra.mxu0 0
    %371 = vmatpush.bf16.msra.mxu0 0
    %372 = vmatpush.bf16.msra.mxu0 0
    %373 = vmatpush.bf16.msra.mxu0 0
    %374 = vmatpush.bf16.msra.mxu0 0
    %375 = vmatpush.bf16.msra.mxu0 0
    %376 = vmatpush.bf16.msra.mxu0 %v200
    %377 = vmatpush.bf16.msra.mxu0 %v199
    %378 = vmatmul.bf16.gmra.mxu0 %v368
    %v379 = vpop.f32.mrf.mxu0
    %v380 = vadd.f32 0.0, %v379
    %v381 = vpop.f32.mrf.mxu0
    %v382 = vadd.f32 0.0, %v381
    %383 = vdwg.mxu0
    %385 = vset.pattern.permute.xlu0 32
    %386 = vperm.xlu0 %385, %v380
    %v387 = vpop.permute.xlu0 %386
    %390 = vset.pattern.permute.xlu0 32
    %391 = vperm.xlu0 %390, %v382
    %v392 = vpop.permute.xlu0 %391
    %394 = vset.pattern.permute.xlu0 33
    %395 = vperm.xlu0 %394, %v380
    %v396 = vpop.permute.xlu0 %395
    %397 = vset.pattern.permute.xlu0 33
    %398 = vperm.xlu0 %397, %v382
    %v399 = vpop.permute.xlu0 %398
    %v400 = vperm.slane %v396, %v238
    %v401 = vperm.slane %v399, %v238
    %v402 = vsel %vm241, %v400, %v400
    %v403 = vsel %vm243, %v400, %v402
    %v404 = vsel %vm245, %v400, %v403
    %v405 = vsel %vm247, %v400, %v404
    %v406 = vsel %vm249, %v400, %v405
    %v407 = vsel %vm251, %v400, %v406
    %v408 = vsel %vm241, %v401, %v401
    %v409 = vsel %vm243, %v401, %v408
    %v410 = vsel %vm245, %v401, %v409
    %v411 = vsel %vm247, %v401, %v410
    %v412 = vsel %vm249, %v401, %v411
    %v413 = vsel %vm251, %v401, %v412
    %v416 = vadd.f32 %v387, %v407
    %v417 = vadd.f32 %v392, %v413
    %v418 = vmul.f32 %v416, 0.2
    %v419 = vmul.f32 %v417, 0.2
    %v420 = vmax.f32 %v416, %v418
    %v421 = vmax.f32 %v417, %v419
    %v422 = vadd.f32 %v420, %v104
    %v423 = vadd.f32 %v421, %v104
    %v424 = vsel %vm269, %v422, -inf
    %425 = vmax.xlane.f32.xlu0 %v424
    %v426 = vpop.xlane.xlu0 %425
    %v427 = vsel %vm269, %v423, -inf
    %428 = vmax.xlane.f32.xlu0 %v427
    %v429 = vpop.xlane.xlu0 %428
    %v430 = vsub.f32 %v422, %v426
    %v431 = vsub.f32 %v423, %v429
    %v432 = vmul.f32 %v430, 1.442695
    %v433 = vpow.pop %v432
    %v434 = vmul.f32 %v431, 1.442695
    %v435 = vpow.pop %v434
    %v436 = vsel %vm269, %v433, 0.0
    %437 = vadd.xlane.f32.xlu0 %v436
    %v438 = vpop.xlane.xlu0 %437
    %v439 = vsel %vm269, %v435, 0.0
    %440 = vadd.xlane.f32.xlu0 %v439
    %v441 = vpop.xlane.xlu0 %440
    %v442 = vrcp.pop %v438
    %v443 = vmul.f32 %v438, %v442
    %v444 = vsub.f32 1.0, %v443
    %v445 = vmul.f32 %v442, %v444
    %v446 = vadd.f32 %v442, %v445
    %vm447 = vweird.f32 %v438
    %vm448 = vweird.f32 %v442
    %vm449 = vmor %vm447, %vm448
    %v450 = vsel %vm449, %v442, %v446
    %v451 = vand.u32 2147483647, %v438
    %vm452 = vcmp.eq.f32.partialorder %v451, 8.507059e+37
    %v453 = vand.u32 %v438, 2147483648
    %v454 = vor.u32 1.1754944e-38, %v453
    %v455 = vsel %vm452, %v454, %v450
    %v456 = vmul.f32 %v433, %v455
    %v457 = vrcp.pop %v441
    %v458 = vmul.f32 %v441, %v457
    %v459 = vsub.f32 1.0, %v458
    %v460 = vmul.f32 %v457, %v459
    %v461 = vadd.f32 %v457, %v460
    %vm462 = vweird.f32 %v441
    %vm463 = vweird.f32 %v457
    %vm464 = vmor %vm462, %vm463
    %v465 = vsel %vm464, %v457, %v461
    %v466 = vand.u32 2147483647, %v441
    %vm467 = vcmp.eq.f32.partialorder %v466, 8.507059e+37
    %v468 = vand.u32 %v441, 2147483648
    %v469 = vor.u32 1.1754944e-38, %v468
    %v470 = vsel %vm467, %v469, %v465
    %v471 = vmul.f32 %v435, %v470
    %v472 = vpack.c.bf16 %v456, %v456
    %v473 = vpack.c.bf16 %v471, %v471
    %v474 = vpack.c.bf16 %v380, %v380
    %v475 = vpack.c.bf16 %v382, %v382
    %v477 = vsel %vm269, %v472, 0
    %v480 = vsel %vm151, %v474, 0
    %482 = vmatpush.bf16.msra.mxu0 0
    %483 = vmatpush.bf16.msra.mxu0 0
    %484 = vmatpush.bf16.msra.mxu0 0
    %485 = vmatpush.bf16.msra.mxu0 0
    %486 = vmatpush.bf16.msra.mxu0 0
    %487 = vmatpush.bf16.msra.mxu0 0
    %488 = vmatpush.bf16.msra.mxu0 0
    %489 = vmatpush.bf16.msra.mxu0 %v480
    %490 = vmatmul.bf16.gmra.mxu0 %v477
    %v491 = vpop.f32.mrf.mxu0
    %v492 = vadd.f32 0.0, %v491
    %v493 = vpop.f32.mrf.mxu0
    %494 = vdwg.mxu0
    %v496 = vsel %vm269, %v473, 0
    %v499 = vsel %vm151, %v475, 0
    %501 = vmatpush.bf16.msra.mxu0 0
    %502 = vmatpush.bf16.msra.mxu0 0
    %503 = vmatpush.bf16.msra.mxu0 0
    %504 = vmatpush.bf16.msra.mxu0 0
    %505 = vmatpush.bf16.msra.mxu0 0
    %506 = vmatpush.bf16.msra.mxu0 0
    %507 = vmatpush.bf16.msra.mxu0 0
    %508 = vmatpush.bf16.msra.mxu0 %v499
    %509 = vmatmul.bf16.gmra.mxu0 %v496
    %v510 = vpop.f32.mrf.mxu0
    %v511 = vadd.f32 0.0, %v510
    %v512 = vpop.f32.mrf.mxu0
    %513 = vdwg.mxu0
    %v514 = vtanh.pop %v492
    %v515 = vtanh.pop %v511
    %v516 = vmul.f32 %v514, 0.125
    %v517 = vmul.f32 %v515, 0.125
    %v518 = vadd.f32 %v173, %v516
    %v519 = vadd.f32 %v176, %v517
    %v520 = vpack.c.bf16 %v519, %v518
    %v522 = vsel %vm203, %v520, 0
    %524 = vmatpush.bf16.msra.mxu0 0
    %525 = vmatpush.bf16.msra.mxu0 0
    %526 = vmatpush.bf16.msra.mxu0 0
    %527 = vmatpush.bf16.msra.mxu0 0
    %528 = vmatpush.bf16.msra.mxu0 0
    %529 = vmatpush.bf16.msra.mxu0 0
    %530 = vmatpush.bf16.msra.mxu0 %v200
    %531 = vmatpush.bf16.msra.mxu0 %v199
    %532 = vmatmul.bf16.gmra.mxu0 %v522
    %v533 = vpop.f32.mrf.mxu0
    %v534 = vadd.f32 0.0, %v533
    %v535 = vpop.f32.mrf.mxu0
    %v536 = vadd.f32 0.0, %v535
    %537 = vdwg.mxu0
    %539 = vset.pattern.permute.xlu0 32
    %540 = vperm.xlu0 %539, %v534
    %v541 = vpop.permute.xlu0 %540
    %544 = vset.pattern.permute.xlu0 32
    %545 = vperm.xlu0 %544, %v536
    %v546 = vpop.permute.xlu0 %545
    %548 = vset.pattern.permute.xlu0 33
    %549 = vperm.xlu0 %548, %v534
    %v550 = vpop.permute.xlu0 %549
    %551 = vset.pattern.permute.xlu0 33
    %552 = vperm.xlu0 %551, %v536
    %v553 = vpop.permute.xlu0 %552
    %v554 = vperm.slane %v550, %v238
    %v555 = vperm.slane %v553, %v238
    %v556 = vsel %vm241, %v554, %v554
    %v557 = vsel %vm243, %v554, %v556
    %v558 = vsel %vm245, %v554, %v557
    %v559 = vsel %vm247, %v554, %v558
    %v560 = vsel %vm249, %v554, %v559
    %v561 = vsel %vm251, %v554, %v560
    %v562 = vsel %vm241, %v555, %v555
    %v563 = vsel %vm243, %v555, %v562
    %v564 = vsel %vm245, %v555, %v563
    %v565 = vsel %vm247, %v555, %v564
    %v566 = vsel %vm249, %v555, %v565
    %v567 = vsel %vm251, %v555, %v566
    %v570 = vadd.f32 %v541, %v561
    %v571 = vadd.f32 %v546, %v567
    %v572 = vmul.f32 %v570, 0.2
    %v573 = vmul.f32 %v571, 0.2
    %v574 = vmax.f32 %v570, %v572
    %v575 = vmax.f32 %v571, %v573
    %v576 = vadd.f32 %v574, %v104
    %v577 = vadd.f32 %v575, %v104
    %v578 = vsel %vm269, %v576, -inf
    %579 = vmax.xlane.f32.xlu0 %v578
    %v580 = vpop.xlane.xlu0 %579
    %v581 = vsel %vm269, %v577, -inf
    %582 = vmax.xlane.f32.xlu0 %v581
    %v583 = vpop.xlane.xlu0 %582
    %v584 = vsub.f32 %v576, %v580
    %v585 = vsub.f32 %v577, %v583
    %v586 = vmul.f32 %v584, 1.442695
    %v587 = vpow.pop %v586
    %v588 = vmul.f32 %v585, 1.442695
    %v589 = vpow.pop %v588
    %v590 = vsel %vm269, %v587, 0.0
    %591 = vadd.xlane.f32.xlu0 %v590
    %v592 = vpop.xlane.xlu0 %591
    %v593 = vsel %vm269, %v589, 0.0
    %594 = vadd.xlane.f32.xlu0 %v593
    %v595 = vpop.xlane.xlu0 %594
    %v596 = vrcp.pop %v592
    %v597 = vmul.f32 %v592, %v596
    %v598 = vsub.f32 1.0, %v597
    %v599 = vmul.f32 %v596, %v598
    %v600 = vadd.f32 %v596, %v599
    %vm601 = vweird.f32 %v592
    %vm602 = vweird.f32 %v596
    %vm603 = vmor %vm601, %vm602
    %v604 = vsel %vm603, %v596, %v600
    %v605 = vand.u32 2147483647, %v592
    %vm606 = vcmp.eq.f32.partialorder %v605, 8.507059e+37
    %v607 = vand.u32 %v592, 2147483648
    %v608 = vor.u32 1.1754944e-38, %v607
    %v609 = vsel %vm606, %v608, %v604
    %v610 = vmul.f32 %v587, %v609
    %v611 = vrcp.pop %v595
    %v612 = vmul.f32 %v595, %v611
    %v613 = vsub.f32 1.0, %v612
    %v614 = vmul.f32 %v611, %v613
    %v615 = vadd.f32 %v611, %v614
    %vm616 = vweird.f32 %v595
    %vm617 = vweird.f32 %v611
    %vm618 = vmor %vm616, %vm617
    %v619 = vsel %vm618, %v611, %v615
    %v620 = vand.u32 2147483647, %v595
    %vm621 = vcmp.eq.f32.partialorder %v620, 8.507059e+37
    %v622 = vand.u32 %v595, 2147483648
    %v623 = vor.u32 1.1754944e-38, %v622
    %v624 = vsel %vm621, %v623, %v619
    %v625 = vmul.f32 %v589, %v624
    %v626 = vpack.c.bf16 %v610, %v610
    %v627 = vpack.c.bf16 %v625, %v625
    %v628 = vpack.c.bf16 %v534, %v534
    %v629 = vpack.c.bf16 %v536, %v536
    %v631 = vsel %vm269, %v626, 0
    %v634 = vsel %vm151, %v628, 0
    %636 = vmatpush.bf16.msra.mxu0 0
    %637 = vmatpush.bf16.msra.mxu0 0
    %638 = vmatpush.bf16.msra.mxu0 0
    %639 = vmatpush.bf16.msra.mxu0 0
    %640 = vmatpush.bf16.msra.mxu0 0
    %641 = vmatpush.bf16.msra.mxu0 0
    %642 = vmatpush.bf16.msra.mxu0 0
    %643 = vmatpush.bf16.msra.mxu0 %v634
    %644 = vmatmul.bf16.gmra.mxu0 %v631
    %v645 = vpop.f32.mrf.mxu0
    %v646 = vadd.f32 0.0, %v645
    %v647 = vpop.f32.mrf.mxu0
    %648 = vdwg.mxu0
    %v650 = vsel %vm269, %v627, 0
    %v653 = vsel %vm151, %v629, 0
    %655 = vmatpush.bf16.msra.mxu0 0
    %656 = vmatpush.bf16.msra.mxu0 0
    %657 = vmatpush.bf16.msra.mxu0 0
    %658 = vmatpush.bf16.msra.mxu0 0
    %659 = vmatpush.bf16.msra.mxu0 0
    %660 = vmatpush.bf16.msra.mxu0 0
    %661 = vmatpush.bf16.msra.mxu0 0
    %662 = vmatpush.bf16.msra.mxu0 %v653
    %663 = vmatmul.bf16.gmra.mxu0 %v650
    %v664 = vpop.f32.mrf.mxu0
    %v665 = vadd.f32 0.0, %v664
    %v666 = vpop.f32.mrf.mxu0
    %667 = vdwg.mxu0
    %v668 = vtanh.pop %v646
    %v669 = vtanh.pop %v665
    %v670 = vmul.f32 %v668, 0.25
    %v671 = vmul.f32 %v669, 0.25
    %v672 = vadd.f32 %v173, %v670
    %v673 = vadd.f32 %v176, %v671
    %v674 = vpack.c.bf16 %v673, %v672
    %v676 = vsel %vm203, %v674, 0
    %678 = vmatpush.bf16.msra.mxu0 0
    %679 = vmatpush.bf16.msra.mxu0 0
    %680 = vmatpush.bf16.msra.mxu0 0
    %681 = vmatpush.bf16.msra.mxu0 0
    %682 = vmatpush.bf16.msra.mxu0 0
    %683 = vmatpush.bf16.msra.mxu0 0
    %684 = vmatpush.bf16.msra.mxu0 %v200
    %685 = vmatpush.bf16.msra.mxu0 %v199
    %686 = vmatmul.bf16.gmra.mxu0 %v676
    %v687 = vpop.f32.mrf.mxu0
    %v688 = vadd.f32 0.0, %v687
    %v689 = vpop.f32.mrf.mxu0
    %v690 = vadd.f32 0.0, %v689
    %691 = vdwg.mxu0
    %693 = vset.pattern.permute.xlu0 32
    %694 = vperm.xlu0 %693, %v688
    %v695 = vpop.permute.xlu0 %694
    %698 = vset.pattern.permute.xlu0 32
    %699 = vperm.xlu0 %698, %v690
    %v700 = vpop.permute.xlu0 %699
    %702 = vset.pattern.permute.xlu0 33
    %703 = vperm.xlu0 %702, %v688
    %v704 = vpop.permute.xlu0 %703
    %705 = vset.pattern.permute.xlu0 33
    %706 = vperm.xlu0 %705, %v690
    %v707 = vpop.permute.xlu0 %706
    %v708 = vperm.slane %v704, %v238
    %v709 = vperm.slane %v707, %v238
    %v710 = vsel %vm241, %v708, %v708
    %v711 = vsel %vm243, %v708, %v710
    %v712 = vsel %vm245, %v708, %v711
    %v713 = vsel %vm247, %v708, %v712
    %v714 = vsel %vm249, %v708, %v713
    %v715 = vsel %vm251, %v708, %v714
    %v716 = vsel %vm241, %v709, %v709
    %v717 = vsel %vm243, %v709, %v716
    %v718 = vsel %vm245, %v709, %v717
    %v719 = vsel %vm247, %v709, %v718
    %v720 = vsel %vm249, %v709, %v719
    %v721 = vsel %vm251, %v709, %v720
    %v724 = vadd.f32 %v695, %v715
    %v725 = vadd.f32 %v700, %v721
    %v726 = vmul.f32 %v724, 0.2
    %v727 = vmul.f32 %v725, 0.2
    %v728 = vmax.f32 %v724, %v726
    %v729 = vmax.f32 %v725, %v727
    %v730 = vadd.f32 %v728, %v104
    %v731 = vadd.f32 %v729, %v104
    %v732 = vsel %vm269, %v730, -inf
    %733 = vmax.xlane.f32.xlu0 %v732
    %v734 = vpop.xlane.xlu0 %733
    %v735 = vsel %vm269, %v731, -inf
    %736 = vmax.xlane.f32.xlu0 %v735
    %v737 = vpop.xlane.xlu0 %736
    %v738 = vsub.f32 %v730, %v734
    %v739 = vsub.f32 %v731, %v737
    %v740 = vmul.f32 %v738, 1.442695
    %v741 = vpow.pop %v740
    %v742 = vmul.f32 %v739, 1.442695
    %v743 = vpow.pop %v742
    %v744 = vsel %vm269, %v741, 0.0
    %745 = vadd.xlane.f32.xlu0 %v744
    %v746 = vpop.xlane.xlu0 %745
    %v747 = vsel %vm269, %v743, 0.0
    %748 = vadd.xlane.f32.xlu0 %v747
    %v749 = vpop.xlane.xlu0 %748
    %v750 = vrcp.pop %v746
    %v751 = vmul.f32 %v746, %v750
    %v752 = vsub.f32 1.0, %v751
    %v753 = vmul.f32 %v750, %v752
    %v754 = vadd.f32 %v750, %v753
    %vm755 = vweird.f32 %v746
    %vm756 = vweird.f32 %v750
    %vm757 = vmor %vm755, %vm756
    %v758 = vsel %vm757, %v750, %v754
    %v759 = vand.u32 2147483647, %v746
    %vm760 = vcmp.eq.f32.partialorder %v759, 8.507059e+37
    %v761 = vand.u32 %v746, 2147483648
    %v762 = vor.u32 1.1754944e-38, %v761
    %v763 = vsel %vm760, %v762, %v758
    %v764 = vmul.f32 %v741, %v763
    %v765 = vrcp.pop %v749
    %v766 = vmul.f32 %v749, %v765
    %v767 = vsub.f32 1.0, %v766
    %v768 = vmul.f32 %v765, %v767
    %v769 = vadd.f32 %v765, %v768
    %vm770 = vweird.f32 %v749
    %vm771 = vweird.f32 %v765
    %vm772 = vmor %vm770, %vm771
    %v773 = vsel %vm772, %v765, %v769
    %v774 = vand.u32 2147483647, %v749
    %vm775 = vcmp.eq.f32.partialorder %v774, 8.507059e+37
    %v776 = vand.u32 %v749, 2147483648
    %v777 = vor.u32 1.1754944e-38, %v776
    %v778 = vsel %vm775, %v777, %v773
    %v779 = vmul.f32 %v743, %v778
    %v780 = vpack.c.bf16 %v764, %v764
    %v781 = vpack.c.bf16 %v779, %v779
    %v782 = vpack.c.bf16 %v688, %v688
    %v783 = vpack.c.bf16 %v690, %v690
    %v785 = vsel %vm269, %v780, 0
    %v788 = vsel %vm151, %v782, 0
    %790 = vmatpush.bf16.msra.mxu0 0
    %791 = vmatpush.bf16.msra.mxu0 0
    %792 = vmatpush.bf16.msra.mxu0 0
    %793 = vmatpush.bf16.msra.mxu0 0
    %794 = vmatpush.bf16.msra.mxu0 0
    %795 = vmatpush.bf16.msra.mxu0 0
    %796 = vmatpush.bf16.msra.mxu0 0
    %797 = vmatpush.bf16.msra.mxu0 %v788
    %798 = vmatmul.bf16.gmra.mxu0 %v785
    %v799 = vpop.f32.mrf.mxu0
    %v800 = vadd.f32 0.0, %v799
    %v801 = vpop.f32.mrf.mxu0
    %802 = vdwg.mxu0
    %v804 = vsel %vm269, %v781, 0
    %v807 = vsel %vm151, %v783, 0
    %809 = vmatpush.bf16.msra.mxu0 0
    %810 = vmatpush.bf16.msra.mxu0 0
    %811 = vmatpush.bf16.msra.mxu0 0
    %812 = vmatpush.bf16.msra.mxu0 0
    %813 = vmatpush.bf16.msra.mxu0 0
    %814 = vmatpush.bf16.msra.mxu0 0
    %815 = vmatpush.bf16.msra.mxu0 0
    %816 = vmatpush.bf16.msra.mxu0 %v807
    %817 = vmatmul.bf16.gmra.mxu0 %v804
    %v818 = vpop.f32.mrf.mxu0
    %v819 = vadd.f32 0.0, %v818
    %v820 = vpop.f32.mrf.mxu0
    %821 = vdwg.mxu0
    %v822 = vtanh.pop %v800
    %v823 = vtanh.pop %v819
    %v824 = vmul.f32 %v514, 2.0
    %v825 = vmul.f32 %v515, 2.0
    %v826 = vadd.f32 %v360, %v824
    %v827 = vadd.f32 %v361, %v825
    %v828 = vmul.f32 %v668, 2.0
    %v829 = vmul.f32 %v669, 2.0
    %v830 = vadd.f32 %v826, %v828
    %v831 = vadd.f32 %v827, %v829
    %v832 = vadd.f32 %v830, %v822
    %v833 = vadd.f32 %v831, %v823
    %v834 = vmul.f32 %v832, 0.041666668
    %v835 = vmul.f32 %v833, 0.041666668
    %v836 = vadd.f32 %v173, %v834
    %v837 = vadd.f32 %v176, %v835
    %v838 = vpack.c.bf16 %v837, %v836
    %v840 = vsel %vm203, %v838, 0
    %842 = vmatpush.bf16.msra.mxu0 0
    %843 = vmatpush.bf16.msra.mxu0 0
    %844 = vmatpush.bf16.msra.mxu0 0
    %845 = vmatpush.bf16.msra.mxu0 0
    %846 = vmatpush.bf16.msra.mxu0 0
    %847 = vmatpush.bf16.msra.mxu0 0
    %848 = vmatpush.bf16.msra.mxu0 %v200
    %849 = vmatpush.bf16.msra.mxu0 %v199
    %850 = vmatmul.bf16.gmra.mxu0 %v840
    %v851 = vpop.f32.mrf.mxu0
    %v852 = vadd.f32 0.0, %v851
    %v853 = vpop.f32.mrf.mxu0
    %v854 = vadd.f32 0.0, %v853
    %855 = vdwg.mxu0
    %857 = vset.pattern.permute.xlu0 32
    %858 = vperm.xlu0 %857, %v852
    %v859 = vpop.permute.xlu0 %858
    %862 = vset.pattern.permute.xlu0 32
    %863 = vperm.xlu0 %862, %v854
    %v864 = vpop.permute.xlu0 %863
    %866 = vset.pattern.permute.xlu0 33
    %867 = vperm.xlu0 %866, %v852
    %v868 = vpop.permute.xlu0 %867
    %869 = vset.pattern.permute.xlu0 33
    %870 = vperm.xlu0 %869, %v854
    %v871 = vpop.permute.xlu0 %870
    %v872 = vperm.slane %v868, %v238
    %v873 = vperm.slane %v871, %v238
    %v874 = vsel %vm241, %v872, %v872
    %v875 = vsel %vm243, %v872, %v874
    %v876 = vsel %vm245, %v872, %v875
    %v877 = vsel %vm247, %v872, %v876
    %v878 = vsel %vm249, %v872, %v877
    %v879 = vsel %vm251, %v872, %v878
    %v880 = vsel %vm241, %v873, %v873
    %v881 = vsel %vm243, %v873, %v880
    %v882 = vsel %vm245, %v873, %v881
    %v883 = vsel %vm247, %v873, %v882
    %v884 = vsel %vm249, %v873, %v883
    %v885 = vsel %vm251, %v873, %v884
    %v888 = vadd.f32 %v859, %v879
    %v889 = vadd.f32 %v864, %v885
    %v890 = vmul.f32 %v888, 0.2
    %v891 = vmul.f32 %v889, 0.2
    %v892 = vmax.f32 %v888, %v890
    %v893 = vmax.f32 %v889, %v891
    %v894 = vadd.f32 %v892, %v104
    %v895 = vadd.f32 %v893, %v104
    %v896 = vsel %vm269, %v894, -inf
    %897 = vmax.xlane.f32.xlu0 %v896
    %v898 = vpop.xlane.xlu0 %897
    %v899 = vsel %vm269, %v895, -inf
    %900 = vmax.xlane.f32.xlu0 %v899
    %v901 = vpop.xlane.xlu0 %900
    %v902 = vsub.f32 %v894, %v898
    %v903 = vsub.f32 %v895, %v901
    %v904 = vmul.f32 %v902, 1.442695
    %v905 = vpow.pop %v904
    %v906 = vmul.f32 %v903, 1.442695
    %v907 = vpow.pop %v906
    %v908 = vsel %vm269, %v905, 0.0
    %909 = vadd.xlane.f32.xlu0 %v908
    %v910 = vpop.xlane.xlu0 %909
    %v911 = vsel %vm269, %v907, 0.0
    %912 = vadd.xlane.f32.xlu0 %v911
    %v913 = vpop.xlane.xlu0 %912
    %v914 = vrcp.pop %v910
    %v915 = vmul.f32 %v910, %v914
    %v916 = vsub.f32 1.0, %v915
    %v917 = vmul.f32 %v914, %v916
    %v918 = vadd.f32 %v914, %v917
    %vm919 = vweird.f32 %v910
    %vm920 = vweird.f32 %v914
    %vm921 = vmor %vm919, %vm920
    %v922 = vsel %vm921, %v914, %v918
    %v923 = vand.u32 2147483647, %v910
    %vm924 = vcmp.eq.f32.partialorder %v923, 8.507059e+37
    %v925 = vand.u32 %v910, 2147483648
    %v926 = vor.u32 1.1754944e-38, %v925
    %v927 = vsel %vm924, %v926, %v922
    %v928 = vmul.f32 %v905, %v927
    %v929 = vrcp.pop %v913
    %v930 = vmul.f32 %v913, %v929
    %v931 = vsub.f32 1.0, %v930
    %v932 = vmul.f32 %v929, %v931
    %v933 = vadd.f32 %v929, %v932
    %vm934 = vweird.f32 %v913
    %vm935 = vweird.f32 %v929
    %vm936 = vmor %vm934, %vm935
    %v937 = vsel %vm936, %v929, %v933
    %v938 = vand.u32 2147483647, %v913
    %vm939 = vcmp.eq.f32.partialorder %v938, 8.507059e+37
    %v940 = vand.u32 %v913, 2147483648
    %v941 = vor.u32 1.1754944e-38, %v940
    %v942 = vsel %vm939, %v941, %v937
    %v943 = vmul.f32 %v907, %v942
    %v944 = vpack.c.bf16 %v928, %v928
    %v945 = vpack.c.bf16 %v943, %v943
    %v946 = vpack.c.bf16 %v852, %v852
    %v947 = vpack.c.bf16 %v854, %v854
    %v949 = vsel %vm269, %v944, 0
    %v952 = vsel %vm151, %v946, 0
    %954 = vmatpush.bf16.msra.mxu0 0
    %955 = vmatpush.bf16.msra.mxu0 0
    %956 = vmatpush.bf16.msra.mxu0 0
    %957 = vmatpush.bf16.msra.mxu0 0
    %958 = vmatpush.bf16.msra.mxu0 0
    %959 = vmatpush.bf16.msra.mxu0 0
    %960 = vmatpush.bf16.msra.mxu0 0
    %961 = vmatpush.bf16.msra.mxu0 %v952
    %962 = vmatmul.bf16.gmra.mxu0 %v949
    %v963 = vpop.f32.mrf.mxu0
    %v964 = vadd.f32 0.0, %v963
    %v965 = vpop.f32.mrf.mxu0
    %966 = vdwg.mxu0
    %v968 = vsel %vm269, %v945, 0
    %v971 = vsel %vm151, %v947, 0
    %973 = vmatpush.bf16.msra.mxu0 0
    %974 = vmatpush.bf16.msra.mxu0 0
    %975 = vmatpush.bf16.msra.mxu0 0
    %976 = vmatpush.bf16.msra.mxu0 0
    %977 = vmatpush.bf16.msra.mxu0 0
    %978 = vmatpush.bf16.msra.mxu0 0
    %979 = vmatpush.bf16.msra.mxu0 0
    %980 = vmatpush.bf16.msra.mxu0 %v971
    %981 = vmatmul.bf16.gmra.mxu0 %v968
    %v982 = vpop.f32.mrf.mxu0
    %v983 = vadd.f32 0.0, %v982
    %v984 = vpop.f32.mrf.mxu0
    %985 = vdwg.mxu0
    %v986 = vtanh.pop %v964
    %v987 = vtanh.pop %v983
    %v988 = vmul.f32 %v986, 0.125
    %v989 = vmul.f32 %v987, 0.125
    %v990 = vadd.f32 %v836, %v988
    %v991 = vadd.f32 %v837, %v989
    %v992 = vpack.c.bf16 %v991, %v990
    %v994 = vsel %vm203, %v992, 0
    %996 = vmatpush.bf16.msra.mxu0 0
    %997 = vmatpush.bf16.msra.mxu0 0
    %998 = vmatpush.bf16.msra.mxu0 0
    %999 = vmatpush.bf16.msra.mxu0 0
    %1000 = vmatpush.bf16.msra.mxu0 0
    %1001 = vmatpush.bf16.msra.mxu0 0
    %1002 = vmatpush.bf16.msra.mxu0 %v200
    %1003 = vmatpush.bf16.msra.mxu0 %v199
    %1004 = vmatmul.bf16.gmra.mxu0 %v994
    %v1005 = vpop.f32.mrf.mxu0
    %v1006 = vadd.f32 0.0, %v1005
    %v1007 = vpop.f32.mrf.mxu0
    %v1008 = vadd.f32 0.0, %v1007
    %1009 = vdwg.mxu0
    %1011 = vset.pattern.permute.xlu0 32
    %1012 = vperm.xlu0 %1011, %v1006
    %v1013 = vpop.permute.xlu0 %1012
    %1016 = vset.pattern.permute.xlu0 32
    %1017 = vperm.xlu0 %1016, %v1008
    %v1018 = vpop.permute.xlu0 %1017
    %1020 = vset.pattern.permute.xlu0 33
    %1021 = vperm.xlu0 %1020, %v1006
    %v1022 = vpop.permute.xlu0 %1021
    %1023 = vset.pattern.permute.xlu0 33
    %1024 = vperm.xlu0 %1023, %v1008
    %v1025 = vpop.permute.xlu0 %1024
    %v1026 = vperm.slane %v1022, %v238
    %v1027 = vperm.slane %v1025, %v238
    %v1028 = vsel %vm241, %v1026, %v1026
    %v1029 = vsel %vm243, %v1026, %v1028
    %v1030 = vsel %vm245, %v1026, %v1029
    %v1031 = vsel %vm247, %v1026, %v1030
    %v1032 = vsel %vm249, %v1026, %v1031
    %v1033 = vsel %vm251, %v1026, %v1032
    %v1034 = vsel %vm241, %v1027, %v1027
    %v1035 = vsel %vm243, %v1027, %v1034
    %v1036 = vsel %vm245, %v1027, %v1035
    %v1037 = vsel %vm247, %v1027, %v1036
    %v1038 = vsel %vm249, %v1027, %v1037
    %v1039 = vsel %vm251, %v1027, %v1038
    %v1042 = vadd.f32 %v1013, %v1033
    %v1043 = vadd.f32 %v1018, %v1039
    %v1044 = vmul.f32 %v1042, 0.2
    %v1045 = vmul.f32 %v1043, 0.2
    %v1046 = vmax.f32 %v1042, %v1044
    %v1047 = vmax.f32 %v1043, %v1045
    %v1048 = vadd.f32 %v1046, %v104
    %v1049 = vadd.f32 %v1047, %v104
    %v1050 = vsel %vm269, %v1048, -inf
    %1051 = vmax.xlane.f32.xlu0 %v1050
    %v1052 = vpop.xlane.xlu0 %1051
    %v1053 = vsel %vm269, %v1049, -inf
    %1054 = vmax.xlane.f32.xlu0 %v1053
    %v1055 = vpop.xlane.xlu0 %1054
    %v1056 = vsub.f32 %v1048, %v1052
    %v1057 = vsub.f32 %v1049, %v1055
    %v1058 = vmul.f32 %v1056, 1.442695
    %v1059 = vpow.pop %v1058
    %v1060 = vmul.f32 %v1057, 1.442695
    %v1061 = vpow.pop %v1060
    %v1062 = vsel %vm269, %v1059, 0.0
    %1063 = vadd.xlane.f32.xlu0 %v1062
    %v1064 = vpop.xlane.xlu0 %1063
    %v1065 = vsel %vm269, %v1061, 0.0
    %1066 = vadd.xlane.f32.xlu0 %v1065
    %v1067 = vpop.xlane.xlu0 %1066
    %v1068 = vrcp.pop %v1064
    %v1069 = vmul.f32 %v1064, %v1068
    %v1070 = vsub.f32 1.0, %v1069
    %v1071 = vmul.f32 %v1068, %v1070
    %v1072 = vadd.f32 %v1068, %v1071
    %vm1073 = vweird.f32 %v1064
    %vm1074 = vweird.f32 %v1068
    %vm1075 = vmor %vm1073, %vm1074
    %v1076 = vsel %vm1075, %v1068, %v1072
    %v1077 = vand.u32 2147483647, %v1064
    %vm1078 = vcmp.eq.f32.partialorder %v1077, 8.507059e+37
    %v1079 = vand.u32 %v1064, 2147483648
    %v1080 = vor.u32 1.1754944e-38, %v1079
    %v1081 = vsel %vm1078, %v1080, %v1076
    %v1082 = vmul.f32 %v1059, %v1081
    %v1083 = vrcp.pop %v1067
    %v1084 = vmul.f32 %v1067, %v1083
    %v1085 = vsub.f32 1.0, %v1084
    %v1086 = vmul.f32 %v1083, %v1085
    %v1087 = vadd.f32 %v1083, %v1086
    %vm1088 = vweird.f32 %v1067
    %vm1089 = vweird.f32 %v1083
    %vm1090 = vmor %vm1088, %vm1089
    %v1091 = vsel %vm1090, %v1083, %v1087
    %v1092 = vand.u32 2147483647, %v1067
    %vm1093 = vcmp.eq.f32.partialorder %v1092, 8.507059e+37
    %v1094 = vand.u32 %v1067, 2147483648
    %v1095 = vor.u32 1.1754944e-38, %v1094
    %v1096 = vsel %vm1093, %v1095, %v1091
    %v1097 = vmul.f32 %v1061, %v1096
    %v1098 = vpack.c.bf16 %v1082, %v1082
    %v1099 = vpack.c.bf16 %v1097, %v1097
    %v1100 = vpack.c.bf16 %v1006, %v1006
    %v1101 = vpack.c.bf16 %v1008, %v1008
    %v1103 = vsel %vm269, %v1098, 0
    %v1106 = vsel %vm151, %v1100, 0
    %1108 = vmatpush.bf16.msra.mxu0 0
    %1109 = vmatpush.bf16.msra.mxu0 0
    %1110 = vmatpush.bf16.msra.mxu0 0
    %1111 = vmatpush.bf16.msra.mxu0 0
    %1112 = vmatpush.bf16.msra.mxu0 0
    %1113 = vmatpush.bf16.msra.mxu0 0
    %1114 = vmatpush.bf16.msra.mxu0 0
    %1115 = vmatpush.bf16.msra.mxu0 %v1106
    %1116 = vmatmul.bf16.gmra.mxu0 %v1103
    %v1117 = vpop.f32.mrf.mxu0
    %v1118 = vadd.f32 0.0, %v1117
    %v1119 = vpop.f32.mrf.mxu0
    %1120 = vdwg.mxu0
    %v1122 = vsel %vm269, %v1099, 0
    %v1125 = vsel %vm151, %v1101, 0
    %1127 = vmatpush.bf16.msra.mxu0 0
    %1128 = vmatpush.bf16.msra.mxu0 0
    %1129 = vmatpush.bf16.msra.mxu0 0
    %1130 = vmatpush.bf16.msra.mxu0 0
    %1131 = vmatpush.bf16.msra.mxu0 0
    %1132 = vmatpush.bf16.msra.mxu0 0
    %1133 = vmatpush.bf16.msra.mxu0 0
    %1134 = vmatpush.bf16.msra.mxu0 %v1125
    %1135 = vmatmul.bf16.gmra.mxu0 %v1122
    %v1136 = vpop.f32.mrf.mxu0
    %v1137 = vadd.f32 0.0, %v1136
    %v1138 = vpop.f32.mrf.mxu0
    %1139 = vdwg.mxu0
    %v1140 = vtanh.pop %v1118
    %v1141 = vtanh.pop %v1137
    %v1142 = vmul.f32 %v1140, 0.125
    %v1143 = vmul.f32 %v1141, 0.125
    %v1144 = vadd.f32 %v836, %v1142
    %v1145 = vadd.f32 %v837, %v1143
    %v1146 = vpack.c.bf16 %v1145, %v1144
    %v1148 = vsel %vm203, %v1146, 0
    %1150 = vmatpush.bf16.msra.mxu0 0
    %1151 = vmatpush.bf16.msra.mxu0 0
    %1152 = vmatpush.bf16.msra.mxu0 0
    %1153 = vmatpush.bf16.msra.mxu0 0
    %1154 = vmatpush.bf16.msra.mxu0 0
    %1155 = vmatpush.bf16.msra.mxu0 0
    %1156 = vmatpush.bf16.msra.mxu0 %v200
    %1157 = vmatpush.bf16.msra.mxu0 %v199
    %1158 = vmatmul.bf16.gmra.mxu0 %v1148
    %v1159 = vpop.f32.mrf.mxu0
    %v1160 = vadd.f32 0.0, %v1159
    %v1161 = vpop.f32.mrf.mxu0
    %v1162 = vadd.f32 0.0, %v1161
    %1163 = vdwg.mxu0
    %1165 = vset.pattern.permute.xlu0 32
    %1166 = vperm.xlu0 %1165, %v1160
    %v1167 = vpop.permute.xlu0 %1166
    %1170 = vset.pattern.permute.xlu0 32
    %1171 = vperm.xlu0 %1170, %v1162
    %v1172 = vpop.permute.xlu0 %1171
    %1174 = vset.pattern.permute.xlu0 33
    %1175 = vperm.xlu0 %1174, %v1160
    %v1176 = vpop.permute.xlu0 %1175
    %1177 = vset.pattern.permute.xlu0 33
    %1178 = vperm.xlu0 %1177, %v1162
    %v1179 = vpop.permute.xlu0 %1178
    %v1180 = vperm.slane %v1176, %v238
    %v1181 = vperm.slane %v1179, %v238
    %v1182 = vsel %vm241, %v1180, %v1180
    %v1183 = vsel %vm243, %v1180, %v1182
    %v1184 = vsel %vm245, %v1180, %v1183
    %v1185 = vsel %vm247, %v1180, %v1184
    %v1186 = vsel %vm249, %v1180, %v1185
    %v1187 = vsel %vm251, %v1180, %v1186
    %v1188 = vsel %vm241, %v1181, %v1181
    %v1189 = vsel %vm243, %v1181, %v1188
    %v1190 = vsel %vm245, %v1181, %v1189
    %v1191 = vsel %vm247, %v1181, %v1190
    %v1192 = vsel %vm249, %v1181, %v1191
    %v1193 = vsel %vm251, %v1181, %v1192
    %v1196 = vadd.f32 %v1167, %v1187
    %v1197 = vadd.f32 %v1172, %v1193
    %v1198 = vmul.f32 %v1196, 0.2
    %v1199 = vmul.f32 %v1197, 0.2
    %v1200 = vmax.f32 %v1196, %v1198
    %v1201 = vmax.f32 %v1197, %v1199
    %v1202 = vadd.f32 %v1200, %v104
    %v1203 = vadd.f32 %v1201, %v104
    %v1204 = vsel %vm269, %v1202, -inf
    %1205 = vmax.xlane.f32.xlu0 %v1204
    %v1206 = vpop.xlane.xlu0 %1205
    %v1207 = vsel %vm269, %v1203, -inf
    %1208 = vmax.xlane.f32.xlu0 %v1207
    %v1209 = vpop.xlane.xlu0 %1208
    %v1210 = vsub.f32 %v1202, %v1206
    %v1211 = vsub.f32 %v1203, %v1209
    %v1212 = vmul.f32 %v1210, 1.442695
    %v1213 = vpow.pop %v1212
    %v1214 = vmul.f32 %v1211, 1.442695
    %v1215 = vpow.pop %v1214
    %v1216 = vsel %vm269, %v1213, 0.0
    %1217 = vadd.xlane.f32.xlu0 %v1216
    %v1218 = vpop.xlane.xlu0 %1217
    %v1219 = vsel %vm269, %v1215, 0.0
    %1220 = vadd.xlane.f32.xlu0 %v1219
    %v1221 = vpop.xlane.xlu0 %1220
    %v1222 = vrcp.pop %v1218
    %v1223 = vmul.f32 %v1218, %v1222
    %v1224 = vsub.f32 1.0, %v1223
    %v1225 = vmul.f32 %v1222, %v1224
    %v1226 = vadd.f32 %v1222, %v1225
    %vm1227 = vweird.f32 %v1218
    %vm1228 = vweird.f32 %v1222
    %vm1229 = vmor %vm1227, %vm1228
    %v1230 = vsel %vm1229, %v1222, %v1226
    %v1231 = vand.u32 2147483647, %v1218
    %vm1232 = vcmp.eq.f32.partialorder %v1231, 8.507059e+37
    %v1233 = vand.u32 %v1218, 2147483648
    %v1234 = vor.u32 1.1754944e-38, %v1233
    %v1235 = vsel %vm1232, %v1234, %v1230
    %v1236 = vmul.f32 %v1213, %v1235
    %v1237 = vrcp.pop %v1221
    %v1238 = vmul.f32 %v1221, %v1237
    %v1239 = vsub.f32 1.0, %v1238
    %v1240 = vmul.f32 %v1237, %v1239
    %v1241 = vadd.f32 %v1237, %v1240
    %vm1242 = vweird.f32 %v1221
    %vm1243 = vweird.f32 %v1237
    %vm1244 = vmor %vm1242, %vm1243
    %v1245 = vsel %vm1244, %v1237, %v1241
    %v1246 = vand.u32 2147483647, %v1221
    %vm1247 = vcmp.eq.f32.partialorder %v1246, 8.507059e+37
    %v1248 = vand.u32 %v1221, 2147483648
    %v1249 = vor.u32 1.1754944e-38, %v1248
    %v1250 = vsel %vm1247, %v1249, %v1245
    %v1251 = vmul.f32 %v1215, %v1250
    %v1252 = vpack.c.bf16 %v1236, %v1236
    %v1253 = vpack.c.bf16 %v1251, %v1251
    %v1254 = vpack.c.bf16 %v1160, %v1160
    %v1255 = vpack.c.bf16 %v1162, %v1162
    %v1257 = vsel %vm269, %v1252, 0
    %v1260 = vsel %vm151, %v1254, 0
    %1262 = vmatpush.bf16.msra.mxu0 0
    %1263 = vmatpush.bf16.msra.mxu0 0
    %1264 = vmatpush.bf16.msra.mxu0 0
    %1265 = vmatpush.bf16.msra.mxu0 0
    %1266 = vmatpush.bf16.msra.mxu0 0
    %1267 = vmatpush.bf16.msra.mxu0 0
    %1268 = vmatpush.bf16.msra.mxu0 0
    %1269 = vmatpush.bf16.msra.mxu0 %v1260
    %1270 = vmatmul.bf16.gmra.mxu0 %v1257
    %v1271 = vpop.f32.mrf.mxu0
    %v1272 = vadd.f32 0.0, %v1271
    %v1273 = vpop.f32.mrf.mxu0
    %1274 = vdwg.mxu0
    %v1276 = vsel %vm269, %v1253, 0
    %v1279 = vsel %vm151, %v1255, 0
    %1281 = vmatpush.bf16.msra.mxu0 0
    %1282 = vmatpush.bf16.msra.mxu0 0
    %1283 = vmatpush.bf16.msra.mxu0 0
    %1284 = vmatpush.bf16.msra.mxu0 0
    %1285 = vmatpush.bf16.msra.mxu0 0
    %1286 = vmatpush.bf16.msra.mxu0 0
    %1287 = vmatpush.bf16.msra.mxu0 0
    %1288 = vmatpush.bf16.msra.mxu0 %v1279
    %1289 = vmatmul.bf16.gmra.mxu0 %v1276
    %v1290 = vpop.f32.mrf.mxu0
    %v1291 = vadd.f32 0.0, %v1290
    %v1292 = vpop.f32.mrf.mxu0
    %1293 = vdwg.mxu0
    %v1294 = vtanh.pop %v1272
    %v1295 = vtanh.pop %v1291
    %v1296 = vmul.f32 %v1294, 0.25
    %v1297 = vmul.f32 %v1295, 0.25
    %v1298 = vadd.f32 %v836, %v1296
    %v1299 = vadd.f32 %v837, %v1297
    %v1300 = vpack.c.bf16 %v1299, %v1298
    %v1302 = vsel %vm203, %v1300, 0
    %1304 = vmatpush.bf16.msra.mxu0 0
    %1305 = vmatpush.bf16.msra.mxu0 0
    %1306 = vmatpush.bf16.msra.mxu0 0
    %1307 = vmatpush.bf16.msra.mxu0 0
    %1308 = vmatpush.bf16.msra.mxu0 0
    %1309 = vmatpush.bf16.msra.mxu0 0
    %1310 = vmatpush.bf16.msra.mxu0 %v200
    %1311 = vmatpush.bf16.msra.mxu0 %v199
    %1312 = vmatmul.bf16.gmra.mxu0 %v1302
    %v1313 = vpop.f32.mrf.mxu0
    %v1314 = vadd.f32 0.0, %v1313
    %v1315 = vpop.f32.mrf.mxu0
    %v1316 = vadd.f32 0.0, %v1315
    %1317 = vdwg.mxu0
    %1319 = vset.pattern.permute.xlu0 32
    %1320 = vperm.xlu0 %1319, %v1314
    %v1321 = vpop.permute.xlu0 %1320
    %1324 = vset.pattern.permute.xlu0 32
    %1325 = vperm.xlu0 %1324, %v1316
    %v1326 = vpop.permute.xlu0 %1325
    %1328 = vset.pattern.permute.xlu0 33
    %1329 = vperm.xlu0 %1328, %v1314
    %v1330 = vpop.permute.xlu0 %1329
    %1331 = vset.pattern.permute.xlu0 33
    %1332 = vperm.xlu0 %1331, %v1316
    %v1333 = vpop.permute.xlu0 %1332
    %v1334 = vperm.slane %v1330, %v238
    %v1335 = vperm.slane %v1333, %v238
    %v1336 = vsel %vm241, %v1334, %v1334
    %v1337 = vsel %vm243, %v1334, %v1336
    %v1338 = vsel %vm245, %v1334, %v1337
    %v1339 = vsel %vm247, %v1334, %v1338
    %v1340 = vsel %vm249, %v1334, %v1339
    %v1341 = vsel %vm251, %v1334, %v1340
    %v1342 = vsel %vm241, %v1335, %v1335
    %v1343 = vsel %vm243, %v1335, %v1342
    %v1344 = vsel %vm245, %v1335, %v1343
    %v1345 = vsel %vm247, %v1335, %v1344
    %v1346 = vsel %vm249, %v1335, %v1345
    %v1347 = vsel %vm251, %v1335, %v1346
    %v1350 = vadd.f32 %v1321, %v1341
    %v1351 = vadd.f32 %v1326, %v1347
    %v1352 = vmul.f32 %v1350, 0.2
    %v1353 = vmul.f32 %v1351, 0.2
    %v1354 = vmax.f32 %v1350, %v1352
    %v1355 = vmax.f32 %v1351, %v1353
    %v1356 = vadd.f32 %v1354, %v104
    %v1357 = vadd.f32 %v1355, %v104
    %v1358 = vsel %vm269, %v1356, -inf
    %1359 = vmax.xlane.f32.xlu0 %v1358
    %v1360 = vpop.xlane.xlu0 %1359
    %v1361 = vsel %vm269, %v1357, -inf
    %1362 = vmax.xlane.f32.xlu0 %v1361
    %v1363 = vpop.xlane.xlu0 %1362
    %v1364 = vsub.f32 %v1356, %v1360
    %v1365 = vsub.f32 %v1357, %v1363
    %v1366 = vmul.f32 %v1364, 1.442695
    %v1367 = vpow.pop %v1366
    %v1368 = vmul.f32 %v1365, 1.442695
    %v1369 = vpow.pop %v1368
    %v1370 = vsel %vm269, %v1367, 0.0
    %1371 = vadd.xlane.f32.xlu0 %v1370
    %v1372 = vpop.xlane.xlu0 %1371
    %v1373 = vsel %vm269, %v1369, 0.0
    %1374 = vadd.xlane.f32.xlu0 %v1373
    %v1375 = vpop.xlane.xlu0 %1374
    %v1376 = vrcp.pop %v1372
    %v1377 = vmul.f32 %v1372, %v1376
    %v1378 = vsub.f32 1.0, %v1377
    %v1379 = vmul.f32 %v1376, %v1378
    %v1380 = vadd.f32 %v1376, %v1379
    %vm1381 = vweird.f32 %v1372
    %vm1382 = vweird.f32 %v1376
    %vm1383 = vmor %vm1381, %vm1382
    %v1384 = vsel %vm1383, %v1376, %v1380
    %v1385 = vand.u32 2147483647, %v1372
    %vm1386 = vcmp.eq.f32.partialorder %v1385, 8.507059e+37
    %v1387 = vand.u32 %v1372, 2147483648
    %v1388 = vor.u32 1.1754944e-38, %v1387
    %v1389 = vsel %vm1386, %v1388, %v1384
    %v1390 = vmul.f32 %v1367, %v1389
    %v1391 = vrcp.pop %v1375
    %v1392 = vmul.f32 %v1375, %v1391
    %v1393 = vsub.f32 1.0, %v1392
    %v1394 = vmul.f32 %v1391, %v1393
    %v1395 = vadd.f32 %v1391, %v1394
    %vm1396 = vweird.f32 %v1375
    %vm1397 = vweird.f32 %v1391
    %vm1398 = vmor %vm1396, %vm1397
    %v1399 = vsel %vm1398, %v1391, %v1395
    %v1400 = vand.u32 2147483647, %v1375
    %vm1401 = vcmp.eq.f32.partialorder %v1400, 8.507059e+37
    %v1402 = vand.u32 %v1375, 2147483648
    %v1403 = vor.u32 1.1754944e-38, %v1402
    %v1404 = vsel %vm1401, %v1403, %v1399
    %v1405 = vmul.f32 %v1369, %v1404
    %v1406 = vpack.c.bf16 %v1390, %v1390
    %v1407 = vpack.c.bf16 %v1405, %v1405
    %v1408 = vpack.c.bf16 %v1314, %v1314
    %v1409 = vpack.c.bf16 %v1316, %v1316
    %v1411 = vsel %vm269, %v1406, 0
    %v1414 = vsel %vm151, %v1408, 0
    %1416 = vmatpush.bf16.msra.mxu0 0
    %1417 = vmatpush.bf16.msra.mxu0 0
    %1418 = vmatpush.bf16.msra.mxu0 0
    %1419 = vmatpush.bf16.msra.mxu0 0
    %1420 = vmatpush.bf16.msra.mxu0 0
    %1421 = vmatpush.bf16.msra.mxu0 0
    %1422 = vmatpush.bf16.msra.mxu0 0
    %1423 = vmatpush.bf16.msra.mxu0 %v1414
    %1424 = vmatmul.bf16.gmra.mxu0 %v1411
    %v1425 = vpop.f32.mrf.mxu0
    %v1426 = vadd.f32 0.0, %v1425
    %v1427 = vpop.f32.mrf.mxu0
    %1428 = vdwg.mxu0
    %v1430 = vsel %vm269, %v1407, 0
    %v1433 = vsel %vm151, %v1409, 0
    %1435 = vmatpush.bf16.msra.mxu0 0
    %1436 = vmatpush.bf16.msra.mxu0 0
    %1437 = vmatpush.bf16.msra.mxu0 0
    %1438 = vmatpush.bf16.msra.mxu0 0
    %1439 = vmatpush.bf16.msra.mxu0 0
    %1440 = vmatpush.bf16.msra.mxu0 0
    %1441 = vmatpush.bf16.msra.mxu0 0
    %1442 = vmatpush.bf16.msra.mxu0 %v1433
    %1443 = vmatmul.bf16.gmra.mxu0 %v1430
    %v1444 = vpop.f32.mrf.mxu0
    %v1445 = vadd.f32 0.0, %v1444
    %v1446 = vpop.f32.mrf.mxu0
    %1447 = vdwg.mxu0
    %v1448 = vtanh.pop %v1426
    %v1449 = vtanh.pop %v1445
    %v1450 = vmul.f32 %v1140, 2.0
    %v1451 = vmul.f32 %v1141, 2.0
    %v1452 = vadd.f32 %v986, %v1450
    %v1453 = vadd.f32 %v987, %v1451
    %v1454 = vmul.f32 %v1294, 2.0
    %v1455 = vmul.f32 %v1295, 2.0
    %v1456 = vadd.f32 %v1452, %v1454
    %v1457 = vadd.f32 %v1453, %v1455
    %v1458 = vadd.f32 %v1456, %v1448
    %v1459 = vadd.f32 %v1457, %v1449
    %v1460 = vmul.f32 %v1458, 0.041666668
    %v1461 = vmul.f32 %v1459, 0.041666668
    %v1462 = vadd.f32 %v836, %v1460
    %v1463 = vadd.f32 %v837, %v1461
    %v1464 = vpack.c.bf16 %v1463, %v1462
    %v1466 = vsel %vm203, %v1464, 0
    %1468 = vmatpush.bf16.msra.mxu0 0
    %1469 = vmatpush.bf16.msra.mxu0 0
    %1470 = vmatpush.bf16.msra.mxu0 0
    %1471 = vmatpush.bf16.msra.mxu0 0
    %1472 = vmatpush.bf16.msra.mxu0 0
    %1473 = vmatpush.bf16.msra.mxu0 0
    %1474 = vmatpush.bf16.msra.mxu0 %v200
    %1475 = vmatpush.bf16.msra.mxu0 %v199
    %1476 = vmatmul.bf16.gmra.mxu0 %v1466
    %v1477 = vpop.f32.mrf.mxu0
    %v1478 = vadd.f32 0.0, %v1477
    %v1479 = vpop.f32.mrf.mxu0
    %v1480 = vadd.f32 0.0, %v1479
    %1481 = vdwg.mxu0
    %1483 = vset.pattern.permute.xlu0 32
    %1484 = vperm.xlu0 %1483, %v1478
    %v1485 = vpop.permute.xlu0 %1484
    %1488 = vset.pattern.permute.xlu0 32
    %1489 = vperm.xlu0 %1488, %v1480
    %v1490 = vpop.permute.xlu0 %1489
    %1492 = vset.pattern.permute.xlu0 33
    %1493 = vperm.xlu0 %1492, %v1478
    %v1494 = vpop.permute.xlu0 %1493
    %1495 = vset.pattern.permute.xlu0 33
    %1496 = vperm.xlu0 %1495, %v1480
    %v1497 = vpop.permute.xlu0 %1496
    %v1498 = vperm.slane %v1494, %v238
    %v1499 = vperm.slane %v1497, %v238
    %v1500 = vsel %vm241, %v1498, %v1498
    %v1501 = vsel %vm243, %v1498, %v1500
    %v1502 = vsel %vm245, %v1498, %v1501
    %v1503 = vsel %vm247, %v1498, %v1502
    %v1504 = vsel %vm249, %v1498, %v1503
    %v1505 = vsel %vm251, %v1498, %v1504
    %v1506 = vsel %vm241, %v1499, %v1499
    %v1507 = vsel %vm243, %v1499, %v1506
    %v1508 = vsel %vm245, %v1499, %v1507
    %v1509 = vsel %vm247, %v1499, %v1508
    %v1510 = vsel %vm249, %v1499, %v1509
    %v1511 = vsel %vm251, %v1499, %v1510
    %v1514 = vadd.f32 %v1485, %v1505
    %v1515 = vadd.f32 %v1490, %v1511
    %v1516 = vmul.f32 %v1514, 0.2
    %v1517 = vmul.f32 %v1515, 0.2
    %v1518 = vmax.f32 %v1514, %v1516
    %v1519 = vmax.f32 %v1515, %v1517
    %v1520 = vadd.f32 %v1518, %v104
    %v1521 = vadd.f32 %v1519, %v104
    %v1522 = vsel %vm269, %v1520, -inf
    %1523 = vmax.xlane.f32.xlu0 %v1522
    %v1524 = vpop.xlane.xlu0 %1523
    %v1525 = vsel %vm269, %v1521, -inf
    %1526 = vmax.xlane.f32.xlu0 %v1525
    %v1527 = vpop.xlane.xlu0 %1526
    %v1528 = vsub.f32 %v1520, %v1524
    %v1529 = vsub.f32 %v1521, %v1527
    %v1530 = vmul.f32 %v1528, 1.442695
    %v1531 = vpow.pop %v1530
    %v1532 = vmul.f32 %v1529, 1.442695
    %v1533 = vpow.pop %v1532
    %v1534 = vsel %vm269, %v1531, 0.0
    %1535 = vadd.xlane.f32.xlu0 %v1534
    %v1536 = vpop.xlane.xlu0 %1535
    %v1537 = vsel %vm269, %v1533, 0.0
    %1538 = vadd.xlane.f32.xlu0 %v1537
    %v1539 = vpop.xlane.xlu0 %1538
    %v1540 = vrcp.pop %v1536
    %v1541 = vmul.f32 %v1536, %v1540
    %v1542 = vsub.f32 1.0, %v1541
    %v1543 = vmul.f32 %v1540, %v1542
    %v1544 = vadd.f32 %v1540, %v1543
    %vm1545 = vweird.f32 %v1536
    %vm1546 = vweird.f32 %v1540
    %vm1547 = vmor %vm1545, %vm1546
    %v1548 = vsel %vm1547, %v1540, %v1544
    %v1549 = vand.u32 2147483647, %v1536
    %vm1550 = vcmp.eq.f32.partialorder %v1549, 8.507059e+37
    %v1551 = vand.u32 %v1536, 2147483648
    %v1552 = vor.u32 1.1754944e-38, %v1551
    %v1553 = vsel %vm1550, %v1552, %v1548
    %v1554 = vmul.f32 %v1531, %v1553
    %v1555 = vrcp.pop %v1539
    %v1556 = vmul.f32 %v1539, %v1555
    %v1557 = vsub.f32 1.0, %v1556
    %v1558 = vmul.f32 %v1555, %v1557
    %v1559 = vadd.f32 %v1555, %v1558
    %vm1560 = vweird.f32 %v1539
    %vm1561 = vweird.f32 %v1555
    %vm1562 = vmor %vm1560, %vm1561
    %v1563 = vsel %vm1562, %v1555, %v1559
    %v1564 = vand.u32 2147483647, %v1539
    %vm1565 = vcmp.eq.f32.partialorder %v1564, 8.507059e+37
    %v1566 = vand.u32 %v1539, 2147483648
    %v1567 = vor.u32 1.1754944e-38, %v1566
    %v1568 = vsel %vm1565, %v1567, %v1563
    %v1569 = vmul.f32 %v1533, %v1568
    %v1570 = vpack.c.bf16 %v1554, %v1554
    %v1571 = vpack.c.bf16 %v1569, %v1569
    %v1572 = vpack.c.bf16 %v1478, %v1478
    %v1573 = vpack.c.bf16 %v1480, %v1480
    %v1575 = vsel %vm269, %v1570, 0
    %v1578 = vsel %vm151, %v1572, 0
    %1580 = vmatpush.bf16.msra.mxu0 0
    %1581 = vmatpush.bf16.msra.mxu0 0
    %1582 = vmatpush.bf16.msra.mxu0 0
    %1583 = vmatpush.bf16.msra.mxu0 0
    %1584 = vmatpush.bf16.msra.mxu0 0
    %1585 = vmatpush.bf16.msra.mxu0 0
    %1586 = vmatpush.bf16.msra.mxu0 0
    %1587 = vmatpush.bf16.msra.mxu0 %v1578
    %1588 = vmatmul.bf16.gmra.mxu0 %v1575
    %v1589 = vpop.f32.mrf.mxu0
    %v1590 = vadd.f32 0.0, %v1589
    %v1591 = vpop.f32.mrf.mxu0
    %1592 = vdwg.mxu0
    %v1594 = vsel %vm269, %v1571, 0
    %v1597 = vsel %vm151, %v1573, 0
    %1599 = vmatpush.bf16.msra.mxu0 0
    %1600 = vmatpush.bf16.msra.mxu0 0
    %1601 = vmatpush.bf16.msra.mxu0 0
    %1602 = vmatpush.bf16.msra.mxu0 0
    %1603 = vmatpush.bf16.msra.mxu0 0
    %1604 = vmatpush.bf16.msra.mxu0 0
    %1605 = vmatpush.bf16.msra.mxu0 0
    %1606 = vmatpush.bf16.msra.mxu0 %v1597
    %1607 = vmatmul.bf16.gmra.mxu0 %v1594
    %v1608 = vpop.f32.mrf.mxu0
    %v1609 = vadd.f32 0.0, %v1608
    %v1610 = vpop.f32.mrf.mxu0
    %1611 = vdwg.mxu0
    %v1612 = vtanh.pop %v1590
    %v1613 = vtanh.pop %v1609
    %v1614 = vmul.f32 %v1612, 0.125
    %v1615 = vmul.f32 %v1613, 0.125
    %v1616 = vadd.f32 %v1462, %v1614
    %v1617 = vadd.f32 %v1463, %v1615
    %v1618 = vpack.c.bf16 %v1617, %v1616
    %v1620 = vsel %vm203, %v1618, 0
    %1622 = vmatpush.bf16.msra.mxu0 0
    %1623 = vmatpush.bf16.msra.mxu0 0
    %1624 = vmatpush.bf16.msra.mxu0 0
    %1625 = vmatpush.bf16.msra.mxu0 0
    %1626 = vmatpush.bf16.msra.mxu0 0
    %1627 = vmatpush.bf16.msra.mxu0 0
    %1628 = vmatpush.bf16.msra.mxu0 %v200
    %1629 = vmatpush.bf16.msra.mxu0 %v199
    %1630 = vmatmul.bf16.gmra.mxu0 %v1620
    %v1631 = vpop.f32.mrf.mxu0
    %v1632 = vadd.f32 0.0, %v1631
    %v1633 = vpop.f32.mrf.mxu0
    %v1634 = vadd.f32 0.0, %v1633
    %1635 = vdwg.mxu0
    %1637 = vset.pattern.permute.xlu0 32
    %1638 = vperm.xlu0 %1637, %v1632
    %v1639 = vpop.permute.xlu0 %1638
    %1642 = vset.pattern.permute.xlu0 32
    %1643 = vperm.xlu0 %1642, %v1634
    %v1644 = vpop.permute.xlu0 %1643
    %1646 = vset.pattern.permute.xlu0 33
    %1647 = vperm.xlu0 %1646, %v1632
    %v1648 = vpop.permute.xlu0 %1647
    %1649 = vset.pattern.permute.xlu0 33
    %1650 = vperm.xlu0 %1649, %v1634
    %v1651 = vpop.permute.xlu0 %1650
    %v1652 = vperm.slane %v1648, %v238
    %v1653 = vperm.slane %v1651, %v238
    %v1654 = vsel %vm241, %v1652, %v1652
    %v1655 = vsel %vm243, %v1652, %v1654
    %v1656 = vsel %vm245, %v1652, %v1655
    %v1657 = vsel %vm247, %v1652, %v1656
    %v1658 = vsel %vm249, %v1652, %v1657
    %v1659 = vsel %vm251, %v1652, %v1658
    %v1660 = vsel %vm241, %v1653, %v1653
    %v1661 = vsel %vm243, %v1653, %v1660
    %v1662 = vsel %vm245, %v1653, %v1661
    %v1663 = vsel %vm247, %v1653, %v1662
    %v1664 = vsel %vm249, %v1653, %v1663
    %v1665 = vsel %vm251, %v1653, %v1664
    %v1668 = vadd.f32 %v1639, %v1659
    %v1669 = vadd.f32 %v1644, %v1665
    %v1670 = vmul.f32 %v1668, 0.2
    %v1671 = vmul.f32 %v1669, 0.2
    %v1672 = vmax.f32 %v1668, %v1670
    %v1673 = vmax.f32 %v1669, %v1671
    %v1674 = vadd.f32 %v1672, %v104
    %v1675 = vadd.f32 %v1673, %v104
    %v1676 = vsel %vm269, %v1674, -inf
    %1677 = vmax.xlane.f32.xlu0 %v1676
    %v1678 = vpop.xlane.xlu0 %1677
    %v1679 = vsel %vm269, %v1675, -inf
    %1680 = vmax.xlane.f32.xlu0 %v1679
    %v1681 = vpop.xlane.xlu0 %1680
    %v1682 = vsub.f32 %v1674, %v1678
    %v1683 = vsub.f32 %v1675, %v1681
    %v1684 = vmul.f32 %v1682, 1.442695
    %v1685 = vpow.pop %v1684
    %v1686 = vmul.f32 %v1683, 1.442695
    %v1687 = vpow.pop %v1686
    %v1688 = vsel %vm269, %v1685, 0.0
    %1689 = vadd.xlane.f32.xlu0 %v1688
    %v1690 = vpop.xlane.xlu0 %1689
    %v1691 = vsel %vm269, %v1687, 0.0
    %1692 = vadd.xlane.f32.xlu0 %v1691
    %v1693 = vpop.xlane.xlu0 %1692
    %v1694 = vrcp.pop %v1690
    %v1695 = vmul.f32 %v1690, %v1694
    %v1696 = vsub.f32 1.0, %v1695
    %v1697 = vmul.f32 %v1694, %v1696
    %v1698 = vadd.f32 %v1694, %v1697
    %vm1699 = vweird.f32 %v1690
    %vm1700 = vweird.f32 %v1694
    %vm1701 = vmor %vm1699, %vm1700
    %v1702 = vsel %vm1701, %v1694, %v1698
    %v1703 = vand.u32 2147483647, %v1690
    %vm1704 = vcmp.eq.f32.partialorder %v1703, 8.507059e+37
    %v1705 = vand.u32 %v1690, 2147483648
    %v1706 = vor.u32 1.1754944e-38, %v1705
    %v1707 = vsel %vm1704, %v1706, %v1702
    %v1708 = vmul.f32 %v1685, %v1707
    %v1709 = vrcp.pop %v1693
    %v1710 = vmul.f32 %v1693, %v1709
    %v1711 = vsub.f32 1.0, %v1710
    %v1712 = vmul.f32 %v1709, %v1711
    %v1713 = vadd.f32 %v1709, %v1712
    %vm1714 = vweird.f32 %v1693
    %vm1715 = vweird.f32 %v1709
    %vm1716 = vmor %vm1714, %vm1715
    %v1717 = vsel %vm1716, %v1709, %v1713
    %v1718 = vand.u32 2147483647, %v1693
    %vm1719 = vcmp.eq.f32.partialorder %v1718, 8.507059e+37
    %v1720 = vand.u32 %v1693, 2147483648
    %v1721 = vor.u32 1.1754944e-38, %v1720
    %v1722 = vsel %vm1719, %v1721, %v1717
    %v1723 = vmul.f32 %v1687, %v1722
    %v1724 = vpack.c.bf16 %v1708, %v1708
    %v1725 = vpack.c.bf16 %v1723, %v1723
    %v1726 = vpack.c.bf16 %v1632, %v1632
    %v1727 = vpack.c.bf16 %v1634, %v1634
    %v1729 = vsel %vm269, %v1724, 0
    %v1732 = vsel %vm151, %v1726, 0
    %1734 = vmatpush.bf16.msra.mxu0 0
    %1735 = vmatpush.bf16.msra.mxu0 0
    %1736 = vmatpush.bf16.msra.mxu0 0
    %1737 = vmatpush.bf16.msra.mxu0 0
    %1738 = vmatpush.bf16.msra.mxu0 0
    %1739 = vmatpush.bf16.msra.mxu0 0
    %1740 = vmatpush.bf16.msra.mxu0 0
    %1741 = vmatpush.bf16.msra.mxu0 %v1732
    %1742 = vmatmul.bf16.gmra.mxu0 %v1729
    %v1743 = vpop.f32.mrf.mxu0
    %v1744 = vadd.f32 0.0, %v1743
    %v1745 = vpop.f32.mrf.mxu0
    %1746 = vdwg.mxu0
    %v1748 = vsel %vm269, %v1725, 0
    %v1751 = vsel %vm151, %v1727, 0
    %1753 = vmatpush.bf16.msra.mxu0 0
    %1754 = vmatpush.bf16.msra.mxu0 0
    %1755 = vmatpush.bf16.msra.mxu0 0
    %1756 = vmatpush.bf16.msra.mxu0 0
    %1757 = vmatpush.bf16.msra.mxu0 0
    %1758 = vmatpush.bf16.msra.mxu0 0
    %1759 = vmatpush.bf16.msra.mxu0 0
    %1760 = vmatpush.bf16.msra.mxu0 %v1751
    %1761 = vmatmul.bf16.gmra.mxu0 %v1748
    %v1762 = vpop.f32.mrf.mxu0
    %v1763 = vadd.f32 0.0, %v1762
    %v1764 = vpop.f32.mrf.mxu0
    %1765 = vdwg.mxu0
    %v1766 = vtanh.pop %v1744
    %v1767 = vtanh.pop %v1763
    %v1768 = vmul.f32 %v1766, 0.125
    %v1769 = vmul.f32 %v1767, 0.125
    %v1770 = vadd.f32 %v1462, %v1768
    %v1771 = vadd.f32 %v1463, %v1769
    %v1772 = vpack.c.bf16 %v1771, %v1770
    %v1774 = vsel %vm203, %v1772, 0
    %1776 = vmatpush.bf16.msra.mxu0 0
    %1777 = vmatpush.bf16.msra.mxu0 0
    %1778 = vmatpush.bf16.msra.mxu0 0
    %1779 = vmatpush.bf16.msra.mxu0 0
    %1780 = vmatpush.bf16.msra.mxu0 0
    %1781 = vmatpush.bf16.msra.mxu0 0
    %1782 = vmatpush.bf16.msra.mxu0 %v200
    %1783 = vmatpush.bf16.msra.mxu0 %v199
    %1784 = vmatmul.bf16.gmra.mxu0 %v1774
    %v1785 = vpop.f32.mrf.mxu0
    %v1786 = vadd.f32 0.0, %v1785
    %v1787 = vpop.f32.mrf.mxu0
    %v1788 = vadd.f32 0.0, %v1787
    %1789 = vdwg.mxu0
    %1791 = vset.pattern.permute.xlu0 32
    %1792 = vperm.xlu0 %1791, %v1786
    %v1793 = vpop.permute.xlu0 %1792
    %1796 = vset.pattern.permute.xlu0 32
    %1797 = vperm.xlu0 %1796, %v1788
    %v1798 = vpop.permute.xlu0 %1797
    %1800 = vset.pattern.permute.xlu0 33
    %1801 = vperm.xlu0 %1800, %v1786
    %v1802 = vpop.permute.xlu0 %1801
    %1803 = vset.pattern.permute.xlu0 33
    %1804 = vperm.xlu0 %1803, %v1788
    %v1805 = vpop.permute.xlu0 %1804
    %v1806 = vperm.slane %v1802, %v238
    %v1807 = vperm.slane %v1805, %v238
    %v1808 = vsel %vm241, %v1806, %v1806
    %v1809 = vsel %vm243, %v1806, %v1808
    %v1810 = vsel %vm245, %v1806, %v1809
    %v1811 = vsel %vm247, %v1806, %v1810
    %v1812 = vsel %vm249, %v1806, %v1811
    %v1813 = vsel %vm251, %v1806, %v1812
    %v1814 = vsel %vm241, %v1807, %v1807
    %v1815 = vsel %vm243, %v1807, %v1814
    %v1816 = vsel %vm245, %v1807, %v1815
    %v1817 = vsel %vm247, %v1807, %v1816
    %v1818 = vsel %vm249, %v1807, %v1817
    %v1819 = vsel %vm251, %v1807, %v1818
    %v1822 = vadd.f32 %v1793, %v1813
    %v1823 = vadd.f32 %v1798, %v1819
    %v1824 = vmul.f32 %v1822, 0.2
    %v1825 = vmul.f32 %v1823, 0.2
    %v1826 = vmax.f32 %v1822, %v1824
    %v1827 = vmax.f32 %v1823, %v1825
    %v1828 = vadd.f32 %v1826, %v104
    %v1829 = vadd.f32 %v1827, %v104
    %v1830 = vsel %vm269, %v1828, -inf
    %1831 = vmax.xlane.f32.xlu0 %v1830
    %v1832 = vpop.xlane.xlu0 %1831
    %v1833 = vsel %vm269, %v1829, -inf
    %1834 = vmax.xlane.f32.xlu0 %v1833
    %v1835 = vpop.xlane.xlu0 %1834
    %v1836 = vsub.f32 %v1828, %v1832
    %v1837 = vsub.f32 %v1829, %v1835
    %v1838 = vmul.f32 %v1836, 1.442695
    %v1839 = vpow.pop %v1838
    %v1840 = vmul.f32 %v1837, 1.442695
    %v1841 = vpow.pop %v1840
    %v1842 = vsel %vm269, %v1839, 0.0
    %1843 = vadd.xlane.f32.xlu0 %v1842
    %v1844 = vpop.xlane.xlu0 %1843
    %v1845 = vsel %vm269, %v1841, 0.0
    %1846 = vadd.xlane.f32.xlu0 %v1845
    %v1847 = vpop.xlane.xlu0 %1846
    %v1848 = vrcp.pop %v1844
    %v1849 = vmul.f32 %v1844, %v1848
    %v1850 = vsub.f32 1.0, %v1849
    %v1851 = vmul.f32 %v1848, %v1850
    %v1852 = vadd.f32 %v1848, %v1851
    %vm1853 = vweird.f32 %v1844
    %vm1854 = vweird.f32 %v1848
    %vm1855 = vmor %vm1853, %vm1854
    %v1856 = vsel %vm1855, %v1848, %v1852
    %v1857 = vand.u32 2147483647, %v1844
    %vm1858 = vcmp.eq.f32.partialorder %v1857, 8.507059e+37
    %v1859 = vand.u32 %v1844, 2147483648
    %v1860 = vor.u32 1.1754944e-38, %v1859
    %v1861 = vsel %vm1858, %v1860, %v1856
    %v1862 = vmul.f32 %v1839, %v1861
    %v1863 = vrcp.pop %v1847
    %v1864 = vmul.f32 %v1847, %v1863
    %v1865 = vsub.f32 1.0, %v1864
    %v1866 = vmul.f32 %v1863, %v1865
    %v1867 = vadd.f32 %v1863, %v1866
    %vm1868 = vweird.f32 %v1847
    %vm1869 = vweird.f32 %v1863
    %vm1870 = vmor %vm1868, %vm1869
    %v1871 = vsel %vm1870, %v1863, %v1867
    %v1872 = vand.u32 2147483647, %v1847
    %vm1873 = vcmp.eq.f32.partialorder %v1872, 8.507059e+37
    %v1874 = vand.u32 %v1847, 2147483648
    %v1875 = vor.u32 1.1754944e-38, %v1874
    %v1876 = vsel %vm1873, %v1875, %v1871
    %v1877 = vmul.f32 %v1841, %v1876
    %v1878 = vpack.c.bf16 %v1862, %v1862
    %v1879 = vpack.c.bf16 %v1877, %v1877
    %v1880 = vpack.c.bf16 %v1786, %v1786
    %v1881 = vpack.c.bf16 %v1788, %v1788
    %v1883 = vsel %vm269, %v1878, 0
    %v1886 = vsel %vm151, %v1880, 0
    %1888 = vmatpush.bf16.msra.mxu0 0
    %1889 = vmatpush.bf16.msra.mxu0 0
    %1890 = vmatpush.bf16.msra.mxu0 0
    %1891 = vmatpush.bf16.msra.mxu0 0
    %1892 = vmatpush.bf16.msra.mxu0 0
    %1893 = vmatpush.bf16.msra.mxu0 0
    %1894 = vmatpush.bf16.msra.mxu0 0
    %1895 = vmatpush.bf16.msra.mxu0 %v1886
    %1896 = vmatmul.bf16.gmra.mxu0 %v1883
    %v1897 = vpop.f32.mrf.mxu0
    %v1898 = vadd.f32 0.0, %v1897
    %v1899 = vpop.f32.mrf.mxu0
    %1900 = vdwg.mxu0
    %v1902 = vsel %vm269, %v1879, 0
    %v1905 = vsel %vm151, %v1881, 0
    %1907 = vmatpush.bf16.msra.mxu0 0
    %1908 = vmatpush.bf16.msra.mxu0 0
    %1909 = vmatpush.bf16.msra.mxu0 0
    %1910 = vmatpush.bf16.msra.mxu0 0
    %1911 = vmatpush.bf16.msra.mxu0 0
    %1912 = vmatpush.bf16.msra.mxu0 0
    %1913 = vmatpush.bf16.msra.mxu0 0
    %1914 = vmatpush.bf16.msra.mxu0 %v1905
    %1915 = vmatmul.bf16.gmra.mxu0 %v1902
    %v1916 = vpop.f32.mrf.mxu0
    %v1917 = vadd.f32 0.0, %v1916
    %v1918 = vpop.f32.mrf.mxu0
    %1919 = vdwg.mxu0
    %v1920 = vtanh.pop %v1898
    %v1921 = vtanh.pop %v1917
    %v1922 = vmul.f32 %v1920, 0.25
    %v1923 = vmul.f32 %v1921, 0.25
    %v1924 = vadd.f32 %v1462, %v1922
    %v1925 = vadd.f32 %v1463, %v1923
    %v1926 = vpack.c.bf16 %v1925, %v1924
    %v1928 = vsel %vm203, %v1926, 0
    %1930 = vmatpush.bf16.msra.mxu0 0
    %1931 = vmatpush.bf16.msra.mxu0 0
    %1932 = vmatpush.bf16.msra.mxu0 0
    %1933 = vmatpush.bf16.msra.mxu0 0
    %1934 = vmatpush.bf16.msra.mxu0 0
    %1935 = vmatpush.bf16.msra.mxu0 0
    %1936 = vmatpush.bf16.msra.mxu0 %v200
    %1937 = vmatpush.bf16.msra.mxu0 %v199
    %1938 = vmatmul.bf16.gmra.mxu0 %v1928
    %v1939 = vpop.f32.mrf.mxu0
    %v1940 = vadd.f32 0.0, %v1939
    %v1941 = vpop.f32.mrf.mxu0
    %v1942 = vadd.f32 0.0, %v1941
    %1943 = vdwg.mxu0
    %1945 = vset.pattern.permute.xlu0 32
    %1946 = vperm.xlu0 %1945, %v1940
    %v1947 = vpop.permute.xlu0 %1946
    %1950 = vset.pattern.permute.xlu0 32
    %1951 = vperm.xlu0 %1950, %v1942
    %v1952 = vpop.permute.xlu0 %1951
    %1954 = vset.pattern.permute.xlu0 33
    %1955 = vperm.xlu0 %1954, %v1940
    %v1956 = vpop.permute.xlu0 %1955
    %1957 = vset.pattern.permute.xlu0 33
    %1958 = vperm.xlu0 %1957, %v1942
    %v1959 = vpop.permute.xlu0 %1958
    %v1960 = vperm.slane %v1956, %v238
    %v1961 = vperm.slane %v1959, %v238
    %v1962 = vsel %vm241, %v1960, %v1960
    %v1963 = vsel %vm243, %v1960, %v1962
    %v1964 = vsel %vm245, %v1960, %v1963
    %v1965 = vsel %vm247, %v1960, %v1964
    %v1966 = vsel %vm249, %v1960, %v1965
    %v1967 = vsel %vm251, %v1960, %v1966
    %v1968 = vsel %vm241, %v1961, %v1961
    %v1969 = vsel %vm243, %v1961, %v1968
    %v1970 = vsel %vm245, %v1961, %v1969
    %v1971 = vsel %vm247, %v1961, %v1970
    %v1972 = vsel %vm249, %v1961, %v1971
    %v1973 = vsel %vm251, %v1961, %v1972
    %v1976 = vadd.f32 %v1947, %v1967
    %v1977 = vadd.f32 %v1952, %v1973
    %v1978 = vmul.f32 %v1976, 0.2
    %v1979 = vmul.f32 %v1977, 0.2
    %v1980 = vmax.f32 %v1976, %v1978
    %v1981 = vmax.f32 %v1977, %v1979
    %v1982 = vadd.f32 %v1980, %v104
    %v1983 = vadd.f32 %v1981, %v104
    %v1984 = vsel %vm269, %v1982, -inf
    %1985 = vmax.xlane.f32.xlu0 %v1984
    %v1986 = vpop.xlane.xlu0 %1985
    %v1987 = vsel %vm269, %v1983, -inf
    %1988 = vmax.xlane.f32.xlu0 %v1987
    %v1989 = vpop.xlane.xlu0 %1988
    %v1990 = vsub.f32 %v1982, %v1986
    %v1991 = vsub.f32 %v1983, %v1989
    %v1992 = vmul.f32 %v1990, 1.442695
    %v1993 = vpow.pop %v1992
    %v1994 = vmul.f32 %v1991, 1.442695
    %v1995 = vpow.pop %v1994
    %v1996 = vsel %vm269, %v1993, 0.0
    %1997 = vadd.xlane.f32.xlu0 %v1996
    %v1998 = vpop.xlane.xlu0 %1997
    %v1999 = vsel %vm269, %v1995, 0.0
    %2000 = vadd.xlane.f32.xlu0 %v1999
    %v2001 = vpop.xlane.xlu0 %2000
    %v2002 = vrcp.pop %v1998
    %v2003 = vmul.f32 %v1998, %v2002
    %v2004 = vsub.f32 1.0, %v2003
    %v2005 = vmul.f32 %v2002, %v2004
    %v2006 = vadd.f32 %v2002, %v2005
    %vm2007 = vweird.f32 %v1998
    %vm2008 = vweird.f32 %v2002
    %vm2009 = vmor %vm2007, %vm2008
    %v2010 = vsel %vm2009, %v2002, %v2006
    %v2011 = vand.u32 2147483647, %v1998
    %vm2012 = vcmp.eq.f32.partialorder %v2011, 8.507059e+37
    %v2013 = vand.u32 %v1998, 2147483648
    %v2014 = vor.u32 1.1754944e-38, %v2013
    %v2015 = vsel %vm2012, %v2014, %v2010
    %v2016 = vmul.f32 %v1993, %v2015
    %v2017 = vrcp.pop %v2001
    %v2018 = vmul.f32 %v2001, %v2017
    %v2019 = vsub.f32 1.0, %v2018
    %v2020 = vmul.f32 %v2017, %v2019
    %v2021 = vadd.f32 %v2017, %v2020
    %vm2022 = vweird.f32 %v2001
    %vm2023 = vweird.f32 %v2017
    %vm2024 = vmor %vm2022, %vm2023
    %v2025 = vsel %vm2024, %v2017, %v2021
    %v2026 = vand.u32 2147483647, %v2001
    %vm2027 = vcmp.eq.f32.partialorder %v2026, 8.507059e+37
    %v2028 = vand.u32 %v2001, 2147483648
    %v2029 = vor.u32 1.1754944e-38, %v2028
    %v2030 = vsel %vm2027, %v2029, %v2025
    %v2031 = vmul.f32 %v1995, %v2030
    %v2032 = vpack.c.bf16 %v2016, %v2016
    %v2033 = vpack.c.bf16 %v2031, %v2031
    %v2034 = vpack.c.bf16 %v1940, %v1940
    %v2035 = vpack.c.bf16 %v1942, %v1942
    %v2037 = vsel %vm269, %v2032, 0
    %v2040 = vsel %vm151, %v2034, 0
    %2042 = vmatpush.bf16.msra.mxu0 0
    %2043 = vmatpush.bf16.msra.mxu0 0
    %2044 = vmatpush.bf16.msra.mxu0 0
    %2045 = vmatpush.bf16.msra.mxu0 0
    %2046 = vmatpush.bf16.msra.mxu0 0
    %2047 = vmatpush.bf16.msra.mxu0 0
    %2048 = vmatpush.bf16.msra.mxu0 0
    %2049 = vmatpush.bf16.msra.mxu0 %v2040
    %2050 = vmatmul.bf16.gmra.mxu0 %v2037
    %v2051 = vpop.f32.mrf.mxu0
    %v2052 = vadd.f32 0.0, %v2051
    %v2053 = vpop.f32.mrf.mxu0
    %2054 = vdwg.mxu0
    %v2056 = vsel %vm269, %v2033, 0
    %v2059 = vsel %vm151, %v2035, 0
    %2061 = vmatpush.bf16.msra.mxu0 0
    %2062 = vmatpush.bf16.msra.mxu0 0
    %2063 = vmatpush.bf16.msra.mxu0 0
    %2064 = vmatpush.bf16.msra.mxu0 0
    %2065 = vmatpush.bf16.msra.mxu0 0
    %2066 = vmatpush.bf16.msra.mxu0 0
    %2067 = vmatpush.bf16.msra.mxu0 0
    %2068 = vmatpush.bf16.msra.mxu0 %v2059
    %2069 = vmatmul.bf16.gmra.mxu0 %v2056
    %v2070 = vpop.f32.mrf.mxu0
    %v2071 = vadd.f32 0.0, %v2070
    %v2072 = vpop.f32.mrf.mxu0
    %2073 = vdwg.mxu0
    %v2074 = vtanh.pop %v2052
    %v2075 = vtanh.pop %v2071
    %v2076 = vmul.f32 %v1766, 2.0
    %v2077 = vmul.f32 %v1767, 2.0
    %v2078 = vadd.f32 %v1612, %v2076
    %v2079 = vadd.f32 %v1613, %v2077
    %v2080 = vmul.f32 %v1920, 2.0
    %v2081 = vmul.f32 %v1921, 2.0
    %v2082 = vadd.f32 %v2078, %v2080
    %v2083 = vadd.f32 %v2079, %v2081
    %v2084 = vadd.f32 %v2082, %v2074
    %v2085 = vadd.f32 %v2083, %v2075
    %v2086 = vmul.f32 %v2084, 0.041666668
    %v2087 = vmul.f32 %v2085, 0.041666668
    %v2088 = vadd.f32 %v1462, %v2086
    %v2089 = vadd.f32 %v1463, %v2087
    %v2090 = vpack.c.bf16 %v2089, %v2088
    %v2092 = vsel %vm203, %v2090, 0
    %2094 = vmatpush.bf16.msra.mxu0 0
    %2095 = vmatpush.bf16.msra.mxu0 0
    %2096 = vmatpush.bf16.msra.mxu0 0
    %2097 = vmatpush.bf16.msra.mxu0 0
    %2098 = vmatpush.bf16.msra.mxu0 0
    %2099 = vmatpush.bf16.msra.mxu0 0
    %2100 = vmatpush.bf16.msra.mxu0 %v200
    %2101 = vmatpush.bf16.msra.mxu0 %v199
    %2102 = vmatmul.bf16.gmra.mxu0 %v2092
    %v2103 = vpop.f32.mrf.mxu0
    %v2104 = vadd.f32 0.0, %v2103
    %v2105 = vpop.f32.mrf.mxu0
    %v2106 = vadd.f32 0.0, %v2105
    %2107 = vdwg.mxu0
    %2109 = vset.pattern.permute.xlu0 32
    %2110 = vperm.xlu0 %2109, %v2104
    %v2111 = vpop.permute.xlu0 %2110
    %2114 = vset.pattern.permute.xlu0 32
    %2115 = vperm.xlu0 %2114, %v2106
    %v2116 = vpop.permute.xlu0 %2115
    %2118 = vset.pattern.permute.xlu0 33
    %2119 = vperm.xlu0 %2118, %v2104
    %v2120 = vpop.permute.xlu0 %2119
    %2121 = vset.pattern.permute.xlu0 33
    %2122 = vperm.xlu0 %2121, %v2106
    %v2123 = vpop.permute.xlu0 %2122
    %v2124 = vperm.slane %v2120, %v238
    %v2125 = vperm.slane %v2123, %v238
    %v2126 = vsel %vm241, %v2124, %v2124
    %v2127 = vsel %vm243, %v2124, %v2126
    %v2128 = vsel %vm245, %v2124, %v2127
    %v2129 = vsel %vm247, %v2124, %v2128
    %v2130 = vsel %vm249, %v2124, %v2129
    %v2131 = vsel %vm251, %v2124, %v2130
    %v2132 = vsel %vm241, %v2125, %v2125
    %v2133 = vsel %vm243, %v2125, %v2132
    %v2134 = vsel %vm245, %v2125, %v2133
    %v2135 = vsel %vm247, %v2125, %v2134
    %v2136 = vsel %vm249, %v2125, %v2135
    %v2137 = vsel %vm251, %v2125, %v2136
    %v2140 = vadd.f32 %v2111, %v2131
    %v2141 = vadd.f32 %v2116, %v2137
    %v2142 = vmul.f32 %v2140, 0.2
    %v2143 = vmul.f32 %v2141, 0.2
    %v2144 = vmax.f32 %v2140, %v2142
    %v2145 = vmax.f32 %v2141, %v2143
    %v2146 = vadd.f32 %v2144, %v104
    %v2147 = vadd.f32 %v2145, %v104
    %v2148 = vsel %vm269, %v2146, -inf
    %2149 = vmax.xlane.f32.xlu0 %v2148
    %v2150 = vpop.xlane.xlu0 %2149
    %v2151 = vsel %vm269, %v2147, -inf
    %2152 = vmax.xlane.f32.xlu0 %v2151
    %v2153 = vpop.xlane.xlu0 %2152
    %v2154 = vsub.f32 %v2146, %v2150
    %v2155 = vsub.f32 %v2147, %v2153
    %v2156 = vmul.f32 %v2154, 1.442695
    %v2157 = vpow.pop %v2156
    %v2158 = vmul.f32 %v2155, 1.442695
    %v2159 = vpow.pop %v2158
    %v2160 = vsel %vm269, %v2157, 0.0
    %2161 = vadd.xlane.f32.xlu0 %v2160
    %v2162 = vpop.xlane.xlu0 %2161
    %v2163 = vsel %vm269, %v2159, 0.0
    %2164 = vadd.xlane.f32.xlu0 %v2163
    %v2165 = vpop.xlane.xlu0 %2164
    %v2166 = vrcp.pop %v2162
    %v2167 = vmul.f32 %v2162, %v2166
    %v2168 = vsub.f32 1.0, %v2167
    %v2169 = vmul.f32 %v2166, %v2168
    %v2170 = vadd.f32 %v2166, %v2169
    %vm2171 = vweird.f32 %v2162
    %vm2172 = vweird.f32 %v2166
    %vm2173 = vmor %vm2171, %vm2172
    %v2174 = vsel %vm2173, %v2166, %v2170
    %v2175 = vand.u32 2147483647, %v2162
    %vm2176 = vcmp.eq.f32.partialorder %v2175, 8.507059e+37
    %v2177 = vand.u32 %v2162, 2147483648
    %v2178 = vor.u32 1.1754944e-38, %v2177
    %v2179 = vsel %vm2176, %v2178, %v2174
    %v2180 = vmul.f32 %v2157, %v2179
    %v2181 = vrcp.pop %v2165
    %v2182 = vmul.f32 %v2165, %v2181
    %v2183 = vsub.f32 1.0, %v2182
    %v2184 = vmul.f32 %v2181, %v2183
    %v2185 = vadd.f32 %v2181, %v2184
    %vm2186 = vweird.f32 %v2165
    %vm2187 = vweird.f32 %v2181
    %vm2188 = vmor %vm2186, %vm2187
    %v2189 = vsel %vm2188, %v2181, %v2185
    %v2190 = vand.u32 2147483647, %v2165
    %vm2191 = vcmp.eq.f32.partialorder %v2190, 8.507059e+37
    %v2192 = vand.u32 %v2165, 2147483648
    %v2193 = vor.u32 1.1754944e-38, %v2192
    %v2194 = vsel %vm2191, %v2193, %v2189
    %v2195 = vmul.f32 %v2159, %v2194
    %v2196 = vpack.c.bf16 %v2180, %v2180
    %v2197 = vpack.c.bf16 %v2195, %v2195
    %v2198 = vpack.c.bf16 %v2104, %v2104
    %v2199 = vpack.c.bf16 %v2106, %v2106
    %v2201 = vsel %vm269, %v2196, 0
    %v2204 = vsel %vm151, %v2198, 0
    %2206 = vmatpush.bf16.msra.mxu0 0
    %2207 = vmatpush.bf16.msra.mxu0 0
    %2208 = vmatpush.bf16.msra.mxu0 0
    %2209 = vmatpush.bf16.msra.mxu0 0
    %2210 = vmatpush.bf16.msra.mxu0 0
    %2211 = vmatpush.bf16.msra.mxu0 0
    %2212 = vmatpush.bf16.msra.mxu0 0
    %2213 = vmatpush.bf16.msra.mxu0 %v2204
    %2214 = vmatmul.bf16.gmra.mxu0 %v2201
    %v2215 = vpop.f32.mrf.mxu0
    %v2216 = vadd.f32 0.0, %v2215
    %v2217 = vpop.f32.mrf.mxu0
    %2218 = vdwg.mxu0
    %v2220 = vsel %vm269, %v2197, 0
    %v2223 = vsel %vm151, %v2199, 0
    %2225 = vmatpush.bf16.msra.mxu0 0
    %2226 = vmatpush.bf16.msra.mxu0 0
    %2227 = vmatpush.bf16.msra.mxu0 0
    %2228 = vmatpush.bf16.msra.mxu0 0
    %2229 = vmatpush.bf16.msra.mxu0 0
    %2230 = vmatpush.bf16.msra.mxu0 0
    %2231 = vmatpush.bf16.msra.mxu0 0
    %2232 = vmatpush.bf16.msra.mxu0 %v2223
    %2233 = vmatmul.bf16.gmra.mxu0 %v2220
    %v2234 = vpop.f32.mrf.mxu0
    %v2235 = vadd.f32 0.0, %v2234
    %v2236 = vpop.f32.mrf.mxu0
    %2237 = vdwg.mxu0
    %v2238 = vtanh.pop %v2216
    %v2239 = vtanh.pop %v2235
    %v2240 = vmul.f32 %v2238, 0.125
    %v2241 = vmul.f32 %v2239, 0.125
    %v2242 = vadd.f32 %v2088, %v2240
    %v2243 = vadd.f32 %v2089, %v2241
    %v2244 = vpack.c.bf16 %v2243, %v2242
    %v2246 = vsel %vm203, %v2244, 0
    %2248 = vmatpush.bf16.msra.mxu0 0
    %2249 = vmatpush.bf16.msra.mxu0 0
    %2250 = vmatpush.bf16.msra.mxu0 0
    %2251 = vmatpush.bf16.msra.mxu0 0
    %2252 = vmatpush.bf16.msra.mxu0 0
    %2253 = vmatpush.bf16.msra.mxu0 0
    %2254 = vmatpush.bf16.msra.mxu0 %v200
    %2255 = vmatpush.bf16.msra.mxu0 %v199
    %2256 = vmatmul.bf16.gmra.mxu0 %v2246
    %v2257 = vpop.f32.mrf.mxu0
    %v2258 = vadd.f32 0.0, %v2257
    %v2259 = vpop.f32.mrf.mxu0
    %v2260 = vadd.f32 0.0, %v2259
    %2261 = vdwg.mxu0
    %2263 = vset.pattern.permute.xlu0 32
    %2264 = vperm.xlu0 %2263, %v2258
    %v2265 = vpop.permute.xlu0 %2264
    %2268 = vset.pattern.permute.xlu0 32
    %2269 = vperm.xlu0 %2268, %v2260
    %v2270 = vpop.permute.xlu0 %2269
    %2272 = vset.pattern.permute.xlu0 33
    %2273 = vperm.xlu0 %2272, %v2258
    %v2274 = vpop.permute.xlu0 %2273
    %2275 = vset.pattern.permute.xlu0 33
    %2276 = vperm.xlu0 %2275, %v2260
    %v2277 = vpop.permute.xlu0 %2276
    %v2278 = vperm.slane %v2274, %v238
    %v2279 = vperm.slane %v2277, %v238
    %v2280 = vsel %vm241, %v2278, %v2278
    %v2281 = vsel %vm243, %v2278, %v2280
    %v2282 = vsel %vm245, %v2278, %v2281
    %v2283 = vsel %vm247, %v2278, %v2282
    %v2284 = vsel %vm249, %v2278, %v2283
    %v2285 = vsel %vm251, %v2278, %v2284
    %v2286 = vsel %vm241, %v2279, %v2279
    %v2287 = vsel %vm243, %v2279, %v2286
    %v2288 = vsel %vm245, %v2279, %v2287
    %v2289 = vsel %vm247, %v2279, %v2288
    %v2290 = vsel %vm249, %v2279, %v2289
    %v2291 = vsel %vm251, %v2279, %v2290
    %v2294 = vadd.f32 %v2265, %v2285
    %v2295 = vadd.f32 %v2270, %v2291
    %v2296 = vmul.f32 %v2294, 0.2
    %v2297 = vmul.f32 %v2295, 0.2
    %v2298 = vmax.f32 %v2294, %v2296
    %v2299 = vmax.f32 %v2295, %v2297
    %v2300 = vadd.f32 %v2298, %v104
    %v2301 = vadd.f32 %v2299, %v104
    %v2302 = vsel %vm269, %v2300, -inf
    %2303 = vmax.xlane.f32.xlu0 %v2302
    %v2304 = vpop.xlane.xlu0 %2303
    %v2305 = vsel %vm269, %v2301, -inf
    %2306 = vmax.xlane.f32.xlu0 %v2305
    %v2307 = vpop.xlane.xlu0 %2306
    %v2308 = vsub.f32 %v2300, %v2304
    %v2309 = vsub.f32 %v2301, %v2307
    %v2310 = vmul.f32 %v2308, 1.442695
    %v2311 = vpow.pop %v2310
    %v2312 = vmul.f32 %v2309, 1.442695
    %v2313 = vpow.pop %v2312
    %v2314 = vsel %vm269, %v2311, 0.0
    %2315 = vadd.xlane.f32.xlu0 %v2314
    %v2316 = vpop.xlane.xlu0 %2315
    %v2317 = vsel %vm269, %v2313, 0.0
    %2318 = vadd.xlane.f32.xlu0 %v2317
    %v2319 = vpop.xlane.xlu0 %2318
    %v2320 = vrcp.pop %v2316
    %v2321 = vmul.f32 %v2316, %v2320
    %v2322 = vsub.f32 1.0, %v2321
    %v2323 = vmul.f32 %v2320, %v2322
    %v2324 = vadd.f32 %v2320, %v2323
    %vm2325 = vweird.f32 %v2316
    %vm2326 = vweird.f32 %v2320
    %vm2327 = vmor %vm2325, %vm2326
    %v2328 = vsel %vm2327, %v2320, %v2324
    %v2329 = vand.u32 2147483647, %v2316
    %vm2330 = vcmp.eq.f32.partialorder %v2329, 8.507059e+37
    %v2331 = vand.u32 %v2316, 2147483648
    %v2332 = vor.u32 1.1754944e-38, %v2331
    %v2333 = vsel %vm2330, %v2332, %v2328
    %v2334 = vmul.f32 %v2311, %v2333
    %v2335 = vrcp.pop %v2319
    %v2336 = vmul.f32 %v2319, %v2335
    %v2337 = vsub.f32 1.0, %v2336
    %v2338 = vmul.f32 %v2335, %v2337
    %v2339 = vadd.f32 %v2335, %v2338
    %vm2340 = vweird.f32 %v2319
    %vm2341 = vweird.f32 %v2335
    %vm2342 = vmor %vm2340, %vm2341
    %v2343 = vsel %vm2342, %v2335, %v2339
    %v2344 = vand.u32 2147483647, %v2319
    %vm2345 = vcmp.eq.f32.partialorder %v2344, 8.507059e+37
    %v2346 = vand.u32 %v2319, 2147483648
    %v2347 = vor.u32 1.1754944e-38, %v2346
    %v2348 = vsel %vm2345, %v2347, %v2343
    %v2349 = vmul.f32 %v2313, %v2348
    %v2350 = vpack.c.bf16 %v2334, %v2334
    %v2351 = vpack.c.bf16 %v2349, %v2349
    %v2352 = vpack.c.bf16 %v2258, %v2258
    %v2353 = vpack.c.bf16 %v2260, %v2260
    %v2355 = vsel %vm269, %v2350, 0
    %v2358 = vsel %vm151, %v2352, 0
    %2360 = vmatpush.bf16.msra.mxu0 0
    %2361 = vmatpush.bf16.msra.mxu0 0
    %2362 = vmatpush.bf16.msra.mxu0 0
    %2363 = vmatpush.bf16.msra.mxu0 0
    %2364 = vmatpush.bf16.msra.mxu0 0
    %2365 = vmatpush.bf16.msra.mxu0 0
    %2366 = vmatpush.bf16.msra.mxu0 0
    %2367 = vmatpush.bf16.msra.mxu0 %v2358
    %2368 = vmatmul.bf16.gmra.mxu0 %v2355
    %v2369 = vpop.f32.mrf.mxu0
    %v2370 = vadd.f32 0.0, %v2369
    %v2371 = vpop.f32.mrf.mxu0
    %2372 = vdwg.mxu0
    %v2374 = vsel %vm269, %v2351, 0
    %v2377 = vsel %vm151, %v2353, 0
    %2379 = vmatpush.bf16.msra.mxu0 0
    %2380 = vmatpush.bf16.msra.mxu0 0
    %2381 = vmatpush.bf16.msra.mxu0 0
    %2382 = vmatpush.bf16.msra.mxu0 0
    %2383 = vmatpush.bf16.msra.mxu0 0
    %2384 = vmatpush.bf16.msra.mxu0 0
    %2385 = vmatpush.bf16.msra.mxu0 0
    %2386 = vmatpush.bf16.msra.mxu0 %v2377
    %2387 = vmatmul.bf16.gmra.mxu0 %v2374
    %v2388 = vpop.f32.mrf.mxu0
    %v2389 = vadd.f32 0.0, %v2388
    %v2390 = vpop.f32.mrf.mxu0
    %2391 = vdwg.mxu0
    %v2392 = vtanh.pop %v2370
    %v2393 = vtanh.pop %v2389
    %v2394 = vmul.f32 %v2392, 0.125
    %v2395 = vmul.f32 %v2393, 0.125
    %v2396 = vadd.f32 %v2088, %v2394
    %v2397 = vadd.f32 %v2089, %v2395
    %v2398 = vpack.c.bf16 %v2397, %v2396
    %v2400 = vsel %vm203, %v2398, 0
    %2402 = vmatpush.bf16.msra.mxu0 0
    %2403 = vmatpush.bf16.msra.mxu0 0
    %2404 = vmatpush.bf16.msra.mxu0 0
    %2405 = vmatpush.bf16.msra.mxu0 0
    %2406 = vmatpush.bf16.msra.mxu0 0
    %2407 = vmatpush.bf16.msra.mxu0 0
    %2408 = vmatpush.bf16.msra.mxu0 %v200
    %2409 = vmatpush.bf16.msra.mxu0 %v199
    %2410 = vmatmul.bf16.gmra.mxu0 %v2400
    %v2411 = vpop.f32.mrf.mxu0
    %v2412 = vadd.f32 0.0, %v2411
    %v2413 = vpop.f32.mrf.mxu0
    %v2414 = vadd.f32 0.0, %v2413
    %2415 = vdwg.mxu0
    %2417 = vset.pattern.permute.xlu0 32
    %2418 = vperm.xlu0 %2417, %v2412
    %v2419 = vpop.permute.xlu0 %2418
    %2422 = vset.pattern.permute.xlu0 32
    %2423 = vperm.xlu0 %2422, %v2414
    %v2424 = vpop.permute.xlu0 %2423
    %2426 = vset.pattern.permute.xlu0 33
    %2427 = vperm.xlu0 %2426, %v2412
    %v2428 = vpop.permute.xlu0 %2427
    %2429 = vset.pattern.permute.xlu0 33
    %2430 = vperm.xlu0 %2429, %v2414
    %v2431 = vpop.permute.xlu0 %2430
    %v2432 = vperm.slane %v2428, %v238
    %v2433 = vperm.slane %v2431, %v238
    %v2434 = vsel %vm241, %v2432, %v2432
    %v2435 = vsel %vm243, %v2432, %v2434
    %v2436 = vsel %vm245, %v2432, %v2435
    %v2437 = vsel %vm247, %v2432, %v2436
    %v2438 = vsel %vm249, %v2432, %v2437
    %v2439 = vsel %vm251, %v2432, %v2438
    %v2440 = vsel %vm241, %v2433, %v2433
    %v2441 = vsel %vm243, %v2433, %v2440
    %v2442 = vsel %vm245, %v2433, %v2441
    %v2443 = vsel %vm247, %v2433, %v2442
    %v2444 = vsel %vm249, %v2433, %v2443
    %v2445 = vsel %vm251, %v2433, %v2444
    %v2448 = vadd.f32 %v2419, %v2439
    %v2449 = vadd.f32 %v2424, %v2445
    %v2450 = vmul.f32 %v2448, 0.2
    %v2451 = vmul.f32 %v2449, 0.2
    %v2452 = vmax.f32 %v2448, %v2450
    %v2453 = vmax.f32 %v2449, %v2451
    %v2454 = vadd.f32 %v2452, %v104
    %v2455 = vadd.f32 %v2453, %v104
    %v2456 = vsel %vm269, %v2454, -inf
    %2457 = vmax.xlane.f32.xlu0 %v2456
    %v2458 = vpop.xlane.xlu0 %2457
    %v2459 = vsel %vm269, %v2455, -inf
    %2460 = vmax.xlane.f32.xlu0 %v2459
    %v2461 = vpop.xlane.xlu0 %2460
    %v2462 = vsub.f32 %v2454, %v2458
    %v2463 = vsub.f32 %v2455, %v2461
    %v2464 = vmul.f32 %v2462, 1.442695
    %v2465 = vpow.pop %v2464
    %v2466 = vmul.f32 %v2463, 1.442695
    %v2467 = vpow.pop %v2466
    %v2468 = vsel %vm269, %v2465, 0.0
    %2469 = vadd.xlane.f32.xlu0 %v2468
    %v2470 = vpop.xlane.xlu0 %2469
    %v2471 = vsel %vm269, %v2467, 0.0
    %2472 = vadd.xlane.f32.xlu0 %v2471
    %v2473 = vpop.xlane.xlu0 %2472
    %v2474 = vrcp.pop %v2470
    %v2475 = vmul.f32 %v2470, %v2474
    %v2476 = vsub.f32 1.0, %v2475
    %v2477 = vmul.f32 %v2474, %v2476
    %v2478 = vadd.f32 %v2474, %v2477
    %vm2479 = vweird.f32 %v2470
    %vm2480 = vweird.f32 %v2474
    %vm2481 = vmor %vm2479, %vm2480
    %v2482 = vsel %vm2481, %v2474, %v2478
    %v2483 = vand.u32 2147483647, %v2470
    %vm2484 = vcmp.eq.f32.partialorder %v2483, 8.507059e+37
    %v2485 = vand.u32 %v2470, 2147483648
    %v2486 = vor.u32 1.1754944e-38, %v2485
    %v2487 = vsel %vm2484, %v2486, %v2482
    %v2488 = vmul.f32 %v2465, %v2487
    %v2489 = vrcp.pop %v2473
    %v2490 = vmul.f32 %v2473, %v2489
    %v2491 = vsub.f32 1.0, %v2490
    %v2492 = vmul.f32 %v2489, %v2491
    %v2493 = vadd.f32 %v2489, %v2492
    %vm2494 = vweird.f32 %v2473
    %vm2495 = vweird.f32 %v2489
    %vm2496 = vmor %vm2494, %vm2495
    %v2497 = vsel %vm2496, %v2489, %v2493
    %v2498 = vand.u32 2147483647, %v2473
    %vm2499 = vcmp.eq.f32.partialorder %v2498, 8.507059e+37
    %v2500 = vand.u32 %v2473, 2147483648
    %v2501 = vor.u32 1.1754944e-38, %v2500
    %v2502 = vsel %vm2499, %v2501, %v2497
    %v2503 = vmul.f32 %v2467, %v2502
    %v2504 = vpack.c.bf16 %v2488, %v2488
    %v2505 = vpack.c.bf16 %v2503, %v2503
    %v2506 = vpack.c.bf16 %v2412, %v2412
    %v2507 = vpack.c.bf16 %v2414, %v2414
    %v2509 = vsel %vm269, %v2504, 0
    %v2512 = vsel %vm151, %v2506, 0
    %2514 = vmatpush.bf16.msra.mxu0 0
    %2515 = vmatpush.bf16.msra.mxu0 0
    %2516 = vmatpush.bf16.msra.mxu0 0
    %2517 = vmatpush.bf16.msra.mxu0 0
    %2518 = vmatpush.bf16.msra.mxu0 0
    %2519 = vmatpush.bf16.msra.mxu0 0
    %2520 = vmatpush.bf16.msra.mxu0 0
    %2521 = vmatpush.bf16.msra.mxu0 %v2512
    %2522 = vmatmul.bf16.gmra.mxu0 %v2509
    %v2523 = vpop.f32.mrf.mxu0
    %v2524 = vadd.f32 0.0, %v2523
    %v2525 = vpop.f32.mrf.mxu0
    %2526 = vdwg.mxu0
    %v2528 = vsel %vm269, %v2505, 0
    %v2531 = vsel %vm151, %v2507, 0
    %2533 = vmatpush.bf16.msra.mxu0 0
    %2534 = vmatpush.bf16.msra.mxu0 0
    %2535 = vmatpush.bf16.msra.mxu0 0
    %2536 = vmatpush.bf16.msra.mxu0 0
    %2537 = vmatpush.bf16.msra.mxu0 0
    %2538 = vmatpush.bf16.msra.mxu0 0
    %2539 = vmatpush.bf16.msra.mxu0 0
    %2540 = vmatpush.bf16.msra.mxu0 %v2531
    %2541 = vmatmul.bf16.gmra.mxu0 %v2528
    %v2542 = vpop.f32.mrf.mxu0
    %v2543 = vadd.f32 0.0, %v2542
    %v2544 = vpop.f32.mrf.mxu0
    %2545 = vdwg.mxu0
    %v2546 = vtanh.pop %v2524
    %v2547 = vtanh.pop %v2543
    %v2548 = vmul.f32 %v2546, 0.25
    %v2549 = vmul.f32 %v2547, 0.25
    %v2550 = vadd.f32 %v2088, %v2548
    %v2551 = vadd.f32 %v2089, %v2549
    %v2552 = vpack.c.bf16 %v2551, %v2550
    %v2554 = vsel %vm203, %v2552, 0
    %2556 = vmatpush.bf16.msra.mxu0 0
    %2557 = vmatpush.bf16.msra.mxu0 0
    %2558 = vmatpush.bf16.msra.mxu0 0
    %2559 = vmatpush.bf16.msra.mxu0 0
    %2560 = vmatpush.bf16.msra.mxu0 0
    %2561 = vmatpush.bf16.msra.mxu0 0
    %2562 = vmatpush.bf16.msra.mxu0 %v200
    %2563 = vmatpush.bf16.msra.mxu0 %v199
    %2564 = vmatmul.bf16.gmra.mxu0 %v2554
    %v2565 = vpop.f32.mrf.mxu0
    %v2566 = vadd.f32 0.0, %v2565
    %v2567 = vpop.f32.mrf.mxu0
    %v2568 = vadd.f32 0.0, %v2567
    %2569 = vdwg.mxu0
    %2571 = vset.pattern.permute.xlu0 32
    %2572 = vperm.xlu0 %2571, %v2566
    %v2573 = vpop.permute.xlu0 %2572
    %2576 = vset.pattern.permute.xlu0 32
    %2577 = vperm.xlu0 %2576, %v2568
    %v2578 = vpop.permute.xlu0 %2577
    %2580 = vset.pattern.permute.xlu0 33
    %2581 = vperm.xlu0 %2580, %v2566
    %v2582 = vpop.permute.xlu0 %2581
    %2583 = vset.pattern.permute.xlu0 33
    %2584 = vperm.xlu0 %2583, %v2568
    %v2585 = vpop.permute.xlu0 %2584
    %v2586 = vperm.slane %v2582, %v238
    %v2587 = vperm.slane %v2585, %v238
    %v2588 = vsel %vm241, %v2586, %v2586
    %v2589 = vsel %vm243, %v2586, %v2588
    %v2590 = vsel %vm245, %v2586, %v2589
    %v2591 = vsel %vm247, %v2586, %v2590
    %v2592 = vsel %vm249, %v2586, %v2591
    %v2593 = vsel %vm251, %v2586, %v2592
    %v2594 = vsel %vm241, %v2587, %v2587
    %v2595 = vsel %vm243, %v2587, %v2594
    %v2596 = vsel %vm245, %v2587, %v2595
    %v2597 = vsel %vm247, %v2587, %v2596
    %v2598 = vsel %vm249, %v2587, %v2597
    %v2599 = vsel %vm251, %v2587, %v2598
    %v2602 = vadd.f32 %v2573, %v2593
    %v2603 = vadd.f32 %v2578, %v2599
    %v2604 = vmul.f32 %v2602, 0.2
    %v2605 = vmul.f32 %v2603, 0.2
    %v2606 = vmax.f32 %v2602, %v2604
    %v2607 = vmax.f32 %v2603, %v2605
    %v2608 = vadd.f32 %v2606, %v104
    %v2609 = vadd.f32 %v2607, %v104
    %v2610 = vsel %vm269, %v2608, -inf
    %2611 = vmax.xlane.f32.xlu0 %v2610
    %v2612 = vpop.xlane.xlu0 %2611
    %v2613 = vsel %vm269, %v2609, -inf
    %2614 = vmax.xlane.f32.xlu0 %v2613
    %v2615 = vpop.xlane.xlu0 %2614
    %v2616 = vsub.f32 %v2608, %v2612
    %v2617 = vsub.f32 %v2609, %v2615
    %v2618 = vmul.f32 %v2616, 1.442695
    %v2619 = vpow.pop %v2618
    %v2620 = vmul.f32 %v2617, 1.442695
    %v2621 = vpow.pop %v2620
    %v2622 = vsel %vm269, %v2619, 0.0
    %2623 = vadd.xlane.f32.xlu0 %v2622
    %v2624 = vpop.xlane.xlu0 %2623
    %v2625 = vsel %vm269, %v2621, 0.0
    %2626 = vadd.xlane.f32.xlu0 %v2625
    %v2627 = vpop.xlane.xlu0 %2626
    %v2628 = vrcp.pop %v2624
    %v2629 = vmul.f32 %v2624, %v2628
    %v2630 = vsub.f32 1.0, %v2629
    %v2631 = vmul.f32 %v2628, %v2630
    %v2632 = vadd.f32 %v2628, %v2631
    %vm2633 = vweird.f32 %v2624
    %vm2634 = vweird.f32 %v2628
    %vm2635 = vmor %vm2633, %vm2634
    %v2636 = vsel %vm2635, %v2628, %v2632
    %v2637 = vand.u32 2147483647, %v2624
    %vm2638 = vcmp.eq.f32.partialorder %v2637, 8.507059e+37
    %v2639 = vand.u32 %v2624, 2147483648
    %v2640 = vor.u32 1.1754944e-38, %v2639
    %v2641 = vsel %vm2638, %v2640, %v2636
    %v2642 = vmul.f32 %v2619, %v2641
    %v2643 = vrcp.pop %v2627
    %v2644 = vmul.f32 %v2627, %v2643
    %v2645 = vsub.f32 1.0, %v2644
    %v2646 = vmul.f32 %v2643, %v2645
    %v2647 = vadd.f32 %v2643, %v2646
    %vm2648 = vweird.f32 %v2627
    %vm2649 = vweird.f32 %v2643
    %vm2650 = vmor %vm2648, %vm2649
    %v2651 = vsel %vm2650, %v2643, %v2647
    %v2652 = vand.u32 2147483647, %v2627
    %vm2653 = vcmp.eq.f32.partialorder %v2652, 8.507059e+37
    %v2654 = vand.u32 %v2627, 2147483648
    %v2655 = vor.u32 1.1754944e-38, %v2654
    %v2656 = vsel %vm2653, %v2655, %v2651
    %v2657 = vmul.f32 %v2621, %v2656
    %v2658 = vpack.c.bf16 %v2642, %v2642
    %v2659 = vpack.c.bf16 %v2657, %v2657
    %v2660 = vpack.c.bf16 %v2566, %v2566
    %v2661 = vpack.c.bf16 %v2568, %v2568
    %v2663 = vsel %vm269, %v2658, 0
    %v2666 = vsel %vm151, %v2660, 0
    %2668 = vmatpush.bf16.msra.mxu0 0
    %2669 = vmatpush.bf16.msra.mxu0 0
    %2670 = vmatpush.bf16.msra.mxu0 0
    %2671 = vmatpush.bf16.msra.mxu0 0
    %2672 = vmatpush.bf16.msra.mxu0 0
    %2673 = vmatpush.bf16.msra.mxu0 0
    %2674 = vmatpush.bf16.msra.mxu0 0
    %2675 = vmatpush.bf16.msra.mxu0 %v2666
    %2676 = vmatmul.bf16.gmra.mxu0 %v2663
    %v2677 = vpop.f32.mrf.mxu0
    %v2678 = vadd.f32 0.0, %v2677
    %v2679 = vpop.f32.mrf.mxu0
    %2680 = vdwg.mxu0
    %v2682 = vsel %vm269, %v2659, 0
    %v2685 = vsel %vm151, %v2661, 0
    %2687 = vmatpush.bf16.msra.mxu0 0
    %2688 = vmatpush.bf16.msra.mxu0 0
    %2689 = vmatpush.bf16.msra.mxu0 0
    %2690 = vmatpush.bf16.msra.mxu0 0
    %2691 = vmatpush.bf16.msra.mxu0 0
    %2692 = vmatpush.bf16.msra.mxu0 0
    %2693 = vmatpush.bf16.msra.mxu0 0
    %2694 = vmatpush.bf16.msra.mxu0 %v2685
    %2695 = vmatmul.bf16.gmra.mxu0 %v2682
    %v2696 = vpop.f32.mrf.mxu0
    %v2697 = vadd.f32 0.0, %v2696
    %v2698 = vpop.f32.mrf.mxu0
    %2699 = vdwg.mxu0
    %v2700 = vtanh.pop %v2678
    %v2701 = vtanh.pop %v2697
    %v2702 = vmul.f32 %v2392, 2.0
    %v2703 = vmul.f32 %v2393, 2.0
    %v2704 = vadd.f32 %v2238, %v2702
    %v2705 = vadd.f32 %v2239, %v2703
    %v2706 = vmul.f32 %v2546, 2.0
    %v2707 = vmul.f32 %v2547, 2.0
    %v2708 = vadd.f32 %v2704, %v2706
    %v2709 = vadd.f32 %v2705, %v2707
    %v2710 = vadd.f32 %v2708, %v2700
    %v2711 = vadd.f32 %v2709, %v2701
    %v2712 = vmul.f32 %v2710, 0.041666668
    %v2713 = vmul.f32 %v2711, 0.041666668
    %v2714 = vadd.f32 %v2088, %v2712
    %v2715 = vadd.f32 %v2089, %v2713
    %v2716 = vsel %vm203, %v2714, 0.0
    %2717 = vadd.xlane.f32.xlu0 %v2716
    %v2718 = vpop.xlane.xlu0 %2717
    %v2719 = vsel %vm203, %v2715, 0.0
    %2720 = vadd.xlane.f32.xlu0 %v2719
    %v2721 = vpop.xlane.xlu0 %2720
    %v2722 = vrcp.pop 32.0
    %v2723 = vmul.f32 32.0, %v2722
    %v2724 = vsub.f32 1.0, %v2723
    %v2725 = vmul.f32 %v2722, %v2724
    %v2726 = vadd.f32 %v2722, %v2725
    %vm2727 = vweird.f32 %v2722
    %v2728 = vsel %vm2727, %v2722, %v2726
    %v2729 = vmul.f32 %v2718, %v2728
    %v2730 = vmul.f32 %v2721, %v2728
    %v2731 = vsub.f32 %v2714, %v2729
    %v2732 = vsub.f32 %v2715, %v2730
    %v2733 = vmul.f32 %v2731, %v2731
    %v2734 = vmul.f32 %v2732, %v2732
    %v2735 = vsel %vm203, %v2733, 0.0
    %2736 = vadd.xlane.f32.xlu0 %v2735
    %v2737 = vpop.xlane.xlu0 %2736
    %v2738 = vsel %vm203, %v2734, 0.0
    %2739 = vadd.xlane.f32.xlu0 %v2738
    %v2740 = vpop.xlane.xlu0 %2739
    %v2741 = vmul.f32 %v2737, %v2728
    %v2742 = vmul.f32 %v2740, %v2728
    %v2743 = vadd.f32 %v2741, 1e-05
    %v2744 = vadd.f32 %v2742, 1e-05
    %v2745 = vrsqrt.pop %v2743
    %v2746 = vmul.f32 %v2745, %v2743
    %v2747 = vmul.f32 %v2746, %v2745
    %v2748 = vmul.f32 0.5, %v2747
    %v2749 = vsub.f32 1.5, %v2748
    %v2750 = vmul.f32 %v2745, %v2749
    %vm2751 = vweird.f32 %v2743
    %vm2752 = vweird.f32 %v2745
    %vm2753 = vmor %vm2751, %vm2752
    %v2754 = vsel %vm2753, %v2745, %v2750
    %v2755 = vrsqrt.pop %v2744
    %v2756 = vmul.f32 %v2755, %v2744
    %v2757 = vmul.f32 %v2756, %v2755
    %v2758 = vmul.f32 0.5, %v2757
    %v2759 = vsub.f32 1.5, %v2758
    %v2760 = vmul.f32 %v2755, %v2759
    %vm2761 = vweird.f32 %v2744
    %vm2762 = vweird.f32 %v2755
    %vm2763 = vmor %vm2761, %vm2762
    %v2764 = vsel %vm2763, %v2755, %v2760
    %v2765 = vmul.f32 %v2731, %v2754
    %v2766 = vmul.f32 %v2732, %v2764
    %v2767 = vpack.c.bf16 %v2766, %v2765
    %v2769 = vsel %vm203, %v2767, 0
    %2771 = vmatpush.bf16.msra.mxu0 0
    %2772 = vmatpush.bf16.msra.mxu0 0
    %2773 = vmatpush.bf16.msra.mxu0 0
    %2774 = vmatpush.bf16.msra.mxu0 0
    %2775 = vmatpush.bf16.msra.mxu0 0
    %2776 = vmatpush.bf16.msra.mxu0 0
    %2777 = vmatpush.bf16.msra.mxu0 %v200
    %2778 = vmatpush.bf16.msra.mxu0 %v199
    %2779 = vmatmul.bf16.gmra.mxu0 %v2769
    %v2780 = vpop.f32.mrf.mxu0
    %v2781 = vadd.f32 0.0, %v2780
    %v2782 = vpop.f32.mrf.mxu0
    %v2783 = vadd.f32 0.0, %v2782
    %2784 = vdwg.mxu0
    %2786 = vset.pattern.permute.xlu0 32
    %2787 = vperm.xlu0 %2786, %v2781
    %v2788 = vpop.permute.xlu0 %2787
    %2791 = vset.pattern.permute.xlu0 32
    %2792 = vperm.xlu0 %2791, %v2783
    %v2793 = vpop.permute.xlu0 %2792
    %2795 = vset.pattern.permute.xlu0 33
    %2796 = vperm.xlu0 %2795, %v2781
    %v2797 = vpop.permute.xlu0 %2796
    %2798 = vset.pattern.permute.xlu0 33
    %2799 = vperm.xlu0 %2798, %v2783
    %v2800 = vpop.permute.xlu0 %2799
    %v2801 = vperm.slane %v2797, %v238
    %v2802 = vperm.slane %v2800, %v238
    %v2803 = vsel %vm241, %v2801, %v2801
    %v2804 = vsel %vm243, %v2801, %v2803
    %v2805 = vsel %vm245, %v2801, %v2804
    %v2806 = vsel %vm247, %v2801, %v2805
    %v2807 = vsel %vm249, %v2801, %v2806
    %v2808 = vsel %vm251, %v2801, %v2807
    %v2809 = vsel %vm241, %v2802, %v2802
    %v2810 = vsel %vm243, %v2802, %v2809
    %v2811 = vsel %vm245, %v2802, %v2810
    %v2812 = vsel %vm247, %v2802, %v2811
    %v2813 = vsel %vm249, %v2802, %v2812
    %v2814 = vsel %vm251, %v2802, %v2813
    %v2817 = vadd.f32 %v2788, %v2808
    %v2818 = vadd.f32 %v2793, %v2814
    %v2819 = vmul.f32 %v2817, 0.2
    %v2820 = vmul.f32 %v2818, 0.2
    %v2821 = vmax.f32 %v2817, %v2819
    %v2822 = vmax.f32 %v2818, %v2820
    %v2823 = vadd.f32 %v2821, %v104
    %v2824 = vadd.f32 %v2822, %v104
    %v2825 = vsel %vm269, %v2823, -inf
    %2826 = vmax.xlane.f32.xlu0 %v2825
    %v2827 = vpop.xlane.xlu0 %2826
    %v2828 = vsel %vm269, %v2824, -inf
    %2829 = vmax.xlane.f32.xlu0 %v2828
    %v2830 = vpop.xlane.xlu0 %2829
    %v2831 = vsub.f32 %v2823, %v2827
    %v2832 = vsub.f32 %v2824, %v2830
    %v2833 = vmul.f32 %v2831, 1.442695
    %v2834 = vpow.pop %v2833
    %v2835 = vmul.f32 %v2832, 1.442695
    %v2836 = vpow.pop %v2835
    %v2837 = vsel %vm269, %v2834, 0.0
    %2838 = vadd.xlane.f32.xlu0 %v2837
    %v2839 = vpop.xlane.xlu0 %2838
    %v2840 = vsel %vm269, %v2836, 0.0
    %2841 = vadd.xlane.f32.xlu0 %v2840
    %v2842 = vpop.xlane.xlu0 %2841
    %v2843 = vrcp.pop %v2839
    %v2844 = vmul.f32 %v2839, %v2843
    %v2845 = vsub.f32 1.0, %v2844
    %v2846 = vmul.f32 %v2843, %v2845
    %v2847 = vadd.f32 %v2843, %v2846
    %vm2848 = vweird.f32 %v2839
    %vm2849 = vweird.f32 %v2843
    %vm2850 = vmor %vm2848, %vm2849
    %v2851 = vsel %vm2850, %v2843, %v2847
    %v2852 = vand.u32 2147483647, %v2839
    %vm2853 = vcmp.eq.f32.partialorder %v2852, 8.507059e+37
    %v2854 = vand.u32 %v2839, 2147483648
    %v2855 = vor.u32 1.1754944e-38, %v2854
    %v2856 = vsel %vm2853, %v2855, %v2851
    %v2857 = vmul.f32 %v2834, %v2856
    %v2858 = vrcp.pop %v2842
    %v2859 = vmul.f32 %v2842, %v2858
    %v2860 = vsub.f32 1.0, %v2859
    %v2861 = vmul.f32 %v2858, %v2860
    %v2862 = vadd.f32 %v2858, %v2861
    %vm2863 = vweird.f32 %v2842
    %vm2864 = vweird.f32 %v2858
    %vm2865 = vmor %vm2863, %vm2864
    %v2866 = vsel %vm2865, %v2858, %v2862
    %v2867 = vand.u32 2147483647, %v2842
    %vm2868 = vcmp.eq.f32.partialorder %v2867, 8.507059e+37
    %v2869 = vand.u32 %v2842, 2147483648
    %v2870 = vor.u32 1.1754944e-38, %v2869
    %v2871 = vsel %vm2868, %v2870, %v2866
    %v2872 = vmul.f32 %v2836, %v2871
    %v2873 = vpack.c.bf16 %v2857, %v2857
    %v2874 = vpack.c.bf16 %v2872, %v2872
    %v2875 = vpack.c.bf16 %v2781, %v2781
    %v2876 = vpack.c.bf16 %v2783, %v2783
    %v2878 = vsel %vm269, %v2873, 0
    %v2881 = vsel %vm151, %v2875, 0
    %2883 = vmatpush.bf16.msra.mxu0 0
    %2884 = vmatpush.bf16.msra.mxu0 0
    %2885 = vmatpush.bf16.msra.mxu0 0
    %2886 = vmatpush.bf16.msra.mxu0 0
    %2887 = vmatpush.bf16.msra.mxu0 0
    %2888 = vmatpush.bf16.msra.mxu0 0
    %2889 = vmatpush.bf16.msra.mxu0 0
    %2890 = vmatpush.bf16.msra.mxu0 %v2881
    %2891 = vmatmul.bf16.gmra.mxu0 %v2878
    %v2892 = vpop.f32.mrf.mxu0
    %v2893 = vadd.f32 0.0, %v2892
    %v2894 = vpop.f32.mrf.mxu0
    %2895 = vdwg.mxu0
    %v2897 = vsel %vm269, %v2874, 0
    %v2900 = vsel %vm151, %v2876, 0
    %2902 = vmatpush.bf16.msra.mxu0 0
    %2903 = vmatpush.bf16.msra.mxu0 0
    %2904 = vmatpush.bf16.msra.mxu0 0
    %2905 = vmatpush.bf16.msra.mxu0 0
    %2906 = vmatpush.bf16.msra.mxu0 0
    %2907 = vmatpush.bf16.msra.mxu0 0
    %2908 = vmatpush.bf16.msra.mxu0 0
    %2909 = vmatpush.bf16.msra.mxu0 %v2900
    %2910 = vmatmul.bf16.gmra.mxu0 %v2897
    %v2911 = vpop.f32.mrf.mxu0
    %v2912 = vadd.f32 0.0, %v2911
    %v2913 = vpop.f32.mrf.mxu0
    %2914 = vdwg.mxu0
    %v2915 = vtanh.pop %v2893
    %v2916 = vtanh.pop %v2912
    %v2917 = vmul.f32 %v2915, 0.125
    %v2918 = vmul.f32 %v2916, 0.125
    %v2919 = vadd.f32 %v2765, %v2917
    %v2920 = vadd.f32 %v2766, %v2918
    %v2921 = vpack.c.bf16 %v2920, %v2919
    %v2923 = vsel %vm203, %v2921, 0
    %2925 = vmatpush.bf16.msra.mxu0 0
    %2926 = vmatpush.bf16.msra.mxu0 0
    %2927 = vmatpush.bf16.msra.mxu0 0
    %2928 = vmatpush.bf16.msra.mxu0 0
    %2929 = vmatpush.bf16.msra.mxu0 0
    %2930 = vmatpush.bf16.msra.mxu0 0
    %2931 = vmatpush.bf16.msra.mxu0 %v200
    %2932 = vmatpush.bf16.msra.mxu0 %v199
    %2933 = vmatmul.bf16.gmra.mxu0 %v2923
    %v2934 = vpop.f32.mrf.mxu0
    %v2935 = vadd.f32 0.0, %v2934
    %v2936 = vpop.f32.mrf.mxu0
    %v2937 = vadd.f32 0.0, %v2936
    %2938 = vdwg.mxu0
    %2940 = vset.pattern.permute.xlu0 32
    %2941 = vperm.xlu0 %2940, %v2935
    %v2942 = vpop.permute.xlu0 %2941
    %2945 = vset.pattern.permute.xlu0 32
    %2946 = vperm.xlu0 %2945, %v2937
    %v2947 = vpop.permute.xlu0 %2946
    %2949 = vset.pattern.permute.xlu0 33
    %2950 = vperm.xlu0 %2949, %v2935
    %v2951 = vpop.permute.xlu0 %2950
    %2952 = vset.pattern.permute.xlu0 33
    %2953 = vperm.xlu0 %2952, %v2937
    %v2954 = vpop.permute.xlu0 %2953
    %v2955 = vperm.slane %v2951, %v238
    %v2956 = vperm.slane %v2954, %v238
    %v2957 = vsel %vm241, %v2955, %v2955
    %v2958 = vsel %vm243, %v2955, %v2957
    %v2959 = vsel %vm245, %v2955, %v2958
    %v2960 = vsel %vm247, %v2955, %v2959
    %v2961 = vsel %vm249, %v2955, %v2960
    %v2962 = vsel %vm251, %v2955, %v2961
    %v2963 = vsel %vm241, %v2956, %v2956
    %v2964 = vsel %vm243, %v2956, %v2963
    %v2965 = vsel %vm245, %v2956, %v2964
    %v2966 = vsel %vm247, %v2956, %v2965
    %v2967 = vsel %vm249, %v2956, %v2966
    %v2968 = vsel %vm251, %v2956, %v2967
    %v2971 = vadd.f32 %v2942, %v2962
    %v2972 = vadd.f32 %v2947, %v2968
    %v2973 = vmul.f32 %v2971, 0.2
    %v2974 = vmul.f32 %v2972, 0.2
    %v2975 = vmax.f32 %v2971, %v2973
    %v2976 = vmax.f32 %v2972, %v2974
    %v2977 = vadd.f32 %v2975, %v104
    %v2978 = vadd.f32 %v2976, %v104
    %v2979 = vsel %vm269, %v2977, -inf
    %2980 = vmax.xlane.f32.xlu0 %v2979
    %v2981 = vpop.xlane.xlu0 %2980
    %v2982 = vsel %vm269, %v2978, -inf
    %2983 = vmax.xlane.f32.xlu0 %v2982
    %v2984 = vpop.xlane.xlu0 %2983
    %v2985 = vsub.f32 %v2977, %v2981
    %v2986 = vsub.f32 %v2978, %v2984
    %v2987 = vmul.f32 %v2985, 1.442695
    %v2988 = vpow.pop %v2987
    %v2989 = vmul.f32 %v2986, 1.442695
    %v2990 = vpow.pop %v2989
    %v2991 = vsel %vm269, %v2988, 0.0
    %2992 = vadd.xlane.f32.xlu0 %v2991
    %v2993 = vpop.xlane.xlu0 %2992
    %v2994 = vsel %vm269, %v2990, 0.0
    %2995 = vadd.xlane.f32.xlu0 %v2994
    %v2996 = vpop.xlane.xlu0 %2995
    %v2997 = vrcp.pop %v2993
    %v2998 = vmul.f32 %v2993, %v2997
    %v2999 = vsub.f32 1.0, %v2998
    %v3000 = vmul.f32 %v2997, %v2999
    %v3001 = vadd.f32 %v2997, %v3000
    %vm3002 = vweird.f32 %v2993
    %vm3003 = vweird.f32 %v2997
    %vm3004 = vmor %vm3002, %vm3003
    %v3005 = vsel %vm3004, %v2997, %v3001
    %v3006 = vand.u32 2147483647, %v2993
    %vm3007 = vcmp.eq.f32.partialorder %v3006, 8.507059e+37
    %v3008 = vand.u32 %v2993, 2147483648
    %v3009 = vor.u32 1.1754944e-38, %v3008
    %v3010 = vsel %vm3007, %v3009, %v3005
    %v3011 = vmul.f32 %v2988, %v3010
    %v3012 = vrcp.pop %v2996
    %v3013 = vmul.f32 %v2996, %v3012
    %v3014 = vsub.f32 1.0, %v3013
    %v3015 = vmul.f32 %v3012, %v3014
    %v3016 = vadd.f32 %v3012, %v3015
    %vm3017 = vweird.f32 %v2996
    %vm3018 = vweird.f32 %v3012
    %vm3019 = vmor %vm3017, %vm3018
    %v3020 = vsel %vm3019, %v3012, %v3016
    %v3021 = vand.u32 2147483647, %v2996
    %vm3022 = vcmp.eq.f32.partialorder %v3021, 8.507059e+37
    %v3023 = vand.u32 %v2996, 2147483648
    %v3024 = vor.u32 1.1754944e-38, %v3023
    %v3025 = vsel %vm3022, %v3024, %v3020
    %v3026 = vmul.f32 %v2990, %v3025
    %v3027 = vpack.c.bf16 %v3011, %v3011
    %v3028 = vpack.c.bf16 %v3026, %v3026
    %v3029 = vpack.c.bf16 %v2935, %v2935
    %v3030 = vpack.c.bf16 %v2937, %v2937
    %v3032 = vsel %vm269, %v3027, 0
    %v3035 = vsel %vm151, %v3029, 0
    %3037 = vmatpush.bf16.msra.mxu0 0
    %3038 = vmatpush.bf16.msra.mxu0 0
    %3039 = vmatpush.bf16.msra.mxu0 0
    %3040 = vmatpush.bf16.msra.mxu0 0
    %3041 = vmatpush.bf16.msra.mxu0 0
    %3042 = vmatpush.bf16.msra.mxu0 0
    %3043 = vmatpush.bf16.msra.mxu0 0
    %3044 = vmatpush.bf16.msra.mxu0 %v3035
    %3045 = vmatmul.bf16.gmra.mxu0 %v3032
    %v3046 = vpop.f32.mrf.mxu0
    %v3047 = vadd.f32 0.0, %v3046
    %v3048 = vpop.f32.mrf.mxu0
    %3049 = vdwg.mxu0
    %v3051 = vsel %vm269, %v3028, 0
    %v3054 = vsel %vm151, %v3030, 0
    %3056 = vmatpush.bf16.msra.mxu0 0
    %3057 = vmatpush.bf16.msra.mxu0 0
    %3058 = vmatpush.bf16.msra.mxu0 0
    %3059 = vmatpush.bf16.msra.mxu0 0
    %3060 = vmatpush.bf16.msra.mxu0 0
    %3061 = vmatpush.bf16.msra.mxu0 0
    %3062 = vmatpush.bf16.msra.mxu0 0
    %3063 = vmatpush.bf16.msra.mxu0 %v3054
    %3064 = vmatmul.bf16.gmra.mxu0 %v3051
    %v3065 = vpop.f32.mrf.mxu0
    %v3066 = vadd.f32 0.0, %v3065
    %v3067 = vpop.f32.mrf.mxu0
    %3068 = vdwg.mxu0
    %v3069 = vtanh.pop %v3047
    %v3070 = vtanh.pop %v3066
    %v3071 = vmul.f32 %v3069, 0.125
    %v3072 = vmul.f32 %v3070, 0.125
    %v3073 = vadd.f32 %v2765, %v3071
    %v3074 = vadd.f32 %v2766, %v3072
    %v3075 = vpack.c.bf16 %v3074, %v3073
    %v3077 = vsel %vm203, %v3075, 0
    %3079 = vmatpush.bf16.msra.mxu0 0
    %3080 = vmatpush.bf16.msra.mxu0 0
    %3081 = vmatpush.bf16.msra.mxu0 0
    %3082 = vmatpush.bf16.msra.mxu0 0
    %3083 = vmatpush.bf16.msra.mxu0 0
    %3084 = vmatpush.bf16.msra.mxu0 0
    %3085 = vmatpush.bf16.msra.mxu0 %v200
    %3086 = vmatpush.bf16.msra.mxu0 %v199
    %3087 = vmatmul.bf16.gmra.mxu0 %v3077
    %v3088 = vpop.f32.mrf.mxu0
    %v3089 = vadd.f32 0.0, %v3088
    %v3090 = vpop.f32.mrf.mxu0
    %v3091 = vadd.f32 0.0, %v3090
    %3092 = vdwg.mxu0
    %3094 = vset.pattern.permute.xlu0 32
    %3095 = vperm.xlu0 %3094, %v3089
    %v3096 = vpop.permute.xlu0 %3095
    %3099 = vset.pattern.permute.xlu0 32
    %3100 = vperm.xlu0 %3099, %v3091
    %v3101 = vpop.permute.xlu0 %3100
    %3103 = vset.pattern.permute.xlu0 33
    %3104 = vperm.xlu0 %3103, %v3089
    %v3105 = vpop.permute.xlu0 %3104
    %3106 = vset.pattern.permute.xlu0 33
    %3107 = vperm.xlu0 %3106, %v3091
    %v3108 = vpop.permute.xlu0 %3107
    %v3109 = vperm.slane %v3105, %v238
    %v3110 = vperm.slane %v3108, %v238
    %v3111 = vsel %vm241, %v3109, %v3109
    %v3112 = vsel %vm243, %v3109, %v3111
    %v3113 = vsel %vm245, %v3109, %v3112
    %v3114 = vsel %vm247, %v3109, %v3113
    %v3115 = vsel %vm249, %v3109, %v3114
    %v3116 = vsel %vm251, %v3109, %v3115
    %v3117 = vsel %vm241, %v3110, %v3110
    %v3118 = vsel %vm243, %v3110, %v3117
    %v3119 = vsel %vm245, %v3110, %v3118
    %v3120 = vsel %vm247, %v3110, %v3119
    %v3121 = vsel %vm249, %v3110, %v3120
    %v3122 = vsel %vm251, %v3110, %v3121
    %v3125 = vadd.f32 %v3096, %v3116
    %v3126 = vadd.f32 %v3101, %v3122
    %v3127 = vmul.f32 %v3125, 0.2
    %v3128 = vmul.f32 %v3126, 0.2
    %v3129 = vmax.f32 %v3125, %v3127
    %v3130 = vmax.f32 %v3126, %v3128
    %v3131 = vadd.f32 %v3129, %v104
    %v3132 = vadd.f32 %v3130, %v104
    %v3133 = vsel %vm269, %v3131, -inf
    %3134 = vmax.xlane.f32.xlu0 %v3133
    %v3135 = vpop.xlane.xlu0 %3134
    %v3136 = vsel %vm269, %v3132, -inf
    %3137 = vmax.xlane.f32.xlu0 %v3136
    %v3138 = vpop.xlane.xlu0 %3137
    %v3139 = vsub.f32 %v3131, %v3135
    %v3140 = vsub.f32 %v3132, %v3138
    %v3141 = vmul.f32 %v3139, 1.442695
    %v3142 = vpow.pop %v3141
    %v3143 = vmul.f32 %v3140, 1.442695
    %v3144 = vpow.pop %v3143
    %v3145 = vsel %vm269, %v3142, 0.0
    %3146 = vadd.xlane.f32.xlu0 %v3145
    %v3147 = vpop.xlane.xlu0 %3146
    %v3148 = vsel %vm269, %v3144, 0.0
    %3149 = vadd.xlane.f32.xlu0 %v3148
    %v3150 = vpop.xlane.xlu0 %3149
    %v3151 = vrcp.pop %v3147
    %v3152 = vmul.f32 %v3147, %v3151
    %v3153 = vsub.f32 1.0, %v3152
    %v3154 = vmul.f32 %v3151, %v3153
    %v3155 = vadd.f32 %v3151, %v3154
    %vm3156 = vweird.f32 %v3147
    %vm3157 = vweird.f32 %v3151
    %vm3158 = vmor %vm3156, %vm3157
    %v3159 = vsel %vm3158, %v3151, %v3155
    %v3160 = vand.u32 2147483647, %v3147
    %vm3161 = vcmp.eq.f32.partialorder %v3160, 8.507059e+37
    %v3162 = vand.u32 %v3147, 2147483648
    %v3163 = vor.u32 1.1754944e-38, %v3162
    %v3164 = vsel %vm3161, %v3163, %v3159
    %v3165 = vmul.f32 %v3142, %v3164
    %v3166 = vrcp.pop %v3150
    %v3167 = vmul.f32 %v3150, %v3166
    %v3168 = vsub.f32 1.0, %v3167
    %v3169 = vmul.f32 %v3166, %v3168
    %v3170 = vadd.f32 %v3166, %v3169
    %vm3171 = vweird.f32 %v3150
    %vm3172 = vweird.f32 %v3166
    %vm3173 = vmor %vm3171, %vm3172
    %v3174 = vsel %vm3173, %v3166, %v3170
    %v3175 = vand.u32 2147483647, %v3150
    %vm3176 = vcmp.eq.f32.partialorder %v3175, 8.507059e+37
    %v3177 = vand.u32 %v3150, 2147483648
    %v3178 = vor.u32 1.1754944e-38, %v3177
    %v3179 = vsel %vm3176, %v3178, %v3174
    %v3180 = vmul.f32 %v3144, %v3179
    %v3181 = vpack.c.bf16 %v3165, %v3165
    %v3182 = vpack.c.bf16 %v3180, %v3180
    %v3183 = vpack.c.bf16 %v3089, %v3089
    %v3184 = vpack.c.bf16 %v3091, %v3091
    %v3186 = vsel %vm269, %v3181, 0
    %v3189 = vsel %vm151, %v3183, 0
    %3191 = vmatpush.bf16.msra.mxu0 0
    %3192 = vmatpush.bf16.msra.mxu0 0
    %3193 = vmatpush.bf16.msra.mxu0 0
    %3194 = vmatpush.bf16.msra.mxu0 0
    %3195 = vmatpush.bf16.msra.mxu0 0
    %3196 = vmatpush.bf16.msra.mxu0 0
    %3197 = vmatpush.bf16.msra.mxu0 0
    %3198 = vmatpush.bf16.msra.mxu0 %v3189
    %3199 = vmatmul.bf16.gmra.mxu0 %v3186
    %v3200 = vpop.f32.mrf.mxu0
    %v3201 = vadd.f32 0.0, %v3200
    %v3202 = vpop.f32.mrf.mxu0
    %3203 = vdwg.mxu0
    %v3205 = vsel %vm269, %v3182, 0
    %v3208 = vsel %vm151, %v3184, 0
    %3210 = vmatpush.bf16.msra.mxu0 0
    %3211 = vmatpush.bf16.msra.mxu0 0
    %3212 = vmatpush.bf16.msra.mxu0 0
    %3213 = vmatpush.bf16.msra.mxu0 0
    %3214 = vmatpush.bf16.msra.mxu0 0
    %3215 = vmatpush.bf16.msra.mxu0 0
    %3216 = vmatpush.bf16.msra.mxu0 0
    %3217 = vmatpush.bf16.msra.mxu0 %v3208
    %3218 = vmatmul.bf16.gmra.mxu0 %v3205
    %v3219 = vpop.f32.mrf.mxu0
    %v3220 = vadd.f32 0.0, %v3219
    %v3221 = vpop.f32.mrf.mxu0
    %3222 = vdwg.mxu0
    %v3223 = vtanh.pop %v3201
    %v3224 = vtanh.pop %v3220
    %v3225 = vmul.f32 %v3223, 0.25
    %v3226 = vmul.f32 %v3224, 0.25
    %v3227 = vadd.f32 %v2765, %v3225
    %v3228 = vadd.f32 %v2766, %v3226
    %v3229 = vpack.c.bf16 %v3228, %v3227
    %v3231 = vsel %vm203, %v3229, 0
    %3233 = vmatpush.bf16.msra.mxu0 0
    %3234 = vmatpush.bf16.msra.mxu0 0
    %3235 = vmatpush.bf16.msra.mxu0 0
    %3236 = vmatpush.bf16.msra.mxu0 0
    %3237 = vmatpush.bf16.msra.mxu0 0
    %3238 = vmatpush.bf16.msra.mxu0 0
    %3239 = vmatpush.bf16.msra.mxu0 %v200
    %3240 = vmatpush.bf16.msra.mxu0 %v199
    %3241 = vmatmul.bf16.gmra.mxu0 %v3231
    %v3242 = vpop.f32.mrf.mxu0
    %v3243 = vadd.f32 0.0, %v3242
    %v3244 = vpop.f32.mrf.mxu0
    %v3245 = vadd.f32 0.0, %v3244
    %3246 = vdwg.mxu0
    %3248 = vset.pattern.permute.xlu0 32
    %3249 = vperm.xlu0 %3248, %v3243
    %v3250 = vpop.permute.xlu0 %3249
    %3253 = vset.pattern.permute.xlu0 32
    %3254 = vperm.xlu0 %3253, %v3245
    %v3255 = vpop.permute.xlu0 %3254
    %3257 = vset.pattern.permute.xlu0 33
    %3258 = vperm.xlu0 %3257, %v3243
    %v3259 = vpop.permute.xlu0 %3258
    %3260 = vset.pattern.permute.xlu0 33
    %3261 = vperm.xlu0 %3260, %v3245
    %v3262 = vpop.permute.xlu0 %3261
    %v3263 = vperm.slane %v3259, %v238
    %v3264 = vperm.slane %v3262, %v238
    %v3265 = vsel %vm241, %v3263, %v3263
    %v3266 = vsel %vm243, %v3263, %v3265
    %v3267 = vsel %vm245, %v3263, %v3266
    %v3268 = vsel %vm247, %v3263, %v3267
    %v3269 = vsel %vm249, %v3263, %v3268
    %v3270 = vsel %vm251, %v3263, %v3269
    %v3271 = vsel %vm241, %v3264, %v3264
    %v3272 = vsel %vm243, %v3264, %v3271
    %v3273 = vsel %vm245, %v3264, %v3272
    %v3274 = vsel %vm247, %v3264, %v3273
    %v3275 = vsel %vm249, %v3264, %v3274
    %v3276 = vsel %vm251, %v3264, %v3275
    %v3279 = vadd.f32 %v3250, %v3270
    %v3280 = vadd.f32 %v3255, %v3276
    %v3281 = vmul.f32 %v3279, 0.2
    %v3282 = vmul.f32 %v3280, 0.2
    %v3283 = vmax.f32 %v3279, %v3281
    %v3284 = vmax.f32 %v3280, %v3282
    %v3285 = vadd.f32 %v3283, %v104
    %v3286 = vadd.f32 %v3284, %v104
    %v3287 = vsel %vm269, %v3285, -inf
    %3288 = vmax.xlane.f32.xlu0 %v3287
    %v3289 = vpop.xlane.xlu0 %3288
    %v3290 = vsel %vm269, %v3286, -inf
    %3291 = vmax.xlane.f32.xlu0 %v3290
    %v3292 = vpop.xlane.xlu0 %3291
    %v3293 = vsub.f32 %v3285, %v3289
    %v3294 = vsub.f32 %v3286, %v3292
    %v3295 = vmul.f32 %v3293, 1.442695
    %v3296 = vpow.pop %v3295
    %v3297 = vmul.f32 %v3294, 1.442695
    %v3298 = vpow.pop %v3297
    %v3299 = vsel %vm269, %v3296, 0.0
    %3300 = vadd.xlane.f32.xlu0 %v3299
    %v3301 = vpop.xlane.xlu0 %3300
    %v3302 = vsel %vm269, %v3298, 0.0
    %3303 = vadd.xlane.f32.xlu0 %v3302
    %v3304 = vpop.xlane.xlu0 %3303
    %v3305 = vrcp.pop %v3301
    %v3306 = vmul.f32 %v3301, %v3305
    %v3307 = vsub.f32 1.0, %v3306
    %v3308 = vmul.f32 %v3305, %v3307
    %v3309 = vadd.f32 %v3305, %v3308
    %vm3310 = vweird.f32 %v3301
    %vm3311 = vweird.f32 %v3305
    %vm3312 = vmor %vm3310, %vm3311
    %v3313 = vsel %vm3312, %v3305, %v3309
    %v3314 = vand.u32 2147483647, %v3301
    %vm3315 = vcmp.eq.f32.partialorder %v3314, 8.507059e+37
    %v3316 = vand.u32 %v3301, 2147483648
    %v3317 = vor.u32 1.1754944e-38, %v3316
    %v3318 = vsel %vm3315, %v3317, %v3313
    %v3319 = vmul.f32 %v3296, %v3318
    %v3320 = vrcp.pop %v3304
    %v3321 = vmul.f32 %v3304, %v3320
    %v3322 = vsub.f32 1.0, %v3321
    %v3323 = vmul.f32 %v3320, %v3322
    %v3324 = vadd.f32 %v3320, %v3323
    %vm3325 = vweird.f32 %v3304
    %vm3326 = vweird.f32 %v3320
    %vm3327 = vmor %vm3325, %vm3326
    %v3328 = vsel %vm3327, %v3320, %v3324
    %v3329 = vand.u32 2147483647, %v3304
    %vm3330 = vcmp.eq.f32.partialorder %v3329, 8.507059e+37
    %v3331 = vand.u32 %v3304, 2147483648
    %v3332 = vor.u32 1.1754944e-38, %v3331
    %v3333 = vsel %vm3330, %v3332, %v3328
    %v3334 = vmul.f32 %v3298, %v3333
    %v3335 = vpack.c.bf16 %v3319, %v3319
    %v3336 = vpack.c.bf16 %v3334, %v3334
    %v3337 = vpack.c.bf16 %v3243, %v3243
    %v3338 = vpack.c.bf16 %v3245, %v3245
    %v3340 = vsel %vm269, %v3335, 0
    %v3343 = vsel %vm151, %v3337, 0
    %3345 = vmatpush.bf16.msra.mxu0 0
    %3346 = vmatpush.bf16.msra.mxu0 0
    %3347 = vmatpush.bf16.msra.mxu0 0
    %3348 = vmatpush.bf16.msra.mxu0 0
    %3349 = vmatpush.bf16.msra.mxu0 0
    %3350 = vmatpush.bf16.msra.mxu0 0
    %3351 = vmatpush.bf16.msra.mxu0 0
    %3352 = vmatpush.bf16.msra.mxu0 %v3343
    %3353 = vmatmul.bf16.gmra.mxu0 %v3340
    %v3354 = vpop.f32.mrf.mxu0
    %v3355 = vadd.f32 0.0, %v3354
    %v3356 = vpop.f32.mrf.mxu0
    %3357 = vdwg.mxu0
    %v3359 = vsel %vm269, %v3336, 0
    %v3362 = vsel %vm151, %v3338, 0
    %3364 = vmatpush.bf16.msra.mxu0 0
    %3365 = vmatpush.bf16.msra.mxu0 0
    %3366 = vmatpush.bf16.msra.mxu0 0
    %3367 = vmatpush.bf16.msra.mxu0 0
    %3368 = vmatpush.bf16.msra.mxu0 0
    %3369 = vmatpush.bf16.msra.mxu0 0
    %3370 = vmatpush.bf16.msra.mxu0 0
    %3371 = vmatpush.bf16.msra.mxu0 %v3362
    %3372 = vmatmul.bf16.gmra.mxu0 %v3359
    %v3373 = vpop.f32.mrf.mxu0
    %v3374 = vadd.f32 0.0, %v3373
    %v3375 = vpop.f32.mrf.mxu0
    %3376 = vdwg.mxu0
    %v3377 = vtanh.pop %v3355
    %v3378 = vtanh.pop %v3374
    %v3379 = vmul.f32 %v3069, 2.0
    %v3380 = vmul.f32 %v3070, 2.0
    %v3381 = vadd.f32 %v2915, %v3379
    %v3382 = vadd.f32 %v2916, %v3380
    %v3383 = vmul.f32 %v3223, 2.0
    %v3384 = vmul.f32 %v3224, 2.0
    %v3385 = vadd.f32 %v3381, %v3383
    %v3386 = vadd.f32 %v3382, %v3384
    %v3387 = vadd.f32 %v3385, %v3377
    %v3388 = vadd.f32 %v3386, %v3378
    %v3389 = vmul.f32 %v3387, 0.041666668
    %v3390 = vmul.f32 %v3388, 0.041666668
    %v3391 = vadd.f32 %v2765, %v3389
    %v3392 = vadd.f32 %v2766, %v3390
    %v3393 = vpack.c.bf16 %v3392, %v3391
    %v3395 = vsel %vm203, %v3393, 0
    %3397 = vmatpush.bf16.msra.mxu0 0
    %3398 = vmatpush.bf16.msra.mxu0 0
    %3399 = vmatpush.bf16.msra.mxu0 0
    %3400 = vmatpush.bf16.msra.mxu0 0
    %3401 = vmatpush.bf16.msra.mxu0 0
    %3402 = vmatpush.bf16.msra.mxu0 0
    %3403 = vmatpush.bf16.msra.mxu0 %v200
    %3404 = vmatpush.bf16.msra.mxu0 %v199
    %3405 = vmatmul.bf16.gmra.mxu0 %v3395
    %v3406 = vpop.f32.mrf.mxu0
    %v3407 = vadd.f32 0.0, %v3406
    %v3408 = vpop.f32.mrf.mxu0
    %v3409 = vadd.f32 0.0, %v3408
    %3410 = vdwg.mxu0
    %3412 = vset.pattern.permute.xlu0 32
    %3413 = vperm.xlu0 %3412, %v3407
    %v3414 = vpop.permute.xlu0 %3413
    %3417 = vset.pattern.permute.xlu0 32
    %3418 = vperm.xlu0 %3417, %v3409
    %v3419 = vpop.permute.xlu0 %3418
    %3421 = vset.pattern.permute.xlu0 33
    %3422 = vperm.xlu0 %3421, %v3407
    %v3423 = vpop.permute.xlu0 %3422
    %3424 = vset.pattern.permute.xlu0 33
    %3425 = vperm.xlu0 %3424, %v3409
    %v3426 = vpop.permute.xlu0 %3425
    %v3427 = vperm.slane %v3423, %v238
    %v3428 = vperm.slane %v3426, %v238
    %v3429 = vsel %vm241, %v3427, %v3427
    %v3430 = vsel %vm243, %v3427, %v3429
    %v3431 = vsel %vm245, %v3427, %v3430
    %v3432 = vsel %vm247, %v3427, %v3431
    %v3433 = vsel %vm249, %v3427, %v3432
    %v3434 = vsel %vm251, %v3427, %v3433
    %v3435 = vsel %vm241, %v3428, %v3428
    %v3436 = vsel %vm243, %v3428, %v3435
    %v3437 = vsel %vm245, %v3428, %v3436
    %v3438 = vsel %vm247, %v3428, %v3437
    %v3439 = vsel %vm249, %v3428, %v3438
    %v3440 = vsel %vm251, %v3428, %v3439
    %v3443 = vadd.f32 %v3414, %v3434
    %v3444 = vadd.f32 %v3419, %v3440
    %v3445 = vmul.f32 %v3443, 0.2
    %v3446 = vmul.f32 %v3444, 0.2
    %v3447 = vmax.f32 %v3443, %v3445
    %v3448 = vmax.f32 %v3444, %v3446
    %v3449 = vadd.f32 %v3447, %v104
    %v3450 = vadd.f32 %v3448, %v104
    %v3451 = vsel %vm269, %v3449, -inf
    %3452 = vmax.xlane.f32.xlu0 %v3451
    %v3453 = vpop.xlane.xlu0 %3452
    %v3454 = vsel %vm269, %v3450, -inf
    %3455 = vmax.xlane.f32.xlu0 %v3454
    %v3456 = vpop.xlane.xlu0 %3455
    %v3457 = vsub.f32 %v3449, %v3453
    %v3458 = vsub.f32 %v3450, %v3456
    %v3459 = vmul.f32 %v3457, 1.442695
    %v3460 = vpow.pop %v3459
    %v3461 = vmul.f32 %v3458, 1.442695
    %v3462 = vpow.pop %v3461
    %v3463 = vsel %vm269, %v3460, 0.0
    %3464 = vadd.xlane.f32.xlu0 %v3463
    %v3465 = vpop.xlane.xlu0 %3464
    %v3466 = vsel %vm269, %v3462, 0.0
    %3467 = vadd.xlane.f32.xlu0 %v3466
    %v3468 = vpop.xlane.xlu0 %3467
    %v3469 = vrcp.pop %v3465
    %v3470 = vmul.f32 %v3465, %v3469
    %v3471 = vsub.f32 1.0, %v3470
    %v3472 = vmul.f32 %v3469, %v3471
    %v3473 = vadd.f32 %v3469, %v3472
    %vm3474 = vweird.f32 %v3465
    %vm3475 = vweird.f32 %v3469
    %vm3476 = vmor %vm3474, %vm3475
    %v3477 = vsel %vm3476, %v3469, %v3473
    %v3478 = vand.u32 2147483647, %v3465
    %vm3479 = vcmp.eq.f32.partialorder %v3478, 8.507059e+37
    %v3480 = vand.u32 %v3465, 2147483648
    %v3481 = vor.u32 1.1754944e-38, %v3480
    %v3482 = vsel %vm3479, %v3481, %v3477
    %v3483 = vmul.f32 %v3460, %v3482
    %v3484 = vrcp.pop %v3468
    %v3485 = vmul.f32 %v3468, %v3484
    %v3486 = vsub.f32 1.0, %v3485
    %v3487 = vmul.f32 %v3484, %v3486
    %v3488 = vadd.f32 %v3484, %v3487
    %vm3489 = vweird.f32 %v3468
    %vm3490 = vweird.f32 %v3484
    %vm3491 = vmor %vm3489, %vm3490
    %v3492 = vsel %vm3491, %v3484, %v3488
    %v3493 = vand.u32 2147483647, %v3468
    %vm3494 = vcmp.eq.f32.partialorder %v3493, 8.507059e+37
    %v3495 = vand.u32 %v3468, 2147483648
    %v3496 = vor.u32 1.1754944e-38, %v3495
    %v3497 = vsel %vm3494, %v3496, %v3492
    %v3498 = vmul.f32 %v3462, %v3497
    %v3499 = vpack.c.bf16 %v3483, %v3483
    %v3500 = vpack.c.bf16 %v3498, %v3498
    %v3501 = vpack.c.bf16 %v3407, %v3407
    %v3502 = vpack.c.bf16 %v3409, %v3409
    %v3504 = vsel %vm269, %v3499, 0
    %v3507 = vsel %vm151, %v3501, 0
    %3509 = vmatpush.bf16.msra.mxu0 0
    %3510 = vmatpush.bf16.msra.mxu0 0
    %3511 = vmatpush.bf16.msra.mxu0 0
    %3512 = vmatpush.bf16.msra.mxu0 0
    %3513 = vmatpush.bf16.msra.mxu0 0
    %3514 = vmatpush.bf16.msra.mxu0 0
    %3515 = vmatpush.bf16.msra.mxu0 0
    %3516 = vmatpush.bf16.msra.mxu0 %v3507
    %3517 = vmatmul.bf16.gmra.mxu0 %v3504
    %v3518 = vpop.f32.mrf.mxu0
    %v3519 = vadd.f32 0.0, %v3518
    %v3520 = vpop.f32.mrf.mxu0
    %3521 = vdwg.mxu0
    %v3523 = vsel %vm269, %v3500, 0
    %v3526 = vsel %vm151, %v3502, 0
    %3528 = vmatpush.bf16.msra.mxu0 0
    %3529 = vmatpush.bf16.msra.mxu0 0
    %3530 = vmatpush.bf16.msra.mxu0 0
    %3531 = vmatpush.bf16.msra.mxu0 0
    %3532 = vmatpush.bf16.msra.mxu0 0
    %3533 = vmatpush.bf16.msra.mxu0 0
    %3534 = vmatpush.bf16.msra.mxu0 0
    %3535 = vmatpush.bf16.msra.mxu0 %v3526
    %3536 = vmatmul.bf16.gmra.mxu0 %v3523
    %v3537 = vpop.f32.mrf.mxu0
    %v3538 = vadd.f32 0.0, %v3537
    %v3539 = vpop.f32.mrf.mxu0
    %3540 = vdwg.mxu0
    %v3541 = vtanh.pop %v3519
    %v3542 = vtanh.pop %v3538
    %v3543 = vmul.f32 %v3541, 0.125
    %v3544 = vmul.f32 %v3542, 0.125
    %v3545 = vadd.f32 %v3391, %v3543
    %v3546 = vadd.f32 %v3392, %v3544
    %v3547 = vpack.c.bf16 %v3546, %v3545
    %v3549 = vsel %vm203, %v3547, 0
    %3551 = vmatpush.bf16.msra.mxu0 0
    %3552 = vmatpush.bf16.msra.mxu0 0
    %3553 = vmatpush.bf16.msra.mxu0 0
    %3554 = vmatpush.bf16.msra.mxu0 0
    %3555 = vmatpush.bf16.msra.mxu0 0
    %3556 = vmatpush.bf16.msra.mxu0 0
    %3557 = vmatpush.bf16.msra.mxu0 %v200
    %3558 = vmatpush.bf16.msra.mxu0 %v199
    %3559 = vmatmul.bf16.gmra.mxu0 %v3549
    %v3560 = vpop.f32.mrf.mxu0
    %v3561 = vadd.f32 0.0, %v3560
    %v3562 = vpop.f32.mrf.mxu0
    %v3563 = vadd.f32 0.0, %v3562
    %3564 = vdwg.mxu0
    %3566 = vset.pattern.permute.xlu0 32
    %3567 = vperm.xlu0 %3566, %v3561
    %v3568 = vpop.permute.xlu0 %3567
    %3571 = vset.pattern.permute.xlu0 32
    %3572 = vperm.xlu0 %3571, %v3563
    %v3573 = vpop.permute.xlu0 %3572
    %3575 = vset.pattern.permute.xlu0 33
    %3576 = vperm.xlu0 %3575, %v3561
    %v3577 = vpop.permute.xlu0 %3576
    %3578 = vset.pattern.permute.xlu0 33
    %3579 = vperm.xlu0 %3578, %v3563
    %v3580 = vpop.permute.xlu0 %3579
    %v3581 = vperm.slane %v3577, %v238
    %v3582 = vperm.slane %v3580, %v238
    %v3583 = vsel %vm241, %v3581, %v3581
    %v3584 = vsel %vm243, %v3581, %v3583
    %v3585 = vsel %vm245, %v3581, %v3584
    %v3586 = vsel %vm247, %v3581, %v3585
    %v3587 = vsel %vm249, %v3581, %v3586
    %v3588 = vsel %vm251, %v3581, %v3587
    %v3589 = vsel %vm241, %v3582, %v3582
    %v3590 = vsel %vm243, %v3582, %v3589
    %v3591 = vsel %vm245, %v3582, %v3590
    %v3592 = vsel %vm247, %v3582, %v3591
    %v3593 = vsel %vm249, %v3582, %v3592
    %v3594 = vsel %vm251, %v3582, %v3593
    %v3597 = vadd.f32 %v3568, %v3588
    %v3598 = vadd.f32 %v3573, %v3594
    %v3599 = vmul.f32 %v3597, 0.2
    %v3600 = vmul.f32 %v3598, 0.2
    %v3601 = vmax.f32 %v3597, %v3599
    %v3602 = vmax.f32 %v3598, %v3600
    %v3603 = vadd.f32 %v3601, %v104
    %v3604 = vadd.f32 %v3602, %v104
    %v3605 = vsel %vm269, %v3603, -inf
    %3606 = vmax.xlane.f32.xlu0 %v3605
    %v3607 = vpop.xlane.xlu0 %3606
    %v3608 = vsel %vm269, %v3604, -inf
    %3609 = vmax.xlane.f32.xlu0 %v3608
    %v3610 = vpop.xlane.xlu0 %3609
    %v3611 = vsub.f32 %v3603, %v3607
    %v3612 = vsub.f32 %v3604, %v3610
    %v3613 = vmul.f32 %v3611, 1.442695
    %v3614 = vpow.pop %v3613
    %v3615 = vmul.f32 %v3612, 1.442695
    %v3616 = vpow.pop %v3615
    %v3617 = vsel %vm269, %v3614, 0.0
    %3618 = vadd.xlane.f32.xlu0 %v3617
    %v3619 = vpop.xlane.xlu0 %3618
    %v3620 = vsel %vm269, %v3616, 0.0
    %3621 = vadd.xlane.f32.xlu0 %v3620
    %v3622 = vpop.xlane.xlu0 %3621
    %v3623 = vrcp.pop %v3619
    %v3624 = vmul.f32 %v3619, %v3623
    %v3625 = vsub.f32 1.0, %v3624
    %v3626 = vmul.f32 %v3623, %v3625
    %v3627 = vadd.f32 %v3623, %v3626
    %vm3628 = vweird.f32 %v3619
    %vm3629 = vweird.f32 %v3623
    %vm3630 = vmor %vm3628, %vm3629
    %v3631 = vsel %vm3630, %v3623, %v3627
    %v3632 = vand.u32 2147483647, %v3619
    %vm3633 = vcmp.eq.f32.partialorder %v3632, 8.507059e+37
    %v3634 = vand.u32 %v3619, 2147483648
    %v3635 = vor.u32 1.1754944e-38, %v3634
    %v3636 = vsel %vm3633, %v3635, %v3631
    %v3637 = vmul.f32 %v3614, %v3636
    %v3638 = vrcp.pop %v3622
    %v3639 = vmul.f32 %v3622, %v3638
    %v3640 = vsub.f32 1.0, %v3639
    %v3641 = vmul.f32 %v3638, %v3640
    %v3642 = vadd.f32 %v3638, %v3641
    %vm3643 = vweird.f32 %v3622
    %vm3644 = vweird.f32 %v3638
    %vm3645 = vmor %vm3643, %vm3644
    %v3646 = vsel %vm3645, %v3638, %v3642
    %v3647 = vand.u32 2147483647, %v3622
    %vm3648 = vcmp.eq.f32.partialorder %v3647, 8.507059e+37
    %v3649 = vand.u32 %v3622, 2147483648
    %v3650 = vor.u32 1.1754944e-38, %v3649
    %v3651 = vsel %vm3648, %v3650, %v3646
    %v3652 = vmul.f32 %v3616, %v3651
    %v3653 = vpack.c.bf16 %v3637, %v3637
    %v3654 = vpack.c.bf16 %v3652, %v3652
    %v3655 = vpack.c.bf16 %v3561, %v3561
    %v3656 = vpack.c.bf16 %v3563, %v3563
    %v3658 = vsel %vm269, %v3653, 0
    %v3661 = vsel %vm151, %v3655, 0
    %3663 = vmatpush.bf16.msra.mxu0 0
    %3664 = vmatpush.bf16.msra.mxu0 0
    %3665 = vmatpush.bf16.msra.mxu0 0
    %3666 = vmatpush.bf16.msra.mxu0 0
    %3667 = vmatpush.bf16.msra.mxu0 0
    %3668 = vmatpush.bf16.msra.mxu0 0
    %3669 = vmatpush.bf16.msra.mxu0 0
    %3670 = vmatpush.bf16.msra.mxu0 %v3661
    %3671 = vmatmul.bf16.gmra.mxu0 %v3658
    %v3672 = vpop.f32.mrf.mxu0
    %v3673 = vadd.f32 0.0, %v3672
    %v3674 = vpop.f32.mrf.mxu0
    %3675 = vdwg.mxu0
    %v3677 = vsel %vm269, %v3654, 0
    %v3680 = vsel %vm151, %v3656, 0
    %3682 = vmatpush.bf16.msra.mxu0 0
    %3683 = vmatpush.bf16.msra.mxu0 0
    %3684 = vmatpush.bf16.msra.mxu0 0
    %3685 = vmatpush.bf16.msra.mxu0 0
    %3686 = vmatpush.bf16.msra.mxu0 0
    %3687 = vmatpush.bf16.msra.mxu0 0
    %3688 = vmatpush.bf16.msra.mxu0 0
    %3689 = vmatpush.bf16.msra.mxu0 %v3680
    %3690 = vmatmul.bf16.gmra.mxu0 %v3677
    %v3691 = vpop.f32.mrf.mxu0
    %v3692 = vadd.f32 0.0, %v3691
    %v3693 = vpop.f32.mrf.mxu0
    %3694 = vdwg.mxu0
    %v3695 = vtanh.pop %v3673
    %v3696 = vtanh.pop %v3692
    %v3697 = vmul.f32 %v3695, 0.125
    %v3698 = vmul.f32 %v3696, 0.125
    %v3699 = vadd.f32 %v3391, %v3697
    %v3700 = vadd.f32 %v3392, %v3698
    %v3701 = vpack.c.bf16 %v3700, %v3699
    %v3703 = vsel %vm203, %v3701, 0
    %3705 = vmatpush.bf16.msra.mxu0 0
    %3706 = vmatpush.bf16.msra.mxu0 0
    %3707 = vmatpush.bf16.msra.mxu0 0
    %3708 = vmatpush.bf16.msra.mxu0 0
    %3709 = vmatpush.bf16.msra.mxu0 0
    %3710 = vmatpush.bf16.msra.mxu0 0
    %3711 = vmatpush.bf16.msra.mxu0 %v200
    %3712 = vmatpush.bf16.msra.mxu0 %v199
    %3713 = vmatmul.bf16.gmra.mxu0 %v3703
    %v3714 = vpop.f32.mrf.mxu0
    %v3715 = vadd.f32 0.0, %v3714
    %v3716 = vpop.f32.mrf.mxu0
    %v3717 = vadd.f32 0.0, %v3716
    %3718 = vdwg.mxu0
    %3720 = vset.pattern.permute.xlu0 32
    %3721 = vperm.xlu0 %3720, %v3715
    %v3722 = vpop.permute.xlu0 %3721
    %3725 = vset.pattern.permute.xlu0 32
    %3726 = vperm.xlu0 %3725, %v3717
    %v3727 = vpop.permute.xlu0 %3726
    %3729 = vset.pattern.permute.xlu0 33
    %3730 = vperm.xlu0 %3729, %v3715
    %v3731 = vpop.permute.xlu0 %3730
    %3732 = vset.pattern.permute.xlu0 33
    %3733 = vperm.xlu0 %3732, %v3717
    %v3734 = vpop.permute.xlu0 %3733
    %v3735 = vperm.slane %v3731, %v238
    %v3736 = vperm.slane %v3734, %v238
    %v3737 = vsel %vm241, %v3735, %v3735
    %v3738 = vsel %vm243, %v3735, %v3737
    %v3739 = vsel %vm245, %v3735, %v3738
    %v3740 = vsel %vm247, %v3735, %v3739
    %v3741 = vsel %vm249, %v3735, %v3740
    %v3742 = vsel %vm251, %v3735, %v3741
    %v3743 = vsel %vm241, %v3736, %v3736
    %v3744 = vsel %vm243, %v3736, %v3743
    %v3745 = vsel %vm245, %v3736, %v3744
    %v3746 = vsel %vm247, %v3736, %v3745
    %v3747 = vsel %vm249, %v3736, %v3746
    %v3748 = vsel %vm251, %v3736, %v3747
    %v3751 = vadd.f32 %v3722, %v3742
    %v3752 = vadd.f32 %v3727, %v3748
    %v3753 = vmul.f32 %v3751, 0.2
    %v3754 = vmul.f32 %v3752, 0.2
    %v3755 = vmax.f32 %v3751, %v3753
    %v3756 = vmax.f32 %v3752, %v3754
    %v3757 = vadd.f32 %v3755, %v104
    %v3758 = vadd.f32 %v3756, %v104
    %v3759 = vsel %vm269, %v3757, -inf
    %3760 = vmax.xlane.f32.xlu0 %v3759
    %v3761 = vpop.xlane.xlu0 %3760
    %v3762 = vsel %vm269, %v3758, -inf
    %3763 = vmax.xlane.f32.xlu0 %v3762
    %v3764 = vpop.xlane.xlu0 %3763
    %v3765 = vsub.f32 %v3757, %v3761
    %v3766 = vsub.f32 %v3758, %v3764
    %v3767 = vmul.f32 %v3765, 1.442695
    %v3768 = vpow.pop %v3767
    %v3769 = vmul.f32 %v3766, 1.442695
    %v3770 = vpow.pop %v3769
    %v3771 = vsel %vm269, %v3768, 0.0
    %3772 = vadd.xlane.f32.xlu0 %v3771
    %v3773 = vpop.xlane.xlu0 %3772
    %v3774 = vsel %vm269, %v3770, 0.0
    %3775 = vadd.xlane.f32.xlu0 %v3774
    %v3776 = vpop.xlane.xlu0 %3775
    %v3777 = vrcp.pop %v3773
    %v3778 = vmul.f32 %v3773, %v3777
    %v3779 = vsub.f32 1.0, %v3778
    %v3780 = vmul.f32 %v3777, %v3779
    %v3781 = vadd.f32 %v3777, %v3780
    %vm3782 = vweird.f32 %v3773
    %vm3783 = vweird.f32 %v3777
    %vm3784 = vmor %vm3782, %vm3783
    %v3785 = vsel %vm3784, %v3777, %v3781
    %v3786 = vand.u32 2147483647, %v3773
    %vm3787 = vcmp.eq.f32.partialorder %v3786, 8.507059e+37
    %v3788 = vand.u32 %v3773, 2147483648
    %v3789 = vor.u32 1.1754944e-38, %v3788
    %v3790 = vsel %vm3787, %v3789, %v3785
    %v3791 = vmul.f32 %v3768, %v3790
    %v3792 = vrcp.pop %v3776
    %v3793 = vmul.f32 %v3776, %v3792
    %v3794 = vsub.f32 1.0, %v3793
    %v3795 = vmul.f32 %v3792, %v3794
    %v3796 = vadd.f32 %v3792, %v3795
    %vm3797 = vweird.f32 %v3776
    %vm3798 = vweird.f32 %v3792
    %vm3799 = vmor %vm3797, %vm3798
    %v3800 = vsel %vm3799, %v3792, %v3796
    %v3801 = vand.u32 2147483647, %v3776
    %vm3802 = vcmp.eq.f32.partialorder %v3801, 8.507059e+37
    %v3803 = vand.u32 %v3776, 2147483648
    %v3804 = vor.u32 1.1754944e-38, %v3803
    %v3805 = vsel %vm3802, %v3804, %v3800
    %v3806 = vmul.f32 %v3770, %v3805
    %v3807 = vpack.c.bf16 %v3791, %v3791
    %v3808 = vpack.c.bf16 %v3806, %v3806
    %v3809 = vpack.c.bf16 %v3715, %v3715
    %v3810 = vpack.c.bf16 %v3717, %v3717
    %v3812 = vsel %vm269, %v3807, 0
    %v3815 = vsel %vm151, %v3809, 0
    %3817 = vmatpush.bf16.msra.mxu0 0
    %3818 = vmatpush.bf16.msra.mxu0 0
    %3819 = vmatpush.bf16.msra.mxu0 0
    %3820 = vmatpush.bf16.msra.mxu0 0
    %3821 = vmatpush.bf16.msra.mxu0 0
    %3822 = vmatpush.bf16.msra.mxu0 0
    %3823 = vmatpush.bf16.msra.mxu0 0
    %3824 = vmatpush.bf16.msra.mxu0 %v3815
    %3825 = vmatmul.bf16.gmra.mxu0 %v3812
    %v3826 = vpop.f32.mrf.mxu0
    %v3827 = vadd.f32 0.0, %v3826
    %v3828 = vpop.f32.mrf.mxu0
    %3829 = vdwg.mxu0
    %v3831 = vsel %vm269, %v3808, 0
    %v3834 = vsel %vm151, %v3810, 0
    %3836 = vmatpush.bf16.msra.mxu0 0
    %3837 = vmatpush.bf16.msra.mxu0 0
    %3838 = vmatpush.bf16.msra.mxu0 0
    %3839 = vmatpush.bf16.msra.mxu0 0
    %3840 = vmatpush.bf16.msra.mxu0 0
    %3841 = vmatpush.bf16.msra.mxu0 0
    %3842 = vmatpush.bf16.msra.mxu0 0
    %3843 = vmatpush.bf16.msra.mxu0 %v3834
    %3844 = vmatmul.bf16.gmra.mxu0 %v3831
    %v3845 = vpop.f32.mrf.mxu0
    %v3846 = vadd.f32 0.0, %v3845
    %v3847 = vpop.f32.mrf.mxu0
    %3848 = vdwg.mxu0
    %v3849 = vtanh.pop %v3827
    %v3850 = vtanh.pop %v3846
    %v3851 = vmul.f32 %v3849, 0.25
    %v3852 = vmul.f32 %v3850, 0.25
    %v3853 = vadd.f32 %v3391, %v3851
    %v3854 = vadd.f32 %v3392, %v3852
    %v3855 = vpack.c.bf16 %v3854, %v3853
    %v3857 = vsel %vm203, %v3855, 0
    %3859 = vmatpush.bf16.msra.mxu0 0
    %3860 = vmatpush.bf16.msra.mxu0 0
    %3861 = vmatpush.bf16.msra.mxu0 0
    %3862 = vmatpush.bf16.msra.mxu0 0
    %3863 = vmatpush.bf16.msra.mxu0 0
    %3864 = vmatpush.bf16.msra.mxu0 0
    %3865 = vmatpush.bf16.msra.mxu0 %v200
    %3866 = vmatpush.bf16.msra.mxu0 %v199
    %3867 = vmatmul.bf16.gmra.mxu0 %v3857
    %v3868 = vpop.f32.mrf.mxu0
    %v3869 = vadd.f32 0.0, %v3868
    %v3870 = vpop.f32.mrf.mxu0
    %v3871 = vadd.f32 0.0, %v3870
    %3872 = vdwg.mxu0
    %3874 = vset.pattern.permute.xlu0 32
    %3875 = vperm.xlu0 %3874, %v3869
    %v3876 = vpop.permute.xlu0 %3875
    %3879 = vset.pattern.permute.xlu0 32
    %3880 = vperm.xlu0 %3879, %v3871
    %v3881 = vpop.permute.xlu0 %3880
    %3883 = vset.pattern.permute.xlu0 33
    %3884 = vperm.xlu0 %3883, %v3869
    %v3885 = vpop.permute.xlu0 %3884
    %3886 = vset.pattern.permute.xlu0 33
    %3887 = vperm.xlu0 %3886, %v3871
    %v3888 = vpop.permute.xlu0 %3887
    %v3889 = vperm.slane %v3885, %v238
    %v3890 = vperm.slane %v3888, %v238
    %v3891 = vsel %vm241, %v3889, %v3889
    %v3892 = vsel %vm243, %v3889, %v3891
    %v3893 = vsel %vm245, %v3889, %v3892
    %v3894 = vsel %vm247, %v3889, %v3893
    %v3895 = vsel %vm249, %v3889, %v3894
    %v3896 = vsel %vm251, %v3889, %v3895
    %v3897 = vsel %vm241, %v3890, %v3890
    %v3898 = vsel %vm243, %v3890, %v3897
    %v3899 = vsel %vm245, %v3890, %v3898
    %v3900 = vsel %vm247, %v3890, %v3899
    %v3901 = vsel %vm249, %v3890, %v3900
    %v3902 = vsel %vm251, %v3890, %v3901
    %v3905 = vadd.f32 %v3876, %v3896
    %v3906 = vadd.f32 %v3881, %v3902
    %v3907 = vmul.f32 %v3905, 0.2
    %v3908 = vmul.f32 %v3906, 0.2
    %v3909 = vmax.f32 %v3905, %v3907
    %v3910 = vmax.f32 %v3906, %v3908
    %v3911 = vadd.f32 %v3909, %v104
    %v3912 = vadd.f32 %v3910, %v104
    %v3913 = vsel %vm269, %v3911, -inf
    %3914 = vmax.xlane.f32.xlu0 %v3913
    %v3915 = vpop.xlane.xlu0 %3914
    %v3916 = vsel %vm269, %v3912, -inf
    %3917 = vmax.xlane.f32.xlu0 %v3916
    %v3918 = vpop.xlane.xlu0 %3917
    %v3919 = vsub.f32 %v3911, %v3915
    %v3920 = vsub.f32 %v3912, %v3918
    %v3921 = vmul.f32 %v3919, 1.442695
    %v3922 = vpow.pop %v3921
    %v3923 = vmul.f32 %v3920, 1.442695
    %v3924 = vpow.pop %v3923
    %v3925 = vsel %vm269, %v3922, 0.0
    %3926 = vadd.xlane.f32.xlu0 %v3925
    %v3927 = vpop.xlane.xlu0 %3926
    %v3928 = vsel %vm269, %v3924, 0.0
    %3929 = vadd.xlane.f32.xlu0 %v3928
    %v3930 = vpop.xlane.xlu0 %3929
    %v3931 = vrcp.pop %v3927
    %v3932 = vmul.f32 %v3927, %v3931
    %v3933 = vsub.f32 1.0, %v3932
    %v3934 = vmul.f32 %v3931, %v3933
    %v3935 = vadd.f32 %v3931, %v3934
    %vm3936 = vweird.f32 %v3927
    %vm3937 = vweird.f32 %v3931
    %vm3938 = vmor %vm3936, %vm3937
    %v3939 = vsel %vm3938, %v3931, %v3935
    %v3940 = vand.u32 2147483647, %v3927
    %vm3941 = vcmp.eq.f32.partialorder %v3940, 8.507059e+37
    %v3942 = vand.u32 %v3927, 2147483648
    %v3943 = vor.u32 1.1754944e-38, %v3942
    %v3944 = vsel %vm3941, %v3943, %v3939
    %v3945 = vmul.f32 %v3922, %v3944
    %v3946 = vrcp.pop %v3930
    %v3947 = vmul.f32 %v3930, %v3946
    %v3948 = vsub.f32 1.0, %v3947
    %v3949 = vmul.f32 %v3946, %v3948
    %v3950 = vadd.f32 %v3946, %v3949
    %vm3951 = vweird.f32 %v3930
    %vm3952 = vweird.f32 %v3946
    %vm3953 = vmor %vm3951, %vm3952
    %v3954 = vsel %vm3953, %v3946, %v3950
    %v3955 = vand.u32 2147483647, %v3930
    %vm3956 = vcmp.eq.f32.partialorder %v3955, 8.507059e+37
    %v3957 = vand.u32 %v3930, 2147483648
    %v3958 = vor.u32 1.1754944e-38, %v3957
    %v3959 = vsel %vm3956, %v3958, %v3954
    %v3960 = vmul.f32 %v3924, %v3959
    %v3961 = vpack.c.bf16 %v3945, %v3945
    %v3962 = vpack.c.bf16 %v3960, %v3960
    %v3963 = vpack.c.bf16 %v3869, %v3869
    %v3964 = vpack.c.bf16 %v3871, %v3871
    %v3966 = vsel %vm269, %v3961, 0
    %v3969 = vsel %vm151, %v3963, 0
    %3971 = vmatpush.bf16.msra.mxu0 0
    %3972 = vmatpush.bf16.msra.mxu0 0
    %3973 = vmatpush.bf16.msra.mxu0 0
    %3974 = vmatpush.bf16.msra.mxu0 0
    %3975 = vmatpush.bf16.msra.mxu0 0
    %3976 = vmatpush.bf16.msra.mxu0 0
    %3977 = vmatpush.bf16.msra.mxu0 0
    %3978 = vmatpush.bf16.msra.mxu0 %v3969
    %3979 = vmatmul.bf16.gmra.mxu0 %v3966
    %v3980 = vpop.f32.mrf.mxu0
    %v3981 = vadd.f32 0.0, %v3980
    %v3982 = vpop.f32.mrf.mxu0
    %3983 = vdwg.mxu0
    %v3985 = vsel %vm269, %v3962, 0
    %v3988 = vsel %vm151, %v3964, 0
    %3990 = vmatpush.bf16.msra.mxu0 0
    %3991 = vmatpush.bf16.msra.mxu0 0
    %3992 = vmatpush.bf16.msra.mxu0 0
    %3993 = vmatpush.bf16.msra.mxu0 0
    %3994 = vmatpush.bf16.msra.mxu0 0
    %3995 = vmatpush.bf16.msra.mxu0 0
    %3996 = vmatpush.bf16.msra.mxu0 0
    %3997 = vmatpush.bf16.msra.mxu0 %v3988
    %3998 = vmatmul.bf16.gmra.mxu0 %v3985
    %v3999 = vpop.f32.mrf.mxu0
    %v4000 = vadd.f32 0.0, %v3999
    %v4001 = vpop.f32.mrf.mxu0
    %4002 = vdwg.mxu0
    %v4003 = vtanh.pop %v3981
    %v4004 = vtanh.pop %v4000
    %v4005 = vmul.f32 %v3695, 2.0
    %v4006 = vmul.f32 %v3696, 2.0
    %v4007 = vadd.f32 %v3541, %v4005
    %v4008 = vadd.f32 %v3542, %v4006
    %v4009 = vmul.f32 %v3849, 2.0
    %v4010 = vmul.f32 %v3850, 2.0
    %v4011 = vadd.f32 %v4007, %v4009
    %v4012 = vadd.f32 %v4008, %v4010
    %v4013 = vadd.f32 %v4011, %v4003
    %v4014 = vadd.f32 %v4012, %v4004
    %v4015 = vmul.f32 %v4013, 0.041666668
    %v4016 = vmul.f32 %v4014, 0.041666668
    %v4017 = vadd.f32 %v3391, %v4015
    %v4018 = vadd.f32 %v3392, %v4016
    %v4019 = vpack.c.bf16 %v4018, %v4017
    %v4021 = vsel %vm203, %v4019, 0
    %4023 = vmatpush.bf16.msra.mxu0 0
    %4024 = vmatpush.bf16.msra.mxu0 0
    %4025 = vmatpush.bf16.msra.mxu0 0
    %4026 = vmatpush.bf16.msra.mxu0 0
    %4027 = vmatpush.bf16.msra.mxu0 0
    %4028 = vmatpush.bf16.msra.mxu0 0
    %4029 = vmatpush.bf16.msra.mxu0 %v200
    %4030 = vmatpush.bf16.msra.mxu0 %v199
    %4031 = vmatmul.bf16.gmra.mxu0 %v4021
    %v4032 = vpop.f32.mrf.mxu0
    %v4033 = vadd.f32 0.0, %v4032
    %v4034 = vpop.f32.mrf.mxu0
    %v4035 = vadd.f32 0.0, %v4034
    %4036 = vdwg.mxu0
    %4038 = vset.pattern.permute.xlu0 32
    %4039 = vperm.xlu0 %4038, %v4033
    %v4040 = vpop.permute.xlu0 %4039
    %4043 = vset.pattern.permute.xlu0 32
    %4044 = vperm.xlu0 %4043, %v4035
    %v4045 = vpop.permute.xlu0 %4044
    %4047 = vset.pattern.permute.xlu0 33
    %4048 = vperm.xlu0 %4047, %v4033
    %v4049 = vpop.permute.xlu0 %4048
    %4050 = vset.pattern.permute.xlu0 33
    %4051 = vperm.xlu0 %4050, %v4035
    %v4052 = vpop.permute.xlu0 %4051
    %v4053 = vperm.slane %v4049, %v238
    %v4054 = vperm.slane %v4052, %v238
    %v4055 = vsel %vm241, %v4053, %v4053
    %v4056 = vsel %vm243, %v4053, %v4055
    %v4057 = vsel %vm245, %v4053, %v4056
    %v4058 = vsel %vm247, %v4053, %v4057
    %v4059 = vsel %vm249, %v4053, %v4058
    %v4060 = vsel %vm251, %v4053, %v4059
    %v4061 = vsel %vm241, %v4054, %v4054
    %v4062 = vsel %vm243, %v4054, %v4061
    %v4063 = vsel %vm245, %v4054, %v4062
    %v4064 = vsel %vm247, %v4054, %v4063
    %v4065 = vsel %vm249, %v4054, %v4064
    %v4066 = vsel %vm251, %v4054, %v4065
    %v4069 = vadd.f32 %v4040, %v4060
    %v4070 = vadd.f32 %v4045, %v4066
    %v4071 = vmul.f32 %v4069, 0.2
    %v4072 = vmul.f32 %v4070, 0.2
    %v4073 = vmax.f32 %v4069, %v4071
    %v4074 = vmax.f32 %v4070, %v4072
    %v4075 = vadd.f32 %v4073, %v104
    %v4076 = vadd.f32 %v4074, %v104
    %v4077 = vsel %vm269, %v4075, -inf
    %4078 = vmax.xlane.f32.xlu0 %v4077
    %v4079 = vpop.xlane.xlu0 %4078
    %v4080 = vsel %vm269, %v4076, -inf
    %4081 = vmax.xlane.f32.xlu0 %v4080
    %v4082 = vpop.xlane.xlu0 %4081
    %v4083 = vsub.f32 %v4075, %v4079
    %v4084 = vsub.f32 %v4076, %v4082
    %v4085 = vmul.f32 %v4083, 1.442695
    %v4086 = vpow.pop %v4085
    %v4087 = vmul.f32 %v4084, 1.442695
    %v4088 = vpow.pop %v4087
    %v4089 = vsel %vm269, %v4086, 0.0
    %4090 = vadd.xlane.f32.xlu0 %v4089
    %v4091 = vpop.xlane.xlu0 %4090
    %v4092 = vsel %vm269, %v4088, 0.0
    %4093 = vadd.xlane.f32.xlu0 %v4092
    %v4094 = vpop.xlane.xlu0 %4093
    %v4095 = vrcp.pop %v4091
    %v4096 = vmul.f32 %v4091, %v4095
    %v4097 = vsub.f32 1.0, %v4096
    %v4098 = vmul.f32 %v4095, %v4097
    %v4099 = vadd.f32 %v4095, %v4098
    %vm4100 = vweird.f32 %v4091
    %vm4101 = vweird.f32 %v4095
    %vm4102 = vmor %vm4100, %vm4101
    %v4103 = vsel %vm4102, %v4095, %v4099
    %v4104 = vand.u32 2147483647, %v4091
    %vm4105 = vcmp.eq.f32.partialorder %v4104, 8.507059e+37
    %v4106 = vand.u32 %v4091, 2147483648
    %v4107 = vor.u32 1.1754944e-38, %v4106
    %v4108 = vsel %vm4105, %v4107, %v4103
    %v4109 = vmul.f32 %v4086, %v4108
    %v4110 = vrcp.pop %v4094
    %v4111 = vmul.f32 %v4094, %v4110
    %v4112 = vsub.f32 1.0, %v4111
    %v4113 = vmul.f32 %v4110, %v4112
    %v4114 = vadd.f32 %v4110, %v4113
    %vm4115 = vweird.f32 %v4094
    %vm4116 = vweird.f32 %v4110
    %vm4117 = vmor %vm4115, %vm4116
    %v4118 = vsel %vm4117, %v4110, %v4114
    %v4119 = vand.u32 2147483647, %v4094
    %vm4120 = vcmp.eq.f32.partialorder %v4119, 8.507059e+37
    %v4121 = vand.u32 %v4094, 2147483648
    %v4122 = vor.u32 1.1754944e-38, %v4121
    %v4123 = vsel %vm4120, %v4122, %v4118
    %v4124 = vmul.f32 %v4088, %v4123
    %v4125 = vpack.c.bf16 %v4109, %v4109
    %v4126 = vpack.c.bf16 %v4124, %v4124
    %v4127 = vpack.c.bf16 %v4033, %v4033
    %v4128 = vpack.c.bf16 %v4035, %v4035
    %v4130 = vsel %vm269, %v4125, 0
    %v4133 = vsel %vm151, %v4127, 0
    %4135 = vmatpush.bf16.msra.mxu0 0
    %4136 = vmatpush.bf16.msra.mxu0 0
    %4137 = vmatpush.bf16.msra.mxu0 0
    %4138 = vmatpush.bf16.msra.mxu0 0
    %4139 = vmatpush.bf16.msra.mxu0 0
    %4140 = vmatpush.bf16.msra.mxu0 0
    %4141 = vmatpush.bf16.msra.mxu0 0
    %4142 = vmatpush.bf16.msra.mxu0 %v4133
    %4143 = vmatmul.bf16.gmra.mxu0 %v4130
    %v4144 = vpop.f32.mrf.mxu0
    %v4145 = vadd.f32 0.0, %v4144
    %v4146 = vpop.f32.mrf.mxu0
    %4147 = vdwg.mxu0
    %v4149 = vsel %vm269, %v4126, 0
    %v4152 = vsel %vm151, %v4128, 0
    %4154 = vmatpush.bf16.msra.mxu0 0
    %4155 = vmatpush.bf16.msra.mxu0 0
    %4156 = vmatpush.bf16.msra.mxu0 0
    %4157 = vmatpush.bf16.msra.mxu0 0
    %4158 = vmatpush.bf16.msra.mxu0 0
    %4159 = vmatpush.bf16.msra.mxu0 0
    %4160 = vmatpush.bf16.msra.mxu0 0
    %4161 = vmatpush.bf16.msra.mxu0 %v4152
    %4162 = vmatmul.bf16.gmra.mxu0 %v4149
    %v4163 = vpop.f32.mrf.mxu0
    %v4164 = vadd.f32 0.0, %v4163
    %v4165 = vpop.f32.mrf.mxu0
    %4166 = vdwg.mxu0
    %v4167 = vtanh.pop %v4145
    %v4168 = vtanh.pop %v4164
    %v4169 = vmul.f32 %v4167, 0.125
    %v4170 = vmul.f32 %v4168, 0.125
    %v4171 = vadd.f32 %v4017, %v4169
    %v4172 = vadd.f32 %v4018, %v4170
    %v4173 = vpack.c.bf16 %v4172, %v4171
    %v4175 = vsel %vm203, %v4173, 0
    %4177 = vmatpush.bf16.msra.mxu0 0
    %4178 = vmatpush.bf16.msra.mxu0 0
    %4179 = vmatpush.bf16.msra.mxu0 0
    %4180 = vmatpush.bf16.msra.mxu0 0
    %4181 = vmatpush.bf16.msra.mxu0 0
    %4182 = vmatpush.bf16.msra.mxu0 0
    %4183 = vmatpush.bf16.msra.mxu0 %v200
    %4184 = vmatpush.bf16.msra.mxu0 %v199
    %4185 = vmatmul.bf16.gmra.mxu0 %v4175
    %v4186 = vpop.f32.mrf.mxu0
    %v4187 = vadd.f32 0.0, %v4186
    %v4188 = vpop.f32.mrf.mxu0
    %v4189 = vadd.f32 0.0, %v4188
    %4190 = vdwg.mxu0
    %4192 = vset.pattern.permute.xlu0 32
    %4193 = vperm.xlu0 %4192, %v4187
    %v4194 = vpop.permute.xlu0 %4193
    %4197 = vset.pattern.permute.xlu0 32
    %4198 = vperm.xlu0 %4197, %v4189
    %v4199 = vpop.permute.xlu0 %4198
    %4201 = vset.pattern.permute.xlu0 33
    %4202 = vperm.xlu0 %4201, %v4187
    %v4203 = vpop.permute.xlu0 %4202
    %4204 = vset.pattern.permute.xlu0 33
    %4205 = vperm.xlu0 %4204, %v4189
    %v4206 = vpop.permute.xlu0 %4205
    %v4207 = vperm.slane %v4203, %v238
    %v4208 = vperm.slane %v4206, %v238
    %v4209 = vsel %vm241, %v4207, %v4207
    %v4210 = vsel %vm243, %v4207, %v4209
    %v4211 = vsel %vm245, %v4207, %v4210
    %v4212 = vsel %vm247, %v4207, %v4211
    %v4213 = vsel %vm249, %v4207, %v4212
    %v4214 = vsel %vm251, %v4207, %v4213
    %v4215 = vsel %vm241, %v4208, %v4208
    %v4216 = vsel %vm243, %v4208, %v4215
    %v4217 = vsel %vm245, %v4208, %v4216
    %v4218 = vsel %vm247, %v4208, %v4217
    %v4219 = vsel %vm249, %v4208, %v4218
    %v4220 = vsel %vm251, %v4208, %v4219
    %v4223 = vadd.f32 %v4194, %v4214
    %v4224 = vadd.f32 %v4199, %v4220
    %v4225 = vmul.f32 %v4223, 0.2
    %v4226 = vmul.f32 %v4224, 0.2
    %v4227 = vmax.f32 %v4223, %v4225
    %v4228 = vmax.f32 %v4224, %v4226
    %v4229 = vadd.f32 %v4227, %v104
    %v4230 = vadd.f32 %v4228, %v104
    %v4231 = vsel %vm269, %v4229, -inf
    %4232 = vmax.xlane.f32.xlu0 %v4231
    %v4233 = vpop.xlane.xlu0 %4232
    %v4234 = vsel %vm269, %v4230, -inf
    %4235 = vmax.xlane.f32.xlu0 %v4234
    %v4236 = vpop.xlane.xlu0 %4235
    %v4237 = vsub.f32 %v4229, %v4233
    %v4238 = vsub.f32 %v4230, %v4236
    %v4239 = vmul.f32 %v4237, 1.442695
    %v4240 = vpow.pop %v4239
    %v4241 = vmul.f32 %v4238, 1.442695
    %v4242 = vpow.pop %v4241
    %v4243 = vsel %vm269, %v4240, 0.0
    %4244 = vadd.xlane.f32.xlu0 %v4243
    %v4245 = vpop.xlane.xlu0 %4244
    %v4246 = vsel %vm269, %v4242, 0.0
    %4247 = vadd.xlane.f32.xlu0 %v4246
    %v4248 = vpop.xlane.xlu0 %4247
    %v4249 = vrcp.pop %v4245
    %v4250 = vmul.f32 %v4245, %v4249
    %v4251 = vsub.f32 1.0, %v4250
    %v4252 = vmul.f32 %v4249, %v4251
    %v4253 = vadd.f32 %v4249, %v4252
    %vm4254 = vweird.f32 %v4245
    %vm4255 = vweird.f32 %v4249
    %vm4256 = vmor %vm4254, %vm4255
    %v4257 = vsel %vm4256, %v4249, %v4253
    %v4258 = vand.u32 2147483647, %v4245
    %vm4259 = vcmp.eq.f32.partialorder %v4258, 8.507059e+37
    %v4260 = vand.u32 %v4245, 2147483648
    %v4261 = vor.u32 1.1754944e-38, %v4260
    %v4262 = vsel %vm4259, %v4261, %v4257
    %v4263 = vmul.f32 %v4240, %v4262
    %v4264 = vrcp.pop %v4248
    %v4265 = vmul.f32 %v4248, %v4264
    %v4266 = vsub.f32 1.0, %v4265
    %v4267 = vmul.f32 %v4264, %v4266
    %v4268 = vadd.f32 %v4264, %v4267
    %vm4269 = vweird.f32 %v4248
    %vm4270 = vweird.f32 %v4264
    %vm4271 = vmor %vm4269, %vm4270
    %v4272 = vsel %vm4271, %v4264, %v4268
    %v4273 = vand.u32 2147483647, %v4248
    %vm4274 = vcmp.eq.f32.partialorder %v4273, 8.507059e+37
    %v4275 = vand.u32 %v4248, 2147483648
    %v4276 = vor.u32 1.1754944e-38, %v4275
    %v4277 = vsel %vm4274, %v4276, %v4272
    %v4278 = vmul.f32 %v4242, %v4277
    %v4279 = vpack.c.bf16 %v4263, %v4263
    %v4280 = vpack.c.bf16 %v4278, %v4278
    %v4281 = vpack.c.bf16 %v4187, %v4187
    %v4282 = vpack.c.bf16 %v4189, %v4189
    %v4284 = vsel %vm269, %v4279, 0
    %v4287 = vsel %vm151, %v4281, 0
    %4289 = vmatpush.bf16.msra.mxu0 0
    %4290 = vmatpush.bf16.msra.mxu0 0
    %4291 = vmatpush.bf16.msra.mxu0 0
    %4292 = vmatpush.bf16.msra.mxu0 0
    %4293 = vmatpush.bf16.msra.mxu0 0
    %4294 = vmatpush.bf16.msra.mxu0 0
    %4295 = vmatpush.bf16.msra.mxu0 0
    %4296 = vmatpush.bf16.msra.mxu0 %v4287
    %4297 = vmatmul.bf16.gmra.mxu0 %v4284
    %v4298 = vpop.f32.mrf.mxu0
    %v4299 = vadd.f32 0.0, %v4298
    %v4300 = vpop.f32.mrf.mxu0
    %4301 = vdwg.mxu0
    %v4303 = vsel %vm269, %v4280, 0
    %v4306 = vsel %vm151, %v4282, 0
    %4308 = vmatpush.bf16.msra.mxu0 0
    %4309 = vmatpush.bf16.msra.mxu0 0
    %4310 = vmatpush.bf16.msra.mxu0 0
    %4311 = vmatpush.bf16.msra.mxu0 0
    %4312 = vmatpush.bf16.msra.mxu0 0
    %4313 = vmatpush.bf16.msra.mxu0 0
    %4314 = vmatpush.bf16.msra.mxu0 0
    %4315 = vmatpush.bf16.msra.mxu0 %v4306
    %4316 = vmatmul.bf16.gmra.mxu0 %v4303
    %v4317 = vpop.f32.mrf.mxu0
    %v4318 = vadd.f32 0.0, %v4317
    %v4319 = vpop.f32.mrf.mxu0
    %4320 = vdwg.mxu0
    %v4321 = vtanh.pop %v4299
    %v4322 = vtanh.pop %v4318
    %v4323 = vmul.f32 %v4321, 0.125
    %v4324 = vmul.f32 %v4322, 0.125
    %v4325 = vadd.f32 %v4017, %v4323
    %v4326 = vadd.f32 %v4018, %v4324
    %v4327 = vpack.c.bf16 %v4326, %v4325
    %v4329 = vsel %vm203, %v4327, 0
    %4331 = vmatpush.bf16.msra.mxu0 0
    %4332 = vmatpush.bf16.msra.mxu0 0
    %4333 = vmatpush.bf16.msra.mxu0 0
    %4334 = vmatpush.bf16.msra.mxu0 0
    %4335 = vmatpush.bf16.msra.mxu0 0
    %4336 = vmatpush.bf16.msra.mxu0 0
    %4337 = vmatpush.bf16.msra.mxu0 %v200
    %4338 = vmatpush.bf16.msra.mxu0 %v199
    %4339 = vmatmul.bf16.gmra.mxu0 %v4329
    %v4340 = vpop.f32.mrf.mxu0
    %v4341 = vadd.f32 0.0, %v4340
    %v4342 = vpop.f32.mrf.mxu0
    %v4343 = vadd.f32 0.0, %v4342
    %4344 = vdwg.mxu0
    %4346 = vset.pattern.permute.xlu0 32
    %4347 = vperm.xlu0 %4346, %v4341
    %v4348 = vpop.permute.xlu0 %4347
    %4351 = vset.pattern.permute.xlu0 32
    %4352 = vperm.xlu0 %4351, %v4343
    %v4353 = vpop.permute.xlu0 %4352
    %4355 = vset.pattern.permute.xlu0 33
    %4356 = vperm.xlu0 %4355, %v4341
    %v4357 = vpop.permute.xlu0 %4356
    %4358 = vset.pattern.permute.xlu0 33
    %4359 = vperm.xlu0 %4358, %v4343
    %v4360 = vpop.permute.xlu0 %4359
    %v4361 = vperm.slane %v4357, %v238
    %v4362 = vperm.slane %v4360, %v238
    %v4363 = vsel %vm241, %v4361, %v4361
    %v4364 = vsel %vm243, %v4361, %v4363
    %v4365 = vsel %vm245, %v4361, %v4364
    %v4366 = vsel %vm247, %v4361, %v4365
    %v4367 = vsel %vm249, %v4361, %v4366
    %v4368 = vsel %vm251, %v4361, %v4367
    %v4369 = vsel %vm241, %v4362, %v4362
    %v4370 = vsel %vm243, %v4362, %v4369
    %v4371 = vsel %vm245, %v4362, %v4370
    %v4372 = vsel %vm247, %v4362, %v4371
    %v4373 = vsel %vm249, %v4362, %v4372
    %v4374 = vsel %vm251, %v4362, %v4373
    %v4377 = vadd.f32 %v4348, %v4368
    %v4378 = vadd.f32 %v4353, %v4374
    %v4379 = vmul.f32 %v4377, 0.2
    %v4380 = vmul.f32 %v4378, 0.2
    %v4381 = vmax.f32 %v4377, %v4379
    %v4382 = vmax.f32 %v4378, %v4380
    %v4383 = vadd.f32 %v4381, %v104
    %v4384 = vadd.f32 %v4382, %v104
    %v4385 = vsel %vm269, %v4383, -inf
    %4386 = vmax.xlane.f32.xlu0 %v4385
    %v4387 = vpop.xlane.xlu0 %4386
    %v4388 = vsel %vm269, %v4384, -inf
    %4389 = vmax.xlane.f32.xlu0 %v4388
    %v4390 = vpop.xlane.xlu0 %4389
    %v4391 = vsub.f32 %v4383, %v4387
    %v4392 = vsub.f32 %v4384, %v4390
    %v4393 = vmul.f32 %v4391, 1.442695
    %v4394 = vpow.pop %v4393
    %v4395 = vmul.f32 %v4392, 1.442695
    %v4396 = vpow.pop %v4395
    %v4397 = vsel %vm269, %v4394, 0.0
    %4398 = vadd.xlane.f32.xlu0 %v4397
    %v4399 = vpop.xlane.xlu0 %4398
    %v4400 = vsel %vm269, %v4396, 0.0
    %4401 = vadd.xlane.f32.xlu0 %v4400
    %v4402 = vpop.xlane.xlu0 %4401
    %v4403 = vrcp.pop %v4399
    %v4404 = vmul.f32 %v4399, %v4403
    %v4405 = vsub.f32 1.0, %v4404
    %v4406 = vmul.f32 %v4403, %v4405
    %v4407 = vadd.f32 %v4403, %v4406
    %vm4408 = vweird.f32 %v4399
    %vm4409 = vweird.f32 %v4403
    %vm4410 = vmor %vm4408, %vm4409
    %v4411 = vsel %vm4410, %v4403, %v4407
    %v4412 = vand.u32 2147483647, %v4399
    %vm4413 = vcmp.eq.f32.partialorder %v4412, 8.507059e+37
    %v4414 = vand.u32 %v4399, 2147483648
    %v4415 = vor.u32 1.1754944e-38, %v4414
    %v4416 = vsel %vm4413, %v4415, %v4411
    %v4417 = vmul.f32 %v4394, %v4416
    %v4418 = vrcp.pop %v4402
    %v4419 = vmul.f32 %v4402, %v4418
    %v4420 = vsub.f32 1.0, %v4419
    %v4421 = vmul.f32 %v4418, %v4420
    %v4422 = vadd.f32 %v4418, %v4421
    %vm4423 = vweird.f32 %v4402
    %vm4424 = vweird.f32 %v4418
    %vm4425 = vmor %vm4423, %vm4424
    %v4426 = vsel %vm4425, %v4418, %v4422
    %v4427 = vand.u32 2147483647, %v4402
    %vm4428 = vcmp.eq.f32.partialorder %v4427, 8.507059e+37
    %v4429 = vand.u32 %v4402, 2147483648
    %v4430 = vor.u32 1.1754944e-38, %v4429
    %v4431 = vsel %vm4428, %v4430, %v4426
    %v4432 = vmul.f32 %v4396, %v4431
    %v4433 = vpack.c.bf16 %v4417, %v4417
    %v4434 = vpack.c.bf16 %v4432, %v4432
    %v4435 = vpack.c.bf16 %v4341, %v4341
    %v4436 = vpack.c.bf16 %v4343, %v4343
    %v4438 = vsel %vm269, %v4433, 0
    %v4441 = vsel %vm151, %v4435, 0
    %4443 = vmatpush.bf16.msra.mxu0 0
    %4444 = vmatpush.bf16.msra.mxu0 0
    %4445 = vmatpush.bf16.msra.mxu0 0
    %4446 = vmatpush.bf16.msra.mxu0 0
    %4447 = vmatpush.bf16.msra.mxu0 0
    %4448 = vmatpush.bf16.msra.mxu0 0
    %4449 = vmatpush.bf16.msra.mxu0 0
    %4450 = vmatpush.bf16.msra.mxu0 %v4441
    %4451 = vmatmul.bf16.gmra.mxu0 %v4438
    %v4452 = vpop.f32.mrf.mxu0
    %v4453 = vadd.f32 0.0, %v4452
    %v4454 = vpop.f32.mrf.mxu0
    %4455 = vdwg.mxu0
    %v4457 = vsel %vm269, %v4434, 0
    %v4460 = vsel %vm151, %v4436, 0
    %4462 = vmatpush.bf16.msra.mxu0 0
    %4463 = vmatpush.bf16.msra.mxu0 0
    %4464 = vmatpush.bf16.msra.mxu0 0
    %4465 = vmatpush.bf16.msra.mxu0 0
    %4466 = vmatpush.bf16.msra.mxu0 0
    %4467 = vmatpush.bf16.msra.mxu0 0
    %4468 = vmatpush.bf16.msra.mxu0 0
    %4469 = vmatpush.bf16.msra.mxu0 %v4460
    %4470 = vmatmul.bf16.gmra.mxu0 %v4457
    %v4471 = vpop.f32.mrf.mxu0
    %v4472 = vadd.f32 0.0, %v4471
    %v4473 = vpop.f32.mrf.mxu0
    %4474 = vdwg.mxu0
    %v4475 = vtanh.pop %v4453
    %v4476 = vtanh.pop %v4472
    %v4477 = vmul.f32 %v4475, 0.25
    %v4478 = vmul.f32 %v4476, 0.25
    %v4479 = vadd.f32 %v4017, %v4477
    %v4480 = vadd.f32 %v4018, %v4478
    %v4481 = vpack.c.bf16 %v4480, %v4479
    %v4483 = vsel %vm203, %v4481, 0
    %4485 = vmatpush.bf16.msra.mxu0 0
    %4486 = vmatpush.bf16.msra.mxu0 0
    %4487 = vmatpush.bf16.msra.mxu0 0
    %4488 = vmatpush.bf16.msra.mxu0 0
    %4489 = vmatpush.bf16.msra.mxu0 0
    %4490 = vmatpush.bf16.msra.mxu0 0
    %4491 = vmatpush.bf16.msra.mxu0 %v200
    %4492 = vmatpush.bf16.msra.mxu0 %v199
    %4493 = vmatmul.bf16.gmra.mxu0 %v4483
    %v4494 = vpop.f32.mrf.mxu0
    %v4495 = vadd.f32 0.0, %v4494
    %v4496 = vpop.f32.mrf.mxu0
    %v4497 = vadd.f32 0.0, %v4496
    %4498 = vdwg.mxu0
    %4500 = vset.pattern.permute.xlu0 32
    %4501 = vperm.xlu0 %4500, %v4495
    %v4502 = vpop.permute.xlu0 %4501
    %4505 = vset.pattern.permute.xlu0 32
    %4506 = vperm.xlu0 %4505, %v4497
    %v4507 = vpop.permute.xlu0 %4506
    %4509 = vset.pattern.permute.xlu0 33
    %4510 = vperm.xlu0 %4509, %v4495
    %v4511 = vpop.permute.xlu0 %4510
    %4512 = vset.pattern.permute.xlu0 33
    %4513 = vperm.xlu0 %4512, %v4497
    %v4514 = vpop.permute.xlu0 %4513
    %v4515 = vperm.slane %v4511, %v238
    %v4516 = vperm.slane %v4514, %v238
    %v4517 = vsel %vm241, %v4515, %v4515
    %v4518 = vsel %vm243, %v4515, %v4517
    %v4519 = vsel %vm245, %v4515, %v4518
    %v4520 = vsel %vm247, %v4515, %v4519
    %v4521 = vsel %vm249, %v4515, %v4520
    %v4522 = vsel %vm251, %v4515, %v4521
    %v4523 = vsel %vm241, %v4516, %v4516
    %v4524 = vsel %vm243, %v4516, %v4523
    %v4525 = vsel %vm245, %v4516, %v4524
    %v4526 = vsel %vm247, %v4516, %v4525
    %v4527 = vsel %vm249, %v4516, %v4526
    %v4528 = vsel %vm251, %v4516, %v4527
    %v4531 = vadd.f32 %v4502, %v4522
    %v4532 = vadd.f32 %v4507, %v4528
    %v4533 = vmul.f32 %v4531, 0.2
    %v4534 = vmul.f32 %v4532, 0.2
    %v4535 = vmax.f32 %v4531, %v4533
    %v4536 = vmax.f32 %v4532, %v4534
    %v4537 = vadd.f32 %v4535, %v104
    %v4538 = vadd.f32 %v4536, %v104
    %v4539 = vsel %vm269, %v4537, -inf
    %4540 = vmax.xlane.f32.xlu0 %v4539
    %v4541 = vpop.xlane.xlu0 %4540
    %v4542 = vsel %vm269, %v4538, -inf
    %4543 = vmax.xlane.f32.xlu0 %v4542
    %v4544 = vpop.xlane.xlu0 %4543
    %v4545 = vsub.f32 %v4537, %v4541
    %v4546 = vsub.f32 %v4538, %v4544
    %v4547 = vmul.f32 %v4545, 1.442695
    %v4548 = vpow.pop %v4547
    %v4549 = vmul.f32 %v4546, 1.442695
    %v4550 = vpow.pop %v4549
    %v4551 = vsel %vm269, %v4548, 0.0
    %4552 = vadd.xlane.f32.xlu0 %v4551
    %v4553 = vpop.xlane.xlu0 %4552
    %v4554 = vsel %vm269, %v4550, 0.0
    %4555 = vadd.xlane.f32.xlu0 %v4554
    %v4556 = vpop.xlane.xlu0 %4555
    %v4557 = vrcp.pop %v4553
    %v4558 = vmul.f32 %v4553, %v4557
    %v4559 = vsub.f32 1.0, %v4558
    %v4560 = vmul.f32 %v4557, %v4559
    %v4561 = vadd.f32 %v4557, %v4560
    %vm4562 = vweird.f32 %v4553
    %vm4563 = vweird.f32 %v4557
    %vm4564 = vmor %vm4562, %vm4563
    %v4565 = vsel %vm4564, %v4557, %v4561
    %v4566 = vand.u32 2147483647, %v4553
    %vm4567 = vcmp.eq.f32.partialorder %v4566, 8.507059e+37
    %v4568 = vand.u32 %v4553, 2147483648
    %v4569 = vor.u32 1.1754944e-38, %v4568
    %v4570 = vsel %vm4567, %v4569, %v4565
    %v4571 = vmul.f32 %v4548, %v4570
    %v4572 = vrcp.pop %v4556
    %v4573 = vmul.f32 %v4556, %v4572
    %v4574 = vsub.f32 1.0, %v4573
    %v4575 = vmul.f32 %v4572, %v4574
    %v4576 = vadd.f32 %v4572, %v4575
    %vm4577 = vweird.f32 %v4556
    %vm4578 = vweird.f32 %v4572
    %vm4579 = vmor %vm4577, %vm4578
    %v4580 = vsel %vm4579, %v4572, %v4576
    %v4581 = vand.u32 2147483647, %v4556
    %vm4582 = vcmp.eq.f32.partialorder %v4581, 8.507059e+37
    %v4583 = vand.u32 %v4556, 2147483648
    %v4584 = vor.u32 1.1754944e-38, %v4583
    %v4585 = vsel %vm4582, %v4584, %v4580
    %v4586 = vmul.f32 %v4550, %v4585
    %v4587 = vpack.c.bf16 %v4571, %v4571
    %v4588 = vpack.c.bf16 %v4586, %v4586
    %v4589 = vpack.c.bf16 %v4495, %v4495
    %v4590 = vpack.c.bf16 %v4497, %v4497
    %v4592 = vsel %vm269, %v4587, 0
    %v4595 = vsel %vm151, %v4589, 0
    %4597 = vmatpush.bf16.msra.mxu0 0
    %4598 = vmatpush.bf16.msra.mxu0 0
    %4599 = vmatpush.bf16.msra.mxu0 0
    %4600 = vmatpush.bf16.msra.mxu0 0
    %4601 = vmatpush.bf16.msra.mxu0 0
    %4602 = vmatpush.bf16.msra.mxu0 0
    %4603 = vmatpush.bf16.msra.mxu0 0
    %4604 = vmatpush.bf16.msra.mxu0 %v4595
    %4605 = vmatmul.bf16.gmra.mxu0 %v4592
    %v4606 = vpop.f32.mrf.mxu0
    %v4607 = vadd.f32 0.0, %v4606
    %v4608 = vpop.f32.mrf.mxu0
    %4609 = vdwg.mxu0
    %v4611 = vsel %vm269, %v4588, 0
    %v4614 = vsel %vm151, %v4590, 0
    %4616 = vmatpush.bf16.msra.mxu0 0
    %4617 = vmatpush.bf16.msra.mxu0 0
    %4618 = vmatpush.bf16.msra.mxu0 0
    %4619 = vmatpush.bf16.msra.mxu0 0
    %4620 = vmatpush.bf16.msra.mxu0 0
    %4621 = vmatpush.bf16.msra.mxu0 0
    %4622 = vmatpush.bf16.msra.mxu0 0
    %4623 = vmatpush.bf16.msra.mxu0 %v4614
    %4624 = vmatmul.bf16.gmra.mxu0 %v4611
    %v4625 = vpop.f32.mrf.mxu0
    %v4626 = vadd.f32 0.0, %v4625
    %v4627 = vpop.f32.mrf.mxu0
    %4628 = vdwg.mxu0
    %v4629 = vtanh.pop %v4607
    %v4630 = vtanh.pop %v4626
    %v4631 = vmul.f32 %v4321, 2.0
    %v4632 = vmul.f32 %v4322, 2.0
    %v4633 = vadd.f32 %v4167, %v4631
    %v4634 = vadd.f32 %v4168, %v4632
    %v4635 = vmul.f32 %v4475, 2.0
    %v4636 = vmul.f32 %v4476, 2.0
    %v4637 = vadd.f32 %v4633, %v4635
    %v4638 = vadd.f32 %v4634, %v4636
    %v4639 = vadd.f32 %v4637, %v4629
    %v4640 = vadd.f32 %v4638, %v4630
    %v4641 = vmul.f32 %v4639, 0.041666668
    %v4642 = vmul.f32 %v4640, 0.041666668
    %v4643 = vadd.f32 %v4017, %v4641
    %v4644 = vadd.f32 %v4018, %v4642
    %v4645 = vpack.c.bf16 %v4644, %v4643
    %v4647 = vsel %vm203, %v4645, 0
    %4649 = vmatpush.bf16.msra.mxu0 0
    %4650 = vmatpush.bf16.msra.mxu0 0
    %4651 = vmatpush.bf16.msra.mxu0 0
    %4652 = vmatpush.bf16.msra.mxu0 0
    %4653 = vmatpush.bf16.msra.mxu0 0
    %4654 = vmatpush.bf16.msra.mxu0 0
    %4655 = vmatpush.bf16.msra.mxu0 %v200
    %4656 = vmatpush.bf16.msra.mxu0 %v199
    %4657 = vmatmul.bf16.gmra.mxu0 %v4647
    %v4658 = vpop.f32.mrf.mxu0
    %v4659 = vadd.f32 0.0, %v4658
    %v4660 = vpop.f32.mrf.mxu0
    %v4661 = vadd.f32 0.0, %v4660
    %4662 = vdwg.mxu0
    %4664 = vset.pattern.permute.xlu0 32
    %4665 = vperm.xlu0 %4664, %v4659
    %v4666 = vpop.permute.xlu0 %4665
    %4669 = vset.pattern.permute.xlu0 32
    %4670 = vperm.xlu0 %4669, %v4661
    %v4671 = vpop.permute.xlu0 %4670
    %4673 = vset.pattern.permute.xlu0 33
    %4674 = vperm.xlu0 %4673, %v4659
    %v4675 = vpop.permute.xlu0 %4674
    %4676 = vset.pattern.permute.xlu0 33
    %4677 = vperm.xlu0 %4676, %v4661
    %v4678 = vpop.permute.xlu0 %4677
    %v4679 = vperm.slane %v4675, %v238
    %v4680 = vperm.slane %v4678, %v238
    %v4681 = vsel %vm241, %v4679, %v4679
    %v4682 = vsel %vm243, %v4679, %v4681
    %v4683 = vsel %vm245, %v4679, %v4682
    %v4684 = vsel %vm247, %v4679, %v4683
    %v4685 = vsel %vm249, %v4679, %v4684
    %v4686 = vsel %vm251, %v4679, %v4685
    %v4687 = vsel %vm241, %v4680, %v4680
    %v4688 = vsel %vm243, %v4680, %v4687
    %v4689 = vsel %vm245, %v4680, %v4688
    %v4690 = vsel %vm247, %v4680, %v4689
    %v4691 = vsel %vm249, %v4680, %v4690
    %v4692 = vsel %vm251, %v4680, %v4691
    %v4695 = vadd.f32 %v4666, %v4686
    %v4696 = vadd.f32 %v4671, %v4692
    %v4697 = vmul.f32 %v4695, 0.2
    %v4698 = vmul.f32 %v4696, 0.2
    %v4699 = vmax.f32 %v4695, %v4697
    %v4700 = vmax.f32 %v4696, %v4698
    %v4701 = vadd.f32 %v4699, %v104
    %v4702 = vadd.f32 %v4700, %v104
    %v4703 = vsel %vm269, %v4701, -inf
    %4704 = vmax.xlane.f32.xlu0 %v4703
    %v4705 = vpop.xlane.xlu0 %4704
    %v4706 = vsel %vm269, %v4702, -inf
    %4707 = vmax.xlane.f32.xlu0 %v4706
    %v4708 = vpop.xlane.xlu0 %4707
    %v4709 = vsub.f32 %v4701, %v4705
    %v4710 = vsub.f32 %v4702, %v4708
    %v4711 = vmul.f32 %v4709, 1.442695
    %v4712 = vpow.pop %v4711
    %v4713 = vmul.f32 %v4710, 1.442695
    %v4714 = vpow.pop %v4713
    %v4715 = vsel %vm269, %v4712, 0.0
    %4716 = vadd.xlane.f32.xlu0 %v4715
    %v4717 = vpop.xlane.xlu0 %4716
    %v4718 = vsel %vm269, %v4714, 0.0
    %4719 = vadd.xlane.f32.xlu0 %v4718
    %v4720 = vpop.xlane.xlu0 %4719
    %v4721 = vrcp.pop %v4717
    %v4722 = vmul.f32 %v4717, %v4721
    %v4723 = vsub.f32 1.0, %v4722
    %v4724 = vmul.f32 %v4721, %v4723
    %v4725 = vadd.f32 %v4721, %v4724
    %vm4726 = vweird.f32 %v4717
    %vm4727 = vweird.f32 %v4721
    %vm4728 = vmor %vm4726, %vm4727
    %v4729 = vsel %vm4728, %v4721, %v4725
    %v4730 = vand.u32 2147483647, %v4717
    %vm4731 = vcmp.eq.f32.partialorder %v4730, 8.507059e+37
    %v4732 = vand.u32 %v4717, 2147483648
    %v4733 = vor.u32 1.1754944e-38, %v4732
    %v4734 = vsel %vm4731, %v4733, %v4729
    %v4735 = vmul.f32 %v4712, %v4734
    %v4736 = vrcp.pop %v4720
    %v4737 = vmul.f32 %v4720, %v4736
    %v4738 = vsub.f32 1.0, %v4737
    %v4739 = vmul.f32 %v4736, %v4738
    %v4740 = vadd.f32 %v4736, %v4739
    %vm4741 = vweird.f32 %v4720
    %vm4742 = vweird.f32 %v4736
    %vm4743 = vmor %vm4741, %vm4742
    %v4744 = vsel %vm4743, %v4736, %v4740
    %v4745 = vand.u32 2147483647, %v4720
    %vm4746 = vcmp.eq.f32.partialorder %v4745, 8.507059e+37
    %v4747 = vand.u32 %v4720, 2147483648
    %v4748 = vor.u32 1.1754944e-38, %v4747
    %v4749 = vsel %vm4746, %v4748, %v4744
    %v4750 = vmul.f32 %v4714, %v4749
    %v4751 = vpack.c.bf16 %v4735, %v4735
    %v4752 = vpack.c.bf16 %v4750, %v4750
    %v4753 = vpack.c.bf16 %v4659, %v4659
    %v4754 = vpack.c.bf16 %v4661, %v4661
    %v4756 = vsel %vm269, %v4751, 0
    %v4759 = vsel %vm151, %v4753, 0
    %4761 = vmatpush.bf16.msra.mxu0 0
    %4762 = vmatpush.bf16.msra.mxu0 0
    %4763 = vmatpush.bf16.msra.mxu0 0
    %4764 = vmatpush.bf16.msra.mxu0 0
    %4765 = vmatpush.bf16.msra.mxu0 0
    %4766 = vmatpush.bf16.msra.mxu0 0
    %4767 = vmatpush.bf16.msra.mxu0 0
    %4768 = vmatpush.bf16.msra.mxu0 %v4759
    %4769 = vmatmul.bf16.gmra.mxu0 %v4756
    %v4770 = vpop.f32.mrf.mxu0
    %v4771 = vadd.f32 0.0, %v4770
    %v4772 = vpop.f32.mrf.mxu0
    %4773 = vdwg.mxu0
    %v4775 = vsel %vm269, %v4752, 0
    %v4778 = vsel %vm151, %v4754, 0
    %4780 = vmatpush.bf16.msra.mxu0 0
    %4781 = vmatpush.bf16.msra.mxu0 0
    %4782 = vmatpush.bf16.msra.mxu0 0
    %4783 = vmatpush.bf16.msra.mxu0 0
    %4784 = vmatpush.bf16.msra.mxu0 0
    %4785 = vmatpush.bf16.msra.mxu0 0
    %4786 = vmatpush.bf16.msra.mxu0 0
    %4787 = vmatpush.bf16.msra.mxu0 %v4778
    %4788 = vmatmul.bf16.gmra.mxu0 %v4775
    %v4789 = vpop.f32.mrf.mxu0
    %v4790 = vadd.f32 0.0, %v4789
    %v4791 = vpop.f32.mrf.mxu0
    %4792 = vdwg.mxu0
    %v4793 = vtanh.pop %v4771
    %v4794 = vtanh.pop %v4790
    %v4795 = vmul.f32 %v4793, 0.125
    %v4796 = vmul.f32 %v4794, 0.125
    %v4797 = vadd.f32 %v4643, %v4795
    %v4798 = vadd.f32 %v4644, %v4796
    %v4799 = vpack.c.bf16 %v4798, %v4797
    %v4801 = vsel %vm203, %v4799, 0
    %4803 = vmatpush.bf16.msra.mxu0 0
    %4804 = vmatpush.bf16.msra.mxu0 0
    %4805 = vmatpush.bf16.msra.mxu0 0
    %4806 = vmatpush.bf16.msra.mxu0 0
    %4807 = vmatpush.bf16.msra.mxu0 0
    %4808 = vmatpush.bf16.msra.mxu0 0
    %4809 = vmatpush.bf16.msra.mxu0 %v200
    %4810 = vmatpush.bf16.msra.mxu0 %v199
    %4811 = vmatmul.bf16.gmra.mxu0 %v4801
    %v4812 = vpop.f32.mrf.mxu0
    %v4813 = vadd.f32 0.0, %v4812
    %v4814 = vpop.f32.mrf.mxu0
    %v4815 = vadd.f32 0.0, %v4814
    %4816 = vdwg.mxu0
    %4818 = vset.pattern.permute.xlu0 32
    %4819 = vperm.xlu0 %4818, %v4813
    %v4820 = vpop.permute.xlu0 %4819
    %4823 = vset.pattern.permute.xlu0 32
    %4824 = vperm.xlu0 %4823, %v4815
    %v4825 = vpop.permute.xlu0 %4824
    %4827 = vset.pattern.permute.xlu0 33
    %4828 = vperm.xlu0 %4827, %v4813
    %v4829 = vpop.permute.xlu0 %4828
    %4830 = vset.pattern.permute.xlu0 33
    %4831 = vperm.xlu0 %4830, %v4815
    %v4832 = vpop.permute.xlu0 %4831
    %v4833 = vperm.slane %v4829, %v238
    %v4834 = vperm.slane %v4832, %v238
    %v4835 = vsel %vm241, %v4833, %v4833
    %v4836 = vsel %vm243, %v4833, %v4835
    %v4837 = vsel %vm245, %v4833, %v4836
    %v4838 = vsel %vm247, %v4833, %v4837
    %v4839 = vsel %vm249, %v4833, %v4838
    %v4840 = vsel %vm251, %v4833, %v4839
    %v4841 = vsel %vm241, %v4834, %v4834
    %v4842 = vsel %vm243, %v4834, %v4841
    %v4843 = vsel %vm245, %v4834, %v4842
    %v4844 = vsel %vm247, %v4834, %v4843
    %v4845 = vsel %vm249, %v4834, %v4844
    %v4846 = vsel %vm251, %v4834, %v4845
    %v4849 = vadd.f32 %v4820, %v4840
    %v4850 = vadd.f32 %v4825, %v4846
    %v4851 = vmul.f32 %v4849, 0.2
    %v4852 = vmul.f32 %v4850, 0.2
    %v4853 = vmax.f32 %v4849, %v4851
    %v4854 = vmax.f32 %v4850, %v4852
    %v4855 = vadd.f32 %v4853, %v104
    %v4856 = vadd.f32 %v4854, %v104
    %v4857 = vsel %vm269, %v4855, -inf
    %4858 = vmax.xlane.f32.xlu0 %v4857
    %v4859 = vpop.xlane.xlu0 %4858
    %v4860 = vsel %vm269, %v4856, -inf
    %4861 = vmax.xlane.f32.xlu0 %v4860
    %v4862 = vpop.xlane.xlu0 %4861
    %v4863 = vsub.f32 %v4855, %v4859
    %v4864 = vsub.f32 %v4856, %v4862
    %v4865 = vmul.f32 %v4863, 1.442695
    %v4866 = vpow.pop %v4865
    %v4867 = vmul.f32 %v4864, 1.442695
    %v4868 = vpow.pop %v4867
    %v4869 = vsel %vm269, %v4866, 0.0
    %4870 = vadd.xlane.f32.xlu0 %v4869
    %v4871 = vpop.xlane.xlu0 %4870
    %v4872 = vsel %vm269, %v4868, 0.0
    %4873 = vadd.xlane.f32.xlu0 %v4872
    %v4874 = vpop.xlane.xlu0 %4873
    %v4875 = vrcp.pop %v4871
    %v4876 = vmul.f32 %v4871, %v4875
    %v4877 = vsub.f32 1.0, %v4876
    %v4878 = vmul.f32 %v4875, %v4877
    %v4879 = vadd.f32 %v4875, %v4878
    %vm4880 = vweird.f32 %v4871
    %vm4881 = vweird.f32 %v4875
    %vm4882 = vmor %vm4880, %vm4881
    %v4883 = vsel %vm4882, %v4875, %v4879
    %v4884 = vand.u32 2147483647, %v4871
    %vm4885 = vcmp.eq.f32.partialorder %v4884, 8.507059e+37
    %v4886 = vand.u32 %v4871, 2147483648
    %v4887 = vor.u32 1.1754944e-38, %v4886
    %v4888 = vsel %vm4885, %v4887, %v4883
    %v4889 = vmul.f32 %v4866, %v4888
    %v4890 = vrcp.pop %v4874
    %v4891 = vmul.f32 %v4874, %v4890
    %v4892 = vsub.f32 1.0, %v4891
    %v4893 = vmul.f32 %v4890, %v4892
    %v4894 = vadd.f32 %v4890, %v4893
    %vm4895 = vweird.f32 %v4874
    %vm4896 = vweird.f32 %v4890
    %vm4897 = vmor %vm4895, %vm4896
    %v4898 = vsel %vm4897, %v4890, %v4894
    %v4899 = vand.u32 2147483647, %v4874
    %vm4900 = vcmp.eq.f32.partialorder %v4899, 8.507059e+37
    %v4901 = vand.u32 %v4874, 2147483648
    %v4902 = vor.u32 1.1754944e-38, %v4901
    %v4903 = vsel %vm4900, %v4902, %v4898
    %v4904 = vmul.f32 %v4868, %v4903
    %v4905 = vpack.c.bf16 %v4889, %v4889
    %v4906 = vpack.c.bf16 %v4904, %v4904
    %v4907 = vpack.c.bf16 %v4813, %v4813
    %v4908 = vpack.c.bf16 %v4815, %v4815
    %v4910 = vsel %vm269, %v4905, 0
    %v4913 = vsel %vm151, %v4907, 0
    %4915 = vmatpush.bf16.msra.mxu0 0
    %4916 = vmatpush.bf16.msra.mxu0 0
    %4917 = vmatpush.bf16.msra.mxu0 0
    %4918 = vmatpush.bf16.msra.mxu0 0
    %4919 = vmatpush.bf16.msra.mxu0 0
    %4920 = vmatpush.bf16.msra.mxu0 0
    %4921 = vmatpush.bf16.msra.mxu0 0
    %4922 = vmatpush.bf16.msra.mxu0 %v4913
    %4923 = vmatmul.bf16.gmra.mxu0 %v4910
    %v4924 = vpop.f32.mrf.mxu0
    %v4925 = vadd.f32 0.0, %v4924
    %v4926 = vpop.f32.mrf.mxu0
    %4927 = vdwg.mxu0
    %v4929 = vsel %vm269, %v4906, 0
    %v4932 = vsel %vm151, %v4908, 0
    %4934 = vmatpush.bf16.msra.mxu0 0
    %4935 = vmatpush.bf16.msra.mxu0 0
    %4936 = vmatpush.bf16.msra.mxu0 0
    %4937 = vmatpush.bf16.msra.mxu0 0
    %4938 = vmatpush.bf16.msra.mxu0 0
    %4939 = vmatpush.bf16.msra.mxu0 0
    %4940 = vmatpush.bf16.msra.mxu0 0
    %4941 = vmatpush.bf16.msra.mxu0 %v4932
    %4942 = vmatmul.bf16.gmra.mxu0 %v4929
    %v4943 = vpop.f32.mrf.mxu0
    %v4944 = vadd.f32 0.0, %v4943
    %v4945 = vpop.f32.mrf.mxu0
    %4946 = vdwg.mxu0
    %v4947 = vtanh.pop %v4925
    %v4948 = vtanh.pop %v4944
    %v4949 = vmul.f32 %v4947, 0.125
    %v4950 = vmul.f32 %v4948, 0.125
    %v4951 = vadd.f32 %v4643, %v4949
    %v4952 = vadd.f32 %v4644, %v4950
    %v4953 = vpack.c.bf16 %v4952, %v4951
    %v4955 = vsel %vm203, %v4953, 0
    %4957 = vmatpush.bf16.msra.mxu0 0
    %4958 = vmatpush.bf16.msra.mxu0 0
    %4959 = vmatpush.bf16.msra.mxu0 0
    %4960 = vmatpush.bf16.msra.mxu0 0
    %4961 = vmatpush.bf16.msra.mxu0 0
    %4962 = vmatpush.bf16.msra.mxu0 0
    %4963 = vmatpush.bf16.msra.mxu0 %v200
    %4964 = vmatpush.bf16.msra.mxu0 %v199
    %4965 = vmatmul.bf16.gmra.mxu0 %v4955
    %v4966 = vpop.f32.mrf.mxu0
    %v4967 = vadd.f32 0.0, %v4966
    %v4968 = vpop.f32.mrf.mxu0
    %v4969 = vadd.f32 0.0, %v4968
    %4970 = vdwg.mxu0
    %4972 = vset.pattern.permute.xlu0 32
    %4973 = vperm.xlu0 %4972, %v4967
    %v4974 = vpop.permute.xlu0 %4973
    %4977 = vset.pattern.permute.xlu0 32
    %4978 = vperm.xlu0 %4977, %v4969
    %v4979 = vpop.permute.xlu0 %4978
    %4981 = vset.pattern.permute.xlu0 33
    %4982 = vperm.xlu0 %4981, %v4967
    %v4983 = vpop.permute.xlu0 %4982
    %4984 = vset.pattern.permute.xlu0 33
    %4985 = vperm.xlu0 %4984, %v4969
    %v4986 = vpop.permute.xlu0 %4985
    %v4987 = vperm.slane %v4983, %v238
    %v4988 = vperm.slane %v4986, %v238
    %v4989 = vsel %vm241, %v4987, %v4987
    %v4990 = vsel %vm243, %v4987, %v4989
    %v4991 = vsel %vm245, %v4987, %v4990
    %v4992 = vsel %vm247, %v4987, %v4991
    %v4993 = vsel %vm249, %v4987, %v4992
    %v4994 = vsel %vm251, %v4987, %v4993
    %v4995 = vsel %vm241, %v4988, %v4988
    %v4996 = vsel %vm243, %v4988, %v4995
    %v4997 = vsel %vm245, %v4988, %v4996
    %v4998 = vsel %vm247, %v4988, %v4997
    %v4999 = vsel %vm249, %v4988, %v4998
    %v5000 = vsel %vm251, %v4988, %v4999
    %v5003 = vadd.f32 %v4974, %v4994
    %v5004 = vadd.f32 %v4979, %v5000
    %v5005 = vmul.f32 %v5003, 0.2
    %v5006 = vmul.f32 %v5004, 0.2
    %v5007 = vmax.f32 %v5003, %v5005
    %v5008 = vmax.f32 %v5004, %v5006
    %v5009 = vadd.f32 %v5007, %v104
    %v5010 = vadd.f32 %v5008, %v104
    %v5011 = vsel %vm269, %v5009, -inf
    %5012 = vmax.xlane.f32.xlu0 %v5011
    %v5013 = vpop.xlane.xlu0 %5012
    %v5014 = vsel %vm269, %v5010, -inf
    %5015 = vmax.xlane.f32.xlu0 %v5014
    %v5016 = vpop.xlane.xlu0 %5015
    %v5017 = vsub.f32 %v5009, %v5013
    %v5018 = vsub.f32 %v5010, %v5016
    %v5019 = vmul.f32 %v5017, 1.442695
    %v5020 = vpow.pop %v5019
    %v5021 = vmul.f32 %v5018, 1.442695
    %v5022 = vpow.pop %v5021
    %v5023 = vsel %vm269, %v5020, 0.0
    %5024 = vadd.xlane.f32.xlu0 %v5023
    %v5025 = vpop.xlane.xlu0 %5024
    %v5026 = vsel %vm269, %v5022, 0.0
    %5027 = vadd.xlane.f32.xlu0 %v5026
    %v5028 = vpop.xlane.xlu0 %5027
    %v5029 = vrcp.pop %v5025
    %v5030 = vmul.f32 %v5025, %v5029
    %v5031 = vsub.f32 1.0, %v5030
    %v5032 = vmul.f32 %v5029, %v5031
    %v5033 = vadd.f32 %v5029, %v5032
    %vm5034 = vweird.f32 %v5025
    %vm5035 = vweird.f32 %v5029
    %vm5036 = vmor %vm5034, %vm5035
    %v5037 = vsel %vm5036, %v5029, %v5033
    %v5038 = vand.u32 2147483647, %v5025
    %vm5039 = vcmp.eq.f32.partialorder %v5038, 8.507059e+37
    %v5040 = vand.u32 %v5025, 2147483648
    %v5041 = vor.u32 1.1754944e-38, %v5040
    %v5042 = vsel %vm5039, %v5041, %v5037
    %v5043 = vmul.f32 %v5020, %v5042
    %v5044 = vrcp.pop %v5028
    %v5045 = vmul.f32 %v5028, %v5044
    %v5046 = vsub.f32 1.0, %v5045
    %v5047 = vmul.f32 %v5044, %v5046
    %v5048 = vadd.f32 %v5044, %v5047
    %vm5049 = vweird.f32 %v5028
    %vm5050 = vweird.f32 %v5044
    %vm5051 = vmor %vm5049, %vm5050
    %v5052 = vsel %vm5051, %v5044, %v5048
    %v5053 = vand.u32 2147483647, %v5028
    %vm5054 = vcmp.eq.f32.partialorder %v5053, 8.507059e+37
    %v5055 = vand.u32 %v5028, 2147483648
    %v5056 = vor.u32 1.1754944e-38, %v5055
    %v5057 = vsel %vm5054, %v5056, %v5052
    %v5058 = vmul.f32 %v5022, %v5057
    %v5059 = vpack.c.bf16 %v5043, %v5043
    %v5060 = vpack.c.bf16 %v5058, %v5058
    %v5061 = vpack.c.bf16 %v4967, %v4967
    %v5062 = vpack.c.bf16 %v4969, %v4969
    %v5064 = vsel %vm269, %v5059, 0
    %v5067 = vsel %vm151, %v5061, 0
    %5069 = vmatpush.bf16.msra.mxu0 0
    %5070 = vmatpush.bf16.msra.mxu0 0
    %5071 = vmatpush.bf16.msra.mxu0 0
    %5072 = vmatpush.bf16.msra.mxu0 0
    %5073 = vmatpush.bf16.msra.mxu0 0
    %5074 = vmatpush.bf16.msra.mxu0 0
    %5075 = vmatpush.bf16.msra.mxu0 0
    %5076 = vmatpush.bf16.msra.mxu0 %v5067
    %5077 = vmatmul.bf16.gmra.mxu0 %v5064
    %v5078 = vpop.f32.mrf.mxu0
    %v5079 = vadd.f32 0.0, %v5078
    %v5080 = vpop.f32.mrf.mxu0
    %5081 = vdwg.mxu0
    %v5083 = vsel %vm269, %v5060, 0
    %v5086 = vsel %vm151, %v5062, 0
    %5088 = vmatpush.bf16.msra.mxu0 0
    %5089 = vmatpush.bf16.msra.mxu0 0
    %5090 = vmatpush.bf16.msra.mxu0 0
    %5091 = vmatpush.bf16.msra.mxu0 0
    %5092 = vmatpush.bf16.msra.mxu0 0
    %5093 = vmatpush.bf16.msra.mxu0 0
    %5094 = vmatpush.bf16.msra.mxu0 0
    %5095 = vmatpush.bf16.msra.mxu0 %v5086
    %5096 = vmatmul.bf16.gmra.mxu0 %v5083
    %v5097 = vpop.f32.mrf.mxu0
    %v5098 = vadd.f32 0.0, %v5097
    %v5099 = vpop.f32.mrf.mxu0
    %5100 = vdwg.mxu0
    %v5101 = vtanh.pop %v5079
    %v5102 = vtanh.pop %v5098
    %v5103 = vmul.f32 %v5101, 0.25
    %v5104 = vmul.f32 %v5102, 0.25
    %v5105 = vadd.f32 %v4643, %v5103
    %v5106 = vadd.f32 %v4644, %v5104
    %v5107 = vpack.c.bf16 %v5106, %v5105
    %v5109 = vsel %vm203, %v5107, 0
    %5111 = vmatpush.bf16.msra.mxu0 0
    %5112 = vmatpush.bf16.msra.mxu0 0
    %5113 = vmatpush.bf16.msra.mxu0 0
    %5114 = vmatpush.bf16.msra.mxu0 0
    %5115 = vmatpush.bf16.msra.mxu0 0
    %5116 = vmatpush.bf16.msra.mxu0 0
    %5117 = vmatpush.bf16.msra.mxu0 %v200
    %5118 = vmatpush.bf16.msra.mxu0 %v199
    %5119 = vmatmul.bf16.gmra.mxu0 %v5109
    %v5120 = vpop.f32.mrf.mxu0
    %v5121 = vadd.f32 0.0, %v5120
    %v5122 = vpop.f32.mrf.mxu0
    %v5123 = vadd.f32 0.0, %v5122
    %5124 = vdwg.mxu0
    %5126 = vset.pattern.permute.xlu0 32
    %5127 = vperm.xlu0 %5126, %v5121
    %v5128 = vpop.permute.xlu0 %5127
    %5131 = vset.pattern.permute.xlu0 32
    %5132 = vperm.xlu0 %5131, %v5123
    %v5133 = vpop.permute.xlu0 %5132
    %5135 = vset.pattern.permute.xlu0 33
    %5136 = vperm.xlu0 %5135, %v5121
    %v5137 = vpop.permute.xlu0 %5136
    %5138 = vset.pattern.permute.xlu0 33
    %5139 = vperm.xlu0 %5138, %v5123
    %v5140 = vpop.permute.xlu0 %5139
    %v5141 = vperm.slane %v5137, %v238
    %v5142 = vperm.slane %v5140, %v238
    %v5143 = vsel %vm241, %v5141, %v5141
    %v5144 = vsel %vm243, %v5141, %v5143
    %v5145 = vsel %vm245, %v5141, %v5144
    %v5146 = vsel %vm247, %v5141, %v5145
    %v5147 = vsel %vm249, %v5141, %v5146
    %v5148 = vsel %vm251, %v5141, %v5147
    %v5149 = vsel %vm241, %v5142, %v5142
    %v5150 = vsel %vm243, %v5142, %v5149
    %v5151 = vsel %vm245, %v5142, %v5150
    %v5152 = vsel %vm247, %v5142, %v5151
    %v5153 = vsel %vm249, %v5142, %v5152
    %v5154 = vsel %vm251, %v5142, %v5153
    %v5157 = vadd.f32 %v5128, %v5148
    %v5158 = vadd.f32 %v5133, %v5154
    %v5159 = vmul.f32 %v5157, 0.2
    %v5160 = vmul.f32 %v5158, 0.2
    %v5161 = vmax.f32 %v5157, %v5159
    %v5162 = vmax.f32 %v5158, %v5160
    %v5163 = vadd.f32 %v5161, %v104
    %v5164 = vadd.f32 %v5162, %v104
    %v5165 = vsel %vm269, %v5163, -inf
    %5166 = vmax.xlane.f32.xlu0 %v5165
    %v5167 = vpop.xlane.xlu0 %5166
    %v5168 = vsel %vm269, %v5164, -inf
    %5169 = vmax.xlane.f32.xlu0 %v5168
    %v5170 = vpop.xlane.xlu0 %5169
    %v5171 = vsub.f32 %v5163, %v5167
    %v5172 = vsub.f32 %v5164, %v5170
    %v5173 = vmul.f32 %v5171, 1.442695
    %v5174 = vpow.pop %v5173
    %v5175 = vmul.f32 %v5172, 1.442695
    %v5176 = vpow.pop %v5175
    %v5177 = vsel %vm269, %v5174, 0.0
    %5178 = vadd.xlane.f32.xlu0 %v5177
    %v5179 = vpop.xlane.xlu0 %5178
    %v5180 = vsel %vm269, %v5176, 0.0
    %5181 = vadd.xlane.f32.xlu0 %v5180
    %v5182 = vpop.xlane.xlu0 %5181
    %v5183 = vrcp.pop %v5179
    %v5184 = vmul.f32 %v5179, %v5183
    %v5185 = vsub.f32 1.0, %v5184
    %v5186 = vmul.f32 %v5183, %v5185
    %v5187 = vadd.f32 %v5183, %v5186
    %vm5188 = vweird.f32 %v5179
    %vm5189 = vweird.f32 %v5183
    %vm5190 = vmor %vm5188, %vm5189
    %v5191 = vsel %vm5190, %v5183, %v5187
    %v5192 = vand.u32 2147483647, %v5179
    %vm5193 = vcmp.eq.f32.partialorder %v5192, 8.507059e+37
    %v5194 = vand.u32 %v5179, 2147483648
    %v5195 = vor.u32 1.1754944e-38, %v5194
    %v5196 = vsel %vm5193, %v5195, %v5191
    %v5197 = vmul.f32 %v5174, %v5196
    %v5198 = vrcp.pop %v5182
    %v5199 = vmul.f32 %v5182, %v5198
    %v5200 = vsub.f32 1.0, %v5199
    %v5201 = vmul.f32 %v5198, %v5200
    %v5202 = vadd.f32 %v5198, %v5201
    %vm5203 = vweird.f32 %v5182
    %vm5204 = vweird.f32 %v5198
    %vm5205 = vmor %vm5203, %vm5204
    %v5206 = vsel %vm5205, %v5198, %v5202
    %v5207 = vand.u32 2147483647, %v5182
    %vm5208 = vcmp.eq.f32.partialorder %v5207, 8.507059e+37
    %v5209 = vand.u32 %v5182, 2147483648
    %v5210 = vor.u32 1.1754944e-38, %v5209
    %v5211 = vsel %vm5208, %v5210, %v5206
    %v5212 = vmul.f32 %v5176, %v5211
    %v5213 = vpack.c.bf16 %v5197, %v5197
    %v5214 = vpack.c.bf16 %v5212, %v5212
    %v5215 = vpack.c.bf16 %v5121, %v5121
    %v5216 = vpack.c.bf16 %v5123, %v5123
    %v5218 = vsel %vm269, %v5213, 0
    %v5221 = vsel %vm151, %v5215, 0
    %5223 = vmatpush.bf16.msra.mxu0 0
    %5224 = vmatpush.bf16.msra.mxu0 0
    %5225 = vmatpush.bf16.msra.mxu0 0
    %5226 = vmatpush.bf16.msra.mxu0 0
    %5227 = vmatpush.bf16.msra.mxu0 0
    %5228 = vmatpush.bf16.msra.mxu0 0
    %5229 = vmatpush.bf16.msra.mxu0 0
    %5230 = vmatpush.bf16.msra.mxu0 %v5221
    %5231 = vmatmul.bf16.gmra.mxu0 %v5218
    %v5232 = vpop.f32.mrf.mxu0
    %v5233 = vadd.f32 0.0, %v5232
    %v5234 = vpop.f32.mrf.mxu0
    %5235 = vdwg.mxu0
    %v5237 = vsel %vm269, %v5214, 0
    %v5240 = vsel %vm151, %v5216, 0
    %5242 = vmatpush.bf16.msra.mxu0 0
    %5243 = vmatpush.bf16.msra.mxu0 0
    %5244 = vmatpush.bf16.msra.mxu0 0
    %5245 = vmatpush.bf16.msra.mxu0 0
    %5246 = vmatpush.bf16.msra.mxu0 0
    %5247 = vmatpush.bf16.msra.mxu0 0
    %5248 = vmatpush.bf16.msra.mxu0 0
    %5249 = vmatpush.bf16.msra.mxu0 %v5240
    %5250 = vmatmul.bf16.gmra.mxu0 %v5237
    %v5251 = vpop.f32.mrf.mxu0
    %v5252 = vadd.f32 0.0, %v5251
    %v5253 = vpop.f32.mrf.mxu0
    %5254 = vdwg.mxu0
    %v5255 = vtanh.pop %v5233
    %v5256 = vtanh.pop %v5252
    %v5257 = vmul.f32 %v4947, 2.0
    %v5258 = vmul.f32 %v4948, 2.0
    %v5259 = vadd.f32 %v4793, %v5257
    %v5260 = vadd.f32 %v4794, %v5258
    %v5261 = vmul.f32 %v5101, 2.0
    %v5262 = vmul.f32 %v5102, 2.0
    %v5263 = vadd.f32 %v5259, %v5261
    %v5264 = vadd.f32 %v5260, %v5262
    %v5265 = vadd.f32 %v5263, %v5255
    %v5266 = vadd.f32 %v5264, %v5256
    %v5267 = vmul.f32 %v5265, 0.041666668
    %v5268 = vmul.f32 %v5266, 0.041666668
    %v5269 = vadd.f32 %v4643, %v5267
    %v5270 = vadd.f32 %v4644, %v5268
    %v5272 = vsel %vm203, %v179, 0
    %v5275 = vsel %vm203, %v182, 0
    %5277 = vmatpush.msra.mxu0 0.0
    %5278 = vmatpush.msra.mxu0 0.0
    %5279 = vmatpush.msra.mxu0 0.0
    %5280 = vmatpush.msra.mxu0 0.0
    %5281 = vmatpush.msra.mxu0 0.0
    %5282 = vmatpush.msra.mxu0 0.0
    %5283 = vmatpush.msra.mxu0 0.0
    %5284 = vmatpush.msra.mxu0 0.0
    %5285 = vmatpush.msra.mxu0 0.0
    %5286 = vmatpush.msra.mxu0 0.0
    %5287 = vmatpush.msra.mxu0 0.0
    %5288 = vmatpush.msra.mxu0 0.0
    %5289 = vmatpush.msra.mxu0 %v116
    %5290 = vmatpush.msra.mxu0 %v115
    %5291 = vmatpush.msra.mxu0 %v114
    %5292 = vmatpush.msra.mxu0 %v113
    %5293 = vmatmul.f32.gmra.mxu0 %v5272
    %v5294 = vpop.f32.mrf.mxu0
    %v5295 = vadd.f32 0.0, %v5294
    %5296 = vmatmul.f32.gmra.mxu0 %v5275
    %v5297 = vpop.f32.mrf.mxu0
    %v5298 = vadd.f32 0.0, %v5297
    %5299 = vdwg.mxu0
    %v5301 = vsel %vm203, %v5269, 0
    %v5304 = vsel %vm203, %v5270, 0
    %5306 = vmatpush.msra.mxu0 0.0
    %5307 = vmatpush.msra.mxu0 0.0
    %5308 = vmatpush.msra.mxu0 0.0
    %5309 = vmatpush.msra.mxu0 0.0
    %5310 = vmatpush.msra.mxu0 0.0
    %5311 = vmatpush.msra.mxu0 0.0
    %5312 = vmatpush.msra.mxu0 0.0
    %5313 = vmatpush.msra.mxu0 0.0
    %5314 = vmatpush.msra.mxu0 0.0
    %5315 = vmatpush.msra.mxu0 0.0
    %5316 = vmatpush.msra.mxu0 0.0
    %5317 = vmatpush.msra.mxu0 0.0
    %5318 = vmatpush.msra.mxu0 %v112
    %5319 = vmatpush.msra.mxu0 %v111
    %5320 = vmatpush.msra.mxu0 %v110
    %5321 = vmatpush.msra.mxu0 %v109
    %5322 = vmatmul.f32.gmra.mxu0 %v5301
    %v5323 = vpop.f32.mrf.mxu0
    %v5324 = vadd.f32 %v5295, %v5323
    %5325 = vmatmul.f32.gmra.mxu0 %v5304
    %v5326 = vpop.f32.mrf.mxu0
    %v5327 = vadd.f32 %v5298, %v5326
    %5328 = vdwg.mxu0
    %v5329 = vadd.f32 %v5324, %v119
    %v5330 = vadd.f32 %v5327, %v119
    %v5331 = vtanh.pop %v5329
    %v5332 = vtanh.pop %v5330
    %v5333 = vsel %vm203, %v5331, 0.0
    %5334 = vadd.xlane.f32.xlu0 %v5333
    %v5335 = vpop.xlane.xlu0 %5334
    %v5336 = vsel %vm203, %v5332, 0.0
    %5337 = vadd.xlane.f32.xlu0 %v5336
    %v5338 = vpop.xlane.xlu0 %5337
    %v5339 = vmul.f32 %v5335, %v2728
    %v5340 = vmul.f32 %v5338, %v2728
    %v5341 = vsub.f32 %v5331, %v5339
    %v5342 = vsub.f32 %v5332, %v5340
    %v5343 = vmul.f32 %v5341, %v5341
    %v5344 = vmul.f32 %v5342, %v5342
    %v5345 = vsel %vm203, %v5343, 0.0
    %5346 = vadd.xlane.f32.xlu0 %v5345
    %v5347 = vpop.xlane.xlu0 %5346
    %v5348 = vsel %vm203, %v5344, 0.0
    %5349 = vadd.xlane.f32.xlu0 %v5348
    %v5350 = vpop.xlane.xlu0 %5349
    %v5351 = vmul.f32 %v5347, %v2728
    %v5352 = vmul.f32 %v5350, %v2728
    %v5353 = vadd.f32 %v5351, 1e-05
    %v5354 = vadd.f32 %v5352, 1e-05
    %v5355 = vrsqrt.pop %v5353
    %v5356 = vmul.f32 %v5355, %v5353
    %v5357 = vmul.f32 %v5356, %v5355
    %v5358 = vmul.f32 0.5, %v5357
    %v5359 = vsub.f32 1.5, %v5358
    %v5360 = vmul.f32 %v5355, %v5359
    %vm5361 = vweird.f32 %v5353
    %vm5362 = vweird.f32 %v5355
    %vm5363 = vmor %vm5361, %vm5362
    %v5364 = vsel %vm5363, %v5355, %v5360
    %v5365 = vrsqrt.pop %v5354
    %v5366 = vmul.f32 %v5365, %v5354
    %v5367 = vmul.f32 %v5366, %v5365
    %v5368 = vmul.f32 0.5, %v5367
    %v5369 = vsub.f32 1.5, %v5368
    %v5370 = vmul.f32 %v5365, %v5369
    %vm5371 = vweird.f32 %v5354
    %vm5372 = vweird.f32 %v5365
    %vm5373 = vmor %vm5371, %vm5372
    %v5374 = vsel %vm5373, %v5365, %v5370
    %v5375 = vmul.f32 %v5341, %v5364
    %v5376 = vmul.f32 %v5342, %v5374
    %v5377 = vpack.c.bf16 %v5376, %v5375
    %v5379 = vsel %vm203, %v5377, 0
    %5381 = vmatpush.bf16.msra.mxu0 0
    %5382 = vmatpush.bf16.msra.mxu0 0
    %5383 = vmatpush.bf16.msra.mxu0 0
    %5384 = vmatpush.bf16.msra.mxu0 0
    %5385 = vmatpush.bf16.msra.mxu0 0
    %5386 = vmatpush.bf16.msra.mxu0 0
    %5387 = vmatpush.bf16.msra.mxu0 %v200
    %5388 = vmatpush.bf16.msra.mxu0 %v199
    %5389 = vmatmul.bf16.gmra.mxu0 %v5379
    %v5390 = vpop.f32.mrf.mxu0
    %v5391 = vadd.f32 0.0, %v5390
    %v5392 = vpop.f32.mrf.mxu0
    %v5393 = vadd.f32 0.0, %v5392
    %5394 = vdwg.mxu0
    %5396 = vset.pattern.permute.xlu0 32
    %5397 = vperm.xlu0 %5396, %v5391
    %v5398 = vpop.permute.xlu0 %5397
    %5401 = vset.pattern.permute.xlu0 32
    %5402 = vperm.xlu0 %5401, %v5393
    %v5403 = vpop.permute.xlu0 %5402
    %5405 = vset.pattern.permute.xlu0 33
    %5406 = vperm.xlu0 %5405, %v5391
    %v5407 = vpop.permute.xlu0 %5406
    %5408 = vset.pattern.permute.xlu0 33
    %5409 = vperm.xlu0 %5408, %v5393
    %v5410 = vpop.permute.xlu0 %5409
    %v5411 = vperm.slane %v5407, %v238
    %v5412 = vperm.slane %v5410, %v238
    %v5413 = vsel %vm241, %v5411, %v5411
    %v5414 = vsel %vm243, %v5411, %v5413
    %v5415 = vsel %vm245, %v5411, %v5414
    %v5416 = vsel %vm247, %v5411, %v5415
    %v5417 = vsel %vm249, %v5411, %v5416
    %v5418 = vsel %vm251, %v5411, %v5417
    %v5419 = vsel %vm241, %v5412, %v5412
    %v5420 = vsel %vm243, %v5412, %v5419
    %v5421 = vsel %vm245, %v5412, %v5420
    %v5422 = vsel %vm247, %v5412, %v5421
    %v5423 = vsel %vm249, %v5412, %v5422
    %v5424 = vsel %vm251, %v5412, %v5423
    %v5427 = vadd.f32 %v5398, %v5418
    %v5428 = vadd.f32 %v5403, %v5424
    %v5429 = vmul.f32 %v5427, 0.2
    %v5430 = vmul.f32 %v5428, 0.2
    %v5431 = vmax.f32 %v5427, %v5429
    %v5432 = vmax.f32 %v5428, %v5430
    %v5433 = vadd.f32 %v5431, %v104
    %v5434 = vadd.f32 %v5432, %v104
    %v5435 = vsel %vm269, %v5433, -inf
    %5436 = vmax.xlane.f32.xlu0 %v5435
    %v5437 = vpop.xlane.xlu0 %5436
    %v5438 = vsel %vm269, %v5434, -inf
    %5439 = vmax.xlane.f32.xlu0 %v5438
    %v5440 = vpop.xlane.xlu0 %5439
    %v5441 = vsub.f32 %v5433, %v5437
    %v5442 = vsub.f32 %v5434, %v5440
    %v5443 = vmul.f32 %v5441, 1.442695
    %v5444 = vpow.pop %v5443
    %v5445 = vmul.f32 %v5442, 1.442695
    %v5446 = vpow.pop %v5445
    %v5447 = vsel %vm269, %v5444, 0.0
    %5448 = vadd.xlane.f32.xlu0 %v5447
    %v5449 = vpop.xlane.xlu0 %5448
    %v5450 = vsel %vm269, %v5446, 0.0
    %5451 = vadd.xlane.f32.xlu0 %v5450
    %v5452 = vpop.xlane.xlu0 %5451
    %v5453 = vrcp.pop %v5449
    %v5454 = vmul.f32 %v5449, %v5453
    %v5455 = vsub.f32 1.0, %v5454
    %v5456 = vmul.f32 %v5453, %v5455
    %v5457 = vadd.f32 %v5453, %v5456
    %vm5458 = vweird.f32 %v5449
    %vm5459 = vweird.f32 %v5453
    %vm5460 = vmor %vm5458, %vm5459
    %v5461 = vsel %vm5460, %v5453, %v5457
    %v5462 = vand.u32 2147483647, %v5449
    %vm5463 = vcmp.eq.f32.partialorder %v5462, 8.507059e+37
    %v5464 = vand.u32 %v5449, 2147483648
    %v5465 = vor.u32 1.1754944e-38, %v5464
    %v5466 = vsel %vm5463, %v5465, %v5461
    %v5467 = vmul.f32 %v5444, %v5466
    %v5468 = vrcp.pop %v5452
    %v5469 = vmul.f32 %v5452, %v5468
    %v5470 = vsub.f32 1.0, %v5469
    %v5471 = vmul.f32 %v5468, %v5470
    %v5472 = vadd.f32 %v5468, %v5471
    %vm5473 = vweird.f32 %v5452
    %vm5474 = vweird.f32 %v5468
    %vm5475 = vmor %vm5473, %vm5474
    %v5476 = vsel %vm5475, %v5468, %v5472
    %v5477 = vand.u32 2147483647, %v5452
    %vm5478 = vcmp.eq.f32.partialorder %v5477, 8.507059e+37
    %v5479 = vand.u32 %v5452, 2147483648
    %v5480 = vor.u32 1.1754944e-38, %v5479
    %v5481 = vsel %vm5478, %v5480, %v5476
    %v5482 = vmul.f32 %v5446, %v5481
    %v5483 = vpack.c.bf16 %v5467, %v5467
    %v5484 = vpack.c.bf16 %v5482, %v5482
    %v5485 = vpack.c.bf16 %v5391, %v5391
    %v5486 = vpack.c.bf16 %v5393, %v5393
    %v5488 = vsel %vm269, %v5483, 0
    %v5491 = vsel %vm151, %v5485, 0
    %5493 = vmatpush.bf16.msra.mxu0 0
    %5494 = vmatpush.bf16.msra.mxu0 0
    %5495 = vmatpush.bf16.msra.mxu0 0
    %5496 = vmatpush.bf16.msra.mxu0 0
    %5497 = vmatpush.bf16.msra.mxu0 0
    %5498 = vmatpush.bf16.msra.mxu0 0
    %5499 = vmatpush.bf16.msra.mxu0 0
    %5500 = vmatpush.bf16.msra.mxu0 %v5491
    %5501 = vmatmul.bf16.gmra.mxu0 %v5488
    %v5502 = vpop.f32.mrf.mxu0
    %v5503 = vadd.f32 0.0, %v5502
    %v5504 = vpop.f32.mrf.mxu0
    %5505 = vdwg.mxu0
    %v5507 = vsel %vm269, %v5484, 0
    %v5510 = vsel %vm151, %v5486, 0
    %5512 = vmatpush.bf16.msra.mxu0 0
    %5513 = vmatpush.bf16.msra.mxu0 0
    %5514 = vmatpush.bf16.msra.mxu0 0
    %5515 = vmatpush.bf16.msra.mxu0 0
    %5516 = vmatpush.bf16.msra.mxu0 0
    %5517 = vmatpush.bf16.msra.mxu0 0
    %5518 = vmatpush.bf16.msra.mxu0 0
    %5519 = vmatpush.bf16.msra.mxu0 %v5510
    %5520 = vmatmul.bf16.gmra.mxu0 %v5507
    %v5521 = vpop.f32.mrf.mxu0
    %v5522 = vadd.f32 0.0, %v5521
    %v5523 = vpop.f32.mrf.mxu0
    %5524 = vdwg.mxu0
    %v5525 = vtanh.pop %v5503
    %v5526 = vtanh.pop %v5522
    %v5527 = vmul.f32 %v5525, 0.125
    %v5528 = vmul.f32 %v5526, 0.125
    %v5529 = vadd.f32 %v5375, %v5527
    %v5530 = vadd.f32 %v5376, %v5528
    %v5531 = vpack.c.bf16 %v5530, %v5529
    %v5533 = vsel %vm203, %v5531, 0
    %5535 = vmatpush.bf16.msra.mxu0 0
    %5536 = vmatpush.bf16.msra.mxu0 0
    %5537 = vmatpush.bf16.msra.mxu0 0
    %5538 = vmatpush.bf16.msra.mxu0 0
    %5539 = vmatpush.bf16.msra.mxu0 0
    %5540 = vmatpush.bf16.msra.mxu0 0
    %5541 = vmatpush.bf16.msra.mxu0 %v200
    %5542 = vmatpush.bf16.msra.mxu0 %v199
    %5543 = vmatmul.bf16.gmra.mxu0 %v5533
    %v5544 = vpop.f32.mrf.mxu0
    %v5545 = vadd.f32 0.0, %v5544
    %v5546 = vpop.f32.mrf.mxu0
    %v5547 = vadd.f32 0.0, %v5546
    %5548 = vdwg.mxu0
    %5550 = vset.pattern.permute.xlu0 32
    %5551 = vperm.xlu0 %5550, %v5545
    %v5552 = vpop.permute.xlu0 %5551
    %5555 = vset.pattern.permute.xlu0 32
    %5556 = vperm.xlu0 %5555, %v5547
    %v5557 = vpop.permute.xlu0 %5556
    %5559 = vset.pattern.permute.xlu0 33
    %5560 = vperm.xlu0 %5559, %v5545
    %v5561 = vpop.permute.xlu0 %5560
    %5562 = vset.pattern.permute.xlu0 33
    %5563 = vperm.xlu0 %5562, %v5547
    %v5564 = vpop.permute.xlu0 %5563
    %v5565 = vperm.slane %v5561, %v238
    %v5566 = vperm.slane %v5564, %v238
    %v5567 = vsel %vm241, %v5565, %v5565
    %v5568 = vsel %vm243, %v5565, %v5567
    %v5569 = vsel %vm245, %v5565, %v5568
    %v5570 = vsel %vm247, %v5565, %v5569
    %v5571 = vsel %vm249, %v5565, %v5570
    %v5572 = vsel %vm251, %v5565, %v5571
    %v5573 = vsel %vm241, %v5566, %v5566
    %v5574 = vsel %vm243, %v5566, %v5573
    %v5575 = vsel %vm245, %v5566, %v5574
    %v5576 = vsel %vm247, %v5566, %v5575
    %v5577 = vsel %vm249, %v5566, %v5576
    %v5578 = vsel %vm251, %v5566, %v5577
    %v5581 = vadd.f32 %v5552, %v5572
    %v5582 = vadd.f32 %v5557, %v5578
    %v5583 = vmul.f32 %v5581, 0.2
    %v5584 = vmul.f32 %v5582, 0.2
    %v5585 = vmax.f32 %v5581, %v5583
    %v5586 = vmax.f32 %v5582, %v5584
    %v5587 = vadd.f32 %v5585, %v104
    %v5588 = vadd.f32 %v5586, %v104
    %v5589 = vsel %vm269, %v5587, -inf
    %5590 = vmax.xlane.f32.xlu0 %v5589
    %v5591 = vpop.xlane.xlu0 %5590
    %v5592 = vsel %vm269, %v5588, -inf
    %5593 = vmax.xlane.f32.xlu0 %v5592
    %v5594 = vpop.xlane.xlu0 %5593
    %v5595 = vsub.f32 %v5587, %v5591
    %v5596 = vsub.f32 %v5588, %v5594
    %v5597 = vmul.f32 %v5595, 1.442695
    %v5598 = vpow.pop %v5597
    %v5599 = vmul.f32 %v5596, 1.442695
    %v5600 = vpow.pop %v5599
    %v5601 = vsel %vm269, %v5598, 0.0
    %5602 = vadd.xlane.f32.xlu0 %v5601
    %v5603 = vpop.xlane.xlu0 %5602
    %v5604 = vsel %vm269, %v5600, 0.0
    %5605 = vadd.xlane.f32.xlu0 %v5604
    %v5606 = vpop.xlane.xlu0 %5605
    %v5607 = vrcp.pop %v5603
    %v5608 = vmul.f32 %v5603, %v5607
    %v5609 = vsub.f32 1.0, %v5608
    %v5610 = vmul.f32 %v5607, %v5609
    %v5611 = vadd.f32 %v5607, %v5610
    %vm5612 = vweird.f32 %v5603
    %vm5613 = vweird.f32 %v5607
    %vm5614 = vmor %vm5612, %vm5613
    %v5615 = vsel %vm5614, %v5607, %v5611
    %v5616 = vand.u32 2147483647, %v5603
    %vm5617 = vcmp.eq.f32.partialorder %v5616, 8.507059e+37
    %v5618 = vand.u32 %v5603, 2147483648
    %v5619 = vor.u32 1.1754944e-38, %v5618
    %v5620 = vsel %vm5617, %v5619, %v5615
    %v5621 = vmul.f32 %v5598, %v5620
    %v5622 = vrcp.pop %v5606
    %v5623 = vmul.f32 %v5606, %v5622
    %v5624 = vsub.f32 1.0, %v5623
    %v5625 = vmul.f32 %v5622, %v5624
    %v5626 = vadd.f32 %v5622, %v5625
    %vm5627 = vweird.f32 %v5606
    %vm5628 = vweird.f32 %v5622
    %vm5629 = vmor %vm5627, %vm5628
    %v5630 = vsel %vm5629, %v5622, %v5626
    %v5631 = vand.u32 2147483647, %v5606
    %vm5632 = vcmp.eq.f32.partialorder %v5631, 8.507059e+37
    %v5633 = vand.u32 %v5606, 2147483648
    %v5634 = vor.u32 1.1754944e-38, %v5633
    %v5635 = vsel %vm5632, %v5634, %v5630
    %v5636 = vmul.f32 %v5600, %v5635
    %v5637 = vpack.c.bf16 %v5621, %v5621
    %v5638 = vpack.c.bf16 %v5636, %v5636
    %v5639 = vpack.c.bf16 %v5545, %v5545
    %v5640 = vpack.c.bf16 %v5547, %v5547
    %v5642 = vsel %vm269, %v5637, 0
    %v5645 = vsel %vm151, %v5639, 0
    %5647 = vmatpush.bf16.msra.mxu0 0
    %5648 = vmatpush.bf16.msra.mxu0 0
    %5649 = vmatpush.bf16.msra.mxu0 0
    %5650 = vmatpush.bf16.msra.mxu0 0
    %5651 = vmatpush.bf16.msra.mxu0 0
    %5652 = vmatpush.bf16.msra.mxu0 0
    %5653 = vmatpush.bf16.msra.mxu0 0
    %5654 = vmatpush.bf16.msra.mxu0 %v5645
    %5655 = vmatmul.bf16.gmra.mxu0 %v5642
    %v5656 = vpop.f32.mrf.mxu0
    %v5657 = vadd.f32 0.0, %v5656
    %v5658 = vpop.f32.mrf.mxu0
    %5659 = vdwg.mxu0
    %v5661 = vsel %vm269, %v5638, 0
    %v5664 = vsel %vm151, %v5640, 0
    %5666 = vmatpush.bf16.msra.mxu0 0
    %5667 = vmatpush.bf16.msra.mxu0 0
    %5668 = vmatpush.bf16.msra.mxu0 0
    %5669 = vmatpush.bf16.msra.mxu0 0
    %5670 = vmatpush.bf16.msra.mxu0 0
    %5671 = vmatpush.bf16.msra.mxu0 0
    %5672 = vmatpush.bf16.msra.mxu0 0
    %5673 = vmatpush.bf16.msra.mxu0 %v5664
    %5674 = vmatmul.bf16.gmra.mxu0 %v5661
    %v5675 = vpop.f32.mrf.mxu0
    %v5676 = vadd.f32 0.0, %v5675
    %v5677 = vpop.f32.mrf.mxu0
    %5678 = vdwg.mxu0
    %v5679 = vtanh.pop %v5657
    %v5680 = vtanh.pop %v5676
    %v5681 = vmul.f32 %v5679, 0.125
    %v5682 = vmul.f32 %v5680, 0.125
    %v5683 = vadd.f32 %v5375, %v5681
    %v5684 = vadd.f32 %v5376, %v5682
    %v5685 = vpack.c.bf16 %v5684, %v5683
    %v5687 = vsel %vm203, %v5685, 0
    %5689 = vmatpush.bf16.msra.mxu0 0
    %5690 = vmatpush.bf16.msra.mxu0 0
    %5691 = vmatpush.bf16.msra.mxu0 0
    %5692 = vmatpush.bf16.msra.mxu0 0
    %5693 = vmatpush.bf16.msra.mxu0 0
    %5694 = vmatpush.bf16.msra.mxu0 0
    %5695 = vmatpush.bf16.msra.mxu0 %v200
    %5696 = vmatpush.bf16.msra.mxu0 %v199
    %5697 = vmatmul.bf16.gmra.mxu0 %v5687
    %v5698 = vpop.f32.mrf.mxu0
    %v5699 = vadd.f32 0.0, %v5698
    %v5700 = vpop.f32.mrf.mxu0
    %v5701 = vadd.f32 0.0, %v5700
    %5702 = vdwg.mxu0
    %5704 = vset.pattern.permute.xlu0 32
    %5705 = vperm.xlu0 %5704, %v5699
    %v5706 = vpop.permute.xlu0 %5705
    %5709 = vset.pattern.permute.xlu0 32
    %5710 = vperm.xlu0 %5709, %v5701
    %v5711 = vpop.permute.xlu0 %5710
    %5713 = vset.pattern.permute.xlu0 33
    %5714 = vperm.xlu0 %5713, %v5699
    %v5715 = vpop.permute.xlu0 %5714
    %5716 = vset.pattern.permute.xlu0 33
    %5717 = vperm.xlu0 %5716, %v5701
    %v5718 = vpop.permute.xlu0 %5717
    %v5719 = vperm.slane %v5715, %v238
    %v5720 = vperm.slane %v5718, %v238
    %v5721 = vsel %vm241, %v5719, %v5719
    %v5722 = vsel %vm243, %v5719, %v5721
    %v5723 = vsel %vm245, %v5719, %v5722
    %v5724 = vsel %vm247, %v5719, %v5723
    %v5725 = vsel %vm249, %v5719, %v5724
    %v5726 = vsel %vm251, %v5719, %v5725
    %v5727 = vsel %vm241, %v5720, %v5720
    %v5728 = vsel %vm243, %v5720, %v5727
    %v5729 = vsel %vm245, %v5720, %v5728
    %v5730 = vsel %vm247, %v5720, %v5729
    %v5731 = vsel %vm249, %v5720, %v5730
    %v5732 = vsel %vm251, %v5720, %v5731
    %v5735 = vadd.f32 %v5706, %v5726
    %v5736 = vadd.f32 %v5711, %v5732
    %v5737 = vmul.f32 %v5735, 0.2
    %v5738 = vmul.f32 %v5736, 0.2
    %v5739 = vmax.f32 %v5735, %v5737
    %v5740 = vmax.f32 %v5736, %v5738
    %v5741 = vadd.f32 %v5739, %v104
    %v5742 = vadd.f32 %v5740, %v104
    %v5743 = vsel %vm269, %v5741, -inf
    %5744 = vmax.xlane.f32.xlu0 %v5743
    %v5745 = vpop.xlane.xlu0 %5744
    %v5746 = vsel %vm269, %v5742, -inf
    %5747 = vmax.xlane.f32.xlu0 %v5746
    %v5748 = vpop.xlane.xlu0 %5747
    %v5749 = vsub.f32 %v5741, %v5745
    %v5750 = vsub.f32 %v5742, %v5748
    %v5751 = vmul.f32 %v5749, 1.442695
    %v5752 = vpow.pop %v5751
    %v5753 = vmul.f32 %v5750, 1.442695
    %v5754 = vpow.pop %v5753
    %v5755 = vsel %vm269, %v5752, 0.0
    %5756 = vadd.xlane.f32.xlu0 %v5755
    %v5757 = vpop.xlane.xlu0 %5756
    %v5758 = vsel %vm269, %v5754, 0.0
    %5759 = vadd.xlane.f32.xlu0 %v5758
    %v5760 = vpop.xlane.xlu0 %5759
    %v5761 = vrcp.pop %v5757
    %v5762 = vmul.f32 %v5757, %v5761
    %v5763 = vsub.f32 1.0, %v5762
    %v5764 = vmul.f32 %v5761, %v5763
    %v5765 = vadd.f32 %v5761, %v5764
    %vm5766 = vweird.f32 %v5757
    %vm5767 = vweird.f32 %v5761
    %vm5768 = vmor %vm5766, %vm5767
    %v5769 = vsel %vm5768, %v5761, %v5765
    %v5770 = vand.u32 2147483647, %v5757
    %vm5771 = vcmp.eq.f32.partialorder %v5770, 8.507059e+37
    %v5772 = vand.u32 %v5757, 2147483648
    %v5773 = vor.u32 1.1754944e-38, %v5772
    %v5774 = vsel %vm5771, %v5773, %v5769
    %v5775 = vmul.f32 %v5752, %v5774
    %v5776 = vrcp.pop %v5760
    %v5777 = vmul.f32 %v5760, %v5776
    %v5778 = vsub.f32 1.0, %v5777
    %v5779 = vmul.f32 %v5776, %v5778
    %v5780 = vadd.f32 %v5776, %v5779
    %vm5781 = vweird.f32 %v5760
    %vm5782 = vweird.f32 %v5776
    %vm5783 = vmor %vm5781, %vm5782
    %v5784 = vsel %vm5783, %v5776, %v5780
    %v5785 = vand.u32 2147483647, %v5760
    %vm5786 = vcmp.eq.f32.partialorder %v5785, 8.507059e+37
    %v5787 = vand.u32 %v5760, 2147483648
    %v5788 = vor.u32 1.1754944e-38, %v5787
    %v5789 = vsel %vm5786, %v5788, %v5784
    %v5790 = vmul.f32 %v5754, %v5789
    %v5791 = vpack.c.bf16 %v5775, %v5775
    %v5792 = vpack.c.bf16 %v5790, %v5790
    %v5793 = vpack.c.bf16 %v5699, %v5699
    %v5794 = vpack.c.bf16 %v5701, %v5701
    %v5796 = vsel %vm269, %v5791, 0
    %v5799 = vsel %vm151, %v5793, 0
    %5801 = vmatpush.bf16.msra.mxu0 0
    %5802 = vmatpush.bf16.msra.mxu0 0
    %5803 = vmatpush.bf16.msra.mxu0 0
    %5804 = vmatpush.bf16.msra.mxu0 0
    %5805 = vmatpush.bf16.msra.mxu0 0
    %5806 = vmatpush.bf16.msra.mxu0 0
    %5807 = vmatpush.bf16.msra.mxu0 0
    %5808 = vmatpush.bf16.msra.mxu0 %v5799
    %5809 = vmatmul.bf16.gmra.mxu0 %v5796
    %v5810 = vpop.f32.mrf.mxu0
    %v5811 = vadd.f32 0.0, %v5810
    %v5812 = vpop.f32.mrf.mxu0
    %5813 = vdwg.mxu0
    %v5815 = vsel %vm269, %v5792, 0
    %v5818 = vsel %vm151, %v5794, 0
    %5820 = vmatpush.bf16.msra.mxu0 0
    %5821 = vmatpush.bf16.msra.mxu0 0
    %5822 = vmatpush.bf16.msra.mxu0 0
    %5823 = vmatpush.bf16.msra.mxu0 0
    %5824 = vmatpush.bf16.msra.mxu0 0
    %5825 = vmatpush.bf16.msra.mxu0 0
    %5826 = vmatpush.bf16.msra.mxu0 0
    %5827 = vmatpush.bf16.msra.mxu0 %v5818
    %5828 = vmatmul.bf16.gmra.mxu0 %v5815
    %v5829 = vpop.f32.mrf.mxu0
    %v5830 = vadd.f32 0.0, %v5829
    %v5831 = vpop.f32.mrf.mxu0
    %5832 = vdwg.mxu0
    %v5833 = vtanh.pop %v5811
    %v5834 = vtanh.pop %v5830
    %v5835 = vmul.f32 %v5833, 0.25
    %v5836 = vmul.f32 %v5834, 0.25
    %v5837 = vadd.f32 %v5375, %v5835
    %v5838 = vadd.f32 %v5376, %v5836
    %v5839 = vpack.c.bf16 %v5838, %v5837
    %v5841 = vsel %vm203, %v5839, 0
    %5843 = vmatpush.bf16.msra.mxu0 0
    %5844 = vmatpush.bf16.msra.mxu0 0
    %5845 = vmatpush.bf16.msra.mxu0 0
    %5846 = vmatpush.bf16.msra.mxu0 0
    %5847 = vmatpush.bf16.msra.mxu0 0
    %5848 = vmatpush.bf16.msra.mxu0 0
    %5849 = vmatpush.bf16.msra.mxu0 %v200
    %5850 = vmatpush.bf16.msra.mxu0 %v199
    %5851 = vmatmul.bf16.gmra.mxu0 %v5841
    %v5852 = vpop.f32.mrf.mxu0
    %v5853 = vadd.f32 0.0, %v5852
    %v5854 = vpop.f32.mrf.mxu0
    %v5855 = vadd.f32 0.0, %v5854
    %5856 = vdwg.mxu0
    %5858 = vset.pattern.permute.xlu0 32
    %5859 = vperm.xlu0 %5858, %v5853
    %v5860 = vpop.permute.xlu0 %5859
    %5863 = vset.pattern.permute.xlu0 32
    %5864 = vperm.xlu0 %5863, %v5855
    %v5865 = vpop.permute.xlu0 %5864
    %5867 = vset.pattern.permute.xlu0 33
    %5868 = vperm.xlu0 %5867, %v5853
    %v5869 = vpop.permute.xlu0 %5868
    %5870 = vset.pattern.permute.xlu0 33
    %5871 = vperm.xlu0 %5870, %v5855
    %v5872 = vpop.permute.xlu0 %5871
    %v5873 = vperm.slane %v5869, %v238
    %v5874 = vperm.slane %v5872, %v238
    %v5875 = vsel %vm241, %v5873, %v5873
    %v5876 = vsel %vm243, %v5873, %v5875
    %v5877 = vsel %vm245, %v5873, %v5876
    %v5878 = vsel %vm247, %v5873, %v5877
    %v5879 = vsel %vm249, %v5873, %v5878
    %v5880 = vsel %vm251, %v5873, %v5879
    %v5881 = vsel %vm241, %v5874, %v5874
    %v5882 = vsel %vm243, %v5874, %v5881
    %v5883 = vsel %vm245, %v5874, %v5882
    %v5884 = vsel %vm247, %v5874, %v5883
    %v5885 = vsel %vm249, %v5874, %v5884
    %v5886 = vsel %vm251, %v5874, %v5885
    %v5889 = vadd.f32 %v5860, %v5880
    %v5890 = vadd.f32 %v5865, %v5886
    %v5891 = vmul.f32 %v5889, 0.2
    %v5892 = vmul.f32 %v5890, 0.2
    %v5893 = vmax.f32 %v5889, %v5891
    %v5894 = vmax.f32 %v5890, %v5892
    %v5895 = vadd.f32 %v5893, %v104
    %v5896 = vadd.f32 %v5894, %v104
    %v5897 = vsel %vm269, %v5895, -inf
    %5898 = vmax.xlane.f32.xlu0 %v5897
    %v5899 = vpop.xlane.xlu0 %5898
    %v5900 = vsel %vm269, %v5896, -inf
    %5901 = vmax.xlane.f32.xlu0 %v5900
    %v5902 = vpop.xlane.xlu0 %5901
    %v5903 = vsub.f32 %v5895, %v5899
    %v5904 = vsub.f32 %v5896, %v5902
    %v5905 = vmul.f32 %v5903, 1.442695
    %v5906 = vpow.pop %v5905
    %v5907 = vmul.f32 %v5904, 1.442695
    %v5908 = vpow.pop %v5907
    %v5909 = vsel %vm269, %v5906, 0.0
    %5910 = vadd.xlane.f32.xlu0 %v5909
    %v5911 = vpop.xlane.xlu0 %5910
    %v5912 = vsel %vm269, %v5908, 0.0
    %5913 = vadd.xlane.f32.xlu0 %v5912
    %v5914 = vpop.xlane.xlu0 %5913
    %v5915 = vrcp.pop %v5911
    %v5916 = vmul.f32 %v5911, %v5915
    %v5917 = vsub.f32 1.0, %v5916
    %v5918 = vmul.f32 %v5915, %v5917
    %v5919 = vadd.f32 %v5915, %v5918
    %vm5920 = vweird.f32 %v5911
    %vm5921 = vweird.f32 %v5915
    %vm5922 = vmor %vm5920, %vm5921
    %v5923 = vsel %vm5922, %v5915, %v5919
    %v5924 = vand.u32 2147483647, %v5911
    %vm5925 = vcmp.eq.f32.partialorder %v5924, 8.507059e+37
    %v5926 = vand.u32 %v5911, 2147483648
    %v5927 = vor.u32 1.1754944e-38, %v5926
    %v5928 = vsel %vm5925, %v5927, %v5923
    %v5929 = vmul.f32 %v5906, %v5928
    %v5930 = vrcp.pop %v5914
    %v5931 = vmul.f32 %v5914, %v5930
    %v5932 = vsub.f32 1.0, %v5931
    %v5933 = vmul.f32 %v5930, %v5932
    %v5934 = vadd.f32 %v5930, %v5933
    %vm5935 = vweird.f32 %v5914
    %vm5936 = vweird.f32 %v5930
    %vm5937 = vmor %vm5935, %vm5936
    %v5938 = vsel %vm5937, %v5930, %v5934
    %v5939 = vand.u32 2147483647, %v5914
    %vm5940 = vcmp.eq.f32.partialorder %v5939, 8.507059e+37
    %v5941 = vand.u32 %v5914, 2147483648
    %v5942 = vor.u32 1.1754944e-38, %v5941
    %v5943 = vsel %vm5940, %v5942, %v5938
    %v5944 = vmul.f32 %v5908, %v5943
    %v5945 = vpack.c.bf16 %v5929, %v5929
    %v5946 = vpack.c.bf16 %v5944, %v5944
    %v5947 = vpack.c.bf16 %v5853, %v5853
    %v5948 = vpack.c.bf16 %v5855, %v5855
    %v5950 = vsel %vm269, %v5945, 0
    %v5953 = vsel %vm151, %v5947, 0
    %5955 = vmatpush.bf16.msra.mxu0 0
    %5956 = vmatpush.bf16.msra.mxu0 0
    %5957 = vmatpush.bf16.msra.mxu0 0
    %5958 = vmatpush.bf16.msra.mxu0 0
    %5959 = vmatpush.bf16.msra.mxu0 0
    %5960 = vmatpush.bf16.msra.mxu0 0
    %5961 = vmatpush.bf16.msra.mxu0 0
    %5962 = vmatpush.bf16.msra.mxu0 %v5953
    %5963 = vmatmul.bf16.gmra.mxu0 %v5950
    %v5964 = vpop.f32.mrf.mxu0
    %v5965 = vadd.f32 0.0, %v5964
    %v5966 = vpop.f32.mrf.mxu0
    %5967 = vdwg.mxu0
    %v5969 = vsel %vm269, %v5946, 0
    %v5972 = vsel %vm151, %v5948, 0
    %5974 = vmatpush.bf16.msra.mxu0 0
    %5975 = vmatpush.bf16.msra.mxu0 0
    %5976 = vmatpush.bf16.msra.mxu0 0
    %5977 = vmatpush.bf16.msra.mxu0 0
    %5978 = vmatpush.bf16.msra.mxu0 0
    %5979 = vmatpush.bf16.msra.mxu0 0
    %5980 = vmatpush.bf16.msra.mxu0 0
    %5981 = vmatpush.bf16.msra.mxu0 %v5972
    %5982 = vmatmul.bf16.gmra.mxu0 %v5969
    %v5983 = vpop.f32.mrf.mxu0
    %v5984 = vadd.f32 0.0, %v5983
    %v5985 = vpop.f32.mrf.mxu0
    %5986 = vdwg.mxu0
    %v5987 = vtanh.pop %v5965
    %v5988 = vtanh.pop %v5984
    %v5989 = vmul.f32 %v5679, 2.0
    %v5990 = vmul.f32 %v5680, 2.0
    %v5991 = vadd.f32 %v5525, %v5989
    %v5992 = vadd.f32 %v5526, %v5990
    %v5993 = vmul.f32 %v5833, 2.0
    %v5994 = vmul.f32 %v5834, 2.0
    %v5995 = vadd.f32 %v5991, %v5993
    %v5996 = vadd.f32 %v5992, %v5994
    %v5997 = vadd.f32 %v5995, %v5987
    %v5998 = vadd.f32 %v5996, %v5988
    %v5999 = vmul.f32 %v5997, 0.041666668
    %v6000 = vmul.f32 %v5998, 0.041666668
    %v6001 = vadd.f32 %v5375, %v5999
    %v6002 = vadd.f32 %v5376, %v6000
    %v6003 = vpack.c.bf16 %v6002, %v6001
    %v6005 = vsel %vm203, %v6003, 0
    %6007 = vmatpush.bf16.msra.mxu0 0
    %6008 = vmatpush.bf16.msra.mxu0 0
    %6009 = vmatpush.bf16.msra.mxu0 0
    %6010 = vmatpush.bf16.msra.mxu0 0
    %6011 = vmatpush.bf16.msra.mxu0 0
    %6012 = vmatpush.bf16.msra.mxu0 0
    %6013 = vmatpush.bf16.msra.mxu0 %v200
    %6014 = vmatpush.bf16.msra.mxu0 %v199
    %6015 = vmatmul.bf16.gmra.mxu0 %v6005
    %v6016 = vpop.f32.mrf.mxu0
    %v6017 = vadd.f32 0.0, %v6016
    %v6018 = vpop.f32.mrf.mxu0
    %v6019 = vadd.f32 0.0, %v6018
    %6020 = vdwg.mxu0
    %6022 = vset.pattern.permute.xlu0 32
    %6023 = vperm.xlu0 %6022, %v6017
    %v6024 = vpop.permute.xlu0 %6023
    %6027 = vset.pattern.permute.xlu0 32
    %6028 = vperm.xlu0 %6027, %v6019
    %v6029 = vpop.permute.xlu0 %6028
    %6031 = vset.pattern.permute.xlu0 33
    %6032 = vperm.xlu0 %6031, %v6017
    %v6033 = vpop.permute.xlu0 %6032
    %6034 = vset.pattern.permute.xlu0 33
    %6035 = vperm.xlu0 %6034, %v6019
    %v6036 = vpop.permute.xlu0 %6035
    %v6037 = vperm.slane %v6033, %v238
    %v6038 = vperm.slane %v6036, %v238
    %v6039 = vsel %vm241, %v6037, %v6037
    %v6040 = vsel %vm243, %v6037, %v6039
    %v6041 = vsel %vm245, %v6037, %v6040
    %v6042 = vsel %vm247, %v6037, %v6041
    %v6043 = vsel %vm249, %v6037, %v6042
    %v6044 = vsel %vm251, %v6037, %v6043
    %v6045 = vsel %vm241, %v6038, %v6038
    %v6046 = vsel %vm243, %v6038, %v6045
    %v6047 = vsel %vm245, %v6038, %v6046
    %v6048 = vsel %vm247, %v6038, %v6047
    %v6049 = vsel %vm249, %v6038, %v6048
    %v6050 = vsel %vm251, %v6038, %v6049
    %v6053 = vadd.f32 %v6024, %v6044
    %v6054 = vadd.f32 %v6029, %v6050
    %v6055 = vmul.f32 %v6053, 0.2
    %v6056 = vmul.f32 %v6054, 0.2
    %v6057 = vmax.f32 %v6053, %v6055
    %v6058 = vmax.f32 %v6054, %v6056
    %v6059 = vadd.f32 %v6057, %v104
    %v6060 = vadd.f32 %v6058, %v104
    %v6061 = vsel %vm269, %v6059, -inf
    %6062 = vmax.xlane.f32.xlu0 %v6061
    %v6063 = vpop.xlane.xlu0 %6062
    %v6064 = vsel %vm269, %v6060, -inf
    %6065 = vmax.xlane.f32.xlu0 %v6064
    %v6066 = vpop.xlane.xlu0 %6065
    %v6067 = vsub.f32 %v6059, %v6063
    %v6068 = vsub.f32 %v6060, %v6066
    %v6069 = vmul.f32 %v6067, 1.442695
    %v6070 = vpow.pop %v6069
    %v6071 = vmul.f32 %v6068, 1.442695
    %v6072 = vpow.pop %v6071
    %v6073 = vsel %vm269, %v6070, 0.0
    %6074 = vadd.xlane.f32.xlu0 %v6073
    %v6075 = vpop.xlane.xlu0 %6074
    %v6076 = vsel %vm269, %v6072, 0.0
    %6077 = vadd.xlane.f32.xlu0 %v6076
    %v6078 = vpop.xlane.xlu0 %6077
    %v6079 = vrcp.pop %v6075
    %v6080 = vmul.f32 %v6075, %v6079
    %v6081 = vsub.f32 1.0, %v6080
    %v6082 = vmul.f32 %v6079, %v6081
    %v6083 = vadd.f32 %v6079, %v6082
    %vm6084 = vweird.f32 %v6075
    %vm6085 = vweird.f32 %v6079
    %vm6086 = vmor %vm6084, %vm6085
    %v6087 = vsel %vm6086, %v6079, %v6083
    %v6088 = vand.u32 2147483647, %v6075
    %vm6089 = vcmp.eq.f32.partialorder %v6088, 8.507059e+37
    %v6090 = vand.u32 %v6075, 2147483648
    %v6091 = vor.u32 1.1754944e-38, %v6090
    %v6092 = vsel %vm6089, %v6091, %v6087
    %v6093 = vmul.f32 %v6070, %v6092
    %v6094 = vrcp.pop %v6078
    %v6095 = vmul.f32 %v6078, %v6094
    %v6096 = vsub.f32 1.0, %v6095
    %v6097 = vmul.f32 %v6094, %v6096
    %v6098 = vadd.f32 %v6094, %v6097
    %vm6099 = vweird.f32 %v6078
    %vm6100 = vweird.f32 %v6094
    %vm6101 = vmor %vm6099, %vm6100
    %v6102 = vsel %vm6101, %v6094, %v6098
    %v6103 = vand.u32 2147483647, %v6078
    %vm6104 = vcmp.eq.f32.partialorder %v6103, 8.507059e+37
    %v6105 = vand.u32 %v6078, 2147483648
    %v6106 = vor.u32 1.1754944e-38, %v6105
    %v6107 = vsel %vm6104, %v6106, %v6102
    %v6108 = vmul.f32 %v6072, %v6107
    %v6109 = vpack.c.bf16 %v6093, %v6093
    %v6110 = vpack.c.bf16 %v6108, %v6108
    %v6111 = vpack.c.bf16 %v6017, %v6017
    %v6112 = vpack.c.bf16 %v6019, %v6019
    %v6114 = vsel %vm269, %v6109, 0
    %v6117 = vsel %vm151, %v6111, 0
    %6119 = vmatpush.bf16.msra.mxu0 0
    %6120 = vmatpush.bf16.msra.mxu0 0
    %6121 = vmatpush.bf16.msra.mxu0 0
    %6122 = vmatpush.bf16.msra.mxu0 0
    %6123 = vmatpush.bf16.msra.mxu0 0
    %6124 = vmatpush.bf16.msra.mxu0 0
    %6125 = vmatpush.bf16.msra.mxu0 0
    %6126 = vmatpush.bf16.msra.mxu0 %v6117
    %6127 = vmatmul.bf16.gmra.mxu0 %v6114
    %v6128 = vpop.f32.mrf.mxu0
    %v6129 = vadd.f32 0.0, %v6128
    %v6130 = vpop.f32.mrf.mxu0
    %6131 = vdwg.mxu0
    %v6133 = vsel %vm269, %v6110, 0
    %v6136 = vsel %vm151, %v6112, 0
    %6138 = vmatpush.bf16.msra.mxu0 0
    %6139 = vmatpush.bf16.msra.mxu0 0
    %6140 = vmatpush.bf16.msra.mxu0 0
    %6141 = vmatpush.bf16.msra.mxu0 0
    %6142 = vmatpush.bf16.msra.mxu0 0
    %6143 = vmatpush.bf16.msra.mxu0 0
    %6144 = vmatpush.bf16.msra.mxu0 0
    %6145 = vmatpush.bf16.msra.mxu0 %v6136
    %6146 = vmatmul.bf16.gmra.mxu0 %v6133
    %v6147 = vpop.f32.mrf.mxu0
    %v6148 = vadd.f32 0.0, %v6147
    %v6149 = vpop.f32.mrf.mxu0
    %6150 = vdwg.mxu0
    %v6151 = vtanh.pop %v6129
    %v6152 = vtanh.pop %v6148
    %v6153 = vmul.f32 %v6151, 0.125
    %v6154 = vmul.f32 %v6152, 0.125
    %v6155 = vadd.f32 %v6001, %v6153
    %v6156 = vadd.f32 %v6002, %v6154
    %v6157 = vpack.c.bf16 %v6156, %v6155
    %v6159 = vsel %vm203, %v6157, 0
    %6161 = vmatpush.bf16.msra.mxu0 0
    %6162 = vmatpush.bf16.msra.mxu0 0
    %6163 = vmatpush.bf16.msra.mxu0 0
    %6164 = vmatpush.bf16.msra.mxu0 0
    %6165 = vmatpush.bf16.msra.mxu0 0
    %6166 = vmatpush.bf16.msra.mxu0 0
    %6167 = vmatpush.bf16.msra.mxu0 %v200
    %6168 = vmatpush.bf16.msra.mxu0 %v199
    %6169 = vmatmul.bf16.gmra.mxu0 %v6159
    %v6170 = vpop.f32.mrf.mxu0
    %v6171 = vadd.f32 0.0, %v6170
    %v6172 = vpop.f32.mrf.mxu0
    %v6173 = vadd.f32 0.0, %v6172
    %6174 = vdwg.mxu0
    %6176 = vset.pattern.permute.xlu0 32
    %6177 = vperm.xlu0 %6176, %v6171
    %v6178 = vpop.permute.xlu0 %6177
    %6181 = vset.pattern.permute.xlu0 32
    %6182 = vperm.xlu0 %6181, %v6173
    %v6183 = vpop.permute.xlu0 %6182
    %6185 = vset.pattern.permute.xlu0 33
    %6186 = vperm.xlu0 %6185, %v6171
    %v6187 = vpop.permute.xlu0 %6186
    %6188 = vset.pattern.permute.xlu0 33
    %6189 = vperm.xlu0 %6188, %v6173
    %v6190 = vpop.permute.xlu0 %6189
    %v6191 = vperm.slane %v6187, %v238
    %v6192 = vperm.slane %v6190, %v238
    %v6193 = vsel %vm241, %v6191, %v6191
    %v6194 = vsel %vm243, %v6191, %v6193
    %v6195 = vsel %vm245, %v6191, %v6194
    %v6196 = vsel %vm247, %v6191, %v6195
    %v6197 = vsel %vm249, %v6191, %v6196
    %v6198 = vsel %vm251, %v6191, %v6197
    %v6199 = vsel %vm241, %v6192, %v6192
    %v6200 = vsel %vm243, %v6192, %v6199
    %v6201 = vsel %vm245, %v6192, %v6200
    %v6202 = vsel %vm247, %v6192, %v6201
    %v6203 = vsel %vm249, %v6192, %v6202
    %v6204 = vsel %vm251, %v6192, %v6203
    %v6207 = vadd.f32 %v6178, %v6198
    %v6208 = vadd.f32 %v6183, %v6204
    %v6209 = vmul.f32 %v6207, 0.2
    %v6210 = vmul.f32 %v6208, 0.2
    %v6211 = vmax.f32 %v6207, %v6209
    %v6212 = vmax.f32 %v6208, %v6210
    %v6213 = vadd.f32 %v6211, %v104
    %v6214 = vadd.f32 %v6212, %v104
    %v6215 = vsel %vm269, %v6213, -inf
    %6216 = vmax.xlane.f32.xlu0 %v6215
    %v6217 = vpop.xlane.xlu0 %6216
    %v6218 = vsel %vm269, %v6214, -inf
    %6219 = vmax.xlane.f32.xlu0 %v6218
    %v6220 = vpop.xlane.xlu0 %6219
    %v6221 = vsub.f32 %v6213, %v6217
    %v6222 = vsub.f32 %v6214, %v6220
    %v6223 = vmul.f32 %v6221, 1.442695
    %v6224 = vpow.pop %v6223
    %v6225 = vmul.f32 %v6222, 1.442695
    %v6226 = vpow.pop %v6225
    %v6227 = vsel %vm269, %v6224, 0.0
    %6228 = vadd.xlane.f32.xlu0 %v6227
    %v6229 = vpop.xlane.xlu0 %6228
    %v6230 = vsel %vm269, %v6226, 0.0
    %6231 = vadd.xlane.f32.xlu0 %v6230
    %v6232 = vpop.xlane.xlu0 %6231
    %v6233 = vrcp.pop %v6229
    %v6234 = vmul.f32 %v6229, %v6233
    %v6235 = vsub.f32 1.0, %v6234
    %v6236 = vmul.f32 %v6233, %v6235
    %v6237 = vadd.f32 %v6233, %v6236
    %vm6238 = vweird.f32 %v6229
    %vm6239 = vweird.f32 %v6233
    %vm6240 = vmor %vm6238, %vm6239
    %v6241 = vsel %vm6240, %v6233, %v6237
    %v6242 = vand.u32 2147483647, %v6229
    %vm6243 = vcmp.eq.f32.partialorder %v6242, 8.507059e+37
    %v6244 = vand.u32 %v6229, 2147483648
    %v6245 = vor.u32 1.1754944e-38, %v6244
    %v6246 = vsel %vm6243, %v6245, %v6241
    %v6247 = vmul.f32 %v6224, %v6246
    %v6248 = vrcp.pop %v6232
    %v6249 = vmul.f32 %v6232, %v6248
    %v6250 = vsub.f32 1.0, %v6249
    %v6251 = vmul.f32 %v6248, %v6250
    %v6252 = vadd.f32 %v6248, %v6251
    %vm6253 = vweird.f32 %v6232
    %vm6254 = vweird.f32 %v6248
    %vm6255 = vmor %vm6253, %vm6254
    %v6256 = vsel %vm6255, %v6248, %v6252
    %v6257 = vand.u32 2147483647, %v6232
    %vm6258 = vcmp.eq.f32.partialorder %v6257, 8.507059e+37
    %v6259 = vand.u32 %v6232, 2147483648
    %v6260 = vor.u32 1.1754944e-38, %v6259
    %v6261 = vsel %vm6258, %v6260, %v6256
    %v6262 = vmul.f32 %v6226, %v6261
    %v6263 = vpack.c.bf16 %v6247, %v6247
    %v6264 = vpack.c.bf16 %v6262, %v6262
    %v6265 = vpack.c.bf16 %v6171, %v6171
    %v6266 = vpack.c.bf16 %v6173, %v6173
    %v6268 = vsel %vm269, %v6263, 0
    %v6271 = vsel %vm151, %v6265, 0
    %6273 = vmatpush.bf16.msra.mxu0 0
    %6274 = vmatpush.bf16.msra.mxu0 0
    %6275 = vmatpush.bf16.msra.mxu0 0
    %6276 = vmatpush.bf16.msra.mxu0 0
    %6277 = vmatpush.bf16.msra.mxu0 0
    %6278 = vmatpush.bf16.msra.mxu0 0
    %6279 = vmatpush.bf16.msra.mxu0 0
    %6280 = vmatpush.bf16.msra.mxu0 %v6271
    %6281 = vmatmul.bf16.gmra.mxu0 %v6268
    %v6282 = vpop.f32.mrf.mxu0
    %v6283 = vadd.f32 0.0, %v6282
    %v6284 = vpop.f32.mrf.mxu0
    %6285 = vdwg.mxu0
    %v6287 = vsel %vm269, %v6264, 0
    %v6290 = vsel %vm151, %v6266, 0
    %6292 = vmatpush.bf16.msra.mxu0 0
    %6293 = vmatpush.bf16.msra.mxu0 0
    %6294 = vmatpush.bf16.msra.mxu0 0
    %6295 = vmatpush.bf16.msra.mxu0 0
    %6296 = vmatpush.bf16.msra.mxu0 0
    %6297 = vmatpush.bf16.msra.mxu0 0
    %6298 = vmatpush.bf16.msra.mxu0 0
    %6299 = vmatpush.bf16.msra.mxu0 %v6290
    %6300 = vmatmul.bf16.gmra.mxu0 %v6287
    %v6301 = vpop.f32.mrf.mxu0
    %v6302 = vadd.f32 0.0, %v6301
    %v6303 = vpop.f32.mrf.mxu0
    %6304 = vdwg.mxu0
    %v6305 = vtanh.pop %v6283
    %v6306 = vtanh.pop %v6302
    %v6307 = vmul.f32 %v6305, 0.125
    %v6308 = vmul.f32 %v6306, 0.125
    %v6309 = vadd.f32 %v6001, %v6307
    %v6310 = vadd.f32 %v6002, %v6308
    %v6311 = vpack.c.bf16 %v6310, %v6309
    %v6313 = vsel %vm203, %v6311, 0
    %6315 = vmatpush.bf16.msra.mxu0 0
    %6316 = vmatpush.bf16.msra.mxu0 0
    %6317 = vmatpush.bf16.msra.mxu0 0
    %6318 = vmatpush.bf16.msra.mxu0 0
    %6319 = vmatpush.bf16.msra.mxu0 0
    %6320 = vmatpush.bf16.msra.mxu0 0
    %6321 = vmatpush.bf16.msra.mxu0 %v200
    %6322 = vmatpush.bf16.msra.mxu0 %v199
    %6323 = vmatmul.bf16.gmra.mxu0 %v6313
    %v6324 = vpop.f32.mrf.mxu0
    %v6325 = vadd.f32 0.0, %v6324
    %v6326 = vpop.f32.mrf.mxu0
    %v6327 = vadd.f32 0.0, %v6326
    %6328 = vdwg.mxu0
    %6330 = vset.pattern.permute.xlu0 32
    %6331 = vperm.xlu0 %6330, %v6325
    %v6332 = vpop.permute.xlu0 %6331
    %6335 = vset.pattern.permute.xlu0 32
    %6336 = vperm.xlu0 %6335, %v6327
    %v6337 = vpop.permute.xlu0 %6336
    %6339 = vset.pattern.permute.xlu0 33
    %6340 = vperm.xlu0 %6339, %v6325
    %v6341 = vpop.permute.xlu0 %6340
    %6342 = vset.pattern.permute.xlu0 33
    %6343 = vperm.xlu0 %6342, %v6327
    %v6344 = vpop.permute.xlu0 %6343
    %v6345 = vperm.slane %v6341, %v238
    %v6346 = vperm.slane %v6344, %v238
    %v6347 = vsel %vm241, %v6345, %v6345
    %v6348 = vsel %vm243, %v6345, %v6347
    %v6349 = vsel %vm245, %v6345, %v6348
    %v6350 = vsel %vm247, %v6345, %v6349
    %v6351 = vsel %vm249, %v6345, %v6350
    %v6352 = vsel %vm251, %v6345, %v6351
    %v6353 = vsel %vm241, %v6346, %v6346
    %v6354 = vsel %vm243, %v6346, %v6353
    %v6355 = vsel %vm245, %v6346, %v6354
    %v6356 = vsel %vm247, %v6346, %v6355
    %v6357 = vsel %vm249, %v6346, %v6356
    %v6358 = vsel %vm251, %v6346, %v6357
    %v6361 = vadd.f32 %v6332, %v6352
    %v6362 = vadd.f32 %v6337, %v6358
    %v6363 = vmul.f32 %v6361, 0.2
    %v6364 = vmul.f32 %v6362, 0.2
    %v6365 = vmax.f32 %v6361, %v6363
    %v6366 = vmax.f32 %v6362, %v6364
    %v6367 = vadd.f32 %v6365, %v104
    %v6368 = vadd.f32 %v6366, %v104
    %v6369 = vsel %vm269, %v6367, -inf
    %6370 = vmax.xlane.f32.xlu0 %v6369
    %v6371 = vpop.xlane.xlu0 %6370
    %v6372 = vsel %vm269, %v6368, -inf
    %6373 = vmax.xlane.f32.xlu0 %v6372
    %v6374 = vpop.xlane.xlu0 %6373
    %v6375 = vsub.f32 %v6367, %v6371
    %v6376 = vsub.f32 %v6368, %v6374
    %v6377 = vmul.f32 %v6375, 1.442695
    %v6378 = vpow.pop %v6377
    %v6379 = vmul.f32 %v6376, 1.442695
    %v6380 = vpow.pop %v6379
    %v6381 = vsel %vm269, %v6378, 0.0
    %6382 = vadd.xlane.f32.xlu0 %v6381
    %v6383 = vpop.xlane.xlu0 %6382
    %v6384 = vsel %vm269, %v6380, 0.0
    %6385 = vadd.xlane.f32.xlu0 %v6384
    %v6386 = vpop.xlane.xlu0 %6385
    %v6387 = vrcp.pop %v6383
    %v6388 = vmul.f32 %v6383, %v6387
    %v6389 = vsub.f32 1.0, %v6388
    %v6390 = vmul.f32 %v6387, %v6389
    %v6391 = vadd.f32 %v6387, %v6390
    %vm6392 = vweird.f32 %v6383
    %vm6393 = vweird.f32 %v6387
    %vm6394 = vmor %vm6392, %vm6393
    %v6395 = vsel %vm6394, %v6387, %v6391
    %v6396 = vand.u32 2147483647, %v6383
    %vm6397 = vcmp.eq.f32.partialorder %v6396, 8.507059e+37
    %v6398 = vand.u32 %v6383, 2147483648
    %v6399 = vor.u32 1.1754944e-38, %v6398
    %v6400 = vsel %vm6397, %v6399, %v6395
    %v6401 = vmul.f32 %v6378, %v6400
    %v6402 = vrcp.pop %v6386
    %v6403 = vmul.f32 %v6386, %v6402
    %v6404 = vsub.f32 1.0, %v6403
    %v6405 = vmul.f32 %v6402, %v6404
    %v6406 = vadd.f32 %v6402, %v6405
    %vm6407 = vweird.f32 %v6386
    %vm6408 = vweird.f32 %v6402
    %vm6409 = vmor %vm6407, %vm6408
    %v6410 = vsel %vm6409, %v6402, %v6406
    %v6411 = vand.u32 2147483647, %v6386
    %vm6412 = vcmp.eq.f32.partialorder %v6411, 8.507059e+37
    %v6413 = vand.u32 %v6386, 2147483648
    %v6414 = vor.u32 1.1754944e-38, %v6413
    %v6415 = vsel %vm6412, %v6414, %v6410
    %v6416 = vmul.f32 %v6380, %v6415
    %v6417 = vpack.c.bf16 %v6401, %v6401
    %v6418 = vpack.c.bf16 %v6416, %v6416
    %v6419 = vpack.c.bf16 %v6325, %v6325
    %v6420 = vpack.c.bf16 %v6327, %v6327
    %v6422 = vsel %vm269, %v6417, 0
    %v6425 = vsel %vm151, %v6419, 0
    %6427 = vmatpush.bf16.msra.mxu0 0
    %6428 = vmatpush.bf16.msra.mxu0 0
    %6429 = vmatpush.bf16.msra.mxu0 0
    %6430 = vmatpush.bf16.msra.mxu0 0
    %6431 = vmatpush.bf16.msra.mxu0 0
    %6432 = vmatpush.bf16.msra.mxu0 0
    %6433 = vmatpush.bf16.msra.mxu0 0
    %6434 = vmatpush.bf16.msra.mxu0 %v6425
    %6435 = vmatmul.bf16.gmra.mxu0 %v6422
    %v6436 = vpop.f32.mrf.mxu0
    %v6437 = vadd.f32 0.0, %v6436
    %v6438 = vpop.f32.mrf.mxu0
    %6439 = vdwg.mxu0
    %v6441 = vsel %vm269, %v6418, 0
    %v6444 = vsel %vm151, %v6420, 0
    %6446 = vmatpush.bf16.msra.mxu0 0
    %6447 = vmatpush.bf16.msra.mxu0 0
    %6448 = vmatpush.bf16.msra.mxu0 0
    %6449 = vmatpush.bf16.msra.mxu0 0
    %6450 = vmatpush.bf16.msra.mxu0 0
    %6451 = vmatpush.bf16.msra.mxu0 0
    %6452 = vmatpush.bf16.msra.mxu0 0
    %6453 = vmatpush.bf16.msra.mxu0 %v6444
    %6454 = vmatmul.bf16.gmra.mxu0 %v6441
    %v6455 = vpop.f32.mrf.mxu0
    %v6456 = vadd.f32 0.0, %v6455
    %v6457 = vpop.f32.mrf.mxu0
    %6458 = vdwg.mxu0
    %v6459 = vtanh.pop %v6437
    %v6460 = vtanh.pop %v6456
    %v6461 = vmul.f32 %v6459, 0.25
    %v6462 = vmul.f32 %v6460, 0.25
    %v6463 = vadd.f32 %v6001, %v6461
    %v6464 = vadd.f32 %v6002, %v6462
    %v6465 = vpack.c.bf16 %v6464, %v6463
    %v6467 = vsel %vm203, %v6465, 0
    %6469 = vmatpush.bf16.msra.mxu0 0
    %6470 = vmatpush.bf16.msra.mxu0 0
    %6471 = vmatpush.bf16.msra.mxu0 0
    %6472 = vmatpush.bf16.msra.mxu0 0
    %6473 = vmatpush.bf16.msra.mxu0 0
    %6474 = vmatpush.bf16.msra.mxu0 0
    %6475 = vmatpush.bf16.msra.mxu0 %v200
    %6476 = vmatpush.bf16.msra.mxu0 %v199
    %6477 = vmatmul.bf16.gmra.mxu0 %v6467
    %v6478 = vpop.f32.mrf.mxu0
    %v6479 = vadd.f32 0.0, %v6478
    %v6480 = vpop.f32.mrf.mxu0
    %v6481 = vadd.f32 0.0, %v6480
    %6482 = vdwg.mxu0
    %6484 = vset.pattern.permute.xlu0 32
    %6485 = vperm.xlu0 %6484, %v6479
    %v6486 = vpop.permute.xlu0 %6485
    %6489 = vset.pattern.permute.xlu0 32
    %6490 = vperm.xlu0 %6489, %v6481
    %v6491 = vpop.permute.xlu0 %6490
    %6493 = vset.pattern.permute.xlu0 33
    %6494 = vperm.xlu0 %6493, %v6479
    %v6495 = vpop.permute.xlu0 %6494
    %6496 = vset.pattern.permute.xlu0 33
    %6497 = vperm.xlu0 %6496, %v6481
    %v6498 = vpop.permute.xlu0 %6497
    %v6499 = vperm.slane %v6495, %v238
    %v6500 = vperm.slane %v6498, %v238
    %v6501 = vsel %vm241, %v6499, %v6499
    %v6502 = vsel %vm243, %v6499, %v6501
    %v6503 = vsel %vm245, %v6499, %v6502
    %v6504 = vsel %vm247, %v6499, %v6503
    %v6505 = vsel %vm249, %v6499, %v6504
    %v6506 = vsel %vm251, %v6499, %v6505
    %v6507 = vsel %vm241, %v6500, %v6500
    %v6508 = vsel %vm243, %v6500, %v6507
    %v6509 = vsel %vm245, %v6500, %v6508
    %v6510 = vsel %vm247, %v6500, %v6509
    %v6511 = vsel %vm249, %v6500, %v6510
    %v6512 = vsel %vm251, %v6500, %v6511
    %v6515 = vadd.f32 %v6486, %v6506
    %v6516 = vadd.f32 %v6491, %v6512
    %v6517 = vmul.f32 %v6515, 0.2
    %v6518 = vmul.f32 %v6516, 0.2
    %v6519 = vmax.f32 %v6515, %v6517
    %v6520 = vmax.f32 %v6516, %v6518
    %v6521 = vadd.f32 %v6519, %v104
    %v6522 = vadd.f32 %v6520, %v104
    %v6523 = vsel %vm269, %v6521, -inf
    %6524 = vmax.xlane.f32.xlu0 %v6523
    %v6525 = vpop.xlane.xlu0 %6524
    %v6526 = vsel %vm269, %v6522, -inf
    %6527 = vmax.xlane.f32.xlu0 %v6526
    %v6528 = vpop.xlane.xlu0 %6527
    %v6529 = vsub.f32 %v6521, %v6525
    %v6530 = vsub.f32 %v6522, %v6528
    %v6531 = vmul.f32 %v6529, 1.442695
    %v6532 = vpow.pop %v6531
    %v6533 = vmul.f32 %v6530, 1.442695
    %v6534 = vpow.pop %v6533
    %v6535 = vsel %vm269, %v6532, 0.0
    %6536 = vadd.xlane.f32.xlu0 %v6535
    %v6537 = vpop.xlane.xlu0 %6536
    %v6538 = vsel %vm269, %v6534, 0.0
    %6539 = vadd.xlane.f32.xlu0 %v6538
    %v6540 = vpop.xlane.xlu0 %6539
    %v6541 = vrcp.pop %v6537
    %v6542 = vmul.f32 %v6537, %v6541
    %v6543 = vsub.f32 1.0, %v6542
    %v6544 = vmul.f32 %v6541, %v6543
    %v6545 = vadd.f32 %v6541, %v6544
    %vm6546 = vweird.f32 %v6537
    %vm6547 = vweird.f32 %v6541
    %vm6548 = vmor %vm6546, %vm6547
    %v6549 = vsel %vm6548, %v6541, %v6545
    %v6550 = vand.u32 2147483647, %v6537
    %vm6551 = vcmp.eq.f32.partialorder %v6550, 8.507059e+37
    %v6552 = vand.u32 %v6537, 2147483648
    %v6553 = vor.u32 1.1754944e-38, %v6552
    %v6554 = vsel %vm6551, %v6553, %v6549
    %v6555 = vmul.f32 %v6532, %v6554
    %v6556 = vrcp.pop %v6540
    %v6557 = vmul.f32 %v6540, %v6556
    %v6558 = vsub.f32 1.0, %v6557
    %v6559 = vmul.f32 %v6556, %v6558
    %v6560 = vadd.f32 %v6556, %v6559
    %vm6561 = vweird.f32 %v6540
    %vm6562 = vweird.f32 %v6556
    %vm6563 = vmor %vm6561, %vm6562
    %v6564 = vsel %vm6563, %v6556, %v6560
    %v6565 = vand.u32 2147483647, %v6540
    %vm6566 = vcmp.eq.f32.partialorder %v6565, 8.507059e+37
    %v6567 = vand.u32 %v6540, 2147483648
    %v6568 = vor.u32 1.1754944e-38, %v6567
    %v6569 = vsel %vm6566, %v6568, %v6564
    %v6570 = vmul.f32 %v6534, %v6569
    %v6571 = vpack.c.bf16 %v6555, %v6555
    %v6572 = vpack.c.bf16 %v6570, %v6570
    %v6573 = vpack.c.bf16 %v6479, %v6479
    %v6574 = vpack.c.bf16 %v6481, %v6481
    %v6576 = vsel %vm269, %v6571, 0
    %v6579 = vsel %vm151, %v6573, 0
    %6581 = vmatpush.bf16.msra.mxu0 0
    %6582 = vmatpush.bf16.msra.mxu0 0
    %6583 = vmatpush.bf16.msra.mxu0 0
    %6584 = vmatpush.bf16.msra.mxu0 0
    %6585 = vmatpush.bf16.msra.mxu0 0
    %6586 = vmatpush.bf16.msra.mxu0 0
    %6587 = vmatpush.bf16.msra.mxu0 0
    %6588 = vmatpush.bf16.msra.mxu0 %v6579
    %6589 = vmatmul.bf16.gmra.mxu0 %v6576
    %v6590 = vpop.f32.mrf.mxu0
    %v6591 = vadd.f32 0.0, %v6590
    %v6592 = vpop.f32.mrf.mxu0
    %6593 = vdwg.mxu0
    %v6595 = vsel %vm269, %v6572, 0
    %v6598 = vsel %vm151, %v6574, 0
    %6600 = vmatpush.bf16.msra.mxu0 0
    %6601 = vmatpush.bf16.msra.mxu0 0
    %6602 = vmatpush.bf16.msra.mxu0 0
    %6603 = vmatpush.bf16.msra.mxu0 0
    %6604 = vmatpush.bf16.msra.mxu0 0
    %6605 = vmatpush.bf16.msra.mxu0 0
    %6606 = vmatpush.bf16.msra.mxu0 0
    %6607 = vmatpush.bf16.msra.mxu0 %v6598
    %6608 = vmatmul.bf16.gmra.mxu0 %v6595
    %v6609 = vpop.f32.mrf.mxu0
    %v6610 = vadd.f32 0.0, %v6609
    %v6611 = vpop.f32.mrf.mxu0
    %6612 = vdwg.mxu0
    %v6613 = vtanh.pop %v6591
    %v6614 = vtanh.pop %v6610
    %v6615 = vmul.f32 %v6305, 2.0
    %v6616 = vmul.f32 %v6306, 2.0
    %v6617 = vadd.f32 %v6151, %v6615
    %v6618 = vadd.f32 %v6152, %v6616
    %v6619 = vmul.f32 %v6459, 2.0
    %v6620 = vmul.f32 %v6460, 2.0
    %v6621 = vadd.f32 %v6617, %v6619
    %v6622 = vadd.f32 %v6618, %v6620
    %v6623 = vadd.f32 %v6621, %v6613
    %v6624 = vadd.f32 %v6622, %v6614
    %v6625 = vmul.f32 %v6623, 0.041666668
    %v6626 = vmul.f32 %v6624, 0.041666668
    %v6627 = vadd.f32 %v6001, %v6625
    %v6628 = vadd.f32 %v6002, %v6626
    %v6629 = vpack.c.bf16 %v6628, %v6627
    %v6631 = vsel %vm203, %v6629, 0
    %6633 = vmatpush.bf16.msra.mxu0 0
    %6634 = vmatpush.bf16.msra.mxu0 0
    %6635 = vmatpush.bf16.msra.mxu0 0
    %6636 = vmatpush.bf16.msra.mxu0 0
    %6637 = vmatpush.bf16.msra.mxu0 0
    %6638 = vmatpush.bf16.msra.mxu0 0
    %6639 = vmatpush.bf16.msra.mxu0 %v200
    %6640 = vmatpush.bf16.msra.mxu0 %v199
    %6641 = vmatmul.bf16.gmra.mxu0 %v6631
    %v6642 = vpop.f32.mrf.mxu0
    %v6643 = vadd.f32 0.0, %v6642
    %v6644 = vpop.f32.mrf.mxu0
    %v6645 = vadd.f32 0.0, %v6644
    %6646 = vdwg.mxu0
    %6648 = vset.pattern.permute.xlu0 32
    %6649 = vperm.xlu0 %6648, %v6643
    %v6650 = vpop.permute.xlu0 %6649
    %6653 = vset.pattern.permute.xlu0 32
    %6654 = vperm.xlu0 %6653, %v6645
    %v6655 = vpop.permute.xlu0 %6654
    %6657 = vset.pattern.permute.xlu0 33
    %6658 = vperm.xlu0 %6657, %v6643
    %v6659 = vpop.permute.xlu0 %6658
    %6660 = vset.pattern.permute.xlu0 33
    %6661 = vperm.xlu0 %6660, %v6645
    %v6662 = vpop.permute.xlu0 %6661
    %v6663 = vperm.slane %v6659, %v238
    %v6664 = vperm.slane %v6662, %v238
    %v6665 = vsel %vm241, %v6663, %v6663
    %v6666 = vsel %vm243, %v6663, %v6665
    %v6667 = vsel %vm245, %v6663, %v6666
    %v6668 = vsel %vm247, %v6663, %v6667
    %v6669 = vsel %vm249, %v6663, %v6668
    %v6670 = vsel %vm251, %v6663, %v6669
    %v6671 = vsel %vm241, %v6664, %v6664
    %v6672 = vsel %vm243, %v6664, %v6671
    %v6673 = vsel %vm245, %v6664, %v6672
    %v6674 = vsel %vm247, %v6664, %v6673
    %v6675 = vsel %vm249, %v6664, %v6674
    %v6676 = vsel %vm251, %v6664, %v6675
    %v6679 = vadd.f32 %v6650, %v6670
    %v6680 = vadd.f32 %v6655, %v6676
    %v6681 = vmul.f32 %v6679, 0.2
    %v6682 = vmul.f32 %v6680, 0.2
    %v6683 = vmax.f32 %v6679, %v6681
    %v6684 = vmax.f32 %v6680, %v6682
    %v6685 = vadd.f32 %v6683, %v104
    %v6686 = vadd.f32 %v6684, %v104
    %v6687 = vsel %vm269, %v6685, -inf
    %6688 = vmax.xlane.f32.xlu0 %v6687
    %v6689 = vpop.xlane.xlu0 %6688
    %v6690 = vsel %vm269, %v6686, -inf
    %6691 = vmax.xlane.f32.xlu0 %v6690
    %v6692 = vpop.xlane.xlu0 %6691
    %v6693 = vsub.f32 %v6685, %v6689
    %v6694 = vsub.f32 %v6686, %v6692
    %v6695 = vmul.f32 %v6693, 1.442695
    %v6696 = vpow.pop %v6695
    %v6697 = vmul.f32 %v6694, 1.442695
    %v6698 = vpow.pop %v6697
    %v6699 = vsel %vm269, %v6696, 0.0
    %6700 = vadd.xlane.f32.xlu0 %v6699
    %v6701 = vpop.xlane.xlu0 %6700
    %v6702 = vsel %vm269, %v6698, 0.0
    %6703 = vadd.xlane.f32.xlu0 %v6702
    %v6704 = vpop.xlane.xlu0 %6703
    %v6705 = vrcp.pop %v6701
    %v6706 = vmul.f32 %v6701, %v6705
    %v6707 = vsub.f32 1.0, %v6706
    %v6708 = vmul.f32 %v6705, %v6707
    %v6709 = vadd.f32 %v6705, %v6708
    %vm6710 = vweird.f32 %v6701
    %vm6711 = vweird.f32 %v6705
    %vm6712 = vmor %vm6710, %vm6711
    %v6713 = vsel %vm6712, %v6705, %v6709
    %v6714 = vand.u32 2147483647, %v6701
    %vm6715 = vcmp.eq.f32.partialorder %v6714, 8.507059e+37
    %v6716 = vand.u32 %v6701, 2147483648
    %v6717 = vor.u32 1.1754944e-38, %v6716
    %v6718 = vsel %vm6715, %v6717, %v6713
    %v6719 = vmul.f32 %v6696, %v6718
    %v6720 = vrcp.pop %v6704
    %v6721 = vmul.f32 %v6704, %v6720
    %v6722 = vsub.f32 1.0, %v6721
    %v6723 = vmul.f32 %v6720, %v6722
    %v6724 = vadd.f32 %v6720, %v6723
    %vm6725 = vweird.f32 %v6704
    %vm6726 = vweird.f32 %v6720
    %vm6727 = vmor %vm6725, %vm6726
    %v6728 = vsel %vm6727, %v6720, %v6724
    %v6729 = vand.u32 2147483647, %v6704
    %vm6730 = vcmp.eq.f32.partialorder %v6729, 8.507059e+37
    %v6731 = vand.u32 %v6704, 2147483648
    %v6732 = vor.u32 1.1754944e-38, %v6731
    %v6733 = vsel %vm6730, %v6732, %v6728
    %v6734 = vmul.f32 %v6698, %v6733
    %v6735 = vpack.c.bf16 %v6719, %v6719
    %v6736 = vpack.c.bf16 %v6734, %v6734
    %v6737 = vpack.c.bf16 %v6643, %v6643
    %v6738 = vpack.c.bf16 %v6645, %v6645
    %v6740 = vsel %vm269, %v6735, 0
    %v6743 = vsel %vm151, %v6737, 0
    %6745 = vmatpush.bf16.msra.mxu0 0
    %6746 = vmatpush.bf16.msra.mxu0 0
    %6747 = vmatpush.bf16.msra.mxu0 0
    %6748 = vmatpush.bf16.msra.mxu0 0
    %6749 = vmatpush.bf16.msra.mxu0 0
    %6750 = vmatpush.bf16.msra.mxu0 0
    %6751 = vmatpush.bf16.msra.mxu0 0
    %6752 = vmatpush.bf16.msra.mxu0 %v6743
    %6753 = vmatmul.bf16.gmra.mxu0 %v6740
    %v6754 = vpop.f32.mrf.mxu0
    %v6755 = vadd.f32 0.0, %v6754
    %v6756 = vpop.f32.mrf.mxu0
    %6757 = vdwg.mxu0
    %v6759 = vsel %vm269, %v6736, 0
    %v6762 = vsel %vm151, %v6738, 0
    %6764 = vmatpush.bf16.msra.mxu0 0
    %6765 = vmatpush.bf16.msra.mxu0 0
    %6766 = vmatpush.bf16.msra.mxu0 0
    %6767 = vmatpush.bf16.msra.mxu0 0
    %6768 = vmatpush.bf16.msra.mxu0 0
    %6769 = vmatpush.bf16.msra.mxu0 0
    %6770 = vmatpush.bf16.msra.mxu0 0
    %6771 = vmatpush.bf16.msra.mxu0 %v6762
    %6772 = vmatmul.bf16.gmra.mxu0 %v6759
    %v6773 = vpop.f32.mrf.mxu0
    %v6774 = vadd.f32 0.0, %v6773
    %v6775 = vpop.f32.mrf.mxu0
    %6776 = vdwg.mxu0
    %v6777 = vtanh.pop %v6755
    %v6778 = vtanh.pop %v6774
    %v6779 = vmul.f32 %v6777, 0.125
    %v6780 = vmul.f32 %v6778, 0.125
    %v6781 = vadd.f32 %v6627, %v6779
    %v6782 = vadd.f32 %v6628, %v6780
    %v6783 = vpack.c.bf16 %v6782, %v6781
    %v6785 = vsel %vm203, %v6783, 0
    %6787 = vmatpush.bf16.msra.mxu0 0
    %6788 = vmatpush.bf16.msra.mxu0 0
    %6789 = vmatpush.bf16.msra.mxu0 0
    %6790 = vmatpush.bf16.msra.mxu0 0
    %6791 = vmatpush.bf16.msra.mxu0 0
    %6792 = vmatpush.bf16.msra.mxu0 0
    %6793 = vmatpush.bf16.msra.mxu0 %v200
    %6794 = vmatpush.bf16.msra.mxu0 %v199
    %6795 = vmatmul.bf16.gmra.mxu0 %v6785
    %v6796 = vpop.f32.mrf.mxu0
    %v6797 = vadd.f32 0.0, %v6796
    %v6798 = vpop.f32.mrf.mxu0
    %v6799 = vadd.f32 0.0, %v6798
    %6800 = vdwg.mxu0
    %6802 = vset.pattern.permute.xlu0 32
    %6803 = vperm.xlu0 %6802, %v6797
    %v6804 = vpop.permute.xlu0 %6803
    %6807 = vset.pattern.permute.xlu0 32
    %6808 = vperm.xlu0 %6807, %v6799
    %v6809 = vpop.permute.xlu0 %6808
    %6811 = vset.pattern.permute.xlu0 33
    %6812 = vperm.xlu0 %6811, %v6797
    %v6813 = vpop.permute.xlu0 %6812
    %6814 = vset.pattern.permute.xlu0 33
    %6815 = vperm.xlu0 %6814, %v6799
    %v6816 = vpop.permute.xlu0 %6815
    %v6817 = vperm.slane %v6813, %v238
    %v6818 = vperm.slane %v6816, %v238
    %v6819 = vsel %vm241, %v6817, %v6817
    %v6820 = vsel %vm243, %v6817, %v6819
    %v6821 = vsel %vm245, %v6817, %v6820
    %v6822 = vsel %vm247, %v6817, %v6821
    %v6823 = vsel %vm249, %v6817, %v6822
    %v6824 = vsel %vm251, %v6817, %v6823
    %v6825 = vsel %vm241, %v6818, %v6818
    %v6826 = vsel %vm243, %v6818, %v6825
    %v6827 = vsel %vm245, %v6818, %v6826
    %v6828 = vsel %vm247, %v6818, %v6827
    %v6829 = vsel %vm249, %v6818, %v6828
    %v6830 = vsel %vm251, %v6818, %v6829
    %v6833 = vadd.f32 %v6804, %v6824
    %v6834 = vadd.f32 %v6809, %v6830
    %v6835 = vmul.f32 %v6833, 0.2
    %v6836 = vmul.f32 %v6834, 0.2
    %v6837 = vmax.f32 %v6833, %v6835
    %v6838 = vmax.f32 %v6834, %v6836
    %v6839 = vadd.f32 %v6837, %v104
    %v6840 = vadd.f32 %v6838, %v104
    %v6841 = vsel %vm269, %v6839, -inf
    %6842 = vmax.xlane.f32.xlu0 %v6841
    %v6843 = vpop.xlane.xlu0 %6842
    %v6844 = vsel %vm269, %v6840, -inf
    %6845 = vmax.xlane.f32.xlu0 %v6844
    %v6846 = vpop.xlane.xlu0 %6845
    %v6847 = vsub.f32 %v6839, %v6843
    %v6848 = vsub.f32 %v6840, %v6846
    %v6849 = vmul.f32 %v6847, 1.442695
    %v6850 = vpow.pop %v6849
    %v6851 = vmul.f32 %v6848, 1.442695
    %v6852 = vpow.pop %v6851
    %v6853 = vsel %vm269, %v6850, 0.0
    %6854 = vadd.xlane.f32.xlu0 %v6853
    %v6855 = vpop.xlane.xlu0 %6854
    %v6856 = vsel %vm269, %v6852, 0.0
    %6857 = vadd.xlane.f32.xlu0 %v6856
    %v6858 = vpop.xlane.xlu0 %6857
    %v6859 = vrcp.pop %v6855
    %v6860 = vmul.f32 %v6855, %v6859
    %v6861 = vsub.f32 1.0, %v6860
    %v6862 = vmul.f32 %v6859, %v6861
    %v6863 = vadd.f32 %v6859, %v6862
    %vm6864 = vweird.f32 %v6855
    %vm6865 = vweird.f32 %v6859
    %vm6866 = vmor %vm6864, %vm6865
    %v6867 = vsel %vm6866, %v6859, %v6863
    %v6868 = vand.u32 2147483647, %v6855
    %vm6869 = vcmp.eq.f32.partialorder %v6868, 8.507059e+37
    %v6870 = vand.u32 %v6855, 2147483648
    %v6871 = vor.u32 1.1754944e-38, %v6870
    %v6872 = vsel %vm6869, %v6871, %v6867
    %v6873 = vmul.f32 %v6850, %v6872
    %v6874 = vrcp.pop %v6858
    %v6875 = vmul.f32 %v6858, %v6874
    %v6876 = vsub.f32 1.0, %v6875
    %v6877 = vmul.f32 %v6874, %v6876
    %v6878 = vadd.f32 %v6874, %v6877
    %vm6879 = vweird.f32 %v6858
    %vm6880 = vweird.f32 %v6874
    %vm6881 = vmor %vm6879, %vm6880
    %v6882 = vsel %vm6881, %v6874, %v6878
    %v6883 = vand.u32 2147483647, %v6858
    %vm6884 = vcmp.eq.f32.partialorder %v6883, 8.507059e+37
    %v6885 = vand.u32 %v6858, 2147483648
    %v6886 = vor.u32 1.1754944e-38, %v6885
    %v6887 = vsel %vm6884, %v6886, %v6882
    %v6888 = vmul.f32 %v6852, %v6887
    %v6889 = vpack.c.bf16 %v6873, %v6873
    %v6890 = vpack.c.bf16 %v6888, %v6888
    %v6891 = vpack.c.bf16 %v6797, %v6797
    %v6892 = vpack.c.bf16 %v6799, %v6799
    %v6894 = vsel %vm269, %v6889, 0
    %v6897 = vsel %vm151, %v6891, 0
    %6899 = vmatpush.bf16.msra.mxu0 0
    %6900 = vmatpush.bf16.msra.mxu0 0
    %6901 = vmatpush.bf16.msra.mxu0 0
    %6902 = vmatpush.bf16.msra.mxu0 0
    %6903 = vmatpush.bf16.msra.mxu0 0
    %6904 = vmatpush.bf16.msra.mxu0 0
    %6905 = vmatpush.bf16.msra.mxu0 0
    %6906 = vmatpush.bf16.msra.mxu0 %v6897
    %6907 = vmatmul.bf16.gmra.mxu0 %v6894
    %v6908 = vpop.f32.mrf.mxu0
    %v6909 = vadd.f32 0.0, %v6908
    %v6910 = vpop.f32.mrf.mxu0
    %6911 = vdwg.mxu0
    %v6913 = vsel %vm269, %v6890, 0
    %v6916 = vsel %vm151, %v6892, 0
    %6918 = vmatpush.bf16.msra.mxu0 0
    %6919 = vmatpush.bf16.msra.mxu0 0
    %6920 = vmatpush.bf16.msra.mxu0 0
    %6921 = vmatpush.bf16.msra.mxu0 0
    %6922 = vmatpush.bf16.msra.mxu0 0
    %6923 = vmatpush.bf16.msra.mxu0 0
    %6924 = vmatpush.bf16.msra.mxu0 0
    %6925 = vmatpush.bf16.msra.mxu0 %v6916
    %6926 = vmatmul.bf16.gmra.mxu0 %v6913
    %v6927 = vpop.f32.mrf.mxu0
    %v6928 = vadd.f32 0.0, %v6927
    %v6929 = vpop.f32.mrf.mxu0
    %6930 = vdwg.mxu0
    %v6931 = vtanh.pop %v6909
    %v6932 = vtanh.pop %v6928
    %v6933 = vmul.f32 %v6931, 0.125
    %v6934 = vmul.f32 %v6932, 0.125
    %v6935 = vadd.f32 %v6627, %v6933
    %v6936 = vadd.f32 %v6628, %v6934
    %v6937 = vpack.c.bf16 %v6936, %v6935
    %v6939 = vsel %vm203, %v6937, 0
    %6941 = vmatpush.bf16.msra.mxu0 0
    %6942 = vmatpush.bf16.msra.mxu0 0
    %6943 = vmatpush.bf16.msra.mxu0 0
    %6944 = vmatpush.bf16.msra.mxu0 0
    %6945 = vmatpush.bf16.msra.mxu0 0
    %6946 = vmatpush.bf16.msra.mxu0 0
    %6947 = vmatpush.bf16.msra.mxu0 %v200
    %6948 = vmatpush.bf16.msra.mxu0 %v199
    %6949 = vmatmul.bf16.gmra.mxu0 %v6939
    %v6950 = vpop.f32.mrf.mxu0
    %v6951 = vadd.f32 0.0, %v6950
    %v6952 = vpop.f32.mrf.mxu0
    %v6953 = vadd.f32 0.0, %v6952
    %6954 = vdwg.mxu0
    %6956 = vset.pattern.permute.xlu0 32
    %6957 = vperm.xlu0 %6956, %v6951
    %v6958 = vpop.permute.xlu0 %6957
    %6961 = vset.pattern.permute.xlu0 32
    %6962 = vperm.xlu0 %6961, %v6953
    %v6963 = vpop.permute.xlu0 %6962
    %6965 = vset.pattern.permute.xlu0 33
    %6966 = vperm.xlu0 %6965, %v6951
    %v6967 = vpop.permute.xlu0 %6966
    %6968 = vset.pattern.permute.xlu0 33
    %6969 = vperm.xlu0 %6968, %v6953
    %v6970 = vpop.permute.xlu0 %6969
    %v6971 = vperm.slane %v6967, %v238
    %v6972 = vperm.slane %v6970, %v238
    %v6973 = vsel %vm241, %v6971, %v6971
    %v6974 = vsel %vm243, %v6971, %v6973
    %v6975 = vsel %vm245, %v6971, %v6974
    %v6976 = vsel %vm247, %v6971, %v6975
    %v6977 = vsel %vm249, %v6971, %v6976
    %v6978 = vsel %vm251, %v6971, %v6977
    %v6979 = vsel %vm241, %v6972, %v6972
    %v6980 = vsel %vm243, %v6972, %v6979
    %v6981 = vsel %vm245, %v6972, %v6980
    %v6982 = vsel %vm247, %v6972, %v6981
    %v6983 = vsel %vm249, %v6972, %v6982
    %v6984 = vsel %vm251, %v6972, %v6983
    %v6987 = vadd.f32 %v6958, %v6978
    %v6988 = vadd.f32 %v6963, %v6984
    %v6989 = vmul.f32 %v6987, 0.2
    %v6990 = vmul.f32 %v6988, 0.2
    %v6991 = vmax.f32 %v6987, %v6989
    %v6992 = vmax.f32 %v6988, %v6990
    %v6993 = vadd.f32 %v6991, %v104
    %v6994 = vadd.f32 %v6992, %v104
    %v6995 = vsel %vm269, %v6993, -inf
    %6996 = vmax.xlane.f32.xlu0 %v6995
    %v6997 = vpop.xlane.xlu0 %6996
    %v6998 = vsel %vm269, %v6994, -inf
    %6999 = vmax.xlane.f32.xlu0 %v6998
    %v7000 = vpop.xlane.xlu0 %6999
    %v7001 = vsub.f32 %v6993, %v6997
    %v7002 = vsub.f32 %v6994, %v7000
    %v7003 = vmul.f32 %v7001, 1.442695
    %v7004 = vpow.pop %v7003
    %v7005 = vmul.f32 %v7002, 1.442695
    %v7006 = vpow.pop %v7005
    %v7007 = vsel %vm269, %v7004, 0.0
    %7008 = vadd.xlane.f32.xlu0 %v7007
    %v7009 = vpop.xlane.xlu0 %7008
    %v7010 = vsel %vm269, %v7006, 0.0
    %7011 = vadd.xlane.f32.xlu0 %v7010
    %v7012 = vpop.xlane.xlu0 %7011
    %v7013 = vrcp.pop %v7009
    %v7014 = vmul.f32 %v7009, %v7013
    %v7015 = vsub.f32 1.0, %v7014
    %v7016 = vmul.f32 %v7013, %v7015
    %v7017 = vadd.f32 %v7013, %v7016
    %vm7018 = vweird.f32 %v7009
    %vm7019 = vweird.f32 %v7013
    %vm7020 = vmor %vm7018, %vm7019
    %v7021 = vsel %vm7020, %v7013, %v7017
    %v7022 = vand.u32 2147483647, %v7009
    %vm7023 = vcmp.eq.f32.partialorder %v7022, 8.507059e+37
    %v7024 = vand.u32 %v7009, 2147483648
    %v7025 = vor.u32 1.1754944e-38, %v7024
    %v7026 = vsel %vm7023, %v7025, %v7021
    %v7027 = vmul.f32 %v7004, %v7026
    %v7028 = vrcp.pop %v7012
    %v7029 = vmul.f32 %v7012, %v7028
    %v7030 = vsub.f32 1.0, %v7029
    %v7031 = vmul.f32 %v7028, %v7030
    %v7032 = vadd.f32 %v7028, %v7031
    %vm7033 = vweird.f32 %v7012
    %vm7034 = vweird.f32 %v7028
    %vm7035 = vmor %vm7033, %vm7034
    %v7036 = vsel %vm7035, %v7028, %v7032
    %v7037 = vand.u32 2147483647, %v7012
    %vm7038 = vcmp.eq.f32.partialorder %v7037, 8.507059e+37
    %v7039 = vand.u32 %v7012, 2147483648
    %v7040 = vor.u32 1.1754944e-38, %v7039
    %v7041 = vsel %vm7038, %v7040, %v7036
    %v7042 = vmul.f32 %v7006, %v7041
    %v7043 = vpack.c.bf16 %v7027, %v7027
    %v7044 = vpack.c.bf16 %v7042, %v7042
    %v7045 = vpack.c.bf16 %v6951, %v6951
    %v7046 = vpack.c.bf16 %v6953, %v6953
    %v7048 = vsel %vm269, %v7043, 0
    %v7051 = vsel %vm151, %v7045, 0
    %7053 = vmatpush.bf16.msra.mxu0 0
    %7054 = vmatpush.bf16.msra.mxu0 0
    %7055 = vmatpush.bf16.msra.mxu0 0
    %7056 = vmatpush.bf16.msra.mxu0 0
    %7057 = vmatpush.bf16.msra.mxu0 0
    %7058 = vmatpush.bf16.msra.mxu0 0
    %7059 = vmatpush.bf16.msra.mxu0 0
    %7060 = vmatpush.bf16.msra.mxu0 %v7051
    %7061 = vmatmul.bf16.gmra.mxu0 %v7048
    %v7062 = vpop.f32.mrf.mxu0
    %v7063 = vadd.f32 0.0, %v7062
    %v7064 = vpop.f32.mrf.mxu0
    %7065 = vdwg.mxu0
    %v7067 = vsel %vm269, %v7044, 0
    %v7070 = vsel %vm151, %v7046, 0
    %7072 = vmatpush.bf16.msra.mxu0 0
    %7073 = vmatpush.bf16.msra.mxu0 0
    %7074 = vmatpush.bf16.msra.mxu0 0
    %7075 = vmatpush.bf16.msra.mxu0 0
    %7076 = vmatpush.bf16.msra.mxu0 0
    %7077 = vmatpush.bf16.msra.mxu0 0
    %7078 = vmatpush.bf16.msra.mxu0 0
    %7079 = vmatpush.bf16.msra.mxu0 %v7070
    %7080 = vmatmul.bf16.gmra.mxu0 %v7067
    %v7081 = vpop.f32.mrf.mxu0
    %v7082 = vadd.f32 0.0, %v7081
    %v7083 = vpop.f32.mrf.mxu0
    %7084 = vdwg.mxu0
    %v7085 = vtanh.pop %v7063
    %v7086 = vtanh.pop %v7082
    %v7087 = vmul.f32 %v7085, 0.25
    %v7088 = vmul.f32 %v7086, 0.25
    %v7089 = vadd.f32 %v6627, %v7087
    %v7090 = vadd.f32 %v6628, %v7088
    %v7091 = vpack.c.bf16 %v7090, %v7089
    %v7093 = vsel %vm203, %v7091, 0
    %7095 = vmatpush.bf16.msra.mxu0 0
    %7096 = vmatpush.bf16.msra.mxu0 0
    %7097 = vmatpush.bf16.msra.mxu0 0
    %7098 = vmatpush.bf16.msra.mxu0 0
    %7099 = vmatpush.bf16.msra.mxu0 0
    %7100 = vmatpush.bf16.msra.mxu0 0
    %7101 = vmatpush.bf16.msra.mxu0 %v200
    %7102 = vmatpush.bf16.msra.mxu0 %v199
    %7103 = vmatmul.bf16.gmra.mxu0 %v7093
    %v7104 = vpop.f32.mrf.mxu0
    %v7105 = vadd.f32 0.0, %v7104
    %v7106 = vpop.f32.mrf.mxu0
    %v7107 = vadd.f32 0.0, %v7106
    %7108 = vdwg.mxu0
    %7110 = vset.pattern.permute.xlu0 32
    %7111 = vperm.xlu0 %7110, %v7105
    %v7112 = vpop.permute.xlu0 %7111
    %7115 = vset.pattern.permute.xlu0 32
    %7116 = vperm.xlu0 %7115, %v7107
    %v7117 = vpop.permute.xlu0 %7116
    %7119 = vset.pattern.permute.xlu0 33
    %7120 = vperm.xlu0 %7119, %v7105
    %v7121 = vpop.permute.xlu0 %7120
    %7122 = vset.pattern.permute.xlu0 33
    %7123 = vperm.xlu0 %7122, %v7107
    %v7124 = vpop.permute.xlu0 %7123
    %v7125 = vperm.slane %v7121, %v238
    %v7126 = vperm.slane %v7124, %v238
    %v7127 = vsel %vm241, %v7125, %v7125
    %v7128 = vsel %vm243, %v7125, %v7127
    %v7129 = vsel %vm245, %v7125, %v7128
    %v7130 = vsel %vm247, %v7125, %v7129
    %v7131 = vsel %vm249, %v7125, %v7130
    %v7132 = vsel %vm251, %v7125, %v7131
    %v7133 = vsel %vm241, %v7126, %v7126
    %v7134 = vsel %vm243, %v7126, %v7133
    %v7135 = vsel %vm245, %v7126, %v7134
    %v7136 = vsel %vm247, %v7126, %v7135
    %v7137 = vsel %vm249, %v7126, %v7136
    %v7138 = vsel %vm251, %v7126, %v7137
    %v7141 = vadd.f32 %v7112, %v7132
    %v7142 = vadd.f32 %v7117, %v7138
    %v7143 = vmul.f32 %v7141, 0.2
    %v7144 = vmul.f32 %v7142, 0.2
    %v7145 = vmax.f32 %v7141, %v7143
    %v7146 = vmax.f32 %v7142, %v7144
    %v7147 = vadd.f32 %v7145, %v104
    %v7148 = vadd.f32 %v7146, %v104
    %v7149 = vsel %vm269, %v7147, -inf
    %7150 = vmax.xlane.f32.xlu0 %v7149
    %v7151 = vpop.xlane.xlu0 %7150
    %v7152 = vsel %vm269, %v7148, -inf
    %7153 = vmax.xlane.f32.xlu0 %v7152
    %v7154 = vpop.xlane.xlu0 %7153
    %v7155 = vsub.f32 %v7147, %v7151
    %v7156 = vsub.f32 %v7148, %v7154
    %v7157 = vmul.f32 %v7155, 1.442695
    %v7158 = vpow.pop %v7157
    %v7159 = vmul.f32 %v7156, 1.442695
    %v7160 = vpow.pop %v7159
    %v7161 = vsel %vm269, %v7158, 0.0
    %7162 = vadd.xlane.f32.xlu0 %v7161
    %v7163 = vpop.xlane.xlu0 %7162
    %v7164 = vsel %vm269, %v7160, 0.0
    %7165 = vadd.xlane.f32.xlu0 %v7164
    %v7166 = vpop.xlane.xlu0 %7165
    %v7167 = vrcp.pop %v7163
    %v7168 = vmul.f32 %v7163, %v7167
    %v7169 = vsub.f32 1.0, %v7168
    %v7170 = vmul.f32 %v7167, %v7169
    %v7171 = vadd.f32 %v7167, %v7170
    %vm7172 = vweird.f32 %v7163
    %vm7173 = vweird.f32 %v7167
    %vm7174 = vmor %vm7172, %vm7173
    %v7175 = vsel %vm7174, %v7167, %v7171
    %v7176 = vand.u32 2147483647, %v7163
    %vm7177 = vcmp.eq.f32.partialorder %v7176, 8.507059e+37
    %v7178 = vand.u32 %v7163, 2147483648
    %v7179 = vor.u32 1.1754944e-38, %v7178
    %v7180 = vsel %vm7177, %v7179, %v7175
    %v7181 = vmul.f32 %v7158, %v7180
    %v7182 = vrcp.pop %v7166
    %v7183 = vmul.f32 %v7166, %v7182
    %v7184 = vsub.f32 1.0, %v7183
    %v7185 = vmul.f32 %v7182, %v7184
    %v7186 = vadd.f32 %v7182, %v7185
    %vm7187 = vweird.f32 %v7166
    %vm7188 = vweird.f32 %v7182
    %vm7189 = vmor %vm7187, %vm7188
    %v7190 = vsel %vm7189, %v7182, %v7186
    %v7191 = vand.u32 2147483647, %v7166
    %vm7192 = vcmp.eq.f32.partialorder %v7191, 8.507059e+37
    %v7193 = vand.u32 %v7166, 2147483648
    %v7194 = vor.u32 1.1754944e-38, %v7193
    %v7195 = vsel %vm7192, %v7194, %v7190
    %v7196 = vmul.f32 %v7160, %v7195
    %v7197 = vpack.c.bf16 %v7181, %v7181
    %v7198 = vpack.c.bf16 %v7196, %v7196
    %v7199 = vpack.c.bf16 %v7105, %v7105
    %v7200 = vpack.c.bf16 %v7107, %v7107
    %v7202 = vsel %vm269, %v7197, 0
    %v7205 = vsel %vm151, %v7199, 0
    %7207 = vmatpush.bf16.msra.mxu0 0
    %7208 = vmatpush.bf16.msra.mxu0 0
    %7209 = vmatpush.bf16.msra.mxu0 0
    %7210 = vmatpush.bf16.msra.mxu0 0
    %7211 = vmatpush.bf16.msra.mxu0 0
    %7212 = vmatpush.bf16.msra.mxu0 0
    %7213 = vmatpush.bf16.msra.mxu0 0
    %7214 = vmatpush.bf16.msra.mxu0 %v7205
    %7215 = vmatmul.bf16.gmra.mxu0 %v7202
    %v7216 = vpop.f32.mrf.mxu0
    %v7217 = vadd.f32 0.0, %v7216
    %v7218 = vpop.f32.mrf.mxu0
    %7219 = vdwg.mxu0
    %v7221 = vsel %vm269, %v7198, 0
    %v7224 = vsel %vm151, %v7200, 0
    %7226 = vmatpush.bf16.msra.mxu0 0
    %7227 = vmatpush.bf16.msra.mxu0 0
    %7228 = vmatpush.bf16.msra.mxu0 0
    %7229 = vmatpush.bf16.msra.mxu0 0
    %7230 = vmatpush.bf16.msra.mxu0 0
    %7231 = vmatpush.bf16.msra.mxu0 0
    %7232 = vmatpush.bf16.msra.mxu0 0
    %7233 = vmatpush.bf16.msra.mxu0 %v7224
    %7234 = vmatmul.bf16.gmra.mxu0 %v7221
    %v7235 = vpop.f32.mrf.mxu0
    %v7236 = vadd.f32 0.0, %v7235
    %v7237 = vpop.f32.mrf.mxu0
    %7238 = vdwg.mxu0
    %v7239 = vtanh.pop %v7217
    %v7240 = vtanh.pop %v7236
    %v7241 = vmul.f32 %v6931, 2.0
    %v7242 = vmul.f32 %v6932, 2.0
    %v7243 = vadd.f32 %v6777, %v7241
    %v7244 = vadd.f32 %v6778, %v7242
    %v7245 = vmul.f32 %v7085, 2.0
    %v7246 = vmul.f32 %v7086, 2.0
    %v7247 = vadd.f32 %v7243, %v7245
    %v7248 = vadd.f32 %v7244, %v7246
    %v7249 = vadd.f32 %v7247, %v7239
    %v7250 = vadd.f32 %v7248, %v7240
    %v7251 = vmul.f32 %v7249, 0.041666668
    %v7252 = vmul.f32 %v7250, 0.041666668
    %v7253 = vadd.f32 %v6627, %v7251
    %v7254 = vadd.f32 %v6628, %v7252
    %v7255 = vpack.c.bf16 %v7254, %v7253
    %v7257 = vsel %vm203, %v7255, 0
    %7259 = vmatpush.bf16.msra.mxu0 0
    %7260 = vmatpush.bf16.msra.mxu0 0
    %7261 = vmatpush.bf16.msra.mxu0 0
    %7262 = vmatpush.bf16.msra.mxu0 0
    %7263 = vmatpush.bf16.msra.mxu0 0
    %7264 = vmatpush.bf16.msra.mxu0 0
    %7265 = vmatpush.bf16.msra.mxu0 %v200
    %7266 = vmatpush.bf16.msra.mxu0 %v199
    %7267 = vmatmul.bf16.gmra.mxu0 %v7257
    %v7268 = vpop.f32.mrf.mxu0
    %v7269 = vadd.f32 0.0, %v7268
    %v7270 = vpop.f32.mrf.mxu0
    %v7271 = vadd.f32 0.0, %v7270
    %7272 = vdwg.mxu0
    %7274 = vset.pattern.permute.xlu0 32
    %7275 = vperm.xlu0 %7274, %v7269
    %v7276 = vpop.permute.xlu0 %7275
    %7279 = vset.pattern.permute.xlu0 32
    %7280 = vperm.xlu0 %7279, %v7271
    %v7281 = vpop.permute.xlu0 %7280
    %7283 = vset.pattern.permute.xlu0 33
    %7284 = vperm.xlu0 %7283, %v7269
    %v7285 = vpop.permute.xlu0 %7284
    %7286 = vset.pattern.permute.xlu0 33
    %7287 = vperm.xlu0 %7286, %v7271
    %v7288 = vpop.permute.xlu0 %7287
    %v7289 = vperm.slane %v7285, %v238
    %v7290 = vperm.slane %v7288, %v238
    %v7291 = vsel %vm241, %v7289, %v7289
    %v7292 = vsel %vm243, %v7289, %v7291
    %v7293 = vsel %vm245, %v7289, %v7292
    %v7294 = vsel %vm247, %v7289, %v7293
    %v7295 = vsel %vm249, %v7289, %v7294
    %v7296 = vsel %vm251, %v7289, %v7295
    %v7297 = vsel %vm241, %v7290, %v7290
    %v7298 = vsel %vm243, %v7290, %v7297
    %v7299 = vsel %vm245, %v7290, %v7298
    %v7300 = vsel %vm247, %v7290, %v7299
    %v7301 = vsel %vm249, %v7290, %v7300
    %v7302 = vsel %vm251, %v7290, %v7301
    %v7305 = vadd.f32 %v7276, %v7296
    %v7306 = vadd.f32 %v7281, %v7302
    %v7307 = vmul.f32 %v7305, 0.2
    %v7308 = vmul.f32 %v7306, 0.2
    %v7309 = vmax.f32 %v7305, %v7307
    %v7310 = vmax.f32 %v7306, %v7308
    %v7311 = vadd.f32 %v7309, %v104
    %v7312 = vadd.f32 %v7310, %v104
    %v7313 = vsel %vm269, %v7311, -inf
    %7314 = vmax.xlane.f32.xlu0 %v7313
    %v7315 = vpop.xlane.xlu0 %7314
    %v7316 = vsel %vm269, %v7312, -inf
    %7317 = vmax.xlane.f32.xlu0 %v7316
    %v7318 = vpop.xlane.xlu0 %7317
    %v7319 = vsub.f32 %v7311, %v7315
    %v7320 = vsub.f32 %v7312, %v7318
    %v7321 = vmul.f32 %v7319, 1.442695
    %v7322 = vpow.pop %v7321
    %v7323 = vmul.f32 %v7320, 1.442695
    %v7324 = vpow.pop %v7323
    %v7325 = vsel %vm269, %v7322, 0.0
    %7326 = vadd.xlane.f32.xlu0 %v7325
    %v7327 = vpop.xlane.xlu0 %7326
    %v7328 = vsel %vm269, %v7324, 0.0
    %7329 = vadd.xlane.f32.xlu0 %v7328
    %v7330 = vpop.xlane.xlu0 %7329
    %v7331 = vrcp.pop %v7327
    %v7332 = vmul.f32 %v7327, %v7331
    %v7333 = vsub.f32 1.0, %v7332
    %v7334 = vmul.f32 %v7331, %v7333
    %v7335 = vadd.f32 %v7331, %v7334
    %vm7336 = vweird.f32 %v7327
    %vm7337 = vweird.f32 %v7331
    %vm7338 = vmor %vm7336, %vm7337
    %v7339 = vsel %vm7338, %v7331, %v7335
    %v7340 = vand.u32 2147483647, %v7327
    %vm7341 = vcmp.eq.f32.partialorder %v7340, 8.507059e+37
    %v7342 = vand.u32 %v7327, 2147483648
    %v7343 = vor.u32 1.1754944e-38, %v7342
    %v7344 = vsel %vm7341, %v7343, %v7339
    %v7345 = vmul.f32 %v7322, %v7344
    %v7346 = vrcp.pop %v7330
    %v7347 = vmul.f32 %v7330, %v7346
    %v7348 = vsub.f32 1.0, %v7347
    %v7349 = vmul.f32 %v7346, %v7348
    %v7350 = vadd.f32 %v7346, %v7349
    %vm7351 = vweird.f32 %v7330
    %vm7352 = vweird.f32 %v7346
    %vm7353 = vmor %vm7351, %vm7352
    %v7354 = vsel %vm7353, %v7346, %v7350
    %v7355 = vand.u32 2147483647, %v7330
    %vm7356 = vcmp.eq.f32.partialorder %v7355, 8.507059e+37
    %v7357 = vand.u32 %v7330, 2147483648
    %v7358 = vor.u32 1.1754944e-38, %v7357
    %v7359 = vsel %vm7356, %v7358, %v7354
    %v7360 = vmul.f32 %v7324, %v7359
    %v7361 = vpack.c.bf16 %v7345, %v7345
    %v7362 = vpack.c.bf16 %v7360, %v7360
    %v7363 = vpack.c.bf16 %v7269, %v7269
    %v7364 = vpack.c.bf16 %v7271, %v7271
    %v7366 = vsel %vm269, %v7361, 0
    %v7369 = vsel %vm151, %v7363, 0
    %7371 = vmatpush.bf16.msra.mxu0 0
    %7372 = vmatpush.bf16.msra.mxu0 0
    %7373 = vmatpush.bf16.msra.mxu0 0
    %7374 = vmatpush.bf16.msra.mxu0 0
    %7375 = vmatpush.bf16.msra.mxu0 0
    %7376 = vmatpush.bf16.msra.mxu0 0
    %7377 = vmatpush.bf16.msra.mxu0 0
    %7378 = vmatpush.bf16.msra.mxu0 %v7369
    %7379 = vmatmul.bf16.gmra.mxu0 %v7366
    %v7380 = vpop.f32.mrf.mxu0
    %v7381 = vadd.f32 0.0, %v7380
    %v7382 = vpop.f32.mrf.mxu0
    %7383 = vdwg.mxu0
    %v7385 = vsel %vm269, %v7362, 0
    %v7388 = vsel %vm151, %v7364, 0
    %7390 = vmatpush.bf16.msra.mxu0 0
    %7391 = vmatpush.bf16.msra.mxu0 0
    %7392 = vmatpush.bf16.msra.mxu0 0
    %7393 = vmatpush.bf16.msra.mxu0 0
    %7394 = vmatpush.bf16.msra.mxu0 0
    %7395 = vmatpush.bf16.msra.mxu0 0
    %7396 = vmatpush.bf16.msra.mxu0 0
    %7397 = vmatpush.bf16.msra.mxu0 %v7388
    %7398 = vmatmul.bf16.gmra.mxu0 %v7385
    %v7399 = vpop.f32.mrf.mxu0
    %v7400 = vadd.f32 0.0, %v7399
    %v7401 = vpop.f32.mrf.mxu0
    %7402 = vdwg.mxu0
    %v7403 = vtanh.pop %v7381
    %v7404 = vtanh.pop %v7400
    %v7405 = vmul.f32 %v7403, 0.125
    %v7406 = vmul.f32 %v7404, 0.125
    %v7407 = vadd.f32 %v7253, %v7405
    %v7408 = vadd.f32 %v7254, %v7406
    %v7409 = vpack.c.bf16 %v7408, %v7407
    %v7411 = vsel %vm203, %v7409, 0
    %7413 = vmatpush.bf16.msra.mxu0 0
    %7414 = vmatpush.bf16.msra.mxu0 0
    %7415 = vmatpush.bf16.msra.mxu0 0
    %7416 = vmatpush.bf16.msra.mxu0 0
    %7417 = vmatpush.bf16.msra.mxu0 0
    %7418 = vmatpush.bf16.msra.mxu0 0
    %7419 = vmatpush.bf16.msra.mxu0 %v200
    %7420 = vmatpush.bf16.msra.mxu0 %v199
    %7421 = vmatmul.bf16.gmra.mxu0 %v7411
    %v7422 = vpop.f32.mrf.mxu0
    %v7423 = vadd.f32 0.0, %v7422
    %v7424 = vpop.f32.mrf.mxu0
    %v7425 = vadd.f32 0.0, %v7424
    %7426 = vdwg.mxu0
    %7428 = vset.pattern.permute.xlu0 32
    %7429 = vperm.xlu0 %7428, %v7423
    %v7430 = vpop.permute.xlu0 %7429
    %7433 = vset.pattern.permute.xlu0 32
    %7434 = vperm.xlu0 %7433, %v7425
    %v7435 = vpop.permute.xlu0 %7434
    %7437 = vset.pattern.permute.xlu0 33
    %7438 = vperm.xlu0 %7437, %v7423
    %v7439 = vpop.permute.xlu0 %7438
    %7440 = vset.pattern.permute.xlu0 33
    %7441 = vperm.xlu0 %7440, %v7425
    %v7442 = vpop.permute.xlu0 %7441
    %v7443 = vperm.slane %v7439, %v238
    %v7444 = vperm.slane %v7442, %v238
    %v7445 = vsel %vm241, %v7443, %v7443
    %v7446 = vsel %vm243, %v7443, %v7445
    %v7447 = vsel %vm245, %v7443, %v7446
    %v7448 = vsel %vm247, %v7443, %v7447
    %v7449 = vsel %vm249, %v7443, %v7448
    %v7450 = vsel %vm251, %v7443, %v7449
    %v7451 = vsel %vm241, %v7444, %v7444
    %v7452 = vsel %vm243, %v7444, %v7451
    %v7453 = vsel %vm245, %v7444, %v7452
    %v7454 = vsel %vm247, %v7444, %v7453
    %v7455 = vsel %vm249, %v7444, %v7454
    %v7456 = vsel %vm251, %v7444, %v7455
    %v7459 = vadd.f32 %v7430, %v7450
    %v7460 = vadd.f32 %v7435, %v7456
    %v7461 = vmul.f32 %v7459, 0.2
    %v7462 = vmul.f32 %v7460, 0.2
    %v7463 = vmax.f32 %v7459, %v7461
    %v7464 = vmax.f32 %v7460, %v7462
    %v7465 = vadd.f32 %v7463, %v104
    %v7466 = vadd.f32 %v7464, %v104
    %v7467 = vsel %vm269, %v7465, -inf
    %7468 = vmax.xlane.f32.xlu0 %v7467
    %v7469 = vpop.xlane.xlu0 %7468
    %v7470 = vsel %vm269, %v7466, -inf
    %7471 = vmax.xlane.f32.xlu0 %v7470
    %v7472 = vpop.xlane.xlu0 %7471
    %v7473 = vsub.f32 %v7465, %v7469
    %v7474 = vsub.f32 %v7466, %v7472
    %v7475 = vmul.f32 %v7473, 1.442695
    %v7476 = vpow.pop %v7475
    %v7477 = vmul.f32 %v7474, 1.442695
    %v7478 = vpow.pop %v7477
    %v7479 = vsel %vm269, %v7476, 0.0
    %7480 = vadd.xlane.f32.xlu0 %v7479
    %v7481 = vpop.xlane.xlu0 %7480
    %v7482 = vsel %vm269, %v7478, 0.0
    %7483 = vadd.xlane.f32.xlu0 %v7482
    %v7484 = vpop.xlane.xlu0 %7483
    %v7485 = vrcp.pop %v7481
    %v7486 = vmul.f32 %v7481, %v7485
    %v7487 = vsub.f32 1.0, %v7486
    %v7488 = vmul.f32 %v7485, %v7487
    %v7489 = vadd.f32 %v7485, %v7488
    %vm7490 = vweird.f32 %v7481
    %vm7491 = vweird.f32 %v7485
    %vm7492 = vmor %vm7490, %vm7491
    %v7493 = vsel %vm7492, %v7485, %v7489
    %v7494 = vand.u32 2147483647, %v7481
    %vm7495 = vcmp.eq.f32.partialorder %v7494, 8.507059e+37
    %v7496 = vand.u32 %v7481, 2147483648
    %v7497 = vor.u32 1.1754944e-38, %v7496
    %v7498 = vsel %vm7495, %v7497, %v7493
    %v7499 = vmul.f32 %v7476, %v7498
    %v7500 = vrcp.pop %v7484
    %v7501 = vmul.f32 %v7484, %v7500
    %v7502 = vsub.f32 1.0, %v7501
    %v7503 = vmul.f32 %v7500, %v7502
    %v7504 = vadd.f32 %v7500, %v7503
    %vm7505 = vweird.f32 %v7484
    %vm7506 = vweird.f32 %v7500
    %vm7507 = vmor %vm7505, %vm7506
    %v7508 = vsel %vm7507, %v7500, %v7504
    %v7509 = vand.u32 2147483647, %v7484
    %vm7510 = vcmp.eq.f32.partialorder %v7509, 8.507059e+37
    %v7511 = vand.u32 %v7484, 2147483648
    %v7512 = vor.u32 1.1754944e-38, %v7511
    %v7513 = vsel %vm7510, %v7512, %v7508
    %v7514 = vmul.f32 %v7478, %v7513
    %v7515 = vpack.c.bf16 %v7499, %v7499
    %v7516 = vpack.c.bf16 %v7514, %v7514
    %v7517 = vpack.c.bf16 %v7423, %v7423
    %v7518 = vpack.c.bf16 %v7425, %v7425
    %v7520 = vsel %vm269, %v7515, 0
    %v7523 = vsel %vm151, %v7517, 0
    %7525 = vmatpush.bf16.msra.mxu0 0
    %7526 = vmatpush.bf16.msra.mxu0 0
    %7527 = vmatpush.bf16.msra.mxu0 0
    %7528 = vmatpush.bf16.msra.mxu0 0
    %7529 = vmatpush.bf16.msra.mxu0 0
    %7530 = vmatpush.bf16.msra.mxu0 0
    %7531 = vmatpush.bf16.msra.mxu0 0
    %7532 = vmatpush.bf16.msra.mxu0 %v7523
    %7533 = vmatmul.bf16.gmra.mxu0 %v7520
    %v7534 = vpop.f32.mrf.mxu0
    %v7535 = vadd.f32 0.0, %v7534
    %v7536 = vpop.f32.mrf.mxu0
    %7537 = vdwg.mxu0
    %v7539 = vsel %vm269, %v7516, 0
    %v7542 = vsel %vm151, %v7518, 0
    %7544 = vmatpush.bf16.msra.mxu0 0
    %7545 = vmatpush.bf16.msra.mxu0 0
    %7546 = vmatpush.bf16.msra.mxu0 0
    %7547 = vmatpush.bf16.msra.mxu0 0
    %7548 = vmatpush.bf16.msra.mxu0 0
    %7549 = vmatpush.bf16.msra.mxu0 0
    %7550 = vmatpush.bf16.msra.mxu0 0
    %7551 = vmatpush.bf16.msra.mxu0 %v7542
    %7552 = vmatmul.bf16.gmra.mxu0 %v7539
    %v7553 = vpop.f32.mrf.mxu0
    %v7554 = vadd.f32 0.0, %v7553
    %v7555 = vpop.f32.mrf.mxu0
    %7556 = vdwg.mxu0
    %v7557 = vtanh.pop %v7535
    %v7558 = vtanh.pop %v7554
    %v7559 = vmul.f32 %v7557, 0.125
    %v7560 = vmul.f32 %v7558, 0.125
    %v7561 = vadd.f32 %v7253, %v7559
    %v7562 = vadd.f32 %v7254, %v7560
    %v7563 = vpack.c.bf16 %v7562, %v7561
    %v7565 = vsel %vm203, %v7563, 0
    %7567 = vmatpush.bf16.msra.mxu0 0
    %7568 = vmatpush.bf16.msra.mxu0 0
    %7569 = vmatpush.bf16.msra.mxu0 0
    %7570 = vmatpush.bf16.msra.mxu0 0
    %7571 = vmatpush.bf16.msra.mxu0 0
    %7572 = vmatpush.bf16.msra.mxu0 0
    %7573 = vmatpush.bf16.msra.mxu0 %v200
    %7574 = vmatpush.bf16.msra.mxu0 %v199
    %7575 = vmatmul.bf16.gmra.mxu0 %v7565
    %v7576 = vpop.f32.mrf.mxu0
    %v7577 = vadd.f32 0.0, %v7576
    %v7578 = vpop.f32.mrf.mxu0
    %v7579 = vadd.f32 0.0, %v7578
    %7580 = vdwg.mxu0
    %7582 = vset.pattern.permute.xlu0 32
    %7583 = vperm.xlu0 %7582, %v7577
    %v7584 = vpop.permute.xlu0 %7583
    %7587 = vset.pattern.permute.xlu0 32
    %7588 = vperm.xlu0 %7587, %v7579
    %v7589 = vpop.permute.xlu0 %7588
    %7591 = vset.pattern.permute.xlu0 33
    %7592 = vperm.xlu0 %7591, %v7577
    %v7593 = vpop.permute.xlu0 %7592
    %7594 = vset.pattern.permute.xlu0 33
    %7595 = vperm.xlu0 %7594, %v7579
    %v7596 = vpop.permute.xlu0 %7595
    %v7597 = vperm.slane %v7593, %v238
    %v7598 = vperm.slane %v7596, %v238
    %v7599 = vsel %vm241, %v7597, %v7597
    %v7600 = vsel %vm243, %v7597, %v7599
    %v7601 = vsel %vm245, %v7597, %v7600
    %v7602 = vsel %vm247, %v7597, %v7601
    %v7603 = vsel %vm249, %v7597, %v7602
    %v7604 = vsel %vm251, %v7597, %v7603
    %v7605 = vsel %vm241, %v7598, %v7598
    %v7606 = vsel %vm243, %v7598, %v7605
    %v7607 = vsel %vm245, %v7598, %v7606
    %v7608 = vsel %vm247, %v7598, %v7607
    %v7609 = vsel %vm249, %v7598, %v7608
    %v7610 = vsel %vm251, %v7598, %v7609
    %v7613 = vadd.f32 %v7584, %v7604
    %v7614 = vadd.f32 %v7589, %v7610
    %v7615 = vmul.f32 %v7613, 0.2
    %v7616 = vmul.f32 %v7614, 0.2
    %v7617 = vmax.f32 %v7613, %v7615
    %v7618 = vmax.f32 %v7614, %v7616
    %v7619 = vadd.f32 %v7617, %v104
    %v7620 = vadd.f32 %v7618, %v104
    %v7621 = vsel %vm269, %v7619, -inf
    %7622 = vmax.xlane.f32.xlu0 %v7621
    %v7623 = vpop.xlane.xlu0 %7622
    %v7624 = vsel %vm269, %v7620, -inf
    %7625 = vmax.xlane.f32.xlu0 %v7624
    %v7626 = vpop.xlane.xlu0 %7625
    %v7627 = vsub.f32 %v7619, %v7623
    %v7628 = vsub.f32 %v7620, %v7626
    %v7629 = vmul.f32 %v7627, 1.442695
    %v7630 = vpow.pop %v7629
    %v7631 = vmul.f32 %v7628, 1.442695
    %v7632 = vpow.pop %v7631
    %v7633 = vsel %vm269, %v7630, 0.0
    %7634 = vadd.xlane.f32.xlu0 %v7633
    %v7635 = vpop.xlane.xlu0 %7634
    %v7636 = vsel %vm269, %v7632, 0.0
    %7637 = vadd.xlane.f32.xlu0 %v7636
    %v7638 = vpop.xlane.xlu0 %7637
    %v7639 = vrcp.pop %v7635
    %v7640 = vmul.f32 %v7635, %v7639
    %v7641 = vsub.f32 1.0, %v7640
    %v7642 = vmul.f32 %v7639, %v7641
    %v7643 = vadd.f32 %v7639, %v7642
    %vm7644 = vweird.f32 %v7635
    %vm7645 = vweird.f32 %v7639
    %vm7646 = vmor %vm7644, %vm7645
    %v7647 = vsel %vm7646, %v7639, %v7643
    %v7648 = vand.u32 2147483647, %v7635
    %vm7649 = vcmp.eq.f32.partialorder %v7648, 8.507059e+37
    %v7650 = vand.u32 %v7635, 2147483648
    %v7651 = vor.u32 1.1754944e-38, %v7650
    %v7652 = vsel %vm7649, %v7651, %v7647
    %v7653 = vmul.f32 %v7630, %v7652
    %v7654 = vrcp.pop %v7638
    %v7655 = vmul.f32 %v7638, %v7654
    %v7656 = vsub.f32 1.0, %v7655
    %v7657 = vmul.f32 %v7654, %v7656
    %v7658 = vadd.f32 %v7654, %v7657
    %vm7659 = vweird.f32 %v7638
    %vm7660 = vweird.f32 %v7654
    %vm7661 = vmor %vm7659, %vm7660
    %v7662 = vsel %vm7661, %v7654, %v7658
    %v7663 = vand.u32 2147483647, %v7638
    %vm7664 = vcmp.eq.f32.partialorder %v7663, 8.507059e+37
    %v7665 = vand.u32 %v7638, 2147483648
    %v7666 = vor.u32 1.1754944e-38, %v7665
    %v7667 = vsel %vm7664, %v7666, %v7662
    %v7668 = vmul.f32 %v7632, %v7667
    %v7669 = vpack.c.bf16 %v7653, %v7653
    %v7670 = vpack.c.bf16 %v7668, %v7668
    %v7671 = vpack.c.bf16 %v7577, %v7577
    %v7672 = vpack.c.bf16 %v7579, %v7579
    %v7674 = vsel %vm269, %v7669, 0
    %v7677 = vsel %vm151, %v7671, 0
    %7679 = vmatpush.bf16.msra.mxu0 0
    %7680 = vmatpush.bf16.msra.mxu0 0
    %7681 = vmatpush.bf16.msra.mxu0 0
    %7682 = vmatpush.bf16.msra.mxu0 0
    %7683 = vmatpush.bf16.msra.mxu0 0
    %7684 = vmatpush.bf16.msra.mxu0 0
    %7685 = vmatpush.bf16.msra.mxu0 0
    %7686 = vmatpush.bf16.msra.mxu0 %v7677
    %7687 = vmatmul.bf16.gmra.mxu0 %v7674
    %v7688 = vpop.f32.mrf.mxu0
    %v7689 = vadd.f32 0.0, %v7688
    %v7690 = vpop.f32.mrf.mxu0
    %7691 = vdwg.mxu0
    %v7693 = vsel %vm269, %v7670, 0
    %v7696 = vsel %vm151, %v7672, 0
    %7698 = vmatpush.bf16.msra.mxu0 0
    %7699 = vmatpush.bf16.msra.mxu0 0
    %7700 = vmatpush.bf16.msra.mxu0 0
    %7701 = vmatpush.bf16.msra.mxu0 0
    %7702 = vmatpush.bf16.msra.mxu0 0
    %7703 = vmatpush.bf16.msra.mxu0 0
    %7704 = vmatpush.bf16.msra.mxu0 0
    %7705 = vmatpush.bf16.msra.mxu0 %v7696
    %7706 = vmatmul.bf16.gmra.mxu0 %v7693
    %v7707 = vpop.f32.mrf.mxu0
    %v7708 = vadd.f32 0.0, %v7707
    %v7709 = vpop.f32.mrf.mxu0
    %7710 = vdwg.mxu0
    %v7711 = vtanh.pop %v7689
    %v7712 = vtanh.pop %v7708
    %v7713 = vmul.f32 %v7711, 0.25
    %v7714 = vmul.f32 %v7712, 0.25
    %v7715 = vadd.f32 %v7253, %v7713
    %v7716 = vadd.f32 %v7254, %v7714
    %v7717 = vpack.c.bf16 %v7716, %v7715
    %v7719 = vsel %vm203, %v7717, 0
    %7721 = vmatpush.bf16.msra.mxu0 0
    %7722 = vmatpush.bf16.msra.mxu0 0
    %7723 = vmatpush.bf16.msra.mxu0 0
    %7724 = vmatpush.bf16.msra.mxu0 0
    %7725 = vmatpush.bf16.msra.mxu0 0
    %7726 = vmatpush.bf16.msra.mxu0 0
    %7727 = vmatpush.bf16.msra.mxu0 %v200
    %7728 = vmatpush.bf16.msra.mxu0 %v199
    %7729 = vmatmul.bf16.gmra.mxu0 %v7719
    %v7730 = vpop.f32.mrf.mxu0
    %v7731 = vadd.f32 0.0, %v7730
    %v7732 = vpop.f32.mrf.mxu0
    %v7733 = vadd.f32 0.0, %v7732
    %7734 = vdwg.mxu0
    %7736 = vset.pattern.permute.xlu0 32
    %7737 = vperm.xlu0 %7736, %v7731
    %v7738 = vpop.permute.xlu0 %7737
    %7741 = vset.pattern.permute.xlu0 32
    %7742 = vperm.xlu0 %7741, %v7733
    %v7743 = vpop.permute.xlu0 %7742
    %7745 = vset.pattern.permute.xlu0 33
    %7746 = vperm.xlu0 %7745, %v7731
    %v7747 = vpop.permute.xlu0 %7746
    %7748 = vset.pattern.permute.xlu0 33
    %7749 = vperm.xlu0 %7748, %v7733
    %v7750 = vpop.permute.xlu0 %7749
    %v7751 = vperm.slane %v7747, %v238
    %v7752 = vperm.slane %v7750, %v238
    %v7753 = vsel %vm241, %v7751, %v7751
    %v7754 = vsel %vm243, %v7751, %v7753
    %v7755 = vsel %vm245, %v7751, %v7754
    %v7756 = vsel %vm247, %v7751, %v7755
    %v7757 = vsel %vm249, %v7751, %v7756
    %v7758 = vsel %vm251, %v7751, %v7757
    %v7759 = vsel %vm241, %v7752, %v7752
    %v7760 = vsel %vm243, %v7752, %v7759
    %v7761 = vsel %vm245, %v7752, %v7760
    %v7762 = vsel %vm247, %v7752, %v7761
    %v7763 = vsel %vm249, %v7752, %v7762
    %v7764 = vsel %vm251, %v7752, %v7763
    %v7767 = vadd.f32 %v7738, %v7758
    %v7768 = vadd.f32 %v7743, %v7764
    %v7769 = vmul.f32 %v7767, 0.2
    %v7770 = vmul.f32 %v7768, 0.2
    %v7771 = vmax.f32 %v7767, %v7769
    %v7772 = vmax.f32 %v7768, %v7770
    %v7773 = vadd.f32 %v7771, %v104
    %v7774 = vadd.f32 %v7772, %v104
    %v7775 = vsel %vm269, %v7773, -inf
    %7776 = vmax.xlane.f32.xlu0 %v7775
    %v7777 = vpop.xlane.xlu0 %7776
    %v7778 = vsel %vm269, %v7774, -inf
    %7779 = vmax.xlane.f32.xlu0 %v7778
    %v7780 = vpop.xlane.xlu0 %7779
    %v7781 = vsub.f32 %v7773, %v7777
    %v7782 = vsub.f32 %v7774, %v7780
    %v7783 = vmul.f32 %v7781, 1.442695
    %v7784 = vpow.pop %v7783
    %v7785 = vmul.f32 %v7782, 1.442695
    %v7786 = vpow.pop %v7785
    %v7787 = vsel %vm269, %v7784, 0.0
    %7788 = vadd.xlane.f32.xlu0 %v7787
    %v7789 = vpop.xlane.xlu0 %7788
    %v7790 = vsel %vm269, %v7786, 0.0
    %7791 = vadd.xlane.f32.xlu0 %v7790
    %v7792 = vpop.xlane.xlu0 %7791
    %v7793 = vrcp.pop %v7789
    %v7794 = vmul.f32 %v7789, %v7793
    %v7795 = vsub.f32 1.0, %v7794
    %v7796 = vmul.f32 %v7793, %v7795
    %v7797 = vadd.f32 %v7793, %v7796
    %vm7798 = vweird.f32 %v7789
    %vm7799 = vweird.f32 %v7793
    %vm7800 = vmor %vm7798, %vm7799
    %v7801 = vsel %vm7800, %v7793, %v7797
    %v7802 = vand.u32 2147483647, %v7789
    %vm7803 = vcmp.eq.f32.partialorder %v7802, 8.507059e+37
    %v7804 = vand.u32 %v7789, 2147483648
    %v7805 = vor.u32 1.1754944e-38, %v7804
    %v7806 = vsel %vm7803, %v7805, %v7801
    %v7807 = vmul.f32 %v7784, %v7806
    %v7808 = vrcp.pop %v7792
    %v7809 = vmul.f32 %v7792, %v7808
    %v7810 = vsub.f32 1.0, %v7809
    %v7811 = vmul.f32 %v7808, %v7810
    %v7812 = vadd.f32 %v7808, %v7811
    %vm7813 = vweird.f32 %v7792
    %vm7814 = vweird.f32 %v7808
    %vm7815 = vmor %vm7813, %vm7814
    %v7816 = vsel %vm7815, %v7808, %v7812
    %v7817 = vand.u32 2147483647, %v7792
    %vm7818 = vcmp.eq.f32.partialorder %v7817, 8.507059e+37
    %v7819 = vand.u32 %v7792, 2147483648
    %v7820 = vor.u32 1.1754944e-38, %v7819
    %v7821 = vsel %vm7818, %v7820, %v7816
    %v7822 = vmul.f32 %v7786, %v7821
    %v7823 = vpack.c.bf16 %v7807, %v7807
    %v7824 = vpack.c.bf16 %v7822, %v7822
    %v7825 = vpack.c.bf16 %v7731, %v7731
    %v7826 = vpack.c.bf16 %v7733, %v7733
    %v7828 = vsel %vm269, %v7823, 0
    %v7831 = vsel %vm151, %v7825, 0
    %7833 = vmatpush.bf16.msra.mxu0 0
    %7834 = vmatpush.bf16.msra.mxu0 0
    %7835 = vmatpush.bf16.msra.mxu0 0
    %7836 = vmatpush.bf16.msra.mxu0 0
    %7837 = vmatpush.bf16.msra.mxu0 0
    %7838 = vmatpush.bf16.msra.mxu0 0
    %7839 = vmatpush.bf16.msra.mxu0 0
    %7840 = vmatpush.bf16.msra.mxu0 %v7831
    %7841 = vmatmul.bf16.gmra.mxu0 %v7828
    %v7842 = vpop.f32.mrf.mxu0
    %v7843 = vadd.f32 0.0, %v7842
    %v7844 = vpop.f32.mrf.mxu0
    %7845 = vdwg.mxu0
    %v7847 = vsel %vm269, %v7824, 0
    %v7850 = vsel %vm151, %v7826, 0
    %7852 = vmatpush.bf16.msra.mxu0 0
    %7853 = vmatpush.bf16.msra.mxu0 0
    %7854 = vmatpush.bf16.msra.mxu0 0
    %7855 = vmatpush.bf16.msra.mxu0 0
    %7856 = vmatpush.bf16.msra.mxu0 0
    %7857 = vmatpush.bf16.msra.mxu0 0
    %7858 = vmatpush.bf16.msra.mxu0 0
    %7859 = vmatpush.bf16.msra.mxu0 %v7850
    %7860 = vmatmul.bf16.gmra.mxu0 %v7847
    %v7861 = vpop.f32.mrf.mxu0
    %v7862 = vadd.f32 0.0, %v7861
    %v7863 = vpop.f32.mrf.mxu0
    %7864 = vdwg.mxu0
    %v7865 = vtanh.pop %v7843
    %v7866 = vtanh.pop %v7862
    %v7867 = vmul.f32 %v7557, 2.0
    %v7868 = vmul.f32 %v7558, 2.0
    %v7869 = vadd.f32 %v7403, %v7867
    %v7870 = vadd.f32 %v7404, %v7868
    %v7871 = vmul.f32 %v7711, 2.0
    %v7872 = vmul.f32 %v7712, 2.0
    %v7873 = vadd.f32 %v7869, %v7871
    %v7874 = vadd.f32 %v7870, %v7872
    %v7875 = vadd.f32 %v7873, %v7865
    %v7876 = vadd.f32 %v7874, %v7866
    %v7877 = vmul.f32 %v7875, 0.041666668
    %v7878 = vmul.f32 %v7876, 0.041666668
    %v7879 = vadd.f32 %v7253, %v7877
    %v7880 = vadd.f32 %v7254, %v7878
    %v7882 = vsel %vm203, %v185, 0
    %v7885 = vsel %vm203, %v188, 0
    %7887 = vmatpush.msra.mxu0 0.0
    %7888 = vmatpush.msra.mxu0 0.0
    %7889 = vmatpush.msra.mxu0 0.0
    %7890 = vmatpush.msra.mxu0 0.0
    %7891 = vmatpush.msra.mxu0 0.0
    %7892 = vmatpush.msra.mxu0 0.0
    %7893 = vmatpush.msra.mxu0 0.0
    %7894 = vmatpush.msra.mxu0 0.0
    %7895 = vmatpush.msra.mxu0 0.0
    %7896 = vmatpush.msra.mxu0 0.0
    %7897 = vmatpush.msra.mxu0 0.0
    %7898 = vmatpush.msra.mxu0 0.0
    %7899 = vmatpush.msra.mxu0 %v116
    %7900 = vmatpush.msra.mxu0 %v115
    %7901 = vmatpush.msra.mxu0 %v114
    %7902 = vmatpush.msra.mxu0 %v113
    %7903 = vmatmul.f32.gmra.mxu0 %v7882
    %v7904 = vpop.f32.mrf.mxu0
    %v7905 = vadd.f32 0.0, %v7904
    %7906 = vmatmul.f32.gmra.mxu0 %v7885
    %v7907 = vpop.f32.mrf.mxu0
    %v7908 = vadd.f32 0.0, %v7907
    %7909 = vdwg.mxu0
    %v7911 = vsel %vm203, %v7879, 0
    %v7914 = vsel %vm203, %v7880, 0
    %7916 = vmatpush.msra.mxu0 0.0
    %7917 = vmatpush.msra.mxu0 0.0
    %7918 = vmatpush.msra.mxu0 0.0
    %7919 = vmatpush.msra.mxu0 0.0
    %7920 = vmatpush.msra.mxu0 0.0
    %7921 = vmatpush.msra.mxu0 0.0
    %7922 = vmatpush.msra.mxu0 0.0
    %7923 = vmatpush.msra.mxu0 0.0
    %7924 = vmatpush.msra.mxu0 0.0
    %7925 = vmatpush.msra.mxu0 0.0
    %7926 = vmatpush.msra.mxu0 0.0
    %7927 = vmatpush.msra.mxu0 0.0
    %7928 = vmatpush.msra.mxu0 %v112
    %7929 = vmatpush.msra.mxu0 %v111
    %7930 = vmatpush.msra.mxu0 %v110
    %7931 = vmatpush.msra.mxu0 %v109
    %7932 = vmatmul.f32.gmra.mxu0 %v7911
    %v7933 = vpop.f32.mrf.mxu0
    %v7934 = vadd.f32 %v7905, %v7933
    %7935 = vmatmul.f32.gmra.mxu0 %v7914
    %v7936 = vpop.f32.mrf.mxu0
    %v7937 = vadd.f32 %v7908, %v7936
    %7938 = vdwg.mxu0
    %v7939 = vadd.f32 %v7934, %v119
    %v7940 = vadd.f32 %v7937, %v119
    %v7941 = vtanh.pop %v7939
    %v7942 = vtanh.pop %v7940
    %v7943 = vsel %vm203, %v7941, 0.0
    %7944 = vadd.xlane.f32.xlu0 %v7943
    %v7945 = vpop.xlane.xlu0 %7944
    %v7946 = vsel %vm203, %v7942, 0.0
    %7947 = vadd.xlane.f32.xlu0 %v7946
    %v7948 = vpop.xlane.xlu0 %7947
    %v7949 = vmul.f32 %v7945, %v2728
    %v7950 = vmul.f32 %v7948, %v2728
    %v7951 = vsub.f32 %v7941, %v7949
    %v7952 = vsub.f32 %v7942, %v7950
    %v7953 = vmul.f32 %v7951, %v7951
    %v7954 = vmul.f32 %v7952, %v7952
    %v7955 = vsel %vm203, %v7953, 0.0
    %7956 = vadd.xlane.f32.xlu0 %v7955
    %v7957 = vpop.xlane.xlu0 %7956
    %v7958 = vsel %vm203, %v7954, 0.0
    %7959 = vadd.xlane.f32.xlu0 %v7958
    %v7960 = vpop.xlane.xlu0 %7959
    %v7961 = vmul.f32 %v7957, %v2728
    %v7962 = vmul.f32 %v7960, %v2728
    %v7963 = vadd.f32 %v7961, 1e-05
    %v7964 = vadd.f32 %v7962, 1e-05
    %v7965 = vrsqrt.pop %v7963
    %v7966 = vmul.f32 %v7965, %v7963
    %v7967 = vmul.f32 %v7966, %v7965
    %v7968 = vmul.f32 0.5, %v7967
    %v7969 = vsub.f32 1.5, %v7968
    %v7970 = vmul.f32 %v7965, %v7969
    %vm7971 = vweird.f32 %v7963
    %vm7972 = vweird.f32 %v7965
    %vm7973 = vmor %vm7971, %vm7972
    %v7974 = vsel %vm7973, %v7965, %v7970
    %v7975 = vrsqrt.pop %v7964
    %v7976 = vmul.f32 %v7975, %v7964
    %v7977 = vmul.f32 %v7976, %v7975
    %v7978 = vmul.f32 0.5, %v7977
    %v7979 = vsub.f32 1.5, %v7978
    %v7980 = vmul.f32 %v7975, %v7979
    %vm7981 = vweird.f32 %v7964
    %vm7982 = vweird.f32 %v7975
    %vm7983 = vmor %vm7981, %vm7982
    %v7984 = vsel %vm7983, %v7975, %v7980
    %v7985 = vmul.f32 %v7951, %v7974
    %v7986 = vmul.f32 %v7952, %v7984
    %v7987 = vld [vmem:[#allocation7] sm:$0xff]
    %v7988 = vld [vmem:[#allocation7 + $0x8] sm:$0xff]
    %v7989 = vld [vmem:[#allocation7 + $0x10] sm:$0xff]
    %v7990 = vld [vmem:[#allocation7 + $0x18] sm:$0xff]
    %v7991 = vld [vmem:[%s9] sm:$0x1]
    %v7993 = vperm.slane %v7991, 0
    %v7996 = vsel %vm203, %v7985, 0
    %v7999 = vsel %vm203, %v7986, 0
    %8001 = vmatpush.msra.mxu0 0.0
    %8002 = vmatpush.msra.mxu0 0.0
    %8003 = vmatpush.msra.mxu0 0.0
    %8004 = vmatpush.msra.mxu0 0.0
    %8005 = vmatpush.msra.mxu0 0.0
    %8006 = vmatpush.msra.mxu0 0.0
    %8007 = vmatpush.msra.mxu0 0.0
    %8008 = vmatpush.msra.mxu0 0.0
    %8009 = vmatpush.msra.mxu0 0.0
    %8010 = vmatpush.msra.mxu0 0.0
    %8011 = vmatpush.msra.mxu0 0.0
    %8012 = vmatpush.msra.mxu0 0.0
    %8013 = vmatpush.msra.mxu0 %v7990
    %8014 = vmatpush.msra.mxu0 %v7989
    %8015 = vmatpush.msra.mxu0 %v7988
    %8016 = vmatpush.msra.mxu0 %v7987
    %8017 = vmatmul.f32.gmra.mxu0 %v7996
    %v8018 = vpop.f32.mrf.mxu0
    %v8019 = vadd.f32 %v7993, %v8018
    %8020 = vmatmul.f32.gmra.mxu0 %v7999
    %v8021 = vpop.f32.mrf.mxu0
    %v8022 = vadd.f32 %v7993, %v8021
    %8023 = vdwg.mxu0
    %v8024 = vtanh.pop %v8019
    %v8025 = vtanh.pop %v8022
    %v8026 = vld [vmem:[#allocation8] sm:$0xff]
    %v8027 = vld [vmem:[#allocation8 + $0x8] sm:$0xff]
    %v8028 = vld [vmem:[#allocation8 + $0x10] sm:$0xff]
    %v8029 = vld [vmem:[#allocation8 + $0x18] sm:$0xff]
    %v8030 = vld [vmem:[%s11] sm:$0x1]
    %v8032 = vperm.slane %v8030, 0
    %v8035 = vsel %vm203, %v8024, 0
    %v8038 = vsel %vm203, %v8025, 0
    %8040 = vmatpush.msra.mxu0 0.0
    %8041 = vmatpush.msra.mxu0 0.0
    %8042 = vmatpush.msra.mxu0 0.0
    %8043 = vmatpush.msra.mxu0 0.0
    %8044 = vmatpush.msra.mxu0 0.0
    %8045 = vmatpush.msra.mxu0 0.0
    %8046 = vmatpush.msra.mxu0 0.0
    %8047 = vmatpush.msra.mxu0 0.0
    %8048 = vmatpush.msra.mxu0 0.0
    %8049 = vmatpush.msra.mxu0 0.0
    %8050 = vmatpush.msra.mxu0 0.0
    %8051 = vmatpush.msra.mxu0 0.0
    %8052 = vmatpush.msra.mxu0 %v8029
    %8053 = vmatpush.msra.mxu0 %v8028
    %8054 = vmatpush.msra.mxu0 %v8027
    %8055 = vmatpush.msra.mxu0 %v8026
    %8056 = vmatmul.f32.gmra.mxu0 %v8035
    %v8057 = vpop.f32.mrf.mxu0
    %v8058 = vadd.f32 %v8032, %v8057
    %8059 = vmatmul.f32.gmra.mxu0 %v8038
    %v8060 = vpop.f32.mrf.mxu0
    %v8061 = vadd.f32 %v8032, %v8060
    %8062 = vdwg.mxu0
    %8063 = vst.msk [vmem:[#allocation10] sm:$0xff] %vm203, %v8058
    %8064 = vst.msk [vmem:[#allocation10 + $0x8] sm:$0xff] %vm203, %v8061
    // Predicated region
    $region66: #{tpu_custom_call.1} parent=1 // pred_check
      _
    $region67: #{tpu_custom_call.1} parent=1 // pred_check_branch
      %8066 = sbr.rel (0) target = $region69
    $region68: #{tpu_custom_call.1} parent=1 // pred_region
      %8068 = vsyncadd [#allocation4], 0
      %s8069 = sshll.u32 [#allocation10], 4
      %s8070 = int_to_ptr.vmem [resolvable:$true] %s8069
      %s8071 = sshll.u32 %s12, 4
      %s8072 = int_to_ptr.hbm [resolvable:$true] %s8071
      %8077 = dma.vmem_to_hbm [thread:$0]  %s8070, 256, %s8072, [#allocation4], 128, 128, 8
    $region69: #{tpu_custom_call.1} parent=1 // pred_fallthru
      _
    // Predicated region
    $region70: #{tpu_custom_call.1} parent=1 // pred_check
      _
    $region71: #{tpu_custom_call.1} parent=1 // pred_check_branch
      %8079 = sbr.rel (0) target = $region73
    $region72: #{tpu_custom_call.1} parent=1 // pred_region
      %8081 = dma.done [#allocation4], 256
    $region73: #{tpu_custom_call.1} parent=1 // pred_fallthru
      _
    %8082 = vsyncpa [#allocation3], 1
    %8083 = vsyncpa [#allocation6], 1
    %8084 = vsyncpa [#allocation9], 1
    %8085 = vsyncpa [#allocation4], 1

</llo_original>
